<compile_context>
chip_gen: v7x
topology: tpu7x:2x2x1
jax: 0.10.0
libtpu: 0.0.40
codegen_flags: <defaults>
</compile_context>

<pallas_src>
import functools
import random

import jax
import jax.numpy as jnp
from jax.experimental import pallas as pl
from jax.experimental.pallas import tpu as pltpu

# ----------------------------------------------------------------------------
# body-part / bone tables (copied verbatim from the PyTorch file)
# ----------------------------------------------------------------------------
left_hand = [i - 1 for i in [9, 10, 11, 12, 24, 25]]
left_leg = [i - 1 for i in [17, 18, 19, 20]]
right_hand = [i - 1 for i in [5, 6, 7, 8, 22, 23]]
right_leg = [i - 1 for i in [13, 14, 15, 16]]
trunk = [i - 1 for i in [4, 3, 21, 2, 1]]
body_parts = [trunk, left_hand, right_hand, left_leg, right_leg]

BONE = [(21, 21), (2, 21), (3, 21), (9, 21), (5, 21), (1, 2), (4, 3), (6, 5),
        (7, 6), (8, 7), (10, 9), (11, 10), (12, 11), (13, 1), (14, 13),
        (15, 14), (16, 15), (17, 1), (18, 17), (19, 18), (20, 19), (23, 8),
        (22, 23), (25, 12), (24, 25)]

_PARENT = list(range(25))
for _v1, _v2 in BONE:
    _PARENT[_v1 - 1] = _v2 - 1
PARENT = tuple(_PARENT)

# ----------------------------------------------------------------------------
# sizes (small, forward-implied shapes)
# ----------------------------------------------------------------------------
N, C, T, V, M = 4, 3, 32, 25, 2
FEATURE_DIM = 32
QUEUE_SIZE = 1024
TOPK = 256
DIM_MLP = 32


# ----------------------------------------------------------------------------
# Pallas kernel 1: fused encoder stub (conv1x1 + ReLU + pooling + MLP head)
#   grid = (B,)  — one sample per step, both persons handled in a static loop.
#   layout: x block is (1, M, C, T*V) so the long T*V axis is lane-dense.
# ----------------------------------------------------------------------------
def _encoder_kernel(x_ref, wct_ref, bc_ref, w1_ref, b1_ref, w2t_ref, b2_ref,
                    f_ref, fs_ref, attn_ref, *, n_person, n_chan, tv):
    wct = wct_ref[...]                      # (H, C)   Wc transposed
    bc = bc_ref[...]                        # (H, 1)
    sum_acc = None
    max_acc = None
    for mm in range(n_person):
        xm = x_ref[0, mm]                   # (C, TV)  lane-dense
        # K=3 contraction as VPU broadcast-FMAs (skip the MXU for tiny K).
        acc = wct[:, 0:1] * xm[0:1, :]
        for cc in range(1, n_chan):
            acc = acc + wct[:, cc:cc + 1] * xm[cc:cc + 1, :]
        h = jnp.maximum(acc + bc, 0.0)                                  # (H, TV)
        # attention map: sigmoid of the per-location channel mean
        z = jnp.mean(h, axis=0, keepdims=True)                          # (1, TV)
        attn_ref[0, mm:mm + 1, :] = 1.0 / (1.0 + jnp.exp(-z))
        s = jnp.sum(h, axis=1, keepdims=True)                           # (H, 1)
        mx = jnp.max(h, axis=1, keepdims=True)                          # (H, 1)
        sum_acc = s if sum_acc is None else sum_acc + s
        max_acc = mx if max_acc is None else max_acc + mx
    feat_avg = sum_acc * (1.0 / float(n_person * tv))                   # (H, 1)
    feat_max = max_acc * (1.0 / float(n_person))                        # (H, 1)

    def head(feat_col):                     # (H, 1) -> (F, 1), all VPU/XLU work
        t1 = jnp.sum(w1_ref[...] * feat_col, axis=0, keepdims=True)     # (1, H)
        hid = jnp.maximum(t1 + b1_ref[...], 0.0)                        # (1, H)
        t2 = jnp.sum(w2t_ref[...] * hid, axis=1, keepdims=True)         # (F, 1)
        return t2 + b2_ref[...]

    f_ref[0] = head(feat_avg)
    fs_ref[0] = head(feat_max)


def encoder_batched(params, x5):
    """Fused, batched encoder stub.  x5: (B, C, T, V, M).

    Returns f (B, F), fs (B, F), attn (B*M, T, V).
    """
    b, c, t, v, m = x5.shape
    tv = t * v
    h_dim = params["W1"].shape[0]
    f_dim = params["W2"].shape[1]

    x = jnp.transpose(x5, (0, 4, 1, 2, 3)).reshape(b, m, c, tv).astype(jnp.float32)
    wct = jnp.transpose(params["Wc"]).astype(jnp.float32)            # (H, C)
    bc = params["bc"].reshape(h_dim, 1).astype(jnp.float32)          # (H, 1)
    w1 = params["W1"].astype(jnp.float32)                            # (H, H) (in,out)
    b1 = params["b1"].reshape(1, h_dim).astype(jnp.float32)          # (1, H)
    w2t = jnp.transpose(params["W2"]).astype(jnp.float32)            # (F, H)
    b2 = params["b2"].reshape(f_dim, 1).astype(jnp.float32)          # (F, 1)

    f_out, fs_out, attn_out = pl.pallas_call(
        functools.partial(_encoder_kernel, n_person=m, n_chan=c, tv=tv),
        out_shape=(jax.ShapeDtypeStruct((b, f_dim, 1), jnp.float32),
                   jax.ShapeDtypeStruct((b, f_dim, 1), jnp.float32),
                   jax.ShapeDtypeStruct((b, m, tv), jnp.float32)),
        grid=(b,),
        in_specs=[
            pl.BlockSpec((1, m, c, tv), lambda i: (i, 0, 0, 0)),
            pl.BlockSpec((h_dim, c), lambda i: (0, 0)),    # weights: constant block,
            pl.BlockSpec((h_dim, 1), lambda i: (0, 0)),    # stay resident in VMEM
            pl.BlockSpec((h_dim, h_dim), lambda i: (0, 0)),
            pl.BlockSpec((1, h_dim), lambda i: (0, 0)),
            pl.BlockSpec((f_dim, h_dim), lambda i: (0, 0)),
            pl.BlockSpec((f_dim, 1), lambda i: (0, 0)),
        ],
        out_specs=(
            pl.BlockSpec((1, f_dim, 1), lambda i: (i, 0, 0)),
            pl.BlockSpec((1, f_dim, 1), lambda i: (i, 0, 0)),
            pl.BlockSpec((1, m, tv), lambda i: (i, 0, 0)),
        ),
        compiler_params=pltpu.CompilerParams(
            dimension_semantics=("parallel",)),           # v7x: shard batch over 2 TCs
    )(x, wct, bc, w1, b1, w2t, b2)

    f = f_out[:, :, 0]
    fs = fs_out[:, :, 0]
    attn = attn_out.reshape(b * m, t, v)
    return f, fs, attn


# ----------------------------------------------------------------------------
# Pallas kernel 2: batched queue matmul (l2norm + optional square fused)
# ----------------------------------------------------------------------------
def _queue_scores_kernel(x_ref, q_ref, flag_ref, o_ref):
    x = x_ref[...]                                                   # (R, D) f32
    ss = jnp.sum(x * x, axis=1, keepdims=True)
    # F.normalize(dim=1): x / max(||x||, 1e-12)  == x * rsqrt(max(||x||^2, 1e-24))
    xn = x * jax.lax.rsqrt(jnp.maximum(ss, 1e-24))
    y = jnp.dot(xn.astype(jnp.bfloat16), q_ref[...],
                preferred_element_type=jnp.float32)                  # (R, K) f32 acc
    flag = flag_ref[...] > 0.5                                       # (R, 1) bool
    o_ref[...] = jnp.where(flag, y * y, y)


def pallas_queue_scores(feats, queue, flags):
    r, _ = feats.shape
    k = queue.shape[1]
    # TODO(synk): for production queue sizes (32k+) tile the K axis with a grid
    # and set vmem_limit_bytes; at K=1024 a single lane-dense block suffices.
    return pl.pallas_call(
        _queue_scores_kernel,
        out_shape=jax.ShapeDtypeStruct((r, k), jnp.float32),
    )(feats.astype(jnp.float32), queue.astype(jnp.bfloat16),
      flags.astype(jnp.float32))


# ----------------------------------------------------------------------------
# Pallas kernel 3: batched KLD over the three (inputs, targets) pairs
#   kld(i, t) = KL( softmax(t/0.04) || softmax(i/0.1) ), reduction='batchmean'
# ----------------------------------------------------------------------------
def _kld3_kernel(q_ref, k_ref, o_ref, *, inv_batch):
    lq = q_ref[...] * (1.0 / 0.1)
    lk = k_ref[...] * (1.0 / 0.04)
    lq = lq - jnp.max(lq, axis=1, keepdims=True)
    log_p = lq - jnp.log(jnp.sum(jnp.exp(lq), axis=1, keepdims=True))
    lk = lk - jnp.max(lk, axis=1, keepdims=True)
    lse_k = jnp.log(jnp.sum(jnp.exp(lk), axis=1, keepdims=True))
    tgt = jnp.exp(lk - lse_k)
    per = tgt * ((lk - lse_k) - log_p)
    row = jnp.sum(per, axis=1, keepdims=True)                        # (3N, 1)
    o_ref[...] = jnp.sum(row, axis=0, keepdims=True) * inv_batch     # (1, 1)


def pallas_kld3(q_stack, k_stack, batch_n):
    out = pl.pallas_call(
        functools.partial(_kld3_kernel, inv_batch=1.0 / float(batch_n)),
        out_shape=jax.ShapeDtypeStruct((1, 1), jnp.float32),
    )(q_stack.astype(jnp.float32), k_stack.astype(jnp.float32))
    return out[0, 0]


# ----------------------------------------------------------------------------
# JAX glue: augmentations, shuffle, top-k, mask pooling (left to XLA fusion)
# ----------------------------------------------------------------------------
def bilinear_align_corners(x, out_h, out_w):
    # x: [B, C, H, W]; mimics F.interpolate(mode='bilinear', align_corners=True)
    b, c, h, w = x.shape
    ry = jnp.linspace(0.0, h - 1.0, out_h) if h > 1 else jnp.zeros((out_h,))
    rx = jnp.linspace(0.0, w - 1.0, out_w) if w > 1 else jnp.zeros((out_w,))
    y0 = jnp.floor(ry).astype(jnp.int32)
    x0 = jnp.floor(rx).astype(jnp.int32)
    y1 = jnp.minimum(y0 + 1, h - 1)
    x1 = jnp.minimum(x0 + 1, w - 1)
    wy = (ry - y0)[None, None, :, None]
    wx = (rx - x0)[None, None, None, :]
    g = lambda yi, xi: x[:, :, yi[:, None], xi[None, :]]
    top = g(y0, x0) * (1 - wx) + g(y0, x1) * wx
    bot = g(y1, x0) * (1 - wx) + g(y1, x1) * wx
    return top * (1 - wy) + bot * wy


def actionlet_swap(x, y, mask):
    # Elementwise blend — plain jnp so XLA fuses it with the neighboring transposes.
    n, c, t, v, m = x.shape
    mfull = bilinear_align_corners(mask, t, v)                       # (N*M, 1, T, V)
    x2 = jnp.transpose(x, (0, 4, 1, 2, 3)).reshape(n * m, c, t, v)
    y2 = jnp.transpose(y, (0, 4, 1, 2, 3)).reshape(n * m, c, t, v)
    z = x2 * mfull + y2 * (1.0 - mfull)
    z = z.reshape(n, m, c, t, v)
    return jnp.transpose(z, (0, 2, 3, 4, 1))


def ske_trans(x, step):  # mode == 'joint', vectorized bone math
    n = x.shape[0]
    ridx = (jnp.arange(n) + step) % n
    parent = jnp.array(PARENT)
    xst = x - x[:, :, :, parent, :]                                  # bone vectors
    num = jnp.sqrt((xst[ridx] ** 2).sum(axis=1, keepdims=True) + 1e-5)
    den = jnp.sqrt((xst ** 2).sum(axis=1, keepdims=True) + 1e-5)
    delta = xst * (num / den)
    xo = x
    for v1, v2 in BONE:  # sequential root-to-leaf re-assembly (static indices)
        xo = xo.at[:, :, :, v1 - 1, :].set(xo[:, :, :, v2 - 1, :]
                                           + delta[:, :, :, v1 - 1, :])
    return xo


def ske_swap_static(x, cfg):
    """ske_swap with the Python-random choices baked in at trace time."""
    n, c, t, v, m = x.shape
    tdr = 4
    ridx = (jnp.arange(n) + cfg["step"]) % n
    spa = list(cfg["spa_idx"])
    ct = cfg["ct"]
    tem_idx = cfg["tem_idx"]
    rt = ct * tdr
    sl = tem_idx * tdr
    tds = (t + tdr - 1) // tdr
    if cfg["branch"] == 0:                    # p > 0.5
        xst = x.at[:, :, sl:sl + rt, spa, :].set(x[ridx][:, :, sl:sl + rt, spa, :])
        mask = jnp.zeros((tds, v)).at[tem_idx:tem_idx + ct, spa].set(1.0)
    elif cfg["branch"] == 1:                  # 0.25 < p <= 0.5
        xt = x[:, :, :2 * rt]
        length = xt.shape[2]
        xt = jnp.transpose(xt, (0, 4, 3, 1, 2)).reshape(n * m, v * c, length)
        src = (jnp.arange(rt) * length) // rt                        # nearest resize
        xt = xt[:, :, src]
        xt = xt.reshape(n, m, v, c, rt)
        xt = jnp.transpose(xt, (0, 3, 4, 2, 1))                      # (N, C, rt, V, M)
        xst = x.at[:, :, sl:sl + rt, spa, :].set(xt[ridx][:, :, :, spa, :])
        mask_c = jnp.zeros((tds, v)).at[tem_idx:tem_idx + ct, spa].set(1.0)
        mask_p = jnp.zeros((tds, v)).at[:, spa].set(1.0)
        mask = (mask_p, mask_c)
    else:                                     # p <= 0.25
        lamb = cfg["lamb"]
        xst = x * (1.0 - lamb) + x[ridx] * lamb
        mask = jnp.zeros((tds, v)) + lamb
    return ridx, xst, mask


def mask_pool(x, mask, randidx):
    # x: (N, M, C', T/4, V); eps placement matches the original module.
    if isinstance(mask, tuple):
        mask_p, mask_c = mask
        p = (x[randidx] * mask_p).sum(-1).sum(-1) / (x[randidx] + 1e-5).sum(-1).sum(-1)
        p = p.mean(-1).mean(-1)
        cc = (x * (1 - mask_c)).sum(-1).sum(-1) / (x.sum(-1).sum(-1) + 1e-5)
        cc = cc.mean(-1).mean(-1)
    else:
        p = (x[randidx] * mask).sum(-1).sum(-1) / (x[randidx] + 1e-5).sum(-1).sum(-1)
        p = p.mean(-1).mean(-1)
        cc = (x * (1 - mask)).sum(-1).sum(-1) / (x.sum(-1).sum(-1) + 1e-5)
        cc = cc.mean(-1).mean(-1)
    s = p + cc
    return p / s, cc / s


def select_topk(q, k, topk):
    # TODO(synk): top-k / gather has no clean Pallas TPU equivalent; done in JAX.
    k = jnp.where(k > 0.95, -1.0, k)
    k_topk, idx = jax.lax.top_k(k, topk)
    q_topk = jnp.take_along_axis(q, idx, axis=-1)
    return q_topk, k_topk


# ----------------------------------------------------------------------------
# trace-time randomness (Python `random`, drawn once; the original module
# re-draws per forward — baking them in keeps the whole forward jit-able)
# ----------------------------------------------------------------------------
def _draw_swap_cfg(n, t, epoch):
    if epoch is None or epoch < 200:
        spa_l, spa_u, tem_l, tem_u = 2, 3, 3, 5
    else:
        spa_l, spa_u, tem_l, tem_u = 1, 2, 1, 3
    step = random.randint(1, n - 2)
    cs = random.randint(spa_l, spa_u)
    parts_idx = random.sample(body_parts, cs)
    spa_idx = sorted(sum(parts_idx, []))
    ct = random.randint(tem_l, tem_u)
    tem_idx = random.randint(0, t // 4 - ct)
    p = random.random()
    branch = 0 if p > 0.5 else (1 if p > 0.25 else 2)
    lamb = random.random() if branch == 2 else 0.0
    return dict(step=step, spa_idx=tuple(spa_idx), ct=ct, tem_idx=tem_idx,
                branch=branch, lamb=lamb)


def make_aug_config(n, t, epoch=None):
    random.seed(0)
    return dict(trans_step=random.randint(1, n - 2),
                swap1=_draw_swap_cfg(n, t, epoch),
                swap2=_draw_swap_cfg(n, t, None))


# ----------------------------------------------------------------------------
# Full forward (pretrain path), jitted
# ----------------------------------------------------------------------------
def build_forward(aug_cfg, topk=TOPK, momentum=0.999):
    @jax.jit
    def forward(params_q, params_k, queue, im_q_extreme, im_q, im_p, im_k):
        n, c, t, v, m = im_q.shape

        # momentum update of the key encoder
        params_k_new = {kk: momentum * params_k[kk] + (1.0 - momentum) * params_q[kk]
                        for kk in params_k}

        # TODO(synk): torch.distributed all_gather/broadcast is identity on 1 device.
        perm = jax.random.permutation(jax.random.PRNGKey(1), n)
        unperm = jnp.argsort(perm)
        im_k_sh = im_k[perm]
        im_k_mean = im_k_sh.mean(axis=0, keepdims=True)

        # ---- key encoder: ONE fused pallas call over [mean sample; batch] ----
        xk = jnp.concatenate([im_k_mean, im_k_sh], axis=0)
        fk, fsk, _ = encoder_batched(params_k_new, xk)
        # fk[0] is k_mean_feat (mean skeleton); unused by the stub head.
        kf = 0.5 * fk[1:] + 0.5 * fsk[1:]
        kf = kf[unperm]
        kf = kf / jnp.maximum(jnp.linalg.norm(kf, axis=1, keepdims=True), 1e-12)

        # ---- query encoder attention pass: ONE fused call over [im_q; im_p] ----
        xa = jnp.concatenate([im_q, im_p], axis=0)
        _, _, attn = encoder_batched(params_q, xa)               # (2N*M, T, V)

        def pool_attn(a):
            return a.reshape(a.shape[0], t // 4, 4, v).mean(axis=2)[:, None]

        qm = pool_attn(attn[:n * m])                             # (N*M, 1, T/4, V)
        pm = pool_attn(attn[n * m:])

        # ---- skeleton augmentations (jnp; fused by XLA) ----
        z_q = actionlet_swap(im_q, im_q_extreme, qm)
        im_pt = ske_trans(im_p, aug_cfg["trans_step"])
        _, im_ps, _ = ske_swap_static(im_pt, aug_cfg["swap1"])
        z_qt = actionlet_swap(im_pt, im_ps, pm)
        randidx2, im_pc, mask2 = ske_swap_static(im_p, aug_cfg["swap2"])

        # ---- query encoder feature pass: ONE fused call over 3 query views ----
        xf = jnp.concatenate([z_q, z_qt, im_pc], axis=0)
        ff, _, _ = encoder_batched(params_q, xf)
        q_un, qt_un, pc_un = ff[:n], ff[n:2 * n], ff[2 * n:]

        # ---- actionlet-aware key mixing ----
        pm5 = pm.reshape(n, m, -1, (t + 3) // 4, v)
        p_w, c_w = mask_pool(jnp.exp(pm5 / 0.1), mask2, randidx2)
        kc_un = kf * c_w[:, None] + kf[randidx2] * p_w[:, None]

        # ---- ONE batched queue matmul (l2norm + optional square fused) ----
        feats = jnp.concatenate([q_un, qt_un, pc_un, kf, kc_un], axis=0)  # (5N, D)
        flags = jnp.concatenate([jnp.ones((3 * n, 1), jnp.float32),
                                 jnp.zeros((2 * n, 1), jnp.float32)], axis=0)
        sims = pallas_queue_scores(feats, queue, flags)                   # (5N, K)
        qn, qtn, pcn, kn, kcn = jnp.split(sims, 5, axis=0)

        qn_topk, kn_topk = select_topk(qn, kn, topk)
        qtn_topk, _ = select_topk(qtn, kn, topk)
        pcn_topk, kcn_topk = select_topk(pcn, kcn, topk)

        # dequeue & enqueue (queue_ptr stub at 0)
        new_queue = jax.lax.dynamic_update_slice(queue, kf.T, (0, 0))

        # ---- ONE batched KLD over the three (q, k) pairs ----
        q_stack = jnp.concatenate([qn_topk, qtn_topk, pcn_topk], axis=0)
        k_stack = jnp.concatenate([kn_topk, kn_topk, kcn_topk], axis=0)
        global_loss = pallas_kld3(q_stack, k_stack, n)
        return global_loss, new_queue

    return forward


# ----------------------------------------------------------------------------
# main
# ----------------------------------------------------------------------------
if __name__ == "__main__":
    key = jax.random.PRNGKey(0)
    ks_ = jax.random.split(key, 12)

    im_q_extreme = jax.random.normal(ks_[0], (N, C, T, V, M), jnp.float32)
    im_q = jax.random.normal(ks_[1], (N, C, T, V, M), jnp.float32)
    im_p = jax.random.normal(ks_[2], (N, C, T, V, M), jnp.float32)
    im_k = jax.random.normal(ks_[3], (N, C, T, V, M), jnp.float32)

    queue = jax.random.normal(ks_[4], (FEATURE_DIM, QUEUE_SIZE), jnp.float32)
    queue = queue / jnp.linalg.norm(queue, axis=0, keepdims=True)   # F.normalize dim=0

    params_q = {
        "Wc": 0.1 * jax.random.normal(ks_[5], (C, DIM_MLP), jnp.float32),
        "bc": 0.01 * jax.random.normal(ks_[6], (DIM_MLP,), jnp.float32),
        "W1": 0.1 * jax.random.normal(ks_[7], (DIM_MLP, DIM_MLP), jnp.float32),
        "b1": 0.01 * jax.random.normal(ks_[8], (DIM_MLP,), jnp.float32),
        "W2": 0.1 * jax.random.normal(ks_[9], (DIM_MLP, FEATURE_DIM), jnp.float32),
        "b2": 0.01 * jax.random.normal(ks_[10], (FEATURE_DIM,), jnp.float32),
    }
    params_k = {k_: v_.copy() for k_, v_ in params_q.items()}  # copied at init

    aug_cfg = make_aug_config(N, T, epoch=None)
    forward = build_forward(aug_cfg)

    loss, new_queue = forward(params_q, params_k, queue,
                              im_q_extreme, im_q, im_p, im_k)
    jax.block_until_ready(loss)
    jax.block_until_ready(new_queue)
    assert jnp.isfinite(loss)
    print("KERNEL_OK")
</pallas_src>

<mosaic_0001>
module attributes {stable_mosaic.version = 11 : i64} {
  func.func @_encoder_kernel(%arg0: i32, %arg1: memref<1x2x3x800xf32, #tpu.memory_space<vmem>>, %arg2: memref<32x3xf32, #tpu.memory_space<vmem>>, %arg3: memref<32x1xf32, #tpu.memory_space<vmem>>, %arg4: memref<32x32xf32, #tpu.memory_space<vmem>>, %arg5: memref<1x32xf32, #tpu.memory_space<vmem>>, %arg6: memref<32x32xf32, #tpu.memory_space<vmem>>, %arg7: memref<32x1xf32, #tpu.memory_space<vmem>>, %arg8: memref<1x32x1xf32, #tpu.memory_space<vmem>>, %arg9: memref<1x32x1xf32, #tpu.memory_space<vmem>>, %arg10: memref<1x2x800xf32, #tpu.memory_space<vmem>>) attributes {dimension_semantics = [#tpu.dimension_semantics<parallel>], iteration_bounds = array<i64: 8>, scalar_prefetch = 0 : i64, scratch_operands = 0 : i64, tpu.core_type = #tpu.core_type<tc>, window_params = [{transform_indices = @transform_0, window_bounds = array<i64: 1, 2, 3, 800>}, {pipeline_mode = #tpu.pipeline_mode<synchronous>, transform_indices = @transform_1, window_bounds = array<i64: 32, 3>}, {pipeline_mode = #tpu.pipeline_mode<synchronous>, transform_indices = @transform_2, window_bounds = array<i64: 32, 1>}, {pipeline_mode = #tpu.pipeline_mode<synchronous>, transform_indices = @transform_3, window_bounds = array<i64: 32, 32>}, {pipeline_mode = #tpu.pipeline_mode<synchronous>, transform_indices = @transform_4, window_bounds = array<i64: 1, 32>}, {pipeline_mode = #tpu.pipeline_mode<synchronous>, transform_indices = @transform_5, window_bounds = array<i64: 32, 32>}, {pipeline_mode = #tpu.pipeline_mode<synchronous>, transform_indices = @transform_6, window_bounds = array<i64: 32, 1>}, {transform_indices = @transform_7, window_bounds = array<i64: 1, 32, 1>}, {transform_indices = @transform_8, window_bounds = array<i64: 1, 32, 1>}, {transform_indices = @transform_9, window_bounds = array<i64: 1, 2, 800>}]} {
    %c0 = arith.constant 0 : index
    %c0_0 = arith.constant 0 : index
    %0 = vector.load %arg2[%c0, %c0_0] : memref<32x3xf32, #tpu.memory_space<vmem>>, vector<32x3xf32>
    %c0_1 = arith.constant 0 : index
    %c0_2 = arith.constant 0 : index
    %1 = vector.load %arg3[%c0_1, %c0_2] : memref<32x1xf32, #tpu.memory_space<vmem>>, vector<32x1xf32>
    %c0_3 = arith.constant 0 : index
    %c0_4 = arith.constant 0 : index
    %c0_5 = arith.constant 0 : index
    %c0_6 = arith.constant 0 : index
    %2 = vector.load %arg1[%c0_3, %c0_4, %c0_5, %c0_6] : memref<1x2x3x800xf32, #tpu.memory_space<vmem>>, vector<1x1x3x800xf32>
    %3 = vector.shape_cast %2 : vector<1x1x3x800xf32> to vector<3x800xf32>
    %4 = vector.extract_strided_slice %0 {offsets = [0, 0], sizes = [32, 1], strides = [1, 1]} : vector<32x3xf32> to vector<32x1xf32>
    %5 = vector.extract_strided_slice %3 {offsets = [0, 0], sizes = [1, 800], strides = [1, 1]} : vector<3x800xf32> to vector<1x800xf32>
    %6 = vector.broadcast %4 : vector<32x1xf32> to vector<32x800xf32>
    %7 = vector.broadcast %5 : vector<1x800xf32> to vector<32x800xf32>
    %8 = arith.mulf %6, %7 : vector<32x800xf32>
    %9 = vector.extract_strided_slice %0 {offsets = [0, 1], sizes = [32, 1], strides = [1, 1]} : vector<32x3xf32> to vector<32x1xf32>
    %10 = vector.extract_strided_slice %3 {offsets = [1, 0], sizes = [1, 800], strides = [1, 1]} : vector<3x800xf32> to vector<1x800xf32>
    %11 = vector.broadcast %9 : vector<32x1xf32> to vector<32x800xf32>
    %12 = vector.broadcast %10 : vector<1x800xf32> to vector<32x800xf32>
    %13 = arith.mulf %11, %12 : vector<32x800xf32>
    %14 = arith.addf %8, %13 : vector<32x800xf32>
    %15 = vector.extract_strided_slice %0 {offsets = [0, 2], sizes = [32, 1], strides = [1, 1]} : vector<32x3xf32> to vector<32x1xf32>
    %16 = vector.extract_strided_slice %3 {offsets = [2, 0], sizes = [1, 800], strides = [1, 1]} : vector<3x800xf32> to vector<1x800xf32>
    %17 = vector.broadcast %15 : vector<32x1xf32> to vector<32x800xf32>
    %18 = vector.broadcast %16 : vector<1x800xf32> to vector<32x800xf32>
    %19 = arith.mulf %17, %18 : vector<32x800xf32>
    %20 = arith.addf %14, %19 : vector<32x800xf32>
    %21 = vector.broadcast %1 : vector<32x1xf32> to vector<32x800xf32>
    %22 = arith.addf %20, %21 : vector<32x800xf32>
    %cst = arith.constant 0.000000e+00 : f32
    %23 = vector.broadcast %cst : f32 to vector<32x800xf32>
    %24 = arith.maximumf %22, %23 : vector<32x800xf32>
    %cst_7 = arith.constant dense<0.000000e+00> : vector<800xf32>
    %25 = vector.multi_reduction <add>, %24, %cst_7 [0] : vector<32x800xf32> to vector<800xf32>
    %26 = vector.shape_cast %25 : vector<800xf32> to vector<1x800xf32>
    %cst_8 = arith.constant 3.200000e+01 : f32
    %27 = vector.broadcast %cst_8 : f32 to vector<1x800xf32>
    %28 = arith.divf %26, %27 : vector<1x800xf32>
    %cst_9 = arith.constant 0.000000e+00 : f32
    %29 = vector.broadcast %cst_9 : f32 to vector<1x800xf32>
    %30 = arith.subf %29, %28 : vector<1x800xf32>
    %31 = math.exp %30 : vector<1x800xf32>
    %cst_10 = arith.constant 1.000000e+00 : f32
    %32 = vector.broadcast %cst_10 : f32 to vector<1x800xf32>
    %33 = arith.addf %32, %31 : vector<1x800xf32>
    %cst_11 = arith.constant 1.000000e+00 : f32
    %34 = vector.broadcast %cst_11 : f32 to vector<1x800xf32>
    %35 = arith.divf %34, %33 : vector<1x800xf32>
    %c0_12 = arith.constant 0 : index
    %c0_13 = arith.constant 0 : index
    %c0_14 = arith.constant 0 : index
    %36 = vector.load %arg10[%c0_12, %c0_13, %c0_14] : memref<1x2x800xf32, #tpu.memory_space<vmem>>, vector<1x1x800xf32>
    %37 = vector.shape_cast %36 : vector<1x1x800xf32> to vector<1x800xf32>
    %38 = vector.shape_cast %35 : vector<1x800xf32> to vector<1x1x800xf32>
    tpu.vector_store %arg10[%c0_12, %c0_13, %c0_14], %38 {strides = array<i32>} : memref<1x2x800xf32, #tpu.memory_space<vmem>>, vector<1x1x800xf32>,
    %cst_15 = arith.constant dense<0.000000e+00> : vector<32xf32>
    %39 = vector.multi_reduction <add>, %24, %cst_15 [1] : vector<32x800xf32> to vector<32xf32>
    %40 = vector.shape_cast %39 : vector<32xf32> to vector<32x1xf32>
    %cst_16 = arith.constant dense<0xFF800000> : vector<32xf32>
    %41 = vector.multi_reduction <maximumf>, %24, %cst_16 [1] : vector<32x800xf32> to vector<32xf32>
    %42 = vector.shape_cast %41 : vector<32xf32> to vector<32x1xf32>
    %c0_17 = arith.constant 0 : index
    %c1 = arith.constant 1 : index
    %c0_18 = arith.constant 0 : index
    %c0_19 = arith.constant 0 : index
    %43 = vector.load %arg1[%c0_17, %c1, %c0_18, %c0_19] : memref<1x2x3x800xf32, #tpu.memory_space<vmem>>, vector<1x1x3x800xf32>
    %44 = vector.shape_cast %43 : vector<1x1x3x800xf32> to vector<3x800xf32>
    %45 = vector.extract_strided_slice %0 {offsets = [0, 0], sizes = [32, 1], strides = [1, 1]} : vector<32x3xf32> to vector<32x1xf32>
    %46 = vector.extract_strided_slice %44 {offsets = [0, 0], sizes = [1, 800], strides = [1, 1]} : vector<3x800xf32> to vector<1x800xf32>
    %47 = vector.broadcast %45 : vector<32x1xf32> to vector<32x800xf32>
    %48 = vector.broadcast %46 : vector<1x800xf32> to vector<32x800xf32>
    %49 = arith.mulf %47, %48 : vector<32x800xf32>
    %50 = vector.extract_strided_slice %0 {offsets = [0, 1], sizes = [32, 1], strides = [1, 1]} : vector<32x3xf32> to vector<32x1xf32>
    %51 = vector.extract_strided_slice %44 {offsets = [1, 0], sizes = [1, 800], strides = [1, 1]} : vector<3x800xf32> to vector<1x800xf32>
    %52 = vector.broadcast %50 : vector<32x1xf32> to vector<32x800xf32>
    %53 = vector.broadcast %51 : vector<1x800xf32> to vector<32x800xf32>
    %54 = arith.mulf %52, %53 : vector<32x800xf32>
    %55 = arith.addf %49, %54 : vector<32x800xf32>
    %56 = vector.extract_strided_slice %0 {offsets = [0, 2], sizes = [32, 1], strides = [1, 1]} : vector<32x3xf32> to vector<32x1xf32>
    %57 = vector.extract_strided_slice %44 {offsets = [2, 0], sizes = [1, 800], strides = [1, 1]} : vector<3x800xf32> to vector<1x800xf32>
    %58 = vector.broadcast %56 : vector<32x1xf32> to vector<32x800xf32>
    %59 = vector.broadcast %57 : vector<1x800xf32> to vector<32x800xf32>
    %60 = arith.mulf %58, %59 : vector<32x800xf32>
    %61 = arith.addf %55, %60 : vector<32x800xf32>
    %62 = vector.broadcast %1 : vector<32x1xf32> to vector<32x800xf32>
    %63 = arith.addf %61, %62 : vector<32x800xf32>
    %cst_20 = arith.constant 0.000000e+00 : f32
    %64 = vector.broadcast %cst_20 : f32 to vector<32x800xf32>
    %65 = arith.maximumf %63, %64 : vector<32x800xf32>
    %cst_21 = arith.constant dense<0.000000e+00> : vector<800xf32>
    %66 = vector.multi_reduction <add>, %65, %cst_21 [0] : vector<32x800xf32> to vector<800xf32>
    %67 = vector.shape_cast %66 : vector<800xf32> to vector<1x800xf32>
    %cst_22 = arith.constant 3.200000e+01 : f32
    %68 = vector.broadcast %cst_22 : f32 to vector<1x800xf32>
    %69 = arith.divf %67, %68 : vector<1x800xf32>
    %cst_23 = arith.constant 0.000000e+00 : f32
    %70 = vector.broadcast %cst_23 : f32 to vector<1x800xf32>
    %71 = arith.subf %70, %69 : vector<1x800xf32>
    %72 = math.exp %71 : vector<1x800xf32>
    %cst_24 = arith.constant 1.000000e+00 : f32
    %73 = vector.broadcast %cst_24 : f32 to vector<1x800xf32>
    %74 = arith.addf %73, %72 : vector<1x800xf32>
    %cst_25 = arith.constant 1.000000e+00 : f32
    %75 = vector.broadcast %cst_25 : f32 to vector<1x800xf32>
    %76 = arith.divf %75, %74 : vector<1x800xf32>
    %c0_26 = arith.constant 0 : index
    %c1_27 = arith.constant 1 : index
    %c0_28 = arith.constant 0 : index
    %77 = vector.load %arg10[%c0_26, %c1_27, %c0_28] : memref<1x2x800xf32, #tpu.memory_space<vmem>>, vector<1x1x800xf32>
    %78 = vector.shape_cast %77 : vector<1x1x800xf32> to vector<1x800xf32>
    %79 = vector.shape_cast %76 : vector<1x800xf32> to vector<1x1x800xf32>
    tpu.vector_store %arg10[%c0_26, %c1_27, %c0_28], %79 {strides = array<i32>} : memref<1x2x800xf32, #tpu.memory_space<vmem>>, vector<1x1x800xf32>,
    %cst_29 = arith.constant dense<0.000000e+00> : vector<32xf32>
    %80 = vector.multi_reduction <add>, %65, %cst_29 [1] : vector<32x800xf32> to vector<32xf32>
    %81 = vector.shape_cast %80 : vector<32xf32> to vector<32x1xf32>
    %cst_30 = arith.constant dense<0xFF800000> : vector<32xf32>
    %82 = vector.multi_reduction <maximumf>, %65, %cst_30 [1] : vector<32x800xf32> to vector<32xf32>
    %83 = vector.shape_cast %82 : vector<32xf32> to vector<32x1xf32>
    %84 = arith.addf %40, %81 : vector<32x1xf32>
    %85 = arith.addf %42, %83 : vector<32x1xf32>
    %cst_31 = arith.constant 6.250000e-04 : f32
    %86 = vector.broadcast %cst_31 : f32 to vector<32x1xf32>
    %87 = arith.mulf %84, %86 : vector<32x1xf32>
    %cst_32 = arith.constant 5.000000e-01 : f32
    %88 = vector.broadcast %cst_32 : f32 to vector<32x1xf32>
    %89 = arith.mulf %85, %88 : vector<32x1xf32>
    %c0_33 = arith.constant 0 : index
    %c0_34 = arith.constant 0 : index
    %90 = vector.load %arg4[%c0_33, %c0_34] : memref<32x32xf32, #tpu.memory_space<vmem>>, vector<32x32xf32>
    %91 = vector.broadcast %87 : vector<32x1xf32> to vector<32x32xf32>
    %92 = arith.mulf %90, %91 : vector<32x32xf32>
    %cst_35 = arith.constant dense<0.000000e+00> : vector<32xf32>
    %93 = vector.multi_reduction <add>, %92, %cst_35 [0] : vector<32x32xf32> to vector<32xf32>
    %94 = vector.shape_cast %93 : vector<32xf32> to vector<1x32xf32>
    %c0_36 = arith.constant 0 : index
    %c0_37 = arith.constant 0 : index
    %95 = vector.load %arg5[%c0_36, %c0_37] : memref<1x32xf32, #tpu.memory_space<vmem>>, vector<1x32xf32>
    %96 = arith.addf %94, %95 : vector<1x32xf32>
    %cst_38 = arith.constant 0.000000e+00 : f32
    %97 = vector.broadcast %cst_38 : f32 to vector<1x32xf32>
    %98 = arith.maximumf %96, %97 : vector<1x32xf32>
    %c0_39 = arith.constant 0 : index
    %c0_40 = arith.constant 0 : index
    %99 = vector.load %arg6[%c0_39, %c0_40] : memref<32x32xf32, #tpu.memory_space<vmem>>, vector<32x32xf32>
    %100 = vector.broadcast %98 : vector<1x32xf32> to vector<32x32xf32>
    %101 = arith.mulf %99, %100 : vector<32x32xf32>
    %cst_41 = arith.constant dense<0.000000e+00> : vector<32xf32>
    %102 = vector.multi_reduction <add>, %101, %cst_41 [1] : vector<32x32xf32> to vector<32xf32>
    %103 = vector.shape_cast %102 : vector<32xf32> to vector<32x1xf32>
    %c0_42 = arith.constant 0 : index
    %c0_43 = arith.constant 0 : index
    %104 = vector.load %arg7[%c0_42, %c0_43] : memref<32x1xf32, #tpu.memory_space<vmem>>, vector<32x1xf32>
    %105 = arith.addf %103, %104 : vector<32x1xf32>
    %c0_44 = arith.constant 0 : index
    %c0_45 = arith.constant 0 : index
    %c0_46 = arith.constant 0 : index
    %106 = vector.load %arg8[%c0_44, %c0_45, %c0_46] : memref<1x32x1xf32, #tpu.memory_space<vmem>>, vector<1x32x1xf32>
    %107 = vector.shape_cast %106 : vector<1x32x1xf32> to vector<32x1xf32>
    %108 = vector.shape_cast %105 : vector<32x1xf32> to vector<1x32x1xf32>
    tpu.vector_store %arg8[%c0_44, %c0_45, %c0_46], %108 {strides = array<i32>} : memref<1x32x1xf32, #tpu.memory_space<vmem>>, vector<1x32x1xf32>,
    %c0_47 = arith.constant 0 : index
    %c0_48 = arith.constant 0 : index
    %109 = vector.load %arg4[%c0_47, %c0_48] : memref<32x32xf32, #tpu.memory_space<vmem>>, vector<32x32xf32>
    %110 = vector.broadcast %89 : vector<32x1xf32> to vector<32x32xf32>
    %111 = arith.mulf %109, %110 : vector<32x32xf32>
    %cst_49 = arith.constant dense<0.000000e+00> : vector<32xf32>
    %112 = vector.multi_reduction <add>, %111, %cst_49 [0] : vector<32x32xf32> to vector<32xf32>
    %113 = vector.shape_cast %112 : vector<32xf32> to vector<1x32xf32>
    %c0_50 = arith.constant 0 : index
    %c0_51 = arith.constant 0 : index
    %114 = vector.load %arg5[%c0_50, %c0_51] : memref<1x32xf32, #tpu.memory_space<vmem>>, vector<1x32xf32>
    %115 = arith.addf %113, %114 : vector<1x32xf32>
    %cst_52 = arith.constant 0.000000e+00 : f32
    %116 = vector.broadcast %cst_52 : f32 to vector<1x32xf32>
    %117 = arith.maximumf %115, %116 : vector<1x32xf32>
    %c0_53 = arith.constant 0 : index
    %c0_54 = arith.constant 0 : index
    %118 = vector.load %arg6[%c0_53, %c0_54] : memref<32x32xf32, #tpu.memory_space<vmem>>, vector<32x32xf32>
    %119 = vector.broadcast %117 : vector<1x32xf32> to vector<32x32xf32>
    %120 = arith.mulf %118, %119 : vector<32x32xf32>
    %cst_55 = arith.constant dense<0.000000e+00> : vector<32xf32>
    %121 = vector.multi_reduction <add>, %120, %cst_55 [1] : vector<32x32xf32> to vector<32xf32>
    %122 = vector.shape_cast %121 : vector<32xf32> to vector<32x1xf32>
    %c0_56 = arith.constant 0 : index
    %c0_57 = arith.constant 0 : index
    %123 = vector.load %arg7[%c0_56, %c0_57] : memref<32x1xf32, #tpu.memory_space<vmem>>, vector<32x1xf32>
    %124 = arith.addf %122, %123 : vector<32x1xf32>
    %c0_58 = arith.constant 0 : index
    %c0_59 = arith.constant 0 : index
    %c0_60 = arith.constant 0 : index
    %125 = vector.load %arg9[%c0_58, %c0_59, %c0_60] : memref<1x32x1xf32, #tpu.memory_space<vmem>>, vector<1x32x1xf32>
    %126 = vector.shape_cast %125 : vector<1x32x1xf32> to vector<32x1xf32>
    %127 = vector.shape_cast %124 : vector<32x1xf32> to vector<1x32x1xf32>
    tpu.vector_store %arg9[%c0_58, %c0_59, %c0_60], %127 {strides = array<i32>} : memref<1x32x1xf32, #tpu.memory_space<vmem>>, vector<1x32x1xf32>,
    return
  }
  func.func @transform_0(%arg0: i32) -> (i32, i32, i32, i32) {
    %c0_i32 = arith.constant 0 : i32
    %c0_i32_0 = arith.constant 0 : i32
    %c0_i32_1 = arith.constant 0 : i32
    %c0_i32_2 = arith.constant 0 : i32
    return %arg0, %c0_i32, %c0_i32_0, %c0_i32_1 : i32, i32, i32, i32
  }
  func.func @transform_1(%arg0: i32) -> (i32, i32) {
    %c0_i32 = arith.constant 0 : i32
    %c0_i32_0 = arith.constant 0 : i32
    %c0_i32_1 = arith.constant 0 : i32
    return %c0_i32, %c0_i32_0 : i32, i32
  }
  func.func @transform_2(%arg0: i32) -> (i32, i32) {
    %c0_i32 = arith.constant 0 : i32
    %c0_i32_0 = arith.constant 0 : i32
    %c0_i32_1 = arith.constant 0 : i32
    return %c0_i32, %c0_i32_0 : i32, i32
  }
  func.func @transform_3(%arg0: i32) -> (i32, i32) {
    %c0_i32 = arith.constant 0 : i32
    %c0_i32_0 = arith.constant 0 : i32
    %c0_i32_1 = arith.constant 0 : i32
    return %c0_i32, %c0_i32_0 : i32, i32
  }
  func.func @transform_4(%arg0: i32) -> (i32, i32) {
    %c0_i32 = arith.constant 0 : i32
    %c0_i32_0 = arith.constant 0 : i32
    %c0_i32_1 = arith.constant 0 : i32
    return %c0_i32, %c0_i32_0 : i32, i32
  }
  func.func @transform_5(%arg0: i32) -> (i32, i32) {
    %c0_i32 = arith.constant 0 : i32
    %c0_i32_0 = arith.constant 0 : i32
    %c0_i32_1 = arith.constant 0 : i32
    return %c0_i32, %c0_i32_0 : i32, i32
  }
  func.func @transform_6(%arg0: i32) -> (i32, i32) {
    %c0_i32 = arith.constant 0 : i32
    %c0_i32_0 = arith.constant 0 : i32
    %c0_i32_1 = arith.constant 0 : i32
    return %c0_i32, %c0_i32_0 : i32, i32
  }
  func.func @transform_7(%arg0: i32) -> (i32, i32, i32) {
    %c0_i32 = arith.constant 0 : i32
    %c0_i32_0 = arith.constant 0 : i32
    %c0_i32_1 = arith.constant 0 : i32
    return %arg0, %c0_i32, %c0_i32_0 : i32, i32, i32
  }
  func.func @transform_8(%arg0: i32) -> (i32, i32, i32) {
    %c0_i32 = arith.constant 0 : i32
    %c0_i32_0 = arith.constant 0 : i32
    %c0_i32_1 = arith.constant 0 : i32
    return %arg0, %c0_i32, %c0_i32_0 : i32, i32, i32
  }
  func.func @transform_9(%arg0: i32) -> (i32, i32, i32) {
    %c0_i32 = arith.constant 0 : i32
    %c0_i32_0 = arith.constant 0 : i32
    %c0_i32_1 = arith.constant 0 : i32
    return %arg0, %c0_i32, %c0_i32_0 : i32, i32, i32
  }
}

module attributes {stable_mosaic.version = 11 : i64} {
  func.func @_encoder_kernel(%arg0: i32, %arg1: memref<1x2x3x800xf32, #tpu.memory_space<vmem>>, %arg2: memref<32x3xf32, #tpu.memory_space<vmem>>, %arg3: memref<32x1xf32, #tpu.memory_space<vmem>>, %arg4: memref<32x32xf32, #tpu.memory_space<vmem>>, %arg5: memref<1x32xf32, #tpu.memory_space<vmem>>, %arg6: memref<32x32xf32, #tpu.memory_space<vmem>>, %arg7: memref<32x1xf32, #tpu.memory_space<vmem>>, %arg8: memref<1x32x1xf32, #tpu.memory_space<vmem>>, %arg9: memref<1x32x1xf32, #tpu.memory_space<vmem>>, %arg10: memref<1x2x800xf32, #tpu.memory_space<vmem>>) attributes {dimension_semantics = [#tpu.dimension_semantics<parallel>], iteration_bounds = array<i64: 12>, scalar_prefetch = 0 : i64, scratch_operands = 0 : i64, tpu.core_type = #tpu.core_type<tc>, window_params = [{transform_indices = @transform_0, window_bounds = array<i64: 1, 2, 3, 800>}, {pipeline_mode = #tpu.pipeline_mode<synchronous>, transform_indices = @transform_1, window_bounds = array<i64: 32, 3>}, {pipeline_mode = #tpu.pipeline_mode<synchronous>, transform_indices = @transform_2, window_bounds = array<i64: 32, 1>}, {pipeline_mode = #tpu.pipeline_mode<synchronous>, transform_indices = @transform_3, window_bounds = array<i64: 32, 32>}, {pipeline_mode = #tpu.pipeline_mode<synchronous>, transform_indices = @transform_4, window_bounds = array<i64: 1, 32>}, {pipeline_mode = #tpu.pipeline_mode<synchronous>, transform_indices = @transform_5, window_bounds = array<i64: 32, 32>}, {pipeline_mode = #tpu.pipeline_mode<synchronous>, transform_indices = @transform_6, window_bounds = array<i64: 32, 1>}, {transform_indices = @transform_7, window_bounds = array<i64: 1, 32, 1>}, {transform_indices = @transform_8, window_bounds = array<i64: 1, 32, 1>}, {transform_indices = @transform_9, window_bounds = array<i64: 1, 2, 800>}]} {
    %c0 = arith.constant 0 : index
    %c0_0 = arith.constant 0 : index
    %0 = vector.load %arg2[%c0, %c0_0] : memref<32x3xf32, #tpu.memory_space<vmem>>, vector<32x3xf32>
    %c0_1 = arith.constant 0 : index
    %c0_2 = arith.constant 0 : index
    %1 = vector.load %arg3[%c0_1, %c0_2] : memref<32x1xf32, #tpu.memory_space<vmem>>, vector<32x1xf32>
    %c0_3 = arith.constant 0 : index
    %c0_4 = arith.constant 0 : index
    %c0_5 = arith.constant 0 : index
    %c0_6 = arith.constant 0 : index
    %2 = vector.load %arg1[%c0_3, %c0_4, %c0_5, %c0_6] : memref<1x2x3x800xf32, #tpu.memory_space<vmem>>, vector<1x1x3x800xf32>
    %3 = vector.shape_cast %2 : vector<1x1x3x800xf32> to vector<3x800xf32>
    %4 = vector.extract_strided_slice %0 {offsets = [0, 0], sizes = [32, 1], strides = [1, 1]} : vector<32x3xf32> to vector<32x1xf32>
    %5 = vector.extract_strided_slice %3 {offsets = [0, 0], sizes = [1, 800], strides = [1, 1]} : vector<3x800xf32> to vector<1x800xf32>
    %6 = vector.broadcast %4 : vector<32x1xf32> to vector<32x800xf32>
    %7 = vector.broadcast %5 : vector<1x800xf32> to vector<32x800xf32>
    %8 = arith.mulf %6, %7 : vector<32x800xf32>
    %9 = vector.extract_strided_slice %0 {offsets = [0, 1], sizes = [32, 1], strides = [1, 1]} : vector<32x3xf32> to vector<32x1xf32>
    %10 = vector.extract_strided_slice %3 {offsets = [1, 0], sizes = [1, 800], strides = [1, 1]} : vector<3x800xf32> to vector<1x800xf32>
    %11 = vector.broadcast %9 : vector<32x1xf32> to vector<32x800xf32>
    %12 = vector.broadcast %10 : vector<1x800xf32> to vector<32x800xf32>
    %13 = arith.mulf %11, %12 : vector<32x800xf32>
    %14 = arith.addf %8, %13 : vector<32x800xf32>
    %15 = vector.extract_strided_slice %0 {offsets = [0, 2], sizes = [32, 1], strides = [1, 1]} : vector<32x3xf32> to vector<32x1xf32>
    %16 = vector.extract_strided_slice %3 {offsets = [2, 0], sizes = [1, 800], strides = [1, 1]} : vector<3x800xf32> to vector<1x800xf32>
    %17 = vector.broadcast %15 : vector<32x1xf32> to vector<32x800xf32>
    %18 = vector.broadcast %16 : vector<1x800xf32> to vector<32x800xf32>
    %19 = arith.mulf %17, %18 : vector<32x800xf32>
    %20 = arith.addf %14, %19 : vector<32x800xf32>
    %21 = vector.broadcast %1 : vector<32x1xf32> to vector<32x800xf32>
    %22 = arith.addf %20, %21 : vector<32x800xf32>
    %cst = arith.constant 0.000000e+00 : f32
    %23 = vector.broadcast %cst : f32 to vector<32x800xf32>
    %24 = arith.maximumf %22, %23 : vector<32x800xf32>
    %cst_7 = arith.constant dense<0.000000e+00> : vector<800xf32>
    %25 = vector.multi_reduction <add>, %24, %cst_7 [0] : vector<32x800xf32> to vector<800xf32>
    %26 = vector.shape_cast %25 : vector<800xf32> to vector<1x800xf32>
    %cst_8 = arith.constant 3.200000e+01 : f32
    %27 = vector.broadcast %cst_8 : f32 to vector<1x800xf32>
    %28 = arith.divf %26, %27 : vector<1x800xf32>
    %cst_9 = arith.constant 0.000000e+00 : f32
    %29 = vector.broadcast %cst_9 : f32 to vector<1x800xf32>
    %30 = arith.subf %29, %28 : vector<1x800xf32>
    %31 = math.exp %30 : vector<1x800xf32>
    %cst_10 = arith.constant 1.000000e+00 : f32
    %32 = vector.broadcast %cst_10 : f32 to vector<1x800xf32>
    %33 = arith.addf %32, %31 : vector<1x800xf32>
    %cst_11 = arith.constant 1.000000e+00 : f32
    %34 = vector.broadcast %cst_11 : f32 to vector<1x800xf32>
    %35 = arith.divf %34, %33 : vector<1x800xf32>
    %c0_12 = arith.constant 0 : index
    %c0_13 = arith.constant 0 : index
    %c0_14 = arith.constant 0 : index
    %36 = vector.load %arg10[%c0_12, %c0_13, %c0_14] : memref<1x2x800xf32, #tpu.memory_space<vmem>>, vector<1x1x800xf32>
    %37 = vector.shape_cast %36 : vector<1x1x800xf32> to vector<1x800xf32>
    %38 = vector.shape_cast %35 : vector<1x800xf32> to vector<1x1x800xf32>
    tpu.vector_store %arg10[%c0_12, %c0_13, %c0_14], %38 {strides = array<i32>} : memref<1x2x800xf32, #tpu.memory_space<vmem>>, vector<1x1x800xf32>,
    %cst_15 = arith.constant dense<0.000000e+00> : vector<32xf32>
    %39 = vector.multi_reduction <add>, %24, %cst_15 [1] : vector<32x800xf32> to vector<32xf32>
    %40 = vector.shape_cast %39 : vector<32xf32> to vector<32x1xf32>
    %cst_16 = arith.constant dense<0xFF800000> : vector<32xf32>
    %41 = vector.multi_reduction <maximumf>, %24, %cst_16 [1] : vector<32x800xf32> to vector<32xf32>
    %42 = vector.shape_cast %41 : vector<32xf32> to vector<32x1xf32>
    %c0_17 = arith.constant 0 : index
    %c1 = arith.constant 1 : index
    %c0_18 = arith.constant 0 : index
    %c0_19 = arith.constant 0 : index
    %43 = vector.load %arg1[%c0_17, %c1, %c0_18, %c0_19] : memref<1x2x3x800xf32, #tpu.memory_space<vmem>>, vector<1x1x3x800xf32>
    %44 = vector.shape_cast %43 : vector<1x1x3x800xf32> to vector<3x800xf32>
    %45 = vector.extract_strided_slice %0 {offsets = [0, 0], sizes = [32, 1], strides = [1, 1]} : vector<32x3xf32> to vector<32x1xf32>
    %46 = vector.extract_strided_slice %44 {offsets = [0, 0], sizes = [1, 800], strides = [1, 1]} : vector<3x800xf32> to vector<1x800xf32>
    %47 = vector.broadcast %45 : vector<32x1xf32> to vector<32x800xf32>
    %48 = vector.broadcast %46 : vector<1x800xf32> to vector<32x800xf32>
    %49 = arith.mulf %47, %48 : vector<32x800xf32>
    %50 = vector.extract_strided_slice %0 {offsets = [0, 1], sizes = [32, 1], strides = [1, 1]} : vector<32x3xf32> to vector<32x1xf32>
    %51 = vector.extract_strided_slice %44 {offsets = [1, 0], sizes = [1, 800], strides = [1, 1]} : vector<3x800xf32> to vector<1x800xf32>
    %52 = vector.broadcast %50 : vector<32x1xf32> to vector<32x800xf32>
    %53 = vector.broadcast %51 : vector<1x800xf32> to vector<32x800xf32>
    %54 = arith.mulf %52, %53 : vector<32x800xf32>
    %55 = arith.addf %49, %54 : vector<32x800xf32>
    %56 = vector.extract_strided_slice %0 {offsets = [0, 2], sizes = [32, 1], strides = [1, 1]} : vector<32x3xf32> to vector<32x1xf32>
    %57 = vector.extract_strided_slice %44 {offsets = [2, 0], sizes = [1, 800], strides = [1, 1]} : vector<3x800xf32> to vector<1x800xf32>
    %58 = vector.broadcast %56 : vector<32x1xf32> to vector<32x800xf32>
    %59 = vector.broadcast %57 : vector<1x800xf32> to vector<32x800xf32>
    %60 = arith.mulf %58, %59 : vector<32x800xf32>
    %61 = arith.addf %55, %60 : vector<32x800xf32>
    %62 = vector.broadcast %1 : vector<32x1xf32> to vector<32x800xf32>
    %63 = arith.addf %61, %62 : vector<32x800xf32>
    %cst_20 = arith.constant 0.000000e+00 : f32
    %64 = vector.broadcast %cst_20 : f32 to vector<32x800xf32>
    %65 = arith.maximumf %63, %64 : vector<32x800xf32>
    %cst_21 = arith.constant dense<0.000000e+00> : vector<800xf32>
    %66 = vector.multi_reduction <add>, %65, %cst_21 [0] : vector<32x800xf32> to vector<800xf32>
    %67 = vector.shape_cast %66 : vector<800xf32> to vector<1x800xf32>
    %cst_22 = arith.constant 3.200000e+01 : f32
    %68 = vector.broadcast %cst_22 : f32 to vector<1x800xf32>
    %69 = arith.divf %67, %68 : vector<1x800xf32>
    %cst_23 = arith.constant 0.000000e+00 : f32
    %70 = vector.broadcast %cst_23 : f32 to vector<1x800xf32>
    %71 = arith.subf %70, %69 : vector<1x800xf32>
    %72 = math.exp %71 : vector<1x800xf32>
    %cst_24 = arith.constant 1.000000e+00 : f32
    %73 = vector.broadcast %cst_24 : f32 to vector<1x800xf32>
    %74 = arith.addf %73, %72 : vector<1x800xf32>
    %cst_25 = arith.constant 1.000000e+00 : f32
    %75 = vector.broadcast %cst_25 : f32 to vector<1x800xf32>
    %76 = arith.divf %75, %74 : vector<1x800xf32>
    %c0_26 = arith.constant 0 : index
    %c1_27 = arith.constant 1 : index
    %c0_28 = arith.constant 0 : index
    %77 = vector.load %arg10[%c0_26, %c1_27, %c0_28] : memref<1x2x800xf32, #tpu.memory_space<vmem>>, vector<1x1x800xf32>
    %78 = vector.shape_cast %77 : vector<1x1x800xf32> to vector<1x800xf32>
    %79 = vector.shape_cast %76 : vector<1x800xf32> to vector<1x1x800xf32>
    tpu.vector_store %arg10[%c0_26, %c1_27, %c0_28], %79 {strides = array<i32>} : memref<1x2x800xf32, #tpu.memory_space<vmem>>, vector<1x1x800xf32>,
    %cst_29 = arith.constant dense<0.000000e+00> : vector<32xf32>
    %80 = vector.multi_reduction <add>, %65, %cst_29 [1] : vector<32x800xf32> to vector<32xf32>
    %81 = vector.shape_cast %80 : vector<32xf32> to vector<32x1xf32>
    %cst_30 = arith.constant dense<0xFF800000> : vector<32xf32>
    %82 = vector.multi_reduction <maximumf>, %65, %cst_30 [1] : vector<32x800xf32> to vector<32xf32>
    %83 = vector.shape_cast %82 : vector<32xf32> to vector<32x1xf32>
    %84 = arith.addf %40, %81 : vector<32x1xf32>
    %85 = arith.addf %42, %83 : vector<32x1xf32>
    %cst_31 = arith.constant 6.250000e-04 : f32
    %86 = vector.broadcast %cst_31 : f32 to vector<32x1xf32>
    %87 = arith.mulf %84, %86 : vector<32x1xf32>
    %cst_32 = arith.constant 5.000000e-01 : f32
    %88 = vector.broadcast %cst_32 : f32 to vector<32x1xf32>
    %89 = arith.mulf %85, %88 : vector<32x1xf32>
    %c0_33 = arith.constant 0 : index
    %c0_34 = arith.constant 0 : index
    %90 = vector.load %arg4[%c0_33, %c0_34] : memref<32x32xf32, #tpu.memory_space<vmem>>, vector<32x32xf32>
    %91 = vector.broadcast %87 : vector<32x1xf32> to vector<32x32xf32>
    %92 = arith.mulf %90, %91 : vector<32x32xf32>
    %cst_35 = arith.constant dense<0.000000e+00> : vector<32xf32>
    %93 = vector.multi_reduction <add>, %92, %cst_35 [0] : vector<32x32xf32> to vector<32xf32>
    %94 = vector.shape_cast %93 : vector<32xf32> to vector<1x32xf32>
    %c0_36 = arith.constant 0 : index
    %c0_37 = arith.constant 0 : index
    %95 = vector.load %arg5[%c0_36, %c0_37] : memref<1x32xf32, #tpu.memory_space<vmem>>, vector<1x32xf32>
    %96 = arith.addf %94, %95 : vector<1x32xf32>
    %cst_38 = arith.constant 0.000000e+00 : f32
    %97 = vector.broadcast %cst_38 : f32 to vector<1x32xf32>
    %98 = arith.maximumf %96, %97 : vector<1x32xf32>
    %c0_39 = arith.constant 0 : index
    %c0_40 = arith.constant 0 : index
    %99 = vector.load %arg6[%c0_39, %c0_40] : memref<32x32xf32, #tpu.memory_space<vmem>>, vector<32x32xf32>
    %100 = vector.broadcast %98 : vector<1x32xf32> to vector<32x32xf32>
    %101 = arith.mulf %99, %100 : vector<32x32xf32>
    %cst_41 = arith.constant dense<0.000000e+00> : vector<32xf32>
    %102 = vector.multi_reduction <add>, %101, %cst_41 [1] : vector<32x32xf32> to vector<32xf32>
    %103 = vector.shape_cast %102 : vector<32xf32> to vector<32x1xf32>
    %c0_42 = arith.constant 0 : index
    %c0_43 = arith.constant 0 : index
    %104 = vector.load %arg7[%c0_42, %c0_43] : memref<32x1xf32, #tpu.memory_space<vmem>>, vector<32x1xf32>
    %105 = arith.addf %103, %104 : vector<32x1xf32>
    %c0_44 = arith.constant 0 : index
    %c0_45 = arith.constant 0 : index
    %c0_46 = arith.constant 0 : index
    %106 = vector.load %arg8[%c0_44, %c0_45, %c0_46] : memref<1x32x1xf32, #tpu.memory_space<vmem>>, vector<1x32x1xf32>
    %107 = vector.shape_cast %106 : vector<1x32x1xf32> to vector<32x1xf32>
    %108 = vector.shape_cast %105 : vector<32x1xf32> to vector<1x32x1xf32>
    tpu.vector_store %arg8[%c0_44, %c0_45, %c0_46], %108 {strides = array<i32>} : memref<1x32x1xf32, #tpu.memory_space<vmem>>, vector<1x32x1xf32>,
    %c0_47 = arith.constant 0 : index
    %c0_48 = arith.constant 0 : index
    %109 = vector.load %arg4[%c0_47, %c0_48] : memref<32x32xf32, #tpu.memory_space<vmem>>, vector<32x32xf32>
    %110 = vector.broadcast %89 : vector<32x1xf32> to vector<32x32xf32>
    %111 = arith.mulf %109, %110 : vector<32x32xf32>
    %cst_49 = arith.constant dense<0.000000e+00> : vector<32xf32>
    %112 = vector.multi_reduction <add>, %111, %cst_49 [0] : vector<32x32xf32> to vector<32xf32>
    %113 = vector.shape_cast %112 : vector<32xf32> to vector<1x32xf32>
    %c0_50 = arith.constant 0 : index
    %c0_51 = arith.constant 0 : index
    %114 = vector.load %arg5[%c0_50, %c0_51] : memref<1x32xf32, #tpu.memory_space<vmem>>, vector<1x32xf32>
    %115 = arith.addf %113, %114 : vector<1x32xf32>
    %cst_52 = arith.constant 0.000000e+00 : f32
    %116 = vector.broadcast %cst_52 : f32 to vector<1x32xf32>
    %117 = arith.maximumf %115, %116 : vector<1x32xf32>
    %c0_53 = arith.constant 0 : index
    %c0_54 = arith.constant 0 : index
    %118 = vector.load %arg6[%c0_53, %c0_54] : memref<32x32xf32, #tpu.memory_space<vmem>>, vector<32x32xf32>
    %119 = vector.broadcast %117 : vector<1x32xf32> to vector<32x32xf32>
    %120 = arith.mulf %118, %119 : vector<32x32xf32>
    %cst_55 = arith.constant dense<0.000000e+00> : vector<32xf32>
    %121 = vector.multi_reduction <add>, %120, %cst_55 [1] : vector<32x32xf32> to vector<32xf32>
    %122 = vector.shape_cast %121 : vector<32xf32> to vector<32x1xf32>
    %c0_56 = arith.constant 0 : index
    %c0_57 = arith.constant 0 : index
    %123 = vector.load %arg7[%c0_56, %c0_57] : memref<32x1xf32, #tpu.memory_space<vmem>>, vector<32x1xf32>
    %124 = arith.addf %122, %123 : vector<32x1xf32>
    %c0_58 = arith.constant 0 : index
    %c0_59 = arith.constant 0 : index
    %c0_60 = arith.constant 0 : index
    %125 = vector.load %arg9[%c0_58, %c0_59, %c0_60] : memref<1x32x1xf32, #tpu.memory_space<vmem>>, vector<1x32x1xf32>
    %126 = vector.shape_cast %125 : vector<1x32x1xf32> to vector<32x1xf32>
    %127 = vector.shape_cast %124 : vector<32x1xf32> to vector<1x32x1xf32>
    tpu.vector_store %arg9[%c0_58, %c0_59, %c0_60], %127 {strides = array<i32>} : memref<1x32x1xf32, #tpu.memory_space<vmem>>, vector<1x32x1xf32>,
    return
  }
  func.func @transform_0(%arg0: i32) -> (i32, i32, i32, i32) {
    %c0_i32 = arith.constant 0 : i32
    %c0_i32_0 = arith.constant 0 : i32
    %c0_i32_1 = arith.constant 0 : i32
    %c0_i32_2 = arith.constant 0 : i32
    return %arg0, %c0_i32, %c0_i32_0, %c0_i32_1 : i32, i32, i32, i32
  }
  func.func @transform_1(%arg0: i32) -> (i32, i32) {
    %c0_i32 = arith.constant 0 : i32
    %c0_i32_0 = arith.constant 0 : i32
    %c0_i32_1 = arith.constant 0 : i32
    return %c0_i32, %c0_i32_0 : i32, i32
  }
  func.func @transform_2(%arg0: i32) -> (i32, i32) {
    %c0_i32 = arith.constant 0 : i32
    %c0_i32_0 = arith.constant 0 : i32
    %c0_i32_1 = arith.constant 0 : i32
    return %c0_i32, %c0_i32_0 : i32, i32
  }
  func.func @transform_3(%arg0: i32) -> (i32, i32) {
    %c0_i32 = arith.constant 0 : i32
    %c0_i32_0 = arith.constant 0 : i32
    %c0_i32_1 = arith.constant 0 : i32
    return %c0_i32, %c0_i32_0 : i32, i32
  }
  func.func @transform_4(%arg0: i32) -> (i32, i32) {
    %c0_i32 = arith.constant 0 : i32
    %c0_i32_0 = arith.constant 0 : i32
    %c0_i32_1 = arith.constant 0 : i32
    return %c0_i32, %c0_i32_0 : i32, i32
  }
  func.func @transform_5(%arg0: i32) -> (i32, i32) {
    %c0_i32 = arith.constant 0 : i32
    %c0_i32_0 = arith.constant 0 : i32
    %c0_i32_1 = arith.constant 0 : i32
    return %c0_i32, %c0_i32_0 : i32, i32
  }
  func.func @transform_6(%arg0: i32) -> (i32, i32) {
    %c0_i32 = arith.constant 0 : i32
    %c0_i32_0 = arith.constant 0 : i32
    %c0_i32_1 = arith.constant 0 : i32
    return %c0_i32, %c0_i32_0 : i32, i32
  }
  func.func @transform_7(%arg0: i32) -> (i32, i32, i32) {
    %c0_i32 = arith.constant 0 : i32
    %c0_i32_0 = arith.constant 0 : i32
    %c0_i32_1 = arith.constant 0 : i32
    return %arg0, %c0_i32, %c0_i32_0 : i32, i32, i32
  }
  func.func @transform_8(%arg0: i32) -> (i32, i32, i32) {
    %c0_i32 = arith.constant 0 : i32
    %c0_i32_0 = arith.constant 0 : i32
    %c0_i32_1 = arith.constant 0 : i32
    return %arg0, %c0_i32, %c0_i32_0 : i32, i32, i32
  }
  func.func @transform_9(%arg0: i32) -> (i32, i32, i32) {
    %c0_i32 = arith.constant 0 : i32
    %c0_i32_0 = arith.constant 0 : i32
    %c0_i32_1 = arith.constant 0 : i32
    return %arg0, %c0_i32, %c0_i32_0 : i32, i32, i32
  }
}

module attributes {stable_mosaic.version = 11 : i64} {
  func.func @_encoder_kernel(%arg0: i32, %arg1: memref<1x2x3x800xf32, #tpu.memory_space<vmem>>, %arg2: memref<32x3xf32, #tpu.memory_space<vmem>>, %arg3: memref<32x1xf32, #tpu.memory_space<vmem>>, %arg4: memref<32x32xf32, #tpu.memory_space<vmem>>, %arg5: memref<1x32xf32, #tpu.memory_space<vmem>>, %arg6: memref<32x32xf32, #tpu.memory_space<vmem>>, %arg7: memref<32x1xf32, #tpu.memory_space<vmem>>, %arg8: memref<1x32x1xf32, #tpu.memory_space<vmem>>, %arg9: memref<1x32x1xf32, #tpu.memory_space<vmem>>, %arg10: memref<1x2x800xf32, #tpu.memory_space<vmem>>) attributes {dimension_semantics = [#tpu.dimension_semantics<parallel>], iteration_bounds = array<i64: 5>, scalar_prefetch = 0 : i64, scratch_operands = 0 : i64, tpu.core_type = #tpu.core_type<tc>, window_params = [{transform_indices = @transform_0, window_bounds = array<i64: 1, 2, 3, 800>}, {pipeline_mode = #tpu.pipeline_mode<synchronous>, transform_indices = @transform_1, window_bounds = array<i64: 32, 3>}, {pipeline_mode = #tpu.pipeline_mode<synchronous>, transform_indices = @transform_2, window_bounds = array<i64: 32, 1>}, {pipeline_mode = #tpu.pipeline_mode<synchronous>, transform_indices = @transform_3, window_bounds = array<i64: 32, 32>}, {pipeline_mode = #tpu.pipeline_mode<synchronous>, transform_indices = @transform_4, window_bounds = array<i64: 1, 32>}, {pipeline_mode = #tpu.pipeline_mode<synchronous>, transform_indices = @transform_5, window_bounds = array<i64: 32, 32>}, {pipeline_mode = #tpu.pipeline_mode<synchronous>, transform_indices = @transform_6, window_bounds = array<i64: 32, 1>}, {transform_indices = @transform_7, window_bounds = array<i64: 1, 32, 1>}, {transform_indices = @transform_8, window_bounds = array<i64: 1, 32, 1>}, {transform_indices = @transform_9, window_bounds = array<i64: 1, 2, 800>}]} {
    %c0 = arith.constant 0 : index
    %c0_0 = arith.constant 0 : index
    %0 = vector.load %arg2[%c0, %c0_0] : memref<32x3xf32, #tpu.memory_space<vmem>>, vector<32x3xf32>
    %c0_1 = arith.constant 0 : index
    %c0_2 = arith.constant 0 : index
    %1 = vector.load %arg3[%c0_1, %c0_2] : memref<32x1xf32, #tpu.memory_space<vmem>>, vector<32x1xf32>
    %c0_3 = arith.constant 0 : index
    %c0_4 = arith.constant 0 : index
    %c0_5 = arith.constant 0 : index
    %c0_6 = arith.constant 0 : index
    %2 = vector.load %arg1[%c0_3, %c0_4, %c0_5, %c0_6] : memref<1x2x3x800xf32, #tpu.memory_space<vmem>>, vector<1x1x3x800xf32>
    %3 = vector.shape_cast %2 : vector<1x1x3x800xf32> to vector<3x800xf32>
    %4 = vector.extract_strided_slice %0 {offsets = [0, 0], sizes = [32, 1], strides = [1, 1]} : vector<32x3xf32> to vector<32x1xf32>
    %5 = vector.extract_strided_slice %3 {offsets = [0, 0], sizes = [1, 800], strides = [1, 1]} : vector<3x800xf32> to vector<1x800xf32>
    %6 = vector.broadcast %4 : vector<32x1xf32> to vector<32x800xf32>
    %7 = vector.broadcast %5 : vector<1x800xf32> to vector<32x800xf32>
    %8 = arith.mulf %6, %7 : vector<32x800xf32>
    %9 = vector.extract_strided_slice %0 {offsets = [0, 1], sizes = [32, 1], strides = [1, 1]} : vector<32x3xf32> to vector<32x1xf32>
    %10 = vector.extract_strided_slice %3 {offsets = [1, 0], sizes = [1, 800], strides = [1, 1]} : vector<3x800xf32> to vector<1x800xf32>
    %11 = vector.broadcast %9 : vector<32x1xf32> to vector<32x800xf32>
    %12 = vector.broadcast %10 : vector<1x800xf32> to vector<32x800xf32>
    %13 = arith.mulf %11, %12 : vector<32x800xf32>
    %14 = arith.addf %8, %13 : vector<32x800xf32>
    %15 = vector.extract_strided_slice %0 {offsets = [0, 2], sizes = [32, 1], strides = [1, 1]} : vector<32x3xf32> to vector<32x1xf32>
    %16 = vector.extract_strided_slice %3 {offsets = [2, 0], sizes = [1, 800], strides = [1, 1]} : vector<3x800xf32> to vector<1x800xf32>
    %17 = vector.broadcast %15 : vector<32x1xf32> to vector<32x800xf32>
    %18 = vector.broadcast %16 : vector<1x800xf32> to vector<32x800xf32>
    %19 = arith.mulf %17, %18 : vector<32x800xf32>
    %20 = arith.addf %14, %19 : vector<32x800xf32>
    %21 = vector.broadcast %1 : vector<32x1xf32> to vector<32x800xf32>
    %22 = arith.addf %20, %21 : vector<32x800xf32>
    %cst = arith.constant 0.000000e+00 : f32
    %23 = vector.broadcast %cst : f32 to vector<32x800xf32>
    %24 = arith.maximumf %22, %23 : vector<32x800xf32>
    %cst_7 = arith.constant dense<0.000000e+00> : vector<800xf32>
    %25 = vector.multi_reduction <add>, %24, %cst_7 [0] : vector<32x800xf32> to vector<800xf32>
    %26 = vector.shape_cast %25 : vector<800xf32> to vector<1x800xf32>
    %cst_8 = arith.constant 3.200000e+01 : f32
    %27 = vector.broadcast %cst_8 : f32 to vector<1x800xf32>
    %28 = arith.divf %26, %27 : vector<1x800xf32>
    %cst_9 = arith.constant 0.000000e+00 : f32
    %29 = vector.broadcast %cst_9 : f32 to vector<1x800xf32>
    %30 = arith.subf %29, %28 : vector<1x800xf32>
    %31 = math.exp %30 : vector<1x800xf32>
    %cst_10 = arith.constant 1.000000e+00 : f32
    %32 = vector.broadcast %cst_10 : f32 to vector<1x800xf32>
    %33 = arith.addf %32, %31 : vector<1x800xf32>
    %cst_11 = arith.constant 1.000000e+00 : f32
    %34 = vector.broadcast %cst_11 : f32 to vector<1x800xf32>
    %35 = arith.divf %34, %33 : vector<1x800xf32>
    %c0_12 = arith.constant 0 : index
    %c0_13 = arith.constant 0 : index
    %c0_14 = arith.constant 0 : index
    %36 = vector.load %arg10[%c0_12, %c0_13, %c0_14] : memref<1x2x800xf32, #tpu.memory_space<vmem>>, vector<1x1x800xf32>
    %37 = vector.shape_cast %36 : vector<1x1x800xf32> to vector<1x800xf32>
    %38 = vector.shape_cast %35 : vector<1x800xf32> to vector<1x1x800xf32>
    tpu.vector_store %arg10[%c0_12, %c0_13, %c0_14], %38 {strides = array<i32>} : memref<1x2x800xf32, #tpu.memory_space<vmem>>, vector<1x1x800xf32>,
    %cst_15 = arith.constant dense<0.000000e+00> : vector<32xf32>
    %39 = vector.multi_reduction <add>, %24, %cst_15 [1] : vector<32x800xf32> to vector<32xf32>
    %40 = vector.shape_cast %39 : vector<32xf32> to vector<32x1xf32>
    %cst_16 = arith.constant dense<0xFF800000> : vector<32xf32>
    %41 = vector.multi_reduction <maximumf>, %24, %cst_16 [1] : vector<32x800xf32> to vector<32xf32>
    %42 = vector.shape_cast %41 : vector<32xf32> to vector<32x1xf32>
    %c0_17 = arith.constant 0 : index
    %c1 = arith.constant 1 : index
    %c0_18 = arith.constant 0 : index
    %c0_19 = arith.constant 0 : index
    %43 = vector.load %arg1[%c0_17, %c1, %c0_18, %c0_19] : memref<1x2x3x800xf32, #tpu.memory_space<vmem>>, vector<1x1x3x800xf32>
    %44 = vector.shape_cast %43 : vector<1x1x3x800xf32> to vector<3x800xf32>
    %45 = vector.extract_strided_slice %0 {offsets = [0, 0], sizes = [32, 1], strides = [1, 1]} : vector<32x3xf32> to vector<32x1xf32>
    %46 = vector.extract_strided_slice %44 {offsets = [0, 0], sizes = [1, 800], strides = [1, 1]} : vector<3x800xf32> to vector<1x800xf32>
    %47 = vector.broadcast %45 : vector<32x1xf32> to vector<32x800xf32>
    %48 = vector.broadcast %46 : vector<1x800xf32> to vector<32x800xf32>
    %49 = arith.mulf %47, %48 : vector<32x800xf32>
    %50 = vector.extract_strided_slice %0 {offsets = [0, 1], sizes = [32, 1], strides = [1, 1]} : vector<32x3xf32> to vector<32x1xf32>
    %51 = vector.extract_strided_slice %44 {offsets = [1, 0], sizes = [1, 800], strides = [1, 1]} : vector<3x800xf32> to vector<1x800xf32>
    %52 = vector.broadcast %50 : vector<32x1xf32> to vector<32x800xf32>
    %53 = vector.broadcast %51 : vector<1x800xf32> to vector<32x800xf32>
    %54 = arith.mulf %52, %53 : vector<32x800xf32>
    %55 = arith.addf %49, %54 : vector<32x800xf32>
    %56 = vector.extract_strided_slice %0 {offsets = [0, 2], sizes = [32, 1], strides = [1, 1]} : vector<32x3xf32> to vector<32x1xf32>
    %57 = vector.extract_strided_slice %44 {offsets = [2, 0], sizes = [1, 800], strides = [1, 1]} : vector<3x800xf32> to vector<1x800xf32>
    %58 = vector.broadcast %56 : vector<32x1xf32> to vector<32x800xf32>
    %59 = vector.broadcast %57 : vector<1x800xf32> to vector<32x800xf32>
    %60 = arith.mulf %58, %59 : vector<32x800xf32>
    %61 = arith.addf %55, %60 : vector<32x800xf32>
    %62 = vector.broadcast %1 : vector<32x1xf32> to vector<32x800xf32>
    %63 = arith.addf %61, %62 : vector<32x800xf32>
    %cst_20 = arith.constant 0.000000e+00 : f32
    %64 = vector.broadcast %cst_20 : f32 to vector<32x800xf32>
    %65 = arith.maximumf %63, %64 : vector<32x800xf32>
    %cst_21 = arith.constant dense<0.000000e+00> : vector<800xf32>
    %66 = vector.multi_reduction <add>, %65, %cst_21 [0] : vector<32x800xf32> to vector<800xf32>
    %67 = vector.shape_cast %66 : vector<800xf32> to vector<1x800xf32>
    %cst_22 = arith.constant 3.200000e+01 : f32
    %68 = vector.broadcast %cst_22 : f32 to vector<1x800xf32>
    %69 = arith.divf %67, %68 : vector<1x800xf32>
    %cst_23 = arith.constant 0.000000e+00 : f32
    %70 = vector.broadcast %cst_23 : f32 to vector<1x800xf32>
    %71 = arith.subf %70, %69 : vector<1x800xf32>
    %72 = math.exp %71 : vector<1x800xf32>
    %cst_24 = arith.constant 1.000000e+00 : f32
    %73 = vector.broadcast %cst_24 : f32 to vector<1x800xf32>
    %74 = arith.addf %73, %72 : vector<1x800xf32>
    %cst_25 = arith.constant 1.000000e+00 : f32
    %75 = vector.broadcast %cst_25 : f32 to vector<1x800xf32>
    %76 = arith.divf %75, %74 : vector<1x800xf32>
    %c0_26 = arith.constant 0 : index
    %c1_27 = arith.constant 1 : index
    %c0_28 = arith.constant 0 : index
    %77 = vector.load %arg10[%c0_26, %c1_27, %c0_28] : memref<1x2x800xf32, #tpu.memory_space<vmem>>, vector<1x1x800xf32>
    %78 = vector.shape_cast %77 : vector<1x1x800xf32> to vector<1x800xf32>
    %79 = vector.shape_cast %76 : vector<1x800xf32> to vector<1x1x800xf32>
    tpu.vector_store %arg10[%c0_26, %c1_27, %c0_28], %79 {strides = array<i32>} : memref<1x2x800xf32, #tpu.memory_space<vmem>>, vector<1x1x800xf32>,
    %cst_29 = arith.constant dense<0.000000e+00> : vector<32xf32>
    %80 = vector.multi_reduction <add>, %65, %cst_29 [1] : vector<32x800xf32> to vector<32xf32>
    %81 = vector.shape_cast %80 : vector<32xf32> to vector<32x1xf32>
    %cst_30 = arith.constant dense<0xFF800000> : vector<32xf32>
    %82 = vector.multi_reduction <maximumf>, %65, %cst_30 [1] : vector<32x800xf32> to vector<32xf32>
    %83 = vector.shape_cast %82 : vector<32xf32> to vector<32x1xf32>
    %84 = arith.addf %40, %81 : vector<32x1xf32>
    %85 = arith.addf %42, %83 : vector<32x1xf32>
    %cst_31 = arith.constant 6.250000e-04 : f32
    %86 = vector.broadcast %cst_31 : f32 to vector<32x1xf32>
    %87 = arith.mulf %84, %86 : vector<32x1xf32>
    %cst_32 = arith.constant 5.000000e-01 : f32
    %88 = vector.broadcast %cst_32 : f32 to vector<32x1xf32>
    %89 = arith.mulf %85, %88 : vector<32x1xf32>
    %c0_33 = arith.constant 0 : index
    %c0_34 = arith.constant 0 : index
    %90 = vector.load %arg4[%c0_33, %c0_34] : memref<32x32xf32, #tpu.memory_space<vmem>>, vector<32x32xf32>
    %91 = vector.broadcast %87 : vector<32x1xf32> to vector<32x32xf32>
    %92 = arith.mulf %90, %91 : vector<32x32xf32>
    %cst_35 = arith.constant dense<0.000000e+00> : vector<32xf32>
    %93 = vector.multi_reduction <add>, %92, %cst_35 [0] : vector<32x32xf32> to vector<32xf32>
    %94 = vector.shape_cast %93 : vector<32xf32> to vector<1x32xf32>
    %c0_36 = arith.constant 0 : index
    %c0_37 = arith.constant 0 : index
    %95 = vector.load %arg5[%c0_36, %c0_37] : memref<1x32xf32, #tpu.memory_space<vmem>>, vector<1x32xf32>
    %96 = arith.addf %94, %95 : vector<1x32xf32>
    %cst_38 = arith.constant 0.000000e+00 : f32
    %97 = vector.broadcast %cst_38 : f32 to vector<1x32xf32>
    %98 = arith.maximumf %96, %97 : vector<1x32xf32>
    %c0_39 = arith.constant 0 : index
    %c0_40 = arith.constant 0 : index
    %99 = vector.load %arg6[%c0_39, %c0_40] : memref<32x32xf32, #tpu.memory_space<vmem>>, vector<32x32xf32>
    %100 = vector.broadcast %98 : vector<1x32xf32> to vector<32x32xf32>
    %101 = arith.mulf %99, %100 : vector<32x32xf32>
    %cst_41 = arith.constant dense<0.000000e+00> : vector<32xf32>
    %102 = vector.multi_reduction <add>, %101, %cst_41 [1] : vector<32x32xf32> to vector<32xf32>
    %103 = vector.shape_cast %102 : vector<32xf32> to vector<32x1xf32>
    %c0_42 = arith.constant 0 : index
    %c0_43 = arith.constant 0 : index
    %104 = vector.load %arg7[%c0_42, %c0_43] : memref<32x1xf32, #tpu.memory_space<vmem>>, vector<32x1xf32>
    %105 = arith.addf %103, %104 : vector<32x1xf32>
    %c0_44 = arith.constant 0 : index
    %c0_45 = arith.constant 0 : index
    %c0_46 = arith.constant 0 : index
    %106 = vector.load %arg8[%c0_44, %c0_45, %c0_46] : memref<1x32x1xf32, #tpu.memory_space<vmem>>, vector<1x32x1xf32>
    %107 = vector.shape_cast %106 : vector<1x32x1xf32> to vector<32x1xf32>
    %108 = vector.shape_cast %105 : vector<32x1xf32> to vector<1x32x1xf32>
    tpu.vector_store %arg8[%c0_44, %c0_45, %c0_46], %108 {strides = array<i32>} : memref<1x32x1xf32, #tpu.memory_space<vmem>>, vector<1x32x1xf32>,
    %c0_47 = arith.constant 0 : index
    %c0_48 = arith.constant 0 : index
    %109 = vector.load %arg4[%c0_47, %c0_48] : memref<32x32xf32, #tpu.memory_space<vmem>>, vector<32x32xf32>
    %110 = vector.broadcast %89 : vector<32x1xf32> to vector<32x32xf32>
    %111 = arith.mulf %109, %110 : vector<32x32xf32>
    %cst_49 = arith.constant dense<0.000000e+00> : vector<32xf32>
    %112 = vector.multi_reduction <add>, %111, %cst_49 [0] : vector<32x32xf32> to vector<32xf32>
    %113 = vector.shape_cast %112 : vector<32xf32> to vector<1x32xf32>
    %c0_50 = arith.constant 0 : index
    %c0_51 = arith.constant 0 : index
    %114 = vector.load %arg5[%c0_50, %c0_51] : memref<1x32xf32, #tpu.memory_space<vmem>>, vector<1x32xf32>
    %115 = arith.addf %113, %114 : vector<1x32xf32>
    %cst_52 = arith.constant 0.000000e+00 : f32
    %116 = vector.broadcast %cst_52 : f32 to vector<1x32xf32>
    %117 = arith.maximumf %115, %116 : vector<1x32xf32>
    %c0_53 = arith.constant 0 : index
    %c0_54 = arith.constant 0 : index
    %118 = vector.load %arg6[%c0_53, %c0_54] : memref<32x32xf32, #tpu.memory_space<vmem>>, vector<32x32xf32>
    %119 = vector.broadcast %117 : vector<1x32xf32> to vector<32x32xf32>
    %120 = arith.mulf %118, %119 : vector<32x32xf32>
    %cst_55 = arith.constant dense<0.000000e+00> : vector<32xf32>
    %121 = vector.multi_reduction <add>, %120, %cst_55 [1] : vector<32x32xf32> to vector<32xf32>
    %122 = vector.shape_cast %121 : vector<32xf32> to vector<32x1xf32>
    %c0_56 = arith.constant 0 : index
    %c0_57 = arith.constant 0 : index
    %123 = vector.load %arg7[%c0_56, %c0_57] : memref<32x1xf32, #tpu.memory_space<vmem>>, vector<32x1xf32>
    %124 = arith.addf %122, %123 : vector<32x1xf32>
    %c0_58 = arith.constant 0 : index
    %c0_59 = arith.constant 0 : index
    %c0_60 = arith.constant 0 : index
    %125 = vector.load %arg9[%c0_58, %c0_59, %c0_60] : memref<1x32x1xf32, #tpu.memory_space<vmem>>, vector<1x32x1xf32>
    %126 = vector.shape_cast %125 : vector<1x32x1xf32> to vector<32x1xf32>
    %127 = vector.shape_cast %124 : vector<32x1xf32> to vector<1x32x1xf32>
    tpu.vector_store %arg9[%c0_58, %c0_59, %c0_60], %127 {strides = array<i32>} : memref<1x32x1xf32, #tpu.memory_space<vmem>>, vector<1x32x1xf32>,
    return
  }
  func.func @transform_0(%arg0: i32) -> (i32, i32, i32, i32) {
    %c0_i32 = arith.constant 0 : i32
    %c0_i32_0 = arith.constant 0 : i32
    %c0_i32_1 = arith.constant 0 : i32
    %c0_i32_2 = arith.constant 0 : i32
    return %arg0, %c0_i32, %c0_i32_0, %c0_i32_1 : i32, i32, i32, i32
  }
  func.func @transform_1(%arg0: i32) -> (i32, i32) {
    %c0_i32 = arith.constant 0 : i32
    %c0_i32_0 = arith.constant 0 : i32
    %c0_i32_1 = arith.constant 0 : i32
    return %c0_i32, %c0_i32_0 : i32, i32
  }
  func.func @transform_2(%arg0: i32) -> (i32, i32) {
    %c0_i32 = arith.constant 0 : i32
    %c0_i32_0 = arith.constant 0 : i32
    %c0_i32_1 = arith.constant 0 : i32
    return %c0_i32, %c0_i32_0 : i32, i32
  }
  func.func @transform_3(%arg0: i32) -> (i32, i32) {
    %c0_i32 = arith.constant 0 : i32
    %c0_i32_0 = arith.constant 0 : i32
    %c0_i32_1 = arith.constant 0 : i32
    return %c0_i32, %c0_i32_0 : i32, i32
  }
  func.func @transform_4(%arg0: i32) -> (i32, i32) {
    %c0_i32 = arith.constant 0 : i32
    %c0_i32_0 = arith.constant 0 : i32
    %c0_i32_1 = arith.constant 0 : i32
    return %c0_i32, %c0_i32_0 : i32, i32
  }
  func.func @transform_5(%arg0: i32) -> (i32, i32) {
    %c0_i32 = arith.constant 0 : i32
    %c0_i32_0 = arith.constant 0 : i32
    %c0_i32_1 = arith.constant 0 : i32
    return %c0_i32, %c0_i32_0 : i32, i32
  }
  func.func @transform_6(%arg0: i32) -> (i32, i32) {
    %c0_i32 = arith.constant 0 : i32
    %c0_i32_0 = arith.constant 0 : i32
    %c0_i32_1 = arith.constant 0 : i32
    return %c0_i32, %c0_i32_0 : i32, i32
  }
  func.func @transform_7(%arg0: i32) -> (i32, i32, i32) {
    %c0_i32 = arith.constant 0 : i32
    %c0_i32_0 = arith.constant 0 : i32
    %c0_i32_1 = arith.constant 0 : i32
    return %arg0, %c0_i32, %c0_i32_0 : i32, i32, i32
  }
  func.func @transform_8(%arg0: i32) -> (i32, i32, i32) {
    %c0_i32 = arith.constant 0 : i32
    %c0_i32_0 = arith.constant 0 : i32
    %c0_i32_1 = arith.constant 0 : i32
    return %arg0, %c0_i32, %c0_i32_0 : i32, i32, i32
  }
  func.func @transform_9(%arg0: i32) -> (i32, i32, i32) {
    %c0_i32 = arith.constant 0 : i32
    %c0_i32_0 = arith.constant 0 : i32
    %c0_i32_1 = arith.constant 0 : i32
    return %arg0, %c0_i32, %c0_i32_0 : i32, i32, i32
  }
}

module attributes {stable_mosaic.version = 11 : i64} {
  func.func @_queue_scores_kernel(%arg0: memref<20x32xf32, #tpu.memory_space<vmem>>, %arg1: memref<32x1024xbf16, #tpu.memory_space<vmem>>, %arg2: memref<20x1xf32, #tpu.memory_space<vmem>>, %arg3: memref<20x1024xf32, #tpu.memory_space<vmem>>) attributes {dimension_semantics = [], scalar_prefetch = 0 : i64, scratch_operands = 0 : i64, tpu.core_type = #tpu.core_type<tc>} {
    %c0 = arith.constant 0 : index
    %c0_0 = arith.constant 0 : index
    %0 = vector.load %arg0[%c0, %c0_0] : memref<20x32xf32, #tpu.memory_space<vmem>>, vector<20x32xf32>
    %1 = arith.mulf %0, %0 : vector<20x32xf32>
    %cst = arith.constant dense<0.000000e+00> : vector<20xf32>
    %2 = vector.multi_reduction <add>, %1, %cst [1] : vector<20x32xf32> to vector<20xf32>
    %3 = vector.shape_cast %2 : vector<20xf32> to vector<20x1xf32>
    %cst_1 = arith.constant 1.000000e-24 : f32
    %4 = vector.broadcast %cst_1 : f32 to vector<20x1xf32>
    %5 = arith.maximumf %3, %4 : vector<20x1xf32>
    %6 = math.rsqrt %5 : vector<20x1xf32>
    %7 = vector.broadcast %6 : vector<20x1xf32> to vector<20x32xf32>
    %8 = arith.mulf %0, %7 : vector<20x32xf32>
    %9 = arith.truncf %8 : vector<20x32xf32> to vector<20x32xbf16>
    %c0_2 = arith.constant 0 : index
    %c0_3 = arith.constant 0 : index
    %10 = vector.load %arg1[%c0_2, %c0_3] : memref<32x1024xbf16, #tpu.memory_space<vmem>>, vector<32x1024xbf16>
    %cst_4 = arith.constant dense<0.000000e+00> : vector<20x1024xf32>
    %11 = tpu.matmul %9, %10, %cst_4 {dimension_numbers = #tpu.dot_dimension_numbers<[1], [0], [0], [1], [0, 0, 1, 1], [], []>} : vector<20x32xbf16>, vector<32x1024xbf16>, vector<20x1024xf32> -> vector<20x1024xf32>
    %c0_5 = arith.constant 0 : index
    %c0_6 = arith.constant 0 : index
    %12 = vector.load %arg2[%c0_5, %c0_6] : memref<20x1xf32, #tpu.memory_space<vmem>>, vector<20x1xf32>
    %cst_7 = arith.constant 5.000000e-01 : f32
    %13 = vector.broadcast %cst_7 : f32 to vector<20x1xf32>
    %14 = arith.cmpf ogt, %12, %13 : vector<20x1xf32>
    %15 = arith.mulf %11, %11 : vector<20x1024xf32>
    %16 = vector.shape_cast %14 : vector<20x1xi1> to vector<20x1xi1>
    %17 = vector.broadcast %16 : vector<20x1xi1> to vector<20x1024xi1>
    %18 = arith.select %17, %15, %11 : vector<20x1024xi1>, vector<20x1024xf32>
    %c0_8 = arith.constant 0 : index
    %c0_9 = arith.constant 0 : index
    %19 = vector.load %arg3[%c0_8, %c0_9] : memref<20x1024xf32, #tpu.memory_space<vmem>>, vector<20x1024xf32>
    tpu.vector_store %arg3[%c0_8, %c0_9], %18 {strides = array<i32>} : memref<20x1024xf32, #tpu.memory_space<vmem>>, vector<20x1024xf32>,
    return
  }
}

module attributes {stable_mosaic.version = 11 : i64} {
  func.func @_kld3_kernel(%arg0: memref<12x256xf32, #tpu.memory_space<vmem>>, %arg1: memref<12x256xf32, #tpu.memory_space<vmem>>, %arg2: memref<1x1xf32, #tpu.memory_space<vmem>>) attributes {dimension_semantics = [], scalar_prefetch = 0 : i64, scratch_operands = 0 : i64, tpu.core_type = #tpu.core_type<tc>} {
    %c0 = arith.constant 0 : index
    %c0_0 = arith.constant 0 : index
    %0 = vector.load %arg0[%c0, %c0_0] : memref<12x256xf32, #tpu.memory_space<vmem>>, vector<12x256xf32>
    %cst = arith.constant 1.000000e+01 : f32
    %1 = vector.broadcast %cst : f32 to vector<12x256xf32>
    %2 = arith.mulf %0, %1 : vector<12x256xf32>
    %c0_1 = arith.constant 0 : index
    %c0_2 = arith.constant 0 : index
    %3 = vector.load %arg1[%c0_1, %c0_2] : memref<12x256xf32, #tpu.memory_space<vmem>>, vector<12x256xf32>
    %cst_3 = arith.constant 2.500000e+01 : f32
    %4 = vector.broadcast %cst_3 : f32 to vector<12x256xf32>
    %5 = arith.mulf %3, %4 : vector<12x256xf32>
    %cst_4 = arith.constant dense<0xFF800000> : vector<12xf32>
    %6 = vector.multi_reduction <maximumf>, %2, %cst_4 [1] : vector<12x256xf32> to vector<12xf32>
    %7 = vector.shape_cast %6 : vector<12xf32> to vector<12x1xf32>
    %8 = vector.broadcast %7 : vector<12x1xf32> to vector<12x256xf32>
    %9 = arith.subf %2, %8 : vector<12x256xf32>
    %10 = math.exp %9 : vector<12x256xf32>
    %cst_5 = arith.constant dense<0.000000e+00> : vector<12xf32>
    %11 = vector.multi_reduction <add>, %10, %cst_5 [1] : vector<12x256xf32> to vector<12xf32>
    %12 = vector.shape_cast %11 : vector<12xf32> to vector<12x1xf32>
    %13 = math.log %12 : vector<12x1xf32>
    %14 = vector.broadcast %13 : vector<12x1xf32> to vector<12x256xf32>
    %15 = arith.subf %9, %14 : vector<12x256xf32>
    %cst_6 = arith.constant dense<0xFF800000> : vector<12xf32>
    %16 = vector.multi_reduction <maximumf>, %5, %cst_6 [1] : vector<12x256xf32> to vector<12xf32>
    %17 = vector.shape_cast %16 : vector<12xf32> to vector<12x1xf32>
    %18 = vector.broadcast %17 : vector<12x1xf32> to vector<12x256xf32>
    %19 = arith.subf %5, %18 : vector<12x256xf32>
    %20 = math.exp %19 : vector<12x256xf32>
    %cst_7 = arith.constant dense<0.000000e+00> : vector<12xf32>
    %21 = vector.multi_reduction <add>, %20, %cst_7 [1] : vector<12x256xf32> to vector<12xf32>
    %22 = vector.shape_cast %21 : vector<12xf32> to vector<12x1xf32>
    %23 = math.log %22 : vector<12x1xf32>
    %24 = vector.broadcast %23 : vector<12x1xf32> to vector<12x256xf32>
    %25 = arith.subf %19, %24 : vector<12x256xf32>
    %26 = math.exp %25 : vector<12x256xf32>
    %27 = vector.broadcast %23 : vector<12x1xf32> to vector<12x256xf32>
    %28 = arith.subf %19, %27 : vector<12x256xf32>
    %29 = arith.subf %28, %15 : vector<12x256xf32>
    %30 = arith.mulf %26, %29 : vector<12x256xf32>
    %cst_8 = arith.constant dense<0.000000e+00> : vector<12xf32>
    %31 = vector.multi_reduction <add>, %30, %cst_8 [1] : vector<12x256xf32> to vector<12xf32>
    %32 = vector.shape_cast %31 : vector<12xf32> to vector<12x1xf32>
    %cst_9 = arith.constant dense<0.000000e+00> : vector<1xf32>
    %33 = vector.multi_reduction <add>, %32, %cst_9 [0] : vector<12x1xf32> to vector<1xf32>
    %34 = vector.shape_cast %33 : vector<1xf32> to vector<1x1xf32>
    %cst_10 = arith.constant 2.500000e-01 : f32
    %35 = vector.broadcast %cst_10 : f32 to vector<1x1xf32>
    %36 = arith.mulf %34, %35 : vector<1x1xf32>
    %c0_11 = arith.constant 0 : index
    %c0_12 = arith.constant 0 : index
    %37 = vector.load %arg2[%c0_11, %c0_12] : memref<1x1xf32, #tpu.memory_space<vmem>>, vector<1x1xf32>
    tpu.vector_store %arg2[%c0_11, %c0_12], %36 {strides = array<i32>} : memref<1x1xf32, #tpu.memory_space<vmem>>, vector<1x1xf32>,
    return
  }
}

</mosaic_0001>

<llo_original>
// kernel: forward.5
$region0: #{forward.5}
  #allocation0 [shape = 'u32[]', space=smem, size = 0x4, offset = 0x4, fixed_abs, tag = 'smem constant byte address 0x4 - core index']
  #allocation1 [shape = 'u32[144,128]{1,0:T(1,128)}', space=vmem, size = 0x12000, scoped, tag = 'internal scratch']
  %s0 = inlined_call_operand.vmem [shape: f32[8,2,3,800], index: 0, kind: input, shape index: {}]
  %s1 = inlined_call_operand.vmem [shape: f32[32,3], index: 1, kind: input, shape index: {}]
  %s2 = inlined_call_operand.vmem [shape: f32[32,1], index: 2, kind: input, shape index: {}]
  %s3 = inlined_call_operand.vmem [shape: f32[32,32], index: 3, kind: input, shape index: {}]
  %s4 = inlined_call_operand.vmem [shape: f32[1,32], index: 4, kind: input, shape index: {}]
  %s5 = inlined_call_operand.vmem [shape: f32[32,32], index: 5, kind: input, shape index: {}]
  %s6 = inlined_call_operand.vmem [shape: f32[32,1], index: 6, kind: input, shape index: {}]
  %s7 = inlined_call_operand.hbm [shape: f32[8,32,1], index: 7, kind: output, shape index: {0}]
  %s8 = inlined_call_operand.hbm [shape: f32[8,32,1], index: 8, kind: output, shape index: {1}]
  %s9 = inlined_call_operand.vmem [shape: f32[8,2,800], index: 9, kind: output, shape index: {2}]
  %10 = xla_tuple %s7, %s8, %s9
  %s11 = sld [smem:[#allocation0]]
  $region77: #{forward.5} parent=0
    _
  %s13 = ssub.s32 1, %s11
  %s14 = scalar_select 0, %s13, %s11
  $region1: #{forward.5} parent=0
    #allocation2 [shape = 'u8[32768]{0}', space=vmem, size = 0x8000, scoped, tag = 'output window, operand 0']
    #allocation3 [shape = 's32[2]{0}', space=sflag, size = 0x8, scoped, tag = 'scoped memory for forward.5']
    #allocation4 [shape = 'u8[32768]{0}', space=vmem, size = 0x8000, scoped, tag = 'output window, operand 1']
    #allocation5 [shape = 's32[2]{0}', space=sflag, size = 0x8, scoped, tag = 'scoped memory for forward.5']
    %15 = vsyncpa [#allocation3], 0
    %s16 = scalar_lea.sflag [#allocation3], 1
    %17 = vsyncpa %s16, 0
    %18 = vsyncpa [#allocation5], 0
    %s19 = scalar_lea.sflag [#allocation5], 1
    %20 = vsyncpa %s19, 0
    loop: start=0, step=1, limit=10
    $region2: #{forward.5} parent=1 // loop_pre_header
      _
    $region3: #{forward.5} parent=1 // loop_header
      %s22 = sphi 0, %s26
      %p23 = scmp.ge.s32.totalorder %s22, 10
      %s32 = sphi 0, %s34
      %s35 = sphi 0, %s32
      %s36 = sphi 0, %s35
      %s52 = sphi 0, %s36
      %s56 = sphi 0, %s56
      %s58 = sphi 0, %s56
      %s59 = sphi 0, %s58
      %s73 = sphi 0, %s59
      %s77 = sphi 0, %s77
      %s79 = sphi 0, %s77
      %s80 = sphi 0, %s79
      %s94 = sphi 0, %s80
      %s98 = sphi 0, %s98
      %s100 = sphi 0, %s98
      %s101 = sphi 0, %s100
      %s115 = sphi 0, %s101
      %s119 = sphi 0, %s119
      %s121 = sphi 0, %s119
      %s122 = sphi 0, %s121
      %s136 = sphi 0, %s122
      %s140 = sphi 0, %s140
      %s142 = sphi 0, %s140
      %s143 = sphi 0, %s142
      %s157 = sphi 0, %s143
      %s161 = sphi 0, %s161
      %s163 = sphi 0, %s161
      %s164 = sphi 0, %s163
      %s178 = sphi 0, %s164
      %s184 = sphi 0, %s186
      %s187 = sphi 0, %s184
      %s188 = sphi 0, %s187
      %s204 = sphi 0, %s188
      %s210 = sphi 0, %s212
      %s213 = sphi 0, %s210
      %s214 = sphi 0, %s213
      %s230 = sphi 0, %s214
      %s236 = sphi 0, %s238
      %s239 = sphi 0, %s236
      %s240 = sphi 0, %s239
      %s256 = sphi 0, %s240
    $region4: #{forward.5} parent=1 // loop_header_branch
      %25 = sbr.rel (%p23) target = $region8
    $region5: #{forward.5} parent=1 // loop_body
      %s27 = ssub.s32 %s22, 1
      %s28 = ssub.s32 %s22, 2
      %s29 = sadd.s32 %s22, 1
      %s30 = ssub.s32 %s22, %s29
      %p31 = scmp.eq.s32.totalorder %s30, 0
      %s33 = sadd.s32 %s32, 1
      %s34 = scalar_select %p31, %s32, %s33
      %p37 = pneg %p31
      %p38 = scmp.eq.s32.totalorder %s22, 7
      %p39 = por %p37, %p38
      %p40 = scmp.ne.s32.totalorder %s32, %s35
      %p41 = scmp.eq.s32.totalorder %s22, 0
      %p42 = por %p40, %p41
      %p43 = scmp.ne.s32.totalorder %s32, %s35
      %p44 = scmp.eq.s32.totalorder %s27, 7
      %p45 = por %p43, %p44
      %p46 = scmp.ne.s32.totalorder %s35, %s36
      %p47 = scmp.eq.s32.totalorder %s27, 0
      %p48 = por %p46, %p47
      %p49 = scmp.ne.s32.totalorder %s35, %s36
      %p50 = scmp.eq.s32.totalorder %s28, 7
      %p51 = por %p49, %p50
      %p53 = scmp.ne.s32.totalorder %s36, %s52
      %p54 = scmp.eq.s32.totalorder %s28, 0
      %p55 = por %p53, %p54
      %s57 = sadd.s32 %s56, 1
      %p60 = scmp.eq.s32.totalorder %s22, 7
      %p61 = scmp.ne.s32.totalorder %s56, %s58
      %p62 = scmp.eq.s32.totalorder %s22, 0
      %p63 = por %p61, %p62
      %p64 = scmp.ne.s32.totalorder %s56, %s58
      %p65 = scmp.eq.s32.totalorder %s27, 7
      %p66 = por %p64, %p65
      %p67 = scmp.ne.s32.totalorder %s58, %s59
      %p68 = scmp.eq.s32.totalorder %s27, 0
      %p69 = por %p67, %p68
      %p70 = scmp.ne.s32.totalorder %s58, %s59
      %p71 = scmp.eq.s32.totalorder %s28, 7
      %p72 = por %p70, %p71
      %p74 = scmp.ne.s32.totalorder %s59, %s73
      %p75 = scmp.eq.s32.totalorder %s28, 0
      %p76 = por %p74, %p75
      %s78 = sadd.s32 %s77, 1
      %p81 = scmp.eq.s32.totalorder %s22, 7
      %p82 = scmp.ne.s32.totalorder %s77, %s79
      %p83 = scmp.eq.s32.totalorder %s22, 0
      %p84 = por %p82, %p83
      %p85 = scmp.ne.s32.totalorder %s77, %s79
      %p86 = scmp.eq.s32.totalorder %s27, 7
      %p87 = por %p85, %p86
      %p88 = scmp.ne.s32.totalorder %s79, %s80
      %p89 = scmp.eq.s32.totalorder %s27, 0
      %p90 = por %p88, %p89
      %p91 = scmp.ne.s32.totalorder %s79, %s80
      %p92 = scmp.eq.s32.totalorder %s28, 7
      %p93 = por %p91, %p92
      %p95 = scmp.ne.s32.totalorder %s80, %s94
      %p96 = scmp.eq.s32.totalorder %s28, 0
      %p97 = por %p95, %p96
      %s99 = sadd.s32 %s98, 1
      %p102 = scmp.eq.s32.totalorder %s22, 7
      %p103 = scmp.ne.s32.totalorder %s98, %s100
      %p104 = scmp.eq.s32.totalorder %s22, 0
      %p105 = por %p103, %p104
      %p106 = scmp.ne.s32.totalorder %s98, %s100
      %p107 = scmp.eq.s32.totalorder %s27, 7
      %p108 = por %p106, %p107
      %p109 = scmp.ne.s32.totalorder %s100, %s101
      %p110 = scmp.eq.s32.totalorder %s27, 0
      %p111 = por %p109, %p110
      %p112 = scmp.ne.s32.totalorder %s100, %s101
      %p113 = scmp.eq.s32.totalorder %s28, 7
      %p114 = por %p112, %p113
      %p116 = scmp.ne.s32.totalorder %s101, %s115
      %p117 = scmp.eq.s32.totalorder %s28, 0
      %p118 = por %p116, %p117
      %s120 = sadd.s32 %s119, 1
      %p123 = scmp.eq.s32.totalorder %s22, 7
      %p124 = scmp.ne.s32.totalorder %s119, %s121
      %p125 = scmp.eq.s32.totalorder %s22, 0
      %p126 = por %p124, %p125
      %p127 = scmp.ne.s32.totalorder %s119, %s121
      %p128 = scmp.eq.s32.totalorder %s27, 7
      %p129 = por %p127, %p128
      %p130 = scmp.ne.s32.totalorder %s121, %s122
      %p131 = scmp.eq.s32.totalorder %s27, 0
      %p132 = por %p130, %p131
      %p133 = scmp.ne.s32.totalorder %s121, %s122
      %p134 = scmp.eq.s32.totalorder %s28, 7
      %p135 = por %p133, %p134
      %p137 = scmp.ne.s32.totalorder %s122, %s136
      %p138 = scmp.eq.s32.totalorder %s28, 0
      %p139 = por %p137, %p138
      %s141 = sadd.s32 %s140, 1
      %p144 = scmp.eq.s32.totalorder %s22, 7
      %p145 = scmp.ne.s32.totalorder %s140, %s142
      %p146 = scmp.eq.s32.totalorder %s22, 0
      %p147 = por %p145, %p146
      %p148 = scmp.ne.s32.totalorder %s140, %s142
      %p149 = scmp.eq.s32.totalorder %s27, 7
      %p150 = por %p148, %p149
      %p151 = scmp.ne.s32.totalorder %s142, %s143
      %p152 = scmp.eq.s32.totalorder %s27, 0
      %p153 = por %p151, %p152
      %p154 = scmp.ne.s32.totalorder %s142, %s143
      %p155 = scmp.eq.s32.totalorder %s28, 7
      %p156 = por %p154, %p155
      %p158 = scmp.ne.s32.totalorder %s143, %s157
      %p159 = scmp.eq.s32.totalorder %s28, 0
      %p160 = por %p158, %p159
      %s162 = sadd.s32 %s161, 1
      %p165 = scmp.eq.s32.totalorder %s22, 7
      %p166 = scmp.ne.s32.totalorder %s161, %s163
      %p167 = scmp.eq.s32.totalorder %s22, 0
      %p168 = por %p166, %p167
      %p169 = scmp.ne.s32.totalorder %s161, %s163
      %p170 = scmp.eq.s32.totalorder %s27, 7
      %p171 = por %p169, %p170
      %p172 = scmp.ne.s32.totalorder %s163, %s164
      %p173 = scmp.eq.s32.totalorder %s27, 0
      %p174 = por %p172, %p173
      %p175 = scmp.ne.s32.totalorder %s163, %s164
      %p176 = scmp.eq.s32.totalorder %s28, 7
      %p177 = por %p175, %p176
      %p179 = scmp.ne.s32.totalorder %s164, %s178
      %p180 = scmp.eq.s32.totalorder %s28, 0
      %p181 = por %p179, %p180
      %s182 = ssub.s32 %s22, %s29
      %p183 = scmp.eq.s32.totalorder %s182, 0
      %s185 = sadd.s32 %s184, 1
      %s186 = scalar_select %p183, %s184, %s185
      %p189 = pneg %p183
      %p190 = scmp.eq.s32.totalorder %s22, 7
      %p191 = por %p189, %p190
      %p192 = scmp.ne.s32.totalorder %s184, %s187
      %p193 = scmp.eq.s32.totalorder %s22, 0
      %p194 = por %p192, %p193
      %p195 = scmp.ne.s32.totalorder %s184, %s187
      %p196 = scmp.eq.s32.totalorder %s27, 7
      %p197 = por %p195, %p196
      %p198 = scmp.ne.s32.totalorder %s187, %s188
      %p199 = scmp.eq.s32.totalorder %s27, 0
      %p200 = por %p198, %p199
      %p201 = scmp.ne.s32.totalorder %s187, %s188
      %p202 = scmp.eq.s32.totalorder %s28, 7
      %p203 = por %p201, %p202
      %p205 = scmp.ne.s32.totalorder %s188, %s204
      %p206 = scmp.eq.s32.totalorder %s28, 0
      %p207 = por %p205, %p206
      %s208 = ssub.s32 %s22, %s29
      %p209 = scmp.eq.s32.totalorder %s208, 0
      %s211 = sadd.s32 %s210, 1
      %s212 = scalar_select %p209, %s210, %s211
      %p215 = pneg %p209
      %p216 = scmp.eq.s32.totalorder %s22, 7
      %p217 = por %p215, %p216
      %p218 = scmp.ne.s32.totalorder %s210, %s213
      %p219 = scmp.eq.s32.totalorder %s22, 0
      %p220 = por %p218, %p219
      %p221 = scmp.ne.s32.totalorder %s210, %s213
      %p222 = scmp.eq.s32.totalorder %s27, 7
      %p223 = por %p221, %p222
      %p224 = scmp.ne.s32.totalorder %s213, %s214
      %p225 = scmp.eq.s32.totalorder %s27, 0
      %p226 = por %p224, %p225
      %p227 = scmp.ne.s32.totalorder %s213, %s214
      %p228 = scmp.eq.s32.totalorder %s28, 7
      %p229 = por %p227, %p228
      %p231 = scmp.ne.s32.totalorder %s214, %s230
      %p232 = scmp.eq.s32.totalorder %s28, 0
      %p233 = por %p231, %p232
      %s234 = ssub.s32 %s22, %s29
      %p235 = scmp.eq.s32.totalorder %s234, 0
      %s237 = sadd.s32 %s236, 1
      %s238 = scalar_select %p235, %s236, %s237
      %p241 = pneg %p235
      %p242 = scmp.eq.s32.totalorder %s22, 7
      %p243 = por %p241, %p242
      %p244 = scmp.ne.s32.totalorder %s236, %s239
      %p245 = scmp.eq.s32.totalorder %s22, 0
      %p246 = por %p244, %p245
      %p247 = scmp.ne.s32.totalorder %s236, %s239
      %p248 = scmp.eq.s32.totalorder %s27, 7
      %p249 = por %p247, %p248
      %p250 = scmp.ne.s32.totalorder %s239, %s240
      %p251 = scmp.eq.s32.totalorder %s27, 0
      %p252 = por %p250, %p251
      %p253 = scmp.ne.s32.totalorder %s239, %s240
      %p254 = scmp.eq.s32.totalorder %s28, 7
      %p255 = por %p253, %p254
      %p257 = scmp.ne.s32.totalorder %s240, %s256
      %p258 = scmp.eq.s32.totalorder %s28, 0
      %p259 = por %p257, %p258
      %p260 = scmp.le.s32.totalorder 1, %s22
      %p261 = scmp.lt.s32.totalorder %s22, 9
      %p262 = pnand %p260, %p261
      %p263 = pneg %p262
      // Predicated region
      $region9: #{forward.5} parent=5 // pred_check
        _
      $region10: #{forward.5} parent=5 // pred_check_branch
        %265 = sbr.rel (%p262) target = $region12
      $region11: #{forward.5} parent=5 // pred_region
        %s266 = ssub.s32 %s22, 1
        // Predicated region
        $region13: #{forward.5} parent=11 // pred_check
          %p267 = pneg %p69
        $region14: #{forward.5} parent=11 // pred_check_branch
          %269 = sbr.rel (%p267) target = $region16
        $region15: #{forward.5} parent=11 // pred_region
          _
        $region16: #{forward.5} parent=11 // pred_fallthru
          _
        // Predicated region
        $region17: #{forward.5} parent=11 // pred_check
          %p270 = pneg %p90
        $region18: #{forward.5} parent=11 // pred_check_branch
          %272 = sbr.rel (%p270) target = $region20
        $region19: #{forward.5} parent=11 // pred_region
          _
        $region20: #{forward.5} parent=11 // pred_fallthru
          _
        // Predicated region
        $region21: #{forward.5} parent=11 // pred_check
          %p273 = pneg %p111
        $region22: #{forward.5} parent=11 // pred_check_branch
          %275 = sbr.rel (%p273) target = $region24
        $region23: #{forward.5} parent=11 // pred_region
          _
        $region24: #{forward.5} parent=11 // pred_fallthru
          _
        // Predicated region
        $region25: #{forward.5} parent=11 // pred_check
          %p276 = pneg %p132
        $region26: #{forward.5} parent=11 // pred_check_branch
          %278 = sbr.rel (%p276) target = $region28
        $region27: #{forward.5} parent=11 // pred_region
          _
        $region28: #{forward.5} parent=11 // pred_fallthru
          _
        // Predicated region
        $region29: #{forward.5} parent=11 // pred_check
          %p279 = pneg %p153
        $region30: #{forward.5} parent=11 // pred_check_branch
          %281 = sbr.rel (%p279) target = $region32
        $region31: #{forward.5} parent=11 // pred_region
          _
        $region32: #{forward.5} parent=11 // pred_fallthru
          _
        // Predicated region
        $region33: #{forward.5} parent=11 // pred_check
          %p282 = pneg %p174
        $region34: #{forward.5} parent=11 // pred_check_branch
          %284 = sbr.rel (%p282) target = $region36
        $region35: #{forward.5} parent=11 // pred_region
          _
        $region36: #{forward.5} parent=11 // pred_fallthru
          _
      $region12: #{forward.5} parent=5 // pred_fallthru
        _
      %p285 = scmp.lt.s32.totalorder %s22, 8
      // Predicated region
      $region37: #{forward.5} parent=5 // pred_check
        %p286 = pneg %p285
      $region38: #{forward.5} parent=5 // pred_check_branch
        %288 = sbr.rel (%p286) target = $region40
      $region39: #{forward.5} parent=5 // pred_region
        // Predicated region
        $region41: #{forward.5} parent=39 // pred_check
          %p289 = pneg %p42
        $region42: #{forward.5} parent=39 // pred_check_branch
          %291 = sbr.rel (%p289) target = $region44
        $region43: #{forward.5} parent=39 // pred_region
          %p292 = scmp.lt.s32.totalorder %s22, 7
          %s293 = scalar_select %p292, %s22, 7
          %s294 = smul.addr %s293, 14
          %s295 = smul.addr %s294, 4
          %s296 = scalar_lea.vmem %s0, %s295
        $region44: #{forward.5} parent=39 // pred_fallthru
          _
      $region40: #{forward.5} parent=5 // pred_fallthru
        _
      %p297 = scmp.le.s32.totalorder 1, %s22
      %p298 = scmp.lt.s32.totalorder %s22, 9
      %p299 = pnand %p297, %p298
      %p300 = pneg %p299
      // Predicated region
      $region45: #{forward.5} parent=5 // pred_check
        _
      $region46: #{forward.5} parent=5 // pred_check_branch
        %302 = sbr.rel (%p299) target = $region48
      $region47: #{forward.5} parent=5 // pred_region
        %s303 = ssub.s32 %s22, 1
        %p304 = scmp.lt.s32.totalorder %s27, 7
        %s305 = scalar_select %p304, %s27, 7
        %s306 = smul.addr %s305, 14
        %s307 = smul.addr %s306, 4
        %s308 = scalar_lea.vmem %s0, %s307
        %p309 = pneg %p48
        %p310 = pneg %p45
        %p311 = pneg %p69
        %p312 = pneg %p66
        %p313 = pneg %p90
        %p314 = pneg %p87
        %p315 = pneg %p111
        %p316 = pneg %p108
        %p317 = pneg %p132
        %p318 = pneg %p129
        %p319 = pneg %p153
        %p320 = pneg %p150
        %p321 = pneg %p174
        %p322 = pneg %p171
        %p323 = pneg %p200
        %p324 = pneg %p197
        %s325 = sand.u32 %s187, 1
        %s326 = scalar_lea.sflag [#allocation3], %s325
        %s327 = sand.u32 %s187, 1
        %s328 = smul.addr %s327, 32
        %s329 = scalar_lea.vmem [#allocation2], %s328
        %p330 = pneg %p226
        %p331 = pneg %p223
        %s332 = sand.u32 %s213, 1
        %s333 = scalar_lea.sflag [#allocation5], %s332
        %s334 = sand.u32 %s213, 1
        %s335 = smul.addr %s334, 32
        %s336 = scalar_lea.vmem [#allocation4], %s335
        %p337 = pneg %p252
        %p338 = pneg %p249
        %p339 = scmp.lt.s32.totalorder %s27, 7
        %s340 = scalar_select %p339, %s27, 7
        %s341 = smul.addr %s340, 7
        %s342 = smul.addr %s341, 2
        %s343 = scalar_lea.vmem %s9, %s342
        %p344 = scmp.lt.s32.totalorder %s27, 7
        %s345 = scalar_select %p344, %s27, 7
        %s346 = smul.addr %s345, 14
        %s347 = smul.addr %s346, 4
        %s348 = scalar_lea.vmem %s0, %s347
        %p349 = scmp.lt.s32.totalorder %s27, 7
        %s350 = scalar_select %p349, %s27, 7
        %s351 = smul.addr %s350, 7
        %s352 = smul.addr %s351, 2
        %s353 = scalar_lea.vmem %s9, %s352
        %v354 = vld [vmem:[%s1] sm:$0xff]
        %v355 = vld [vmem:[%s1 + $0x8] sm:$0xff]
        %v356 = vld [vmem:[%s1 + $0x10] sm:$0xff]
        %v357 = vld [vmem:[%s1 + $0x18] sm:$0xff]
        %v358 = vld [vmem:[%s2] sm:$0xff]
        %v359 = vld [vmem:[%s2 + $0x8] sm:$0xff]
        %v360 = vld [vmem:[%s2 + $0x10] sm:$0xff]
        %v361 = vld [vmem:[%s2 + $0x18] sm:$0xff]
        %v362 = vld [vmem:[%s348] sm:$0x77]
        %v363 = vld [vmem:[%s348 + $0x8] sm:$0x77]
        %v364 = vld [vmem:[%s348 + $0x10] sm:$0x77]
        %v365 = vld [vmem:[%s348 + $0x18] sm:$0x7]
        %367 = vset.pattern.permute.xlu0 0
        %368 = vperm.xlu0 %367, %v354
        %v369 = vpop.permute.xlu0 %368
        %372 = vset.pattern.permute.xlu0 0
        %373 = vperm.xlu0 %372, %v355
        %v374 = vpop.permute.xlu0 %373
        %377 = vset.pattern.permute.xlu0 0
        %378 = vperm.xlu0 %377, %v356
        %v379 = vpop.permute.xlu0 %378
        %382 = vset.pattern.permute.xlu0 0
        %383 = vperm.xlu0 %382, %v357
        %v384 = vpop.permute.xlu0 %383
        %v390 = vlaneseq
        %v391 = vshrl.u32 %v390, 7
        %v392 = vsub.s32 0, %v391
        %v393 = vrot.slane %v362, %v392
        %v394 = vlaneseq
        %v395 = vshrl.u32 %v394, 7
        %v396 = vsub.s32 4, %v395
        %v397 = vrot.slane %v362, %v396
        %v398 = vlaneseq
        %v399 = vshrl.u32 %v398, 7
        %v400 = vsub.s32 0, %v399
        %v401 = vrot.slane %v363, %v400
        %v402 = vlaneseq
        %v403 = vshrl.u32 %v402, 7
        %v404 = vsub.s32 4, %v403
        %v405 = vrot.slane %v363, %v404
        %v406 = vlaneseq
        %v407 = vshrl.u32 %v406, 7
        %v408 = vsub.s32 0, %v407
        %v409 = vrot.slane %v364, %v408
        %v410 = vlaneseq
        %v411 = vshrl.u32 %v410, 7
        %v412 = vsub.s32 4, %v411
        %v413 = vrot.slane %v364, %v412
        %v414 = vlaneseq
        %v415 = vshrl.u32 %v414, 7
        %v416 = vsub.s32 0, %v415
        %v417 = vrot.slane %v365, %v416
        %v425 = vlaneseq
        %v426 = vshrl.u32 %v425, 7
        %v427 = vsub.s32 0, %v426
        %v428 = vrot.slane %v393, %v427
        %v429 = vlaneseq
        %v430 = vshrl.u32 %v429, 7
        %v431 = vsub.s32 0, %v430
        %v432 = vrot.slane %v397, %v431
        %v433 = vlaneseq
        %v434 = vshrl.u32 %v433, 7
        %v435 = vsub.s32 0, %v434
        %v436 = vrot.slane %v401, %v435
        %v437 = vlaneseq
        %v438 = vshrl.u32 %v437, 7
        %v439 = vsub.s32 0, %v438
        %v440 = vrot.slane %v405, %v439
        %v441 = vlaneseq
        %v442 = vshrl.u32 %v441, 7
        %v443 = vsub.s32 0, %v442
        %v444 = vrot.slane %v409, %v443
        %v445 = vlaneseq
        %v446 = vshrl.u32 %v445, 7
        %v447 = vsub.s32 0, %v446
        %v448 = vrot.slane %v413, %v447
        %v449 = vlaneseq
        %v450 = vshrl.u32 %v449, 7
        %v451 = vsub.s32 0, %v450
        %v452 = vrot.slane %v417, %v451
        %v453 = vmul.f32 %v369, %v428
        %v454 = vmul.f32 %v369, %v432
        %v455 = vmul.f32 %v369, %v436
        %v456 = vmul.f32 %v369, %v440
        %v457 = vmul.f32 %v369, %v444
        %v458 = vmul.f32 %v369, %v448
        %v459 = vmul.f32 %v369, %v452
        %v460 = vmul.f32 %v374, %v428
        %v461 = vmul.f32 %v374, %v432
        %v462 = vmul.f32 %v374, %v436
        %v463 = vmul.f32 %v374, %v440
        %v464 = vmul.f32 %v374, %v444
        %v465 = vmul.f32 %v374, %v448
        %v466 = vmul.f32 %v374, %v452
        %v467 = vmul.f32 %v379, %v428
        %v468 = vmul.f32 %v379, %v432
        %v469 = vmul.f32 %v379, %v436
        %v470 = vmul.f32 %v379, %v440
        %v471 = vmul.f32 %v379, %v444
        %v472 = vmul.f32 %v379, %v448
        %v473 = vmul.f32 %v379, %v452
        %v474 = vmul.f32 %v384, %v428
        %v475 = vmul.f32 %v384, %v432
        %v476 = vmul.f32 %v384, %v436
        %v477 = vmul.f32 %v384, %v440
        %v478 = vmul.f32 %v384, %v444
        %v479 = vmul.f32 %v384, %v448
        %v480 = vmul.f32 %v384, %v452
        %481 = vset.pattern.permute.xlu0 1
        %482 = vperm.xlu0 %481, %v354
        %v483 = vpop.permute.xlu0 %482
        %485 = vset.pattern.permute.xlu0 1
        %486 = vperm.xlu0 %485, %v355
        %v487 = vpop.permute.xlu0 %486
        %489 = vset.pattern.permute.xlu0 1
        %490 = vperm.xlu0 %489, %v356
        %v491 = vpop.permute.xlu0 %490
        %493 = vset.pattern.permute.xlu0 1
        %494 = vperm.xlu0 %493, %v357
        %v495 = vpop.permute.xlu0 %494
        %v497 = vlaneseq
        %v498 = vshrl.u32 %v497, 7
        %v499 = vsub.s32 1, %v498
        %v500 = vrot.slane %v362, %v499
        %v501 = vlaneseq
        %v502 = vshrl.u32 %v501, 7
        %v503 = vsub.s32 5, %v502
        %v504 = vrot.slane %v362, %v503
        %v505 = vlaneseq
        %v506 = vshrl.u32 %v505, 7
        %v507 = vsub.s32 1, %v506
        %v508 = vrot.slane %v363, %v507
        %v509 = vlaneseq
        %v510 = vshrl.u32 %v509, 7
        %v511 = vsub.s32 5, %v510
        %v512 = vrot.slane %v363, %v511
        %v513 = vlaneseq
        %v514 = vshrl.u32 %v513, 7
        %v515 = vsub.s32 1, %v514
        %v516 = vrot.slane %v364, %v515
        %v517 = vlaneseq
        %v518 = vshrl.u32 %v517, 7
        %v519 = vsub.s32 5, %v518
        %v520 = vrot.slane %v364, %v519
        %v521 = vlaneseq
        %v522 = vshrl.u32 %v521, 7
        %v523 = vsub.s32 1, %v522
        %v524 = vrot.slane %v365, %v523
        %v532 = vlaneseq
        %v533 = vshrl.u32 %v532, 7
        %v534 = vsub.s32 1, %v533
        %v535 = vrot.slane %v500, %v534
        %v536 = vlaneseq
        %v537 = vshrl.u32 %v536, 7
        %v538 = vsub.s32 1, %v537
        %v539 = vrot.slane %v504, %v538
        %v540 = vlaneseq
        %v541 = vshrl.u32 %v540, 7
        %v542 = vsub.s32 1, %v541
        %v543 = vrot.slane %v508, %v542
        %v544 = vlaneseq
        %v545 = vshrl.u32 %v544, 7
        %v546 = vsub.s32 1, %v545
        %v547 = vrot.slane %v512, %v546
        %v548 = vlaneseq
        %v549 = vshrl.u32 %v548, 7
        %v550 = vsub.s32 1, %v549
        %v551 = vrot.slane %v516, %v550
        %v552 = vlaneseq
        %v553 = vshrl.u32 %v552, 7
        %v554 = vsub.s32 1, %v553
        %v555 = vrot.slane %v520, %v554
        %v556 = vlaneseq
        %v557 = vshrl.u32 %v556, 7
        %v558 = vsub.s32 1, %v557
        %v559 = vrot.slane %v524, %v558
        %v560 = vmul.f32 %v483, %v535
        %v561 = vmul.f32 %v483, %v539
        %v562 = vmul.f32 %v483, %v543
        %v563 = vmul.f32 %v483, %v547
        %v564 = vmul.f32 %v483, %v551
        %v565 = vmul.f32 %v483, %v555
        %v566 = vmul.f32 %v483, %v559
        %v567 = vmul.f32 %v487, %v535
        %v568 = vmul.f32 %v487, %v539
        %v569 = vmul.f32 %v487, %v543
        %v570 = vmul.f32 %v487, %v547
        %v571 = vmul.f32 %v487, %v551
        %v572 = vmul.f32 %v487, %v555
        %v573 = vmul.f32 %v487, %v559
        %v574 = vmul.f32 %v491, %v535
        %v575 = vmul.f32 %v491, %v539
        %v576 = vmul.f32 %v491, %v543
        %v577 = vmul.f32 %v491, %v547
        %v578 = vmul.f32 %v491, %v551
        %v579 = vmul.f32 %v491, %v555
        %v580 = vmul.f32 %v491, %v559
        %v581 = vmul.f32 %v495, %v535
        %v582 = vmul.f32 %v495, %v539
        %v583 = vmul.f32 %v495, %v543
        %v584 = vmul.f32 %v495, %v547
        %v585 = vmul.f32 %v495, %v551
        %v586 = vmul.f32 %v495, %v555
        %v587 = vmul.f32 %v495, %v559
        %v588 = vadd.f32 %v453, %v560
        %v589 = vadd.f32 %v454, %v561
        %v590 = vadd.f32 %v455, %v562
        %v591 = vadd.f32 %v456, %v563
        %v592 = vadd.f32 %v457, %v564
        %v593 = vadd.f32 %v458, %v565
        %v594 = vadd.f32 %v459, %v566
        %v595 = vadd.f32 %v460, %v567
        %v596 = vadd.f32 %v461, %v568
        %v597 = vadd.f32 %v462, %v569
        %v598 = vadd.f32 %v463, %v570
        %v599 = vadd.f32 %v464, %v571
        %v600 = vadd.f32 %v465, %v572
        %v601 = vadd.f32 %v466, %v573
        %v602 = vadd.f32 %v467, %v574
        %v603 = vadd.f32 %v468, %v575
        %v604 = vadd.f32 %v469, %v576
        %v605 = vadd.f32 %v470, %v577
        %v606 = vadd.f32 %v471, %v578
        %v607 = vadd.f32 %v472, %v579
        %v608 = vadd.f32 %v473, %v580
        %v609 = vadd.f32 %v474, %v581
        %v610 = vadd.f32 %v475, %v582
        %v611 = vadd.f32 %v476, %v583
        %v612 = vadd.f32 %v477, %v584
        %v613 = vadd.f32 %v478, %v585
        %v614 = vadd.f32 %v479, %v586
        %v615 = vadd.f32 %v480, %v587
        %616 = vset.pattern.permute.xlu0 2
        %617 = vperm.xlu0 %616, %v354
        %v618 = vpop.permute.xlu0 %617
        %620 = vset.pattern.permute.xlu0 2
        %621 = vperm.xlu0 %620, %v355
        %v622 = vpop.permute.xlu0 %621
        %624 = vset.pattern.permute.xlu0 2
        %625 = vperm.xlu0 %624, %v356
        %v626 = vpop.permute.xlu0 %625
        %628 = vset.pattern.permute.xlu0 2
        %629 = vperm.xlu0 %628, %v357
        %v630 = vpop.permute.xlu0 %629
        %v632 = vlaneseq
        %v633 = vshrl.u32 %v632, 7
        %v634 = vsub.s32 2, %v633
        %v635 = vrot.slane %v362, %v634
        %v636 = vlaneseq
        %v637 = vshrl.u32 %v636, 7
        %v638 = vsub.s32 6, %v637
        %v639 = vrot.slane %v362, %v638
        %v640 = vlaneseq
        %v641 = vshrl.u32 %v640, 7
        %v642 = vsub.s32 2, %v641
        %v643 = vrot.slane %v363, %v642
        %v644 = vlaneseq
        %v645 = vshrl.u32 %v644, 7
        %v646 = vsub.s32 6, %v645
        %v647 = vrot.slane %v363, %v646
        %v648 = vlaneseq
        %v649 = vshrl.u32 %v648, 7
        %v650 = vsub.s32 2, %v649
        %v651 = vrot.slane %v364, %v650
        %v652 = vlaneseq
        %v653 = vshrl.u32 %v652, 7
        %v654 = vsub.s32 6, %v653
        %v655 = vrot.slane %v364, %v654
        %v656 = vlaneseq
        %v657 = vshrl.u32 %v656, 7
        %v658 = vsub.s32 2, %v657
        %v659 = vrot.slane %v365, %v658
        %v667 = vlaneseq
        %v668 = vshrl.u32 %v667, 7
        %v669 = vsub.s32 2, %v668
        %v670 = vrot.slane %v635, %v669
        %v671 = vlaneseq
        %v672 = vshrl.u32 %v671, 7
        %v673 = vsub.s32 2, %v672
        %v674 = vrot.slane %v639, %v673
        %v675 = vlaneseq
        %v676 = vshrl.u32 %v675, 7
        %v677 = vsub.s32 2, %v676
        %v678 = vrot.slane %v643, %v677
        %v679 = vlaneseq
        %v680 = vshrl.u32 %v679, 7
        %v681 = vsub.s32 2, %v680
        %v682 = vrot.slane %v647, %v681
        %v683 = vlaneseq
        %v684 = vshrl.u32 %v683, 7
        %v685 = vsub.s32 2, %v684
        %v686 = vrot.slane %v651, %v685
        %v687 = vlaneseq
        %v688 = vshrl.u32 %v687, 7
        %v689 = vsub.s32 2, %v688
        %v690 = vrot.slane %v655, %v689
        %v691 = vlaneseq
        %v692 = vshrl.u32 %v691, 7
        %v693 = vsub.s32 2, %v692
        %v694 = vrot.slane %v659, %v693
        %v695 = vmul.f32 %v618, %v670
        %v696 = vmul.f32 %v618, %v674
        %v697 = vmul.f32 %v618, %v678
        %v698 = vmul.f32 %v618, %v682
        %v699 = vmul.f32 %v618, %v686
        %v700 = vmul.f32 %v618, %v690
        %v701 = vmul.f32 %v618, %v694
        %v702 = vmul.f32 %v622, %v670
        %v703 = vmul.f32 %v622, %v674
        %v704 = vmul.f32 %v622, %v678
        %v705 = vmul.f32 %v622, %v682
        %v706 = vmul.f32 %v622, %v686
        %v707 = vmul.f32 %v622, %v690
        %v708 = vmul.f32 %v622, %v694
        %v709 = vmul.f32 %v626, %v670
        %v710 = vmul.f32 %v626, %v674
        %v711 = vmul.f32 %v626, %v678
        %v712 = vmul.f32 %v626, %v682
        %v713 = vmul.f32 %v626, %v686
        %v714 = vmul.f32 %v626, %v690
        %v715 = vmul.f32 %v626, %v694
        %v716 = vmul.f32 %v630, %v670
        %v717 = vmul.f32 %v630, %v674
        %v718 = vmul.f32 %v630, %v678
        %v719 = vmul.f32 %v630, %v682
        %v720 = vmul.f32 %v630, %v686
        %v721 = vmul.f32 %v630, %v690
        %v722 = vmul.f32 %v630, %v694
        %v723 = vadd.f32 %v588, %v695
        %v724 = vadd.f32 %v589, %v696
        %v725 = vadd.f32 %v590, %v697
        %v726 = vadd.f32 %v591, %v698
        %v727 = vadd.f32 %v592, %v699
        %v728 = vadd.f32 %v593, %v700
        %v729 = vadd.f32 %v594, %v701
        %v730 = vadd.f32 %v595, %v702
        %v731 = vadd.f32 %v596, %v703
        %v732 = vadd.f32 %v597, %v704
        %v733 = vadd.f32 %v598, %v705
        %v734 = vadd.f32 %v599, %v706
        %v735 = vadd.f32 %v600, %v707
        %v736 = vadd.f32 %v601, %v708
        %v737 = vadd.f32 %v602, %v709
        %v738 = vadd.f32 %v603, %v710
        %v739 = vadd.f32 %v604, %v711
        %v740 = vadd.f32 %v605, %v712
        %v741 = vadd.f32 %v606, %v713
        %v742 = vadd.f32 %v607, %v714
        %v743 = vadd.f32 %v608, %v715
        %v744 = vadd.f32 %v609, %v716
        %v745 = vadd.f32 %v610, %v717
        %v746 = vadd.f32 %v611, %v718
        %v747 = vadd.f32 %v612, %v719
        %v748 = vadd.f32 %v613, %v720
        %v749 = vadd.f32 %v614, %v721
        %v750 = vadd.f32 %v615, %v722
        %752 = vset.pattern.permute.xlu0 0
        %753 = vperm.xlu0 %752, %v358
        %v754 = vpop.permute.xlu0 %753
        %757 = vset.pattern.permute.xlu0 0
        %758 = vperm.xlu0 %757, %v359
        %v759 = vpop.permute.xlu0 %758
        %762 = vset.pattern.permute.xlu0 0
        %763 = vperm.xlu0 %762, %v360
        %v764 = vpop.permute.xlu0 %763
        %767 = vset.pattern.permute.xlu0 0
        %768 = vperm.xlu0 %767, %v361
        %v769 = vpop.permute.xlu0 %768
        %v771 = vadd.f32 %v723, %v754
        %v772 = vadd.f32 %v724, %v754
        %v773 = vadd.f32 %v725, %v754
        %v774 = vadd.f32 %v726, %v754
        %v775 = vadd.f32 %v727, %v754
        %v776 = vadd.f32 %v728, %v754
        %v777 = vadd.f32 %v729, %v754
        %v778 = vadd.f32 %v730, %v759
        %v779 = vadd.f32 %v731, %v759
        %v780 = vadd.f32 %v732, %v759
        %v781 = vadd.f32 %v733, %v759
        %v782 = vadd.f32 %v734, %v759
        %v783 = vadd.f32 %v735, %v759
        %v784 = vadd.f32 %v736, %v759
        %v785 = vadd.f32 %v737, %v764
        %v786 = vadd.f32 %v738, %v764
        %v787 = vadd.f32 %v739, %v764
        %v788 = vadd.f32 %v740, %v764
        %v789 = vadd.f32 %v741, %v764
        %v790 = vadd.f32 %v742, %v764
        %v791 = vadd.f32 %v743, %v764
        %v792 = vadd.f32 %v744, %v769
        %v793 = vadd.f32 %v745, %v769
        %v794 = vadd.f32 %v746, %v769
        %v795 = vadd.f32 %v747, %v769
        %v796 = vadd.f32 %v748, %v769
        %v797 = vadd.f32 %v749, %v769
        %v798 = vadd.f32 %v750, %v769
        %v799 = vmax.f32 %v771, 0.0
        %v800 = vmax.f32 %v772, 0.0
        %v801 = vmax.f32 %v773, 0.0
        %v802 = vmax.f32 %v774, 0.0
        %v803 = vmax.f32 %v775, 0.0
        %v804 = vmax.f32 %v776, 0.0
        %v805 = vmax.f32 %v777, 0.0
        %v806 = vmax.f32 %v778, 0.0
        %v807 = vmax.f32 %v779, 0.0
        %v808 = vmax.f32 %v780, 0.0
        %v809 = vmax.f32 %v781, 0.0
        %v810 = vmax.f32 %v782, 0.0
        %v811 = vmax.f32 %v783, 0.0
        %v812 = vmax.f32 %v784, 0.0
        %v813 = vmax.f32 %v785, 0.0
        %v814 = vmax.f32 %v786, 0.0
        %v815 = vmax.f32 %v787, 0.0
        %v816 = vmax.f32 %v788, 0.0
        %v817 = vmax.f32 %v789, 0.0
        %v818 = vmax.f32 %v790, 0.0
        %v819 = vmax.f32 %v791, 0.0
        %v820 = vmax.f32 %v792, 0.0
        %v821 = vmax.f32 %v793, 0.0
        %v822 = vmax.f32 %v794, 0.0
        %v823 = vmax.f32 %v795, 0.0
        %v824 = vmax.f32 %v796, 0.0
        %v825 = vmax.f32 %v797, 0.0
        %v826 = vmax.f32 %v798, 0.0
        %v827 = vadd.f32 %v799, %v806
        %v828 = vadd.f32 %v827, %v813
        %v829 = vadd.f32 %v828, %v820
        %v830 = vrot.slane %v829, 4
        %v831 = vadd.f32 %v829, %v830
        %v832 = vrot.slane %v831, 2
        %v833 = vadd.f32 %v831, %v832
        %v834 = vrot.slane %v833, 1
        %v835 = vadd.f32 %v833, %v834
        %v836 = vadd.f32 %v800, %v807
        %v837 = vadd.f32 %v836, %v814
        %v838 = vadd.f32 %v837, %v821
        %v839 = vrot.slane %v838, 4
        %v840 = vadd.f32 %v838, %v839
        %v841 = vrot.slane %v840, 2
        %v842 = vadd.f32 %v840, %v841
        %v843 = vrot.slane %v842, 1
        %v844 = vadd.f32 %v842, %v843
        %v845 = vadd.f32 %v801, %v808
        %v846 = vadd.f32 %v845, %v815
        %v847 = vadd.f32 %v846, %v822
        %v848 = vrot.slane %v847, 4
        %v849 = vadd.f32 %v847, %v848
        %v850 = vrot.slane %v849, 2
        %v851 = vadd.f32 %v849, %v850
        %v852 = vrot.slane %v851, 1
        %v853 = vadd.f32 %v851, %v852
        %v854 = vadd.f32 %v802, %v809
        %v855 = vadd.f32 %v854, %v816
        %v856 = vadd.f32 %v855, %v823
        %v857 = vrot.slane %v856, 4
        %v858 = vadd.f32 %v856, %v857
        %v859 = vrot.slane %v858, 2
        %v860 = vadd.f32 %v858, %v859
        %v861 = vrot.slane %v860, 1
        %v862 = vadd.f32 %v860, %v861
        %v863 = vadd.f32 %v803, %v810
        %v864 = vadd.f32 %v863, %v817
        %v865 = vadd.f32 %v864, %v824
        %v866 = vrot.slane %v865, 4
        %v867 = vadd.f32 %v865, %v866
        %v868 = vrot.slane %v867, 2
        %v869 = vadd.f32 %v867, %v868
        %v870 = vrot.slane %v869, 1
        %v871 = vadd.f32 %v869, %v870
        %v872 = vadd.f32 %v804, %v811
        %v873 = vadd.f32 %v872, %v818
        %v874 = vadd.f32 %v873, %v825
        %v875 = vrot.slane %v874, 4
        %v876 = vadd.f32 %v874, %v875
        %v877 = vrot.slane %v876, 2
        %v878 = vadd.f32 %v876, %v877
        %v879 = vrot.slane %v878, 1
        %v880 = vadd.f32 %v878, %v879
        %vm881 = vcmask 261120
        %v882 = vsel %vm881, %v805, 0.0
        %v883 = vsel %vm881, %v812, 0.0
        %v884 = vadd.f32 %v882, %v883
        %v885 = vsel %vm881, %v819, 0.0
        %v886 = vadd.f32 %v884, %v885
        %v887 = vsel %vm881, %v826, 0.0
        %v888 = vadd.f32 %v886, %v887
        %v889 = vrot.slane %v888, 4
        %v890 = vadd.f32 %v888, %v889
        %v891 = vrot.slane %v890, 2
        %v892 = vadd.f32 %v890, %v891
        %v893 = vrot.slane %v892, 1
        %v894 = vadd.f32 %v892, %v893
        %v895 = vrcp.pop 32.0
        %v896 = vmul.f32 %v835, %v895
        %v897 = vmul.f32 %v844, %v895
        %v898 = vmul.f32 %v853, %v895
        %v899 = vmul.f32 %v862, %v895
        %v900 = vmul.f32 %v871, %v895
        %v901 = vmul.f32 %v880, %v895
        %v902 = vmul.f32 %v894, %v895
        %v903 = vsub.f32 0.0, %v896
        %v904 = vsub.f32 0.0, %v897
        %v905 = vsub.f32 0.0, %v898
        %v906 = vsub.f32 0.0, %v899
        %v907 = vsub.f32 0.0, %v900
        %v908 = vsub.f32 0.0, %v901
        %v909 = vsub.f32 0.0, %v902
        %v910 = vmul.f32 %v903, 1.442695
        %v911 = vpow.pop %v910
        %v912 = vmul.f32 %v904, 1.442695
        %v913 = vpow.pop %v912
        %v914 = vmul.f32 %v905, 1.442695
        %v915 = vpow.pop %v914
        %v916 = vmul.f32 %v906, 1.442695
        %v917 = vpow.pop %v916
        %v918 = vmul.f32 %v907, 1.442695
        %v919 = vpow.pop %v918
        %v920 = vmul.f32 %v908, 1.442695
        %v921 = vpow.pop %v920
        %v922 = vmul.f32 %v909, 1.442695
        %v923 = vpow.pop %v922
        %v924 = vadd.f32 %v911, 1.0
        %v925 = vadd.f32 %v913, 1.0
        %v926 = vadd.f32 %v915, 1.0
        %v927 = vadd.f32 %v917, 1.0
        %v928 = vadd.f32 %v919, 1.0
        %v929 = vadd.f32 %v921, 1.0
        %v930 = vadd.f32 %v923, 1.0
        %v931 = vrcp.pop %v924
        %v932 = vmul.f32 1.0, %v931
        %v933 = vrcp.pop %v925
        %v934 = vmul.f32 1.0, %v933
        %v935 = vrcp.pop %v926
        %v936 = vmul.f32 1.0, %v935
        %v937 = vrcp.pop %v927
        %v938 = vmul.f32 1.0, %v937
        %v939 = vrcp.pop %v928
        %v940 = vmul.f32 1.0, %v939
        %v941 = vrcp.pop %v929
        %v942 = vmul.f32 1.0, %v941
        %v943 = vrcp.pop %v930
        %v944 = vmul.f32 1.0, %v943
        %v952 = vcombine.low %v932, %v934
        %v953 = vcombine.low %v936, %v938
        %v954 = vcombine.low %v940, %v942
        %v956 = vunpack.c.l.s4 1966171168
        %v957 = vunpack.c.0.s8 %v956
        %v958 = vlaneseq
        %v959 = vshrl.u32 %v958, 7
        %v960 = vsub.s32 %v957, %v959
        %v961 = vrot.slane %v952, %v960
        %v963 = vunpack.c.l.s4 1966171168
        %v964 = vunpack.c.0.s8 %v963
        %v965 = vlaneseq
        %v966 = vshrl.u32 %v965, 7
        %v967 = vsub.s32 %v964, %v966
        %v968 = vrot.slane %v953, %v967
        %v970 = vunpack.c.l.s4 1966171168
        %v971 = vunpack.c.0.s8 %v970
        %v972 = vlaneseq
        %v973 = vshrl.u32 %v972, 7
        %v974 = vsub.s32 %v971, %v973
        %v975 = vrot.slane %v954, %v974
        %v977 = vunpack.c.l.s4 1966171168
        %v978 = vunpack.c.0.s8 %v977
        %v979 = vlaneseq
        %v980 = vshrl.u32 %v979, 7
        %v981 = vsub.s32 %v978, %v980
        %v982 = vrot.slane %v944, %v981
        %v983 = vcombine.low %v961, %v968
        %v984 = vcombine.low %v975, %v982
        %v986 = vunpack.c.l.s4 1966171168
        %v987 = vunpack.c.0.s8 %v986
        %v988 = vlaneseq
        %v989 = vshrl.u32 %v988, 7
        %v990 = vsub.s32 %v987, %v989
        %v991 = vrot.slane %v983, %v990
        %v993 = vunpack.c.l.s4 1966171168
        %v994 = vunpack.c.0.s8 %v993
        %v995 = vlaneseq
        %v996 = vshrl.u32 %v995, 7
        %v997 = vsub.s32 %v994, %v996
        %v998 = vrot.slane %v984, %v997
        %v999 = vcombine.low %v991, %v998
        %v1001 = vlaneseq
        %vm1002 = vcmp.ge.s32.totalorder %v1001, 0
        %vm1003 = vcmp.lt.s32.totalorder %v1001, 800
        %vm1004 = vmand %vm1002, %vm1003
        %1005 = vst.msk [vmem:[%s353] ss:$2 sm:$0x7f] %vm1004, %v999
        %v1006 = vadd.f32 %v799, %v800
        %v1007 = vadd.f32 %v1006, %v801
        %v1008 = vadd.f32 %v1007, %v802
        %v1009 = vadd.f32 %v1008, %v803
        %v1010 = vadd.f32 %v1009, %v804
        %v1011 = vadd.f32 %v1010, %v882
        %1012 = vadd.xlane.f32.xlu0 %v1011
        %v1013 = vpop.xlane.xlu0 %1012
        %v1014 = vadd.f32 %v806, %v807
        %v1015 = vadd.f32 %v1014, %v808
        %v1016 = vadd.f32 %v1015, %v809
        %v1017 = vadd.f32 %v1016, %v810
        %v1018 = vadd.f32 %v1017, %v811
        %v1019 = vadd.f32 %v1018, %v883
        %1020 = vadd.xlane.f32.xlu0 %v1019
        %v1021 = vpop.xlane.xlu0 %1020
        %v1022 = vadd.f32 %v813, %v814
        %v1023 = vadd.f32 %v1022, %v815
        %v1024 = vadd.f32 %v1023, %v816
        %v1025 = vadd.f32 %v1024, %v817
        %v1026 = vadd.f32 %v1025, %v818
        %v1027 = vadd.f32 %v1026, %v885
        %1028 = vadd.xlane.f32.xlu0 %v1027
        %v1029 = vpop.xlane.xlu0 %1028
        %v1030 = vadd.f32 %v820, %v821
        %v1031 = vadd.f32 %v1030, %v822
        %v1032 = vadd.f32 %v1031, %v823
        %v1033 = vadd.f32 %v1032, %v824
        %v1034 = vadd.f32 %v1033, %v825
        %v1035 = vadd.f32 %v1034, %v887
        %1036 = vadd.xlane.f32.xlu0 %v1035
        %v1037 = vpop.xlane.xlu0 %1036
        %v1038 = vmax.f32 %v799, %v800
        %v1039 = vmax.f32 %v1038, %v801
        %v1040 = vmax.f32 %v1039, %v802
        %v1041 = vmax.f32 %v1040, %v803
        %v1042 = vmax.f32 %v1041, %v804
        %v1043 = vsel %vm881, %v805, -inf
        %v1044 = vmax.f32 %v1042, %v1043
        %1045 = vmax.xlane.f32.xlu0 %v1044
        %v1046 = vpop.xlane.xlu0 %1045
        %v1047 = vmax.f32 %v806, %v807
        %v1048 = vmax.f32 %v1047, %v808
        %v1049 = vmax.f32 %v1048, %v809
        %v1050 = vmax.f32 %v1049, %v810
        %v1051 = vmax.f32 %v1050, %v811
        %v1052 = vsel %vm881, %v812, -inf
        %v1053 = vmax.f32 %v1051, %v1052
        %1054 = vmax.xlane.f32.xlu0 %v1053
        %v1055 = vpop.xlane.xlu0 %1054
        %v1056 = vmax.f32 %v813, %v814
        %v1057 = vmax.f32 %v1056, %v815
        %v1058 = vmax.f32 %v1057, %v816
        %v1059 = vmax.f32 %v1058, %v817
        %v1060 = vmax.f32 %v1059, %v818
        %v1061 = vsel %vm881, %v819, -inf
        %v1062 = vmax.f32 %v1060, %v1061
        %1063 = vmax.xlane.f32.xlu0 %v1062
        %v1064 = vpop.xlane.xlu0 %1063
        %v1065 = vmax.f32 %v820, %v821
        %v1066 = vmax.f32 %v1065, %v822
        %v1067 = vmax.f32 %v1066, %v823
        %v1068 = vmax.f32 %v1067, %v824
        %v1069 = vmax.f32 %v1068, %v825
        %v1070 = vsel %vm881, %v826, -inf
        %v1071 = vmax.f32 %v1069, %v1070
        %1072 = vmax.xlane.f32.xlu0 %v1071
        %v1073 = vpop.xlane.xlu0 %1072
        %s1074 = scalar_lea.vmem %s348, 28
        %v1075 = vld [vmem:[%s1074] sm:$0x77]
        %v1076 = vld [vmem:[%s1074 + $0x8] sm:$0x77]
        %v1077 = vld [vmem:[%s1074 + $0x10] sm:$0x77]
        %v1078 = vld [vmem:[%s1074 + $0x18] sm:$0x7]
        %v1083 = vlaneseq
        %v1084 = vshrl.u32 %v1083, 7
        %v1085 = vsub.s32 0, %v1084
        %v1086 = vrot.slane %v1075, %v1085
        %v1087 = vlaneseq
        %v1088 = vshrl.u32 %v1087, 7
        %v1089 = vsub.s32 4, %v1088
        %v1090 = vrot.slane %v1075, %v1089
        %v1091 = vlaneseq
        %v1092 = vshrl.u32 %v1091, 7
        %v1093 = vsub.s32 0, %v1092
        %v1094 = vrot.slane %v1076, %v1093
        %v1095 = vlaneseq
        %v1096 = vshrl.u32 %v1095, 7
        %v1097 = vsub.s32 4, %v1096
        %v1098 = vrot.slane %v1076, %v1097
        %v1099 = vlaneseq
        %v1100 = vshrl.u32 %v1099, 7
        %v1101 = vsub.s32 0, %v1100
        %v1102 = vrot.slane %v1077, %v1101
        %v1103 = vlaneseq
        %v1104 = vshrl.u32 %v1103, 7
        %v1105 = vsub.s32 4, %v1104
        %v1106 = vrot.slane %v1077, %v1105
        %v1107 = vlaneseq
        %v1108 = vshrl.u32 %v1107, 7
        %v1109 = vsub.s32 0, %v1108
        %v1110 = vrot.slane %v1078, %v1109
        %v1118 = vlaneseq
        %v1119 = vshrl.u32 %v1118, 7
        %v1120 = vsub.s32 0, %v1119
        %v1121 = vrot.slane %v1086, %v1120
        %v1122 = vlaneseq
        %v1123 = vshrl.u32 %v1122, 7
        %v1124 = vsub.s32 0, %v1123
        %v1125 = vrot.slane %v1090, %v1124
        %v1126 = vlaneseq
        %v1127 = vshrl.u32 %v1126, 7
        %v1128 = vsub.s32 0, %v1127
        %v1129 = vrot.slane %v1094, %v1128
        %v1130 = vlaneseq
        %v1131 = vshrl.u32 %v1130, 7
        %v1132 = vsub.s32 0, %v1131
        %v1133 = vrot.slane %v1098, %v1132
        %v1134 = vlaneseq
        %v1135 = vshrl.u32 %v1134, 7
        %v1136 = vsub.s32 0, %v1135
        %v1137 = vrot.slane %v1102, %v1136
        %v1138 = vlaneseq
        %v1139 = vshrl.u32 %v1138, 7
        %v1140 = vsub.s32 0, %v1139
        %v1141 = vrot.slane %v1106, %v1140
        %v1142 = vlaneseq
        %v1143 = vshrl.u32 %v1142, 7
        %v1144 = vsub.s32 0, %v1143
        %v1145 = vrot.slane %v1110, %v1144
        %v1146 = vmul.f32 %v369, %v1121
        %v1147 = vmul.f32 %v369, %v1125
        %v1148 = vmul.f32 %v369, %v1129
        %v1149 = vmul.f32 %v369, %v1133
        %v1150 = vmul.f32 %v369, %v1137
        %v1151 = vmul.f32 %v369, %v1141
        %v1152 = vmul.f32 %v369, %v1145
        %v1153 = vmul.f32 %v374, %v1121
        %v1154 = vmul.f32 %v374, %v1125
        %v1155 = vmul.f32 %v374, %v1129
        %v1156 = vmul.f32 %v374, %v1133
        %v1157 = vmul.f32 %v374, %v1137
        %v1158 = vmul.f32 %v374, %v1141
        %v1159 = vmul.f32 %v374, %v1145
        %v1160 = vmul.f32 %v379, %v1121
        %v1161 = vmul.f32 %v379, %v1125
        %v1162 = vmul.f32 %v379, %v1129
        %v1163 = vmul.f32 %v379, %v1133
        %v1164 = vmul.f32 %v379, %v1137
        %v1165 = vmul.f32 %v379, %v1141
        %v1166 = vmul.f32 %v379, %v1145
        %v1167 = vmul.f32 %v384, %v1121
        %v1168 = vmul.f32 %v384, %v1125
        %v1169 = vmul.f32 %v384, %v1129
        %v1170 = vmul.f32 %v384, %v1133
        %v1171 = vmul.f32 %v384, %v1137
        %v1172 = vmul.f32 %v384, %v1141
        %v1173 = vmul.f32 %v384, %v1145
        %v1174 = vlaneseq
        %v1175 = vshrl.u32 %v1174, 7
        %v1176 = vsub.s32 1, %v1175
        %v1177 = vrot.slane %v1075, %v1176
        %v1178 = vlaneseq
        %v1179 = vshrl.u32 %v1178, 7
        %v1180 = vsub.s32 5, %v1179
        %v1181 = vrot.slane %v1075, %v1180
        %v1182 = vlaneseq
        %v1183 = vshrl.u32 %v1182, 7
        %v1184 = vsub.s32 1, %v1183
        %v1185 = vrot.slane %v1076, %v1184
        %v1186 = vlaneseq
        %v1187 = vshrl.u32 %v1186, 7
        %v1188 = vsub.s32 5, %v1187
        %v1189 = vrot.slane %v1076, %v1188
        %v1190 = vlaneseq
        %v1191 = vshrl.u32 %v1190, 7
        %v1192 = vsub.s32 1, %v1191
        %v1193 = vrot.slane %v1077, %v1192
        %v1194 = vlaneseq
        %v1195 = vshrl.u32 %v1194, 7
        %v1196 = vsub.s32 5, %v1195
        %v1197 = vrot.slane %v1077, %v1196
        %v1198 = vlaneseq
        %v1199 = vshrl.u32 %v1198, 7
        %v1200 = vsub.s32 1, %v1199
        %v1201 = vrot.slane %v1078, %v1200
        %v1209 = vlaneseq
        %v1210 = vshrl.u32 %v1209, 7
        %v1211 = vsub.s32 1, %v1210
        %v1212 = vrot.slane %v1177, %v1211
        %v1213 = vlaneseq
        %v1214 = vshrl.u32 %v1213, 7
        %v1215 = vsub.s32 1, %v1214
        %v1216 = vrot.slane %v1181, %v1215
        %v1217 = vlaneseq
        %v1218 = vshrl.u32 %v1217, 7
        %v1219 = vsub.s32 1, %v1218
        %v1220 = vrot.slane %v1185, %v1219
        %v1221 = vlaneseq
        %v1222 = vshrl.u32 %v1221, 7
        %v1223 = vsub.s32 1, %v1222
        %v1224 = vrot.slane %v1189, %v1223
        %v1225 = vlaneseq
        %v1226 = vshrl.u32 %v1225, 7
        %v1227 = vsub.s32 1, %v1226
        %v1228 = vrot.slane %v1193, %v1227
        %v1229 = vlaneseq
        %v1230 = vshrl.u32 %v1229, 7
        %v1231 = vsub.s32 1, %v1230
        %v1232 = vrot.slane %v1197, %v1231
        %v1233 = vlaneseq
        %v1234 = vshrl.u32 %v1233, 7
        %v1235 = vsub.s32 1, %v1234
        %v1236 = vrot.slane %v1201, %v1235
        %v1237 = vmul.f32 %v483, %v1212
        %v1238 = vmul.f32 %v483, %v1216
        %v1239 = vmul.f32 %v483, %v1220
        %v1240 = vmul.f32 %v483, %v1224
        %v1241 = vmul.f32 %v483, %v1228
        %v1242 = vmul.f32 %v483, %v1232
        %v1243 = vmul.f32 %v483, %v1236
        %v1244 = vmul.f32 %v487, %v1212
        %v1245 = vmul.f32 %v487, %v1216
        %v1246 = vmul.f32 %v487, %v1220
        %v1247 = vmul.f32 %v487, %v1224
        %v1248 = vmul.f32 %v487, %v1228
        %v1249 = vmul.f32 %v487, %v1232
        %v1250 = vmul.f32 %v487, %v1236
        %v1251 = vmul.f32 %v491, %v1212
        %v1252 = vmul.f32 %v491, %v1216
        %v1253 = vmul.f32 %v491, %v1220
        %v1254 = vmul.f32 %v491, %v1224
        %v1255 = vmul.f32 %v491, %v1228
        %v1256 = vmul.f32 %v491, %v1232
        %v1257 = vmul.f32 %v491, %v1236
        %v1258 = vmul.f32 %v495, %v1212
        %v1259 = vmul.f32 %v495, %v1216
        %v1260 = vmul.f32 %v495, %v1220
        %v1261 = vmul.f32 %v495, %v1224
        %v1262 = vmul.f32 %v495, %v1228
        %v1263 = vmul.f32 %v495, %v1232
        %v1264 = vmul.f32 %v495, %v1236
        %v1265 = vadd.f32 %v1146, %v1237
        %v1266 = vadd.f32 %v1147, %v1238
        %v1267 = vadd.f32 %v1148, %v1239
        %v1268 = vadd.f32 %v1149, %v1240
        %v1269 = vadd.f32 %v1150, %v1241
        %v1270 = vadd.f32 %v1151, %v1242
        %v1271 = vadd.f32 %v1152, %v1243
        %v1272 = vadd.f32 %v1153, %v1244
        %v1273 = vadd.f32 %v1154, %v1245
        %v1274 = vadd.f32 %v1155, %v1246
        %v1275 = vadd.f32 %v1156, %v1247
        %v1276 = vadd.f32 %v1157, %v1248
        %v1277 = vadd.f32 %v1158, %v1249
        %v1278 = vadd.f32 %v1159, %v1250
        %v1279 = vadd.f32 %v1160, %v1251
        %v1280 = vadd.f32 %v1161, %v1252
        %v1281 = vadd.f32 %v1162, %v1253
        %v1282 = vadd.f32 %v1163, %v1254
        %v1283 = vadd.f32 %v1164, %v1255
        %v1284 = vadd.f32 %v1165, %v1256
        %v1285 = vadd.f32 %v1166, %v1257
        %v1286 = vadd.f32 %v1167, %v1258
        %v1287 = vadd.f32 %v1168, %v1259
        %v1288 = vadd.f32 %v1169, %v1260
        %v1289 = vadd.f32 %v1170, %v1261
        %v1290 = vadd.f32 %v1171, %v1262
        %v1291 = vadd.f32 %v1172, %v1263
        %v1292 = vadd.f32 %v1173, %v1264
        %v1293 = vlaneseq
        %v1294 = vshrl.u32 %v1293, 7
        %v1295 = vsub.s32 2, %v1294
        %v1296 = vrot.slane %v1075, %v1295
        %v1297 = vlaneseq
        %v1298 = vshrl.u32 %v1297, 7
        %v1299 = vsub.s32 6, %v1298
        %v1300 = vrot.slane %v1075, %v1299
        %v1301 = vlaneseq
        %v1302 = vshrl.u32 %v1301, 7
        %v1303 = vsub.s32 2, %v1302
        %v1304 = vrot.slane %v1076, %v1303
        %v1305 = vlaneseq
        %v1306 = vshrl.u32 %v1305, 7
        %v1307 = vsub.s32 6, %v1306
        %v1308 = vrot.slane %v1076, %v1307
        %v1309 = vlaneseq
        %v1310 = vshrl.u32 %v1309, 7
        %v1311 = vsub.s32 2, %v1310
        %v1312 = vrot.slane %v1077, %v1311
        %v1313 = vlaneseq
        %v1314 = vshrl.u32 %v1313, 7
        %v1315 = vsub.s32 6, %v1314
        %v1316 = vrot.slane %v1077, %v1315
        %v1317 = vlaneseq
        %v1318 = vshrl.u32 %v1317, 7
        %v1319 = vsub.s32 2, %v1318
        %v1320 = vrot.slane %v1078, %v1319
        %v1328 = vlaneseq
        %v1329 = vshrl.u32 %v1328, 7
        %v1330 = vsub.s32 2, %v1329
        %v1331 = vrot.slane %v1296, %v1330
        %v1332 = vlaneseq
        %v1333 = vshrl.u32 %v1332, 7
        %v1334 = vsub.s32 2, %v1333
        %v1335 = vrot.slane %v1300, %v1334
        %v1336 = vlaneseq
        %v1337 = vshrl.u32 %v1336, 7
        %v1338 = vsub.s32 2, %v1337
        %v1339 = vrot.slane %v1304, %v1338
        %v1340 = vlaneseq
        %v1341 = vshrl.u32 %v1340, 7
        %v1342 = vsub.s32 2, %v1341
        %v1343 = vrot.slane %v1308, %v1342
        %v1344 = vlaneseq
        %v1345 = vshrl.u32 %v1344, 7
        %v1346 = vsub.s32 2, %v1345
        %v1347 = vrot.slane %v1312, %v1346
        %v1348 = vlaneseq
        %v1349 = vshrl.u32 %v1348, 7
        %v1350 = vsub.s32 2, %v1349
        %v1351 = vrot.slane %v1316, %v1350
        %v1352 = vlaneseq
        %v1353 = vshrl.u32 %v1352, 7
        %v1354 = vsub.s32 2, %v1353
        %v1355 = vrot.slane %v1320, %v1354
        %v1356 = vmul.f32 %v618, %v1331
        %v1357 = vmul.f32 %v618, %v1335
        %v1358 = vmul.f32 %v618, %v1339
        %v1359 = vmul.f32 %v618, %v1343
        %v1360 = vmul.f32 %v618, %v1347
        %v1361 = vmul.f32 %v618, %v1351
        %v1362 = vmul.f32 %v618, %v1355
        %v1363 = vmul.f32 %v622, %v1331
        %v1364 = vmul.f32 %v622, %v1335
        %v1365 = vmul.f32 %v622, %v1339
        %v1366 = vmul.f32 %v622, %v1343
        %v1367 = vmul.f32 %v622, %v1347
        %v1368 = vmul.f32 %v622, %v1351
        %v1369 = vmul.f32 %v622, %v1355
        %v1370 = vmul.f32 %v626, %v1331
        %v1371 = vmul.f32 %v626, %v1335
        %v1372 = vmul.f32 %v626, %v1339
        %v1373 = vmul.f32 %v626, %v1343
        %v1374 = vmul.f32 %v626, %v1347
        %v1375 = vmul.f32 %v626, %v1351
        %v1376 = vmul.f32 %v626, %v1355
        %v1377 = vmul.f32 %v630, %v1331
        %v1378 = vmul.f32 %v630, %v1335
        %v1379 = vmul.f32 %v630, %v1339
        %v1380 = vmul.f32 %v630, %v1343
        %v1381 = vmul.f32 %v630, %v1347
        %v1382 = vmul.f32 %v630, %v1351
        %v1383 = vmul.f32 %v630, %v1355
        %v1384 = vadd.f32 %v1265, %v1356
        %v1385 = vadd.f32 %v1266, %v1357
        %v1386 = vadd.f32 %v1267, %v1358
        %v1387 = vadd.f32 %v1268, %v1359
        %v1388 = vadd.f32 %v1269, %v1360
        %v1389 = vadd.f32 %v1270, %v1361
        %v1390 = vadd.f32 %v1271, %v1362
        %v1391 = vadd.f32 %v1272, %v1363
        %v1392 = vadd.f32 %v1273, %v1364
        %v1393 = vadd.f32 %v1274, %v1365
        %v1394 = vadd.f32 %v1275, %v1366
        %v1395 = vadd.f32 %v1276, %v1367
        %v1396 = vadd.f32 %v1277, %v1368
        %v1397 = vadd.f32 %v1278, %v1369
        %v1398 = vadd.f32 %v1279, %v1370
        %v1399 = vadd.f32 %v1280, %v1371
        %v1400 = vadd.f32 %v1281, %v1372
        %v1401 = vadd.f32 %v1282, %v1373
        %v1402 = vadd.f32 %v1283, %v1374
        %v1403 = vadd.f32 %v1284, %v1375
        %v1404 = vadd.f32 %v1285, %v1376
        %v1405 = vadd.f32 %v1286, %v1377
        %v1406 = vadd.f32 %v1287, %v1378
        %v1407 = vadd.f32 %v1288, %v1379
        %v1408 = vadd.f32 %v1289, %v1380
        %v1409 = vadd.f32 %v1290, %v1381
        %v1410 = vadd.f32 %v1291, %v1382
        %v1411 = vadd.f32 %v1292, %v1383
        %v1412 = vadd.f32 %v1384, %v754
        %v1413 = vadd.f32 %v1385, %v754
        %v1414 = vadd.f32 %v1386, %v754
        %v1415 = vadd.f32 %v1387, %v754
        %v1416 = vadd.f32 %v1388, %v754
        %v1417 = vadd.f32 %v1389, %v754
        %v1418 = vadd.f32 %v1390, %v754
        %v1419 = vadd.f32 %v1391, %v759
        %v1420 = vadd.f32 %v1392, %v759
        %v1421 = vadd.f32 %v1393, %v759
        %v1422 = vadd.f32 %v1394, %v759
        %v1423 = vadd.f32 %v1395, %v759
        %v1424 = vadd.f32 %v1396, %v759
        %v1425 = vadd.f32 %v1397, %v759
        %v1426 = vadd.f32 %v1398, %v764
        %v1427 = vadd.f32 %v1399, %v764
        %v1428 = vadd.f32 %v1400, %v764
        %v1429 = vadd.f32 %v1401, %v764
        %v1430 = vadd.f32 %v1402, %v764
        %v1431 = vadd.f32 %v1403, %v764
        %v1432 = vadd.f32 %v1404, %v764
        %v1433 = vadd.f32 %v1405, %v769
        %v1434 = vadd.f32 %v1406, %v769
        %v1435 = vadd.f32 %v1407, %v769
        %v1436 = vadd.f32 %v1408, %v769
        %v1437 = vadd.f32 %v1409, %v769
        %v1438 = vadd.f32 %v1410, %v769
        %v1439 = vadd.f32 %v1411, %v769
        %v1440 = vmax.f32 %v1412, 0.0
        %v1441 = vmax.f32 %v1413, 0.0
        %v1442 = vmax.f32 %v1414, 0.0
        %v1443 = vmax.f32 %v1415, 0.0
        %v1444 = vmax.f32 %v1416, 0.0
        %v1445 = vmax.f32 %v1417, 0.0
        %v1446 = vmax.f32 %v1418, 0.0
        %v1447 = vmax.f32 %v1419, 0.0
        %v1448 = vmax.f32 %v1420, 0.0
        %v1449 = vmax.f32 %v1421, 0.0
        %v1450 = vmax.f32 %v1422, 0.0
        %v1451 = vmax.f32 %v1423, 0.0
        %v1452 = vmax.f32 %v1424, 0.0
        %v1453 = vmax.f32 %v1425, 0.0
        %v1454 = vmax.f32 %v1426, 0.0
        %v1455 = vmax.f32 %v1427, 0.0
        %v1456 = vmax.f32 %v1428, 0.0
        %v1457 = vmax.f32 %v1429, 0.0
        %v1458 = vmax.f32 %v1430, 0.0
        %v1459 = vmax.f32 %v1431, 0.0
        %v1460 = vmax.f32 %v1432, 0.0
        %v1461 = vmax.f32 %v1433, 0.0
        %v1462 = vmax.f32 %v1434, 0.0
        %v1463 = vmax.f32 %v1435, 0.0
        %v1464 = vmax.f32 %v1436, 0.0
        %v1465 = vmax.f32 %v1437, 0.0
        %v1466 = vmax.f32 %v1438, 0.0
        %v1467 = vmax.f32 %v1439, 0.0
        %v1468 = vadd.f32 %v1440, %v1447
        %v1469 = vadd.f32 %v1468, %v1454
        %v1470 = vadd.f32 %v1469, %v1461
        %v1471 = vrot.slane %v1470, 4
        %v1472 = vadd.f32 %v1470, %v1471
        %v1473 = vrot.slane %v1472, 2
        %v1474 = vadd.f32 %v1472, %v1473
        %v1475 = vrot.slane %v1474, 1
        %v1476 = vadd.f32 %v1474, %v1475
        %v1477 = vadd.f32 %v1441, %v1448
        %v1478 = vadd.f32 %v1477, %v1455
        %v1479 = vadd.f32 %v1478, %v1462
        %v1480 = vrot.slane %v1479, 4
        %v1481 = vadd.f32 %v1479, %v1480
        %v1482 = vrot.slane %v1481, 2
        %v1483 = vadd.f32 %v1481, %v1482
        %v1484 = vrot.slane %v1483, 1
        %v1485 = vadd.f32 %v1483, %v1484
        %v1486 = vadd.f32 %v1442, %v1449
        %v1487 = vadd.f32 %v1486, %v1456
        %v1488 = vadd.f32 %v1487, %v1463
        %v1489 = vrot.slane %v1488, 4
        %v1490 = vadd.f32 %v1488, %v1489
        %v1491 = vrot.slane %v1490, 2
        %v1492 = vadd.f32 %v1490, %v1491
        %v1493 = vrot.slane %v1492, 1
        %v1494 = vadd.f32 %v1492, %v1493
        %v1495 = vadd.f32 %v1443, %v1450
        %v1496 = vadd.f32 %v1495, %v1457
        %v1497 = vadd.f32 %v1496, %v1464
        %v1498 = vrot.slane %v1497, 4
        %v1499 = vadd.f32 %v1497, %v1498
        %v1500 = vrot.slane %v1499, 2
        %v1501 = vadd.f32 %v1499, %v1500
        %v1502 = vrot.slane %v1501, 1
        %v1503 = vadd.f32 %v1501, %v1502
        %v1504 = vadd.f32 %v1444, %v1451
        %v1505 = vadd.f32 %v1504, %v1458
        %v1506 = vadd.f32 %v1505, %v1465
        %v1507 = vrot.slane %v1506, 4
        %v1508 = vadd.f32 %v1506, %v1507
        %v1509 = vrot.slane %v1508, 2
        %v1510 = vadd.f32 %v1508, %v1509
        %v1511 = vrot.slane %v1510, 1
        %v1512 = vadd.f32 %v1510, %v1511
        %v1513 = vadd.f32 %v1445, %v1452
        %v1514 = vadd.f32 %v1513, %v1459
        %v1515 = vadd.f32 %v1514, %v1466
        %v1516 = vrot.slane %v1515, 4
        %v1517 = vadd.f32 %v1515, %v1516
        %v1518 = vrot.slane %v1517, 2
        %v1519 = vadd.f32 %v1517, %v1518
        %v1520 = vrot.slane %v1519, 1
        %v1521 = vadd.f32 %v1519, %v1520
        %v1522 = vsel %vm881, %v1446, 0.0
        %v1523 = vsel %vm881, %v1453, 0.0
        %v1524 = vadd.f32 %v1522, %v1523
        %v1525 = vsel %vm881, %v1460, 0.0
        %v1526 = vadd.f32 %v1524, %v1525
        %v1527 = vsel %vm881, %v1467, 0.0
        %v1528 = vadd.f32 %v1526, %v1527
        %v1529 = vrot.slane %v1528, 4
        %v1530 = vadd.f32 %v1528, %v1529
        %v1531 = vrot.slane %v1530, 2
        %v1532 = vadd.f32 %v1530, %v1531
        %v1533 = vrot.slane %v1532, 1
        %v1534 = vadd.f32 %v1532, %v1533
        %v1535 = vmul.f32 %v1476, %v895
        %v1536 = vmul.f32 %v1485, %v895
        %v1537 = vmul.f32 %v1494, %v895
        %v1538 = vmul.f32 %v1503, %v895
        %v1539 = vmul.f32 %v1512, %v895
        %v1540 = vmul.f32 %v1521, %v895
        %v1541 = vmul.f32 %v1534, %v895
        %v1542 = vsub.f32 0.0, %v1535
        %v1543 = vsub.f32 0.0, %v1536
        %v1544 = vsub.f32 0.0, %v1537
        %v1545 = vsub.f32 0.0, %v1538
        %v1546 = vsub.f32 0.0, %v1539
        %v1547 = vsub.f32 0.0, %v1540
        %v1548 = vsub.f32 0.0, %v1541
        %v1549 = vmul.f32 %v1542, 1.442695
        %v1550 = vpow.pop %v1549
        %v1551 = vmul.f32 %v1543, 1.442695
        %v1552 = vpow.pop %v1551
        %v1553 = vmul.f32 %v1544, 1.442695
        %v1554 = vpow.pop %v1553
        %v1555 = vmul.f32 %v1545, 1.442695
        %v1556 = vpow.pop %v1555
        %v1557 = vmul.f32 %v1546, 1.442695
        %v1558 = vpow.pop %v1557
        %v1559 = vmul.f32 %v1547, 1.442695
        %v1560 = vpow.pop %v1559
        %v1561 = vmul.f32 %v1548, 1.442695
        %v1562 = vpow.pop %v1561
        %v1563 = vadd.f32 %v1550, 1.0
        %v1564 = vadd.f32 %v1552, 1.0
        %v1565 = vadd.f32 %v1554, 1.0
        %v1566 = vadd.f32 %v1556, 1.0
        %v1567 = vadd.f32 %v1558, 1.0
        %v1568 = vadd.f32 %v1560, 1.0
        %v1569 = vadd.f32 %v1562, 1.0
        %v1570 = vrcp.pop %v1563
        %v1571 = vmul.f32 1.0, %v1570
        %v1572 = vrcp.pop %v1564
        %v1573 = vmul.f32 1.0, %v1572
        %v1574 = vrcp.pop %v1565
        %v1575 = vmul.f32 1.0, %v1574
        %v1576 = vrcp.pop %v1566
        %v1577 = vmul.f32 1.0, %v1576
        %v1578 = vrcp.pop %v1567
        %v1579 = vmul.f32 1.0, %v1578
        %v1580 = vrcp.pop %v1568
        %v1581 = vmul.f32 1.0, %v1580
        %v1582 = vrcp.pop %v1569
        %v1583 = vmul.f32 1.0, %v1582
        %v1591 = vcombine.low %v1571, %v1573
        %v1592 = vcombine.low %v1575, %v1577
        %v1593 = vcombine.low %v1579, %v1581
        %v1595 = vunpack.c.l.s4 1966171168
        %v1596 = vunpack.c.0.s8 %v1595
        %v1597 = vlaneseq
        %v1598 = vshrl.u32 %v1597, 7
        %v1599 = vsub.s32 %v1596, %v1598
        %v1600 = vrot.slane %v1591, %v1599
        %v1602 = vunpack.c.l.s4 1966171168
        %v1603 = vunpack.c.0.s8 %v1602
        %v1604 = vlaneseq
        %v1605 = vshrl.u32 %v1604, 7
        %v1606 = vsub.s32 %v1603, %v1605
        %v1607 = vrot.slane %v1592, %v1606
        %v1609 = vunpack.c.l.s4 1966171168
        %v1610 = vunpack.c.0.s8 %v1609
        %v1611 = vlaneseq
        %v1612 = vshrl.u32 %v1611, 7
        %v1613 = vsub.s32 %v1610, %v1612
        %v1614 = vrot.slane %v1593, %v1613
        %v1616 = vunpack.c.l.s4 1966171168
        %v1617 = vunpack.c.0.s8 %v1616
        %v1618 = vlaneseq
        %v1619 = vshrl.u32 %v1618, 7
        %v1620 = vsub.s32 %v1617, %v1619
        %v1621 = vrot.slane %v1583, %v1620
        %v1622 = vcombine.low %v1600, %v1607
        %v1623 = vcombine.low %v1614, %v1621
        %v1625 = vunpack.c.l.s4 1966171168
        %v1626 = vunpack.c.0.s8 %v1625
        %v1627 = vlaneseq
        %v1628 = vshrl.u32 %v1627, 7
        %v1629 = vsub.s32 %v1626, %v1628
        %v1630 = vrot.slane %v1622, %v1629
        %v1632 = vunpack.c.l.s4 1966171168
        %v1633 = vunpack.c.0.s8 %v1632
        %v1634 = vlaneseq
        %v1635 = vshrl.u32 %v1634, 7
        %v1636 = vsub.s32 %v1633, %v1635
        %v1637 = vrot.slane %v1623, %v1636
        %v1638 = vcombine.low %v1630, %v1637
        %s1640 = scalar_lea.vmem %s353, 1
        %1641 = vst.msk [vmem:[%s1640] ss:$2 sm:$0x7f] %vm1004, %v1638
        %v1642 = vadd.f32 %v1440, %v1441
        %v1643 = vadd.f32 %v1642, %v1442
        %v1644 = vadd.f32 %v1643, %v1443
        %v1645 = vadd.f32 %v1644, %v1444
        %v1646 = vadd.f32 %v1645, %v1445
        %v1647 = vadd.f32 %v1646, %v1522
        %1648 = vadd.xlane.f32.xlu0 %v1647
        %v1649 = vpop.xlane.xlu0 %1648
        %v1650 = vadd.f32 %v1447, %v1448
        %v1651 = vadd.f32 %v1650, %v1449
        %v1652 = vadd.f32 %v1651, %v1450
        %v1653 = vadd.f32 %v1652, %v1451
        %v1654 = vadd.f32 %v1653, %v1452
        %v1655 = vadd.f32 %v1654, %v1523
        %1656 = vadd.xlane.f32.xlu0 %v1655
        %v1657 = vpop.xlane.xlu0 %1656
        %v1658 = vadd.f32 %v1454, %v1455
        %v1659 = vadd.f32 %v1658, %v1456
        %v1660 = vadd.f32 %v1659, %v1457
        %v1661 = vadd.f32 %v1660, %v1458
        %v1662 = vadd.f32 %v1661, %v1459
        %v1663 = vadd.f32 %v1662, %v1525
        %1664 = vadd.xlane.f32.xlu0 %v1663
        %v1665 = vpop.xlane.xlu0 %1664
        %v1666 = vadd.f32 %v1461, %v1462
        %v1667 = vadd.f32 %v1666, %v1463
        %v1668 = vadd.f32 %v1667, %v1464
        %v1669 = vadd.f32 %v1668, %v1465
        %v1670 = vadd.f32 %v1669, %v1466
        %v1671 = vadd.f32 %v1670, %v1527
        %1672 = vadd.xlane.f32.xlu0 %v1671
        %v1673 = vpop.xlane.xlu0 %1672
        %v1674 = vmax.f32 %v1440, %v1441
        %v1675 = vmax.f32 %v1674, %v1442
        %v1676 = vmax.f32 %v1675, %v1443
        %v1677 = vmax.f32 %v1676, %v1444
        %v1678 = vmax.f32 %v1677, %v1445
        %v1679 = vsel %vm881, %v1446, -inf
        %v1680 = vmax.f32 %v1678, %v1679
        %1681 = vmax.xlane.f32.xlu0 %v1680
        %v1682 = vpop.xlane.xlu0 %1681
        %v1683 = vmax.f32 %v1447, %v1448
        %v1684 = vmax.f32 %v1683, %v1449
        %v1685 = vmax.f32 %v1684, %v1450
        %v1686 = vmax.f32 %v1685, %v1451
        %v1687 = vmax.f32 %v1686, %v1452
        %v1688 = vsel %vm881, %v1453, -inf
        %v1689 = vmax.f32 %v1687, %v1688
        %1690 = vmax.xlane.f32.xlu0 %v1689
        %v1691 = vpop.xlane.xlu0 %1690
        %v1692 = vmax.f32 %v1454, %v1455
        %v1693 = vmax.f32 %v1692, %v1456
        %v1694 = vmax.f32 %v1693, %v1457
        %v1695 = vmax.f32 %v1694, %v1458
        %v1696 = vmax.f32 %v1695, %v1459
        %v1697 = vsel %vm881, %v1460, -inf
        %v1698 = vmax.f32 %v1696, %v1697
        %1699 = vmax.xlane.f32.xlu0 %v1698
        %v1700 = vpop.xlane.xlu0 %1699
        %v1701 = vmax.f32 %v1461, %v1462
        %v1702 = vmax.f32 %v1701, %v1463
        %v1703 = vmax.f32 %v1702, %v1464
        %v1704 = vmax.f32 %v1703, %v1465
        %v1705 = vmax.f32 %v1704, %v1466
        %v1706 = vsel %vm881, %v1467, -inf
        %v1707 = vmax.f32 %v1705, %v1706
        %1708 = vmax.xlane.f32.xlu0 %v1707
        %v1709 = vpop.xlane.xlu0 %1708
        %v1710 = vadd.f32 %v1013, %v1649
        %v1711 = vadd.f32 %v1021, %v1657
        %v1712 = vadd.f32 %v1029, %v1665
        %v1713 = vadd.f32 %v1037, %v1673
        %v1714 = vadd.f32 %v1046, %v1682
        %v1715 = vadd.f32 %v1055, %v1691
        %v1716 = vadd.f32 %v1064, %v1700
        %v1717 = vadd.f32 %v1073, %v1709
        %v1718 = vmul.f32 %v1710, 0.000625
        %v1719 = vmul.f32 %v1711, 0.000625
        %v1720 = vmul.f32 %v1712, 0.000625
        %v1721 = vmul.f32 %v1713, 0.000625
        %v1722 = vmul.f32 %v1714, 0.5
        %v1723 = vmul.f32 %v1715, 0.5
        %v1724 = vmul.f32 %v1716, 0.5
        %v1725 = vmul.f32 %v1717, 0.5
        %v1726 = vld [vmem:[%s3] sm:$0xff]
        %v1727 = vld [vmem:[%s3 + $0x8] sm:$0xff]
        %v1728 = vld [vmem:[%s3 + $0x10] sm:$0xff]
        %v1729 = vld [vmem:[%s3 + $0x18] sm:$0xff]
        %v1730 = vmul.f32 %v1726, %v1718
        %v1731 = vmul.f32 %v1727, %v1719
        %v1732 = vmul.f32 %v1728, %v1720
        %v1733 = vmul.f32 %v1729, %v1721
        %v1734 = vsel %vm881, %v1730, 0.0
        %v1735 = vsel %vm881, %v1731, 0.0
        %v1736 = vadd.f32 %v1734, %v1735
        %v1737 = vsel %vm881, %v1732, 0.0
        %v1738 = vadd.f32 %v1736, %v1737
        %v1739 = vsel %vm881, %v1733, 0.0
        %v1740 = vadd.f32 %v1738, %v1739
        %v1741 = vrot.slane %v1740, 4
        %v1742 = vadd.f32 %v1740, %v1741
        %v1743 = vrot.slane %v1742, 2
        %v1744 = vadd.f32 %v1742, %v1743
        %v1745 = vrot.slane %v1744, 1
        %v1746 = vadd.f32 %v1744, %v1745
        %v1747 = vld [vmem:[%s4] sm:$0x1]
        %v1748 = vadd.f32 %v1746, %v1747
        %v1749 = vmax.f32 %v1748, 0.0
        %v1750 = vld [vmem:[%s5] sm:$0xff]
        %v1751 = vld [vmem:[%s5 + $0x8] sm:$0xff]
        %v1752 = vld [vmem:[%s5 + $0x10] sm:$0xff]
        %v1753 = vld [vmem:[%s5 + $0x18] sm:$0xff]
        %v1754 = vlaneseq
        %v1755 = vshrl.u32 %v1754, 7
        %v1756 = vsub.s32 0, %v1755
        %v1757 = vrot.slane %v1749, %v1756
        %v1758 = vmul.f32 %v1750, %v1757
        %v1759 = vmul.f32 %v1751, %v1757
        %v1760 = vmul.f32 %v1752, %v1757
        %v1761 = vmul.f32 %v1753, %v1757
        %v1762 = vsel %vm881, %v1758, 0.0
        %1763 = vadd.xlane.f32.xlu0 %v1762
        %v1764 = vpop.xlane.xlu0 %1763
        %v1765 = vsel %vm881, %v1759, 0.0
        %1766 = vadd.xlane.f32.xlu0 %v1765
        %v1767 = vpop.xlane.xlu0 %1766
        %v1768 = vsel %vm881, %v1760, 0.0
        %1769 = vadd.xlane.f32.xlu0 %v1768
        %v1770 = vpop.xlane.xlu0 %1769
        %v1771 = vsel %vm881, %v1761, 0.0
        %1772 = vadd.xlane.f32.xlu0 %v1771
        %v1773 = vpop.xlane.xlu0 %1772
        %v1774 = vld [vmem:[%s6] sm:$0xff]
        %v1775 = vld [vmem:[%s6 + $0x8] sm:$0xff]
        %v1776 = vld [vmem:[%s6 + $0x10] sm:$0xff]
        %v1777 = vld [vmem:[%s6 + $0x18] sm:$0xff]
        %v1778 = vadd.f32 %v1764, %v1774
        %v1779 = vadd.f32 %v1767, %v1775
        %v1780 = vadd.f32 %v1770, %v1776
        %v1781 = vadd.f32 %v1773, %v1777
        %vm1782 = vcmask 7168
        %1783 = vst.msk [vmem:[%s329] sm:$0xff] %vm1782, %v1778
        %1784 = vst.msk [vmem:[%s329 + $0x8] sm:$0xff] %vm1782, %v1779
        %1785 = vst.msk [vmem:[%s329 + $0x10] sm:$0xff] %vm1782, %v1780
        %1786 = vst.msk [vmem:[%s329 + $0x18] sm:$0xff] %vm1782, %v1781
        %v1787 = vld [vmem:[%s3] sm:$0xff]
        %v1788 = vld [vmem:[%s3 + $0x8] sm:$0xff]
        %v1789 = vld [vmem:[%s3 + $0x10] sm:$0xff]
        %v1790 = vld [vmem:[%s3 + $0x18] sm:$0xff]
        %v1791 = vmul.f32 %v1787, %v1722
        %v1792 = vmul.f32 %v1788, %v1723
        %v1793 = vmul.f32 %v1789, %v1724
        %v1794 = vmul.f32 %v1790, %v1725
        %v1795 = vsel %vm881, %v1791, 0.0
        %v1796 = vsel %vm881, %v1792, 0.0
        %v1797 = vadd.f32 %v1795, %v1796
        %v1798 = vsel %vm881, %v1793, 0.0
        %v1799 = vadd.f32 %v1797, %v1798
        %v1800 = vsel %vm881, %v1794, 0.0
        %v1801 = vadd.f32 %v1799, %v1800
        %v1802 = vrot.slane %v1801, 4
        %v1803 = vadd.f32 %v1801, %v1802
        %v1804 = vrot.slane %v1803, 2
        %v1805 = vadd.f32 %v1803, %v1804
        %v1806 = vrot.slane %v1805, 1
        %v1807 = vadd.f32 %v1805, %v1806
        %v1808 = vld [vmem:[%s4] sm:$0x1]
        %v1809 = vadd.f32 %v1807, %v1808
        %v1810 = vmax.f32 %v1809, 0.0
        %v1811 = vld [vmem:[%s5] sm:$0xff]
        %v1812 = vld [vmem:[%s5 + $0x8] sm:$0xff]
        %v1813 = vld [vmem:[%s5 + $0x10] sm:$0xff]
        %v1814 = vld [vmem:[%s5 + $0x18] sm:$0xff]
        %v1815 = vlaneseq
        %v1816 = vshrl.u32 %v1815, 7
        %v1817 = vsub.s32 0, %v1816
        %v1818 = vrot.slane %v1810, %v1817
        %v1819 = vmul.f32 %v1811, %v1818
        %v1820 = vmul.f32 %v1812, %v1818
        %v1821 = vmul.f32 %v1813, %v1818
        %v1822 = vmul.f32 %v1814, %v1818
        %v1823 = vsel %vm881, %v1819, 0.0
        %1824 = vadd.xlane.f32.xlu0 %v1823
        %v1825 = vpop.xlane.xlu0 %1824
        %v1826 = vsel %vm881, %v1820, 0.0
        %1827 = vadd.xlane.f32.xlu0 %v1826
        %v1828 = vpop.xlane.xlu0 %1827
        %v1829 = vsel %vm881, %v1821, 0.0
        %1830 = vadd.xlane.f32.xlu0 %v1829
        %v1831 = vpop.xlane.xlu0 %1830
        %v1832 = vsel %vm881, %v1822, 0.0
        %1833 = vadd.xlane.f32.xlu0 %v1832
        %v1834 = vpop.xlane.xlu0 %1833
        %v1835 = vld [vmem:[%s6] sm:$0xff]
        %v1836 = vld [vmem:[%s6 + $0x8] sm:$0xff]
        %v1837 = vld [vmem:[%s6 + $0x10] sm:$0xff]
        %v1838 = vld [vmem:[%s6 + $0x18] sm:$0xff]
        %v1839 = vadd.f32 %v1825, %v1835
        %v1840 = vadd.f32 %v1828, %v1836
        %v1841 = vadd.f32 %v1831, %v1837
        %v1842 = vadd.f32 %v1834, %v1838
        %1843 = vst.msk [vmem:[%s336] sm:$0xff] %vm1782, %v1839
        %1844 = vst.msk [vmem:[%s336 + $0x8] sm:$0xff] %vm1782, %v1840
        %1845 = vst.msk [vmem:[%s336 + $0x10] sm:$0xff] %vm1782, %v1841
        %1846 = vst.msk [vmem:[%s336 + $0x18] sm:$0xff] %vm1782, %v1842
        %s1847 = sand.u32 %s187, 1
        %s1848 = scalar_lea.sflag [#allocation3], %s1847
        %s1849 = sand.u32 %s187, 1
        %s1850 = smul.addr %s1849, 32
        %s1851 = scalar_lea.vmem [#allocation2], %s1850
        %s1852 = sand.u32 %s213, 1
        %s1853 = scalar_lea.sflag [#allocation5], %s1852
        %s1854 = sand.u32 %s213, 1
        %s1855 = smul.addr %s1854, 32
        %s1856 = scalar_lea.vmem [#allocation4], %s1855
        %p1857 = scmp.lt.s32.totalorder %s27, 7
        %s1858 = scalar_select %p1857, %s27, 7
        %s1859 = smul.addr %s1858, 7
        %s1860 = smul.addr %s1859, 2
        %s1861 = scalar_lea.vmem %s9, %s1860
        // Predicated region
        $region49: #{forward.5} parent=47 // pred_check
          %p1862 = pneg %p197
        $region50: #{forward.5} parent=47 // pred_check_branch
          %1864 = sbr.rel (%p1862) target = $region52
        $region51: #{forward.5} parent=47 // pred_region
          %s1866 = ssub.s32 512, 512
          %1867 = vsyncadd %s1848, %s1866
          %s1868 = smul.addr %s27, 4
          %s1869 = smul.addr %s1868, 128
          %s1870 = scalar_lea.hbm %s7, %s1869
          %s1871 = sshll.u32 %s1851, 4
          %s1872 = int_to_ptr.vmem [resolvable:$true] %s1871
          %1877 = dma.vmem_to_hbm [thread:$0]  %s1872, 512, %s1870, %s1848, 128, 128, 8
        $region52: #{forward.5} parent=47 // pred_fallthru
          _
        // Predicated region
        $region53: #{forward.5} parent=47 // pred_check
          %p1878 = pneg %p223
        $region54: #{forward.5} parent=47 // pred_check_branch
          %1880 = sbr.rel (%p1878) target = $region56
        $region55: #{forward.5} parent=47 // pred_region
          %s1882 = ssub.s32 512, 512
          %1883 = vsyncadd %s1853, %s1882
          %s1884 = smul.addr %s27, 4
          %s1885 = smul.addr %s1884, 128
          %s1886 = scalar_lea.hbm %s8, %s1885
          %s1887 = sshll.u32 %s1856, 4
          %s1888 = int_to_ptr.vmem [resolvable:$true] %s1887
          %1893 = dma.vmem_to_hbm [thread:$0]  %s1888, 512, %s1886, %s1853, 128, 128, 8
        $region56: #{forward.5} parent=47 // pred_fallthru
          _
        // Predicated region
        $region57: #{forward.5} parent=47 // pred_check
          %p1894 = pneg %p249
        $region58: #{forward.5} parent=47 // pred_check_branch
          %1896 = sbr.rel (%p1894) target = $region60
        $region59: #{forward.5} parent=47 // pred_region
          _
        $region60: #{forward.5} parent=47 // pred_fallthru
          _
      $region48: #{forward.5} parent=5 // pred_fallthru
        _
      %p1897 = scmp.le.s32.totalorder 2, %s22
      // Predicated region
      $region61: #{forward.5} parent=5 // pred_check
        %p1898 = pneg %p1897
      $region62: #{forward.5} parent=5 // pred_check_branch
        %1900 = sbr.rel (%p1898) target = $region64
      $region63: #{forward.5} parent=5 // pred_region
        %s1901 = ssub.s32 %s22, 2
        // Predicated region
        $region65: #{forward.5} parent=63 // pred_check
          %p1902 = pneg %p203
        $region66: #{forward.5} parent=63 // pred_check_branch
          %1904 = sbr.rel (%p1902) target = $region68
        $region67: #{forward.5} parent=63 // pred_region
          %s1905 = sand.u32 %s188, 1
          %s1906 = scalar_lea.sflag [#allocation3], %s1905
          %s1907 = sand.u32 %s188, 1
          %s1908 = smul.addr %s1907, 32
          %s1909 = scalar_lea.vmem [#allocation2], %s1908
          %1910 = dma.done %s1906, 512
        $region68: #{forward.5} parent=63 // pred_fallthru
          _
        // Predicated region
        $region69: #{forward.5} parent=63 // pred_check
          %p1911 = pneg %p229
        $region70: #{forward.5} parent=63 // pred_check_branch
          %1913 = sbr.rel (%p1911) target = $region72
        $region71: #{forward.5} parent=63 // pred_region
          %s1914 = sand.u32 %s214, 1
          %s1915 = scalar_lea.sflag [#allocation5], %s1914
          %s1916 = sand.u32 %s214, 1
          %s1917 = smul.addr %s1916, 32
          %s1918 = scalar_lea.vmem [#allocation4], %s1917
          %1919 = dma.done %s1915, 512
        $region72: #{forward.5} parent=63 // pred_fallthru
          _
        // Predicated region
        $region73: #{forward.5} parent=63 // pred_check
          %p1920 = pneg %p255
        $region74: #{forward.5} parent=63 // pred_check_branch
          %1922 = sbr.rel (%p1920) target = $region76
        $region75: #{forward.5} parent=63 // pred_region
          %p1923 = scmp.lt.s32.totalorder %s28, 7
          %s1924 = scalar_select %p1923, %s28, 7
          %s1925 = smul.addr %s1924, 7
          %s1926 = smul.addr %s1925, 2
          %s1927 = scalar_lea.vmem %s9, %s1926
        $region76: #{forward.5} parent=63 // pred_fallthru
          _
      $region64: #{forward.5} parent=5 // pred_fallthru
        _
    $region6: #{forward.5} parent=1 // loop_footer
      %s26 = sadd.s32 1, %s22
    $region7: #{forward.5} parent=1 // loop_footer_branch
      %21 = sbr.rel target = $region3
    $region8: #{forward.5} parent=1 // loop_exit
      _
    %1928 = vsyncpa [#allocation3], 1
    %s1929 = scalar_lea.sflag [#allocation3], 1
    %1930 = vsyncpa %s1929, 1
    %1931 = vsyncpa [#allocation5], 1
    %s1932 = scalar_lea.sflag [#allocation5], 1
    %1933 = vsyncpa %s1932, 1

// kernel: forward.6
$region0: #{forward.6}
  #allocation0 [shape = 'u32[]', space=smem, size = 0x4, offset = 0x4, fixed_abs, tag = 'smem constant byte address 0x4 - core index']
  #allocation1 [shape = 'u32[144,128]{1,0:T(1,128)}', space=vmem, size = 0x12000, scoped, tag = 'internal scratch']
  %s0 = inlined_call_operand.vmem [shape: f32[12,2,3,800], index: 0, kind: input, shape index: {}]
  %s1 = inlined_call_operand.vmem [shape: f32[32,3], index: 1, kind: input, shape index: {}]
  %s2 = inlined_call_operand.vmem [shape: f32[32,1], index: 2, kind: input, shape index: {}]
  %s3 = inlined_call_operand.vmem [shape: f32[32,32], index: 3, kind: input, shape index: {}]
  %s4 = inlined_call_operand.vmem [shape: f32[1,32], index: 4, kind: input, shape index: {}]
  %s5 = inlined_call_operand.vmem [shape: f32[32,32], index: 5, kind: input, shape index: {}]
  %s6 = inlined_call_operand.vmem [shape: f32[32,1], index: 6, kind: input, shape index: {}]
  %s7 = inlined_call_operand.vmem [shape: f32[12,32,1], index: 7, kind: output, shape index: {0}]
  %s8 = inlined_call_operand.hbm [shape: f32[12,32,1], index: 8, kind: output, shape index: {1}]
  %s9 = inlined_call_operand.hbm [shape: f32[12,2,800], index: 9, kind: output, shape index: {2}]
  %10 = xla_tuple %s7, %s8, %s9
  %s11 = sld [smem:[#allocation0]]
  $region77: #{forward.6} parent=0
    _
  %s13 = ssub.s32 1, %s11
  %s14 = scalar_select 0, %s13, %s11
  $region1: #{forward.6} parent=0
    #allocation2 [shape = 'u8[32768]{0}', space=vmem, size = 0x8000, scoped, tag = 'output window, operand 1']
    #allocation3 [shape = 's32[2]{0}', space=sflag, size = 0x8, scoped, tag = 'scoped memory for forward.6']
    #allocation4 [shape = 'u8[14336]{0}', space=vmem, size = 0x3800, scoped, tag = 'output window, operand 2']
    #allocation5 [shape = 's32[2]{0}', space=sflag, size = 0x8, scoped, tag = 'scoped memory for forward.6']
    %15 = vsyncpa [#allocation3], 0
    %s16 = scalar_lea.sflag [#allocation3], 1
    %17 = vsyncpa %s16, 0
    %18 = vsyncpa [#allocation5], 0
    %s19 = scalar_lea.sflag [#allocation5], 1
    %20 = vsyncpa %s19, 0
    loop: start=0, step=1, limit=14
    $region2: #{forward.6} parent=1 // loop_pre_header
      _
    $region3: #{forward.6} parent=1 // loop_header
      %s22 = sphi 0, %s26
      %p23 = scmp.ge.s32.totalorder %s22, 14
      %s32 = sphi 0, %s34
      %s35 = sphi 0, %s32
      %s36 = sphi 0, %s35
      %s52 = sphi 0, %s36
      %s56 = sphi 0, %s56
      %s58 = sphi 0, %s56
      %s59 = sphi 0, %s58
      %s73 = sphi 0, %s59
      %s77 = sphi 0, %s77
      %s79 = sphi 0, %s77
      %s80 = sphi 0, %s79
      %s94 = sphi 0, %s80
      %s98 = sphi 0, %s98
      %s100 = sphi 0, %s98
      %s101 = sphi 0, %s100
      %s115 = sphi 0, %s101
      %s119 = sphi 0, %s119
      %s121 = sphi 0, %s119
      %s122 = sphi 0, %s121
      %s136 = sphi 0, %s122
      %s140 = sphi 0, %s140
      %s142 = sphi 0, %s140
      %s143 = sphi 0, %s142
      %s157 = sphi 0, %s143
      %s161 = sphi 0, %s161
      %s163 = sphi 0, %s161
      %s164 = sphi 0, %s163
      %s178 = sphi 0, %s164
      %s184 = sphi 0, %s186
      %s187 = sphi 0, %s184
      %s188 = sphi 0, %s187
      %s204 = sphi 0, %s188
      %s210 = sphi 0, %s212
      %s213 = sphi 0, %s210
      %s214 = sphi 0, %s213
      %s230 = sphi 0, %s214
      %s236 = sphi 0, %s238
      %s239 = sphi 0, %s236
      %s240 = sphi 0, %s239
      %s256 = sphi 0, %s240
    $region4: #{forward.6} parent=1 // loop_header_branch
      %25 = sbr.rel (%p23) target = $region8
    $region5: #{forward.6} parent=1 // loop_body
      %s27 = ssub.s32 %s22, 1
      %s28 = ssub.s32 %s22, 2
      %s29 = sadd.s32 %s22, 1
      %s30 = ssub.s32 %s22, %s29
      %p31 = scmp.eq.s32.totalorder %s30, 0
      %s33 = sadd.s32 %s32, 1
      %s34 = scalar_select %p31, %s32, %s33
      %p37 = pneg %p31
      %p38 = scmp.eq.s32.totalorder %s22, 11
      %p39 = por %p37, %p38
      %p40 = scmp.ne.s32.totalorder %s32, %s35
      %p41 = scmp.eq.s32.totalorder %s22, 0
      %p42 = por %p40, %p41
      %p43 = scmp.ne.s32.totalorder %s32, %s35
      %p44 = scmp.eq.s32.totalorder %s27, 11
      %p45 = por %p43, %p44
      %p46 = scmp.ne.s32.totalorder %s35, %s36
      %p47 = scmp.eq.s32.totalorder %s27, 0
      %p48 = por %p46, %p47
      %p49 = scmp.ne.s32.totalorder %s35, %s36
      %p50 = scmp.eq.s32.totalorder %s28, 11
      %p51 = por %p49, %p50
      %p53 = scmp.ne.s32.totalorder %s36, %s52
      %p54 = scmp.eq.s32.totalorder %s28, 0
      %p55 = por %p53, %p54
      %s57 = sadd.s32 %s56, 1
      %p60 = scmp.eq.s32.totalorder %s22, 11
      %p61 = scmp.ne.s32.totalorder %s56, %s58
      %p62 = scmp.eq.s32.totalorder %s22, 0
      %p63 = por %p61, %p62
      %p64 = scmp.ne.s32.totalorder %s56, %s58
      %p65 = scmp.eq.s32.totalorder %s27, 11
      %p66 = por %p64, %p65
      %p67 = scmp.ne.s32.totalorder %s58, %s59
      %p68 = scmp.eq.s32.totalorder %s27, 0
      %p69 = por %p67, %p68
      %p70 = scmp.ne.s32.totalorder %s58, %s59
      %p71 = scmp.eq.s32.totalorder %s28, 11
      %p72 = por %p70, %p71
      %p74 = scmp.ne.s32.totalorder %s59, %s73
      %p75 = scmp.eq.s32.totalorder %s28, 0
      %p76 = por %p74, %p75
      %s78 = sadd.s32 %s77, 1
      %p81 = scmp.eq.s32.totalorder %s22, 11
      %p82 = scmp.ne.s32.totalorder %s77, %s79
      %p83 = scmp.eq.s32.totalorder %s22, 0
      %p84 = por %p82, %p83
      %p85 = scmp.ne.s32.totalorder %s77, %s79
      %p86 = scmp.eq.s32.totalorder %s27, 11
      %p87 = por %p85, %p86
      %p88 = scmp.ne.s32.totalorder %s79, %s80
      %p89 = scmp.eq.s32.totalorder %s27, 0
      %p90 = por %p88, %p89
      %p91 = scmp.ne.s32.totalorder %s79, %s80
      %p92 = scmp.eq.s32.totalorder %s28, 11
      %p93 = por %p91, %p92
      %p95 = scmp.ne.s32.totalorder %s80, %s94
      %p96 = scmp.eq.s32.totalorder %s28, 0
      %p97 = por %p95, %p96
      %s99 = sadd.s32 %s98, 1
      %p102 = scmp.eq.s32.totalorder %s22, 11
      %p103 = scmp.ne.s32.totalorder %s98, %s100
      %p104 = scmp.eq.s32.totalorder %s22, 0
      %p105 = por %p103, %p104
      %p106 = scmp.ne.s32.totalorder %s98, %s100
      %p107 = scmp.eq.s32.totalorder %s27, 11
      %p108 = por %p106, %p107
      %p109 = scmp.ne.s32.totalorder %s100, %s101
      %p110 = scmp.eq.s32.totalorder %s27, 0
      %p111 = por %p109, %p110
      %p112 = scmp.ne.s32.totalorder %s100, %s101
      %p113 = scmp.eq.s32.totalorder %s28, 11
      %p114 = por %p112, %p113
      %p116 = scmp.ne.s32.totalorder %s101, %s115
      %p117 = scmp.eq.s32.totalorder %s28, 0
      %p118 = por %p116, %p117
      %s120 = sadd.s32 %s119, 1
      %p123 = scmp.eq.s32.totalorder %s22, 11
      %p124 = scmp.ne.s32.totalorder %s119, %s121
      %p125 = scmp.eq.s32.totalorder %s22, 0
      %p126 = por %p124, %p125
      %p127 = scmp.ne.s32.totalorder %s119, %s121
      %p128 = scmp.eq.s32.totalorder %s27, 11
      %p129 = por %p127, %p128
      %p130 = scmp.ne.s32.totalorder %s121, %s122
      %p131 = scmp.eq.s32.totalorder %s27, 0
      %p132 = por %p130, %p131
      %p133 = scmp.ne.s32.totalorder %s121, %s122
      %p134 = scmp.eq.s32.totalorder %s28, 11
      %p135 = por %p133, %p134
      %p137 = scmp.ne.s32.totalorder %s122, %s136
      %p138 = scmp.eq.s32.totalorder %s28, 0
      %p139 = por %p137, %p138
      %s141 = sadd.s32 %s140, 1
      %p144 = scmp.eq.s32.totalorder %s22, 11
      %p145 = scmp.ne.s32.totalorder %s140, %s142
      %p146 = scmp.eq.s32.totalorder %s22, 0
      %p147 = por %p145, %p146
      %p148 = scmp.ne.s32.totalorder %s140, %s142
      %p149 = scmp.eq.s32.totalorder %s27, 11
      %p150 = por %p148, %p149
      %p151 = scmp.ne.s32.totalorder %s142, %s143
      %p152 = scmp.eq.s32.totalorder %s27, 0
      %p153 = por %p151, %p152
      %p154 = scmp.ne.s32.totalorder %s142, %s143
      %p155 = scmp.eq.s32.totalorder %s28, 11
      %p156 = por %p154, %p155
      %p158 = scmp.ne.s32.totalorder %s143, %s157
      %p159 = scmp.eq.s32.totalorder %s28, 0
      %p160 = por %p158, %p159
      %s162 = sadd.s32 %s161, 1
      %p165 = scmp.eq.s32.totalorder %s22, 11
      %p166 = scmp.ne.s32.totalorder %s161, %s163
      %p167 = scmp.eq.s32.totalorder %s22, 0
      %p168 = por %p166, %p167
      %p169 = scmp.ne.s32.totalorder %s161, %s163
      %p170 = scmp.eq.s32.totalorder %s27, 11
      %p171 = por %p169, %p170
      %p172 = scmp.ne.s32.totalorder %s163, %s164
      %p173 = scmp.eq.s32.totalorder %s27, 0
      %p174 = por %p172, %p173
      %p175 = scmp.ne.s32.totalorder %s163, %s164
      %p176 = scmp.eq.s32.totalorder %s28, 11
      %p177 = por %p175, %p176
      %p179 = scmp.ne.s32.totalorder %s164, %s178
      %p180 = scmp.eq.s32.totalorder %s28, 0
      %p181 = por %p179, %p180
      %s182 = ssub.s32 %s22, %s29
      %p183 = scmp.eq.s32.totalorder %s182, 0
      %s185 = sadd.s32 %s184, 1
      %s186 = scalar_select %p183, %s184, %s185
      %p189 = pneg %p183
      %p190 = scmp.eq.s32.totalorder %s22, 11
      %p191 = por %p189, %p190
      %p192 = scmp.ne.s32.totalorder %s184, %s187
      %p193 = scmp.eq.s32.totalorder %s22, 0
      %p194 = por %p192, %p193
      %p195 = scmp.ne.s32.totalorder %s184, %s187
      %p196 = scmp.eq.s32.totalorder %s27, 11
      %p197 = por %p195, %p196
      %p198 = scmp.ne.s32.totalorder %s187, %s188
      %p199 = scmp.eq.s32.totalorder %s27, 0
      %p200 = por %p198, %p199
      %p201 = scmp.ne.s32.totalorder %s187, %s188
      %p202 = scmp.eq.s32.totalorder %s28, 11
      %p203 = por %p201, %p202
      %p205 = scmp.ne.s32.totalorder %s188, %s204
      %p206 = scmp.eq.s32.totalorder %s28, 0
      %p207 = por %p205, %p206
      %s208 = ssub.s32 %s22, %s29
      %p209 = scmp.eq.s32.totalorder %s208, 0
      %s211 = sadd.s32 %s210, 1
      %s212 = scalar_select %p209, %s210, %s211
      %p215 = pneg %p209
      %p216 = scmp.eq.s32.totalorder %s22, 11
      %p217 = por %p215, %p216
      %p218 = scmp.ne.s32.totalorder %s210, %s213
      %p219 = scmp.eq.s32.totalorder %s22, 0
      %p220 = por %p218, %p219
      %p221 = scmp.ne.s32.totalorder %s210, %s213
      %p222 = scmp.eq.s32.totalorder %s27, 11
      %p223 = por %p221, %p222
      %p224 = scmp.ne.s32.totalorder %s213, %s214
      %p225 = scmp.eq.s32.totalorder %s27, 0
      %p226 = por %p224, %p225
      %p227 = scmp.ne.s32.totalorder %s213, %s214
      %p228 = scmp.eq.s32.totalorder %s28, 11
      %p229 = por %p227, %p228
      %p231 = scmp.ne.s32.totalorder %s214, %s230
      %p232 = scmp.eq.s32.totalorder %s28, 0
      %p233 = por %p231, %p232
      %s234 = ssub.s32 %s22, %s29
      %p235 = scmp.eq.s32.totalorder %s234, 0
      %s237 = sadd.s32 %s236, 1
      %s238 = scalar_select %p235, %s236, %s237
      %p241 = pneg %p235
      %p242 = scmp.eq.s32.totalorder %s22, 11
      %p243 = por %p241, %p242
      %p244 = scmp.ne.s32.totalorder %s236, %s239
      %p245 = scmp.eq.s32.totalorder %s22, 0
      %p246 = por %p244, %p245
      %p247 = scmp.ne.s32.totalorder %s236, %s239
      %p248 = scmp.eq.s32.totalorder %s27, 11
      %p249 = por %p247, %p248
      %p250 = scmp.ne.s32.totalorder %s239, %s240
      %p251 = scmp.eq.s32.totalorder %s27, 0
      %p252 = por %p250, %p251
      %p253 = scmp.ne.s32.totalorder %s239, %s240
      %p254 = scmp.eq.s32.totalorder %s28, 11
      %p255 = por %p253, %p254
      %p257 = scmp.ne.s32.totalorder %s240, %s256
      %p258 = scmp.eq.s32.totalorder %s28, 0
      %p259 = por %p257, %p258
      %p260 = scmp.le.s32.totalorder 1, %s22
      %p261 = scmp.lt.s32.totalorder %s22, 13
      %p262 = pnand %p260, %p261
      %p263 = pneg %p262
      // Predicated region
      $region9: #{forward.6} parent=5 // pred_check
        _
      $region10: #{forward.6} parent=5 // pred_check_branch
        %265 = sbr.rel (%p262) target = $region12
      $region11: #{forward.6} parent=5 // pred_region
        %s266 = ssub.s32 %s22, 1
        // Predicated region
        $region13: #{forward.6} parent=11 // pred_check
          %p267 = pneg %p69
        $region14: #{forward.6} parent=11 // pred_check_branch
          %269 = sbr.rel (%p267) target = $region16
        $region15: #{forward.6} parent=11 // pred_region
          _
        $region16: #{forward.6} parent=11 // pred_fallthru
          _
        // Predicated region
        $region17: #{forward.6} parent=11 // pred_check
          %p270 = pneg %p90
        $region18: #{forward.6} parent=11 // pred_check_branch
          %272 = sbr.rel (%p270) target = $region20
        $region19: #{forward.6} parent=11 // pred_region
          _
        $region20: #{forward.6} parent=11 // pred_fallthru
          _
        // Predicated region
        $region21: #{forward.6} parent=11 // pred_check
          %p273 = pneg %p111
        $region22: #{forward.6} parent=11 // pred_check_branch
          %275 = sbr.rel (%p273) target = $region24
        $region23: #{forward.6} parent=11 // pred_region
          _
        $region24: #{forward.6} parent=11 // pred_fallthru
          _
        // Predicated region
        $region25: #{forward.6} parent=11 // pred_check
          %p276 = pneg %p132
        $region26: #{forward.6} parent=11 // pred_check_branch
          %278 = sbr.rel (%p276) target = $region28
        $region27: #{forward.6} parent=11 // pred_region
          _
        $region28: #{forward.6} parent=11 // pred_fallthru
          _
        // Predicated region
        $region29: #{forward.6} parent=11 // pred_check
          %p279 = pneg %p153
        $region30: #{forward.6} parent=11 // pred_check_branch
          %281 = sbr.rel (%p279) target = $region32
        $region31: #{forward.6} parent=11 // pred_region
          _
        $region32: #{forward.6} parent=11 // pred_fallthru
          _
        // Predicated region
        $region33: #{forward.6} parent=11 // pred_check
          %p282 = pneg %p174
        $region34: #{forward.6} parent=11 // pred_check_branch
          %284 = sbr.rel (%p282) target = $region36
        $region35: #{forward.6} parent=11 // pred_region
          _
        $region36: #{forward.6} parent=11 // pred_fallthru
          _
      $region12: #{forward.6} parent=5 // pred_fallthru
        _
      %p285 = scmp.lt.s32.totalorder %s22, 12
      // Predicated region
      $region37: #{forward.6} parent=5 // pred_check
        %p286 = pneg %p285
      $region38: #{forward.6} parent=5 // pred_check_branch
        %288 = sbr.rel (%p286) target = $region40
      $region39: #{forward.6} parent=5 // pred_region
        // Predicated region
        $region41: #{forward.6} parent=39 // pred_check
          %p289 = pneg %p42
        $region42: #{forward.6} parent=39 // pred_check_branch
          %291 = sbr.rel (%p289) target = $region44
        $region43: #{forward.6} parent=39 // pred_region
          %p292 = scmp.lt.s32.totalorder %s22, 11
          %s293 = scalar_select %p292, %s22, 11
          %s294 = smul.addr %s293, 14
          %s295 = smul.addr %s294, 4
          %s296 = scalar_lea.vmem %s0, %s295
        $region44: #{forward.6} parent=39 // pred_fallthru
          _
      $region40: #{forward.6} parent=5 // pred_fallthru
        _
      %p297 = scmp.le.s32.totalorder 1, %s22
      %p298 = scmp.lt.s32.totalorder %s22, 13
      %p299 = pnand %p297, %p298
      %p300 = pneg %p299
      // Predicated region
      $region45: #{forward.6} parent=5 // pred_check
        _
      $region46: #{forward.6} parent=5 // pred_check_branch
        %302 = sbr.rel (%p299) target = $region48
      $region47: #{forward.6} parent=5 // pred_region
        %s303 = ssub.s32 %s22, 1
        %p304 = scmp.lt.s32.totalorder %s27, 11
        %s305 = scalar_select %p304, %s27, 11
        %s306 = smul.addr %s305, 14
        %s307 = smul.addr %s306, 4
        %s308 = scalar_lea.vmem %s0, %s307
        %p309 = pneg %p48
        %p310 = pneg %p45
        %p311 = pneg %p69
        %p312 = pneg %p66
        %p313 = pneg %p90
        %p314 = pneg %p87
        %p315 = pneg %p111
        %p316 = pneg %p108
        %p317 = pneg %p132
        %p318 = pneg %p129
        %p319 = pneg %p153
        %p320 = pneg %p150
        %p321 = pneg %p174
        %p322 = pneg %p171
        %p323 = pneg %p200
        %p324 = pneg %p197
        %p325 = scmp.lt.s32.totalorder %s27, 11
        %s326 = scalar_select %p325, %s27, 11
        %s327 = smul.addr %s326, 4
        %s328 = smul.addr %s327, 8
        %s329 = scalar_lea.vmem %s7, %s328
        %p330 = pneg %p226
        %p331 = pneg %p223
        %s332 = sand.u32 %s213, 1
        %s333 = scalar_lea.sflag [#allocation3], %s332
        %s334 = sand.u32 %s213, 1
        %s335 = smul.addr %s334, 32
        %s336 = scalar_lea.vmem [#allocation2], %s335
        %p337 = pneg %p252
        %p338 = pneg %p249
        %s339 = sand.u32 %s239, 1
        %s340 = scalar_lea.sflag [#allocation5], %s339
        %s341 = sand.u32 %s239, 1
        %s342 = smul.addr %s341, 14
        %s343 = scalar_lea.vmem [#allocation4], %s342
        %p344 = scmp.lt.s32.totalorder %s27, 11
        %s345 = scalar_select %p344, %s27, 11
        %s346 = smul.addr %s345, 14
        %s347 = smul.addr %s346, 4
        %s348 = scalar_lea.vmem %s0, %s347
        %p349 = scmp.lt.s32.totalorder %s27, 11
        %s350 = scalar_select %p349, %s27, 11
        %s351 = smul.addr %s350, 4
        %s352 = smul.addr %s351, 8
        %s353 = scalar_lea.vmem %s7, %s352
        %v354 = vld [vmem:[%s1] sm:$0xff]
        %v355 = vld [vmem:[%s1 + $0x8] sm:$0xff]
        %v356 = vld [vmem:[%s1 + $0x10] sm:$0xff]
        %v357 = vld [vmem:[%s1 + $0x18] sm:$0xff]
        %v358 = vld [vmem:[%s2] sm:$0xff]
        %v359 = vld [vmem:[%s2 + $0x8] sm:$0xff]
        %v360 = vld [vmem:[%s2 + $0x10] sm:$0xff]
        %v361 = vld [vmem:[%s2 + $0x18] sm:$0xff]
        %v362 = vld [vmem:[%s348] sm:$0x77]
        %v363 = vld [vmem:[%s348 + $0x8] sm:$0x77]
        %v364 = vld [vmem:[%s348 + $0x10] sm:$0x77]
        %v365 = vld [vmem:[%s348 + $0x18] sm:$0x7]
        %367 = vset.pattern.permute.xlu0 0
        %368 = vperm.xlu0 %367, %v354
        %v369 = vpop.permute.xlu0 %368
        %372 = vset.pattern.permute.xlu0 0
        %373 = vperm.xlu0 %372, %v355
        %v374 = vpop.permute.xlu0 %373
        %377 = vset.pattern.permute.xlu0 0
        %378 = vperm.xlu0 %377, %v356
        %v379 = vpop.permute.xlu0 %378
        %382 = vset.pattern.permute.xlu0 0
        %383 = vperm.xlu0 %382, %v357
        %v384 = vpop.permute.xlu0 %383
        %v390 = vlaneseq
        %v391 = vshrl.u32 %v390, 7
        %v392 = vsub.s32 0, %v391
        %v393 = vrot.slane %v362, %v392
        %v394 = vlaneseq
        %v395 = vshrl.u32 %v394, 7
        %v396 = vsub.s32 4, %v395
        %v397 = vrot.slane %v362, %v396
        %v398 = vlaneseq
        %v399 = vshrl.u32 %v398, 7
        %v400 = vsub.s32 0, %v399
        %v401 = vrot.slane %v363, %v400
        %v402 = vlaneseq
        %v403 = vshrl.u32 %v402, 7
        %v404 = vsub.s32 4, %v403
        %v405 = vrot.slane %v363, %v404
        %v406 = vlaneseq
        %v407 = vshrl.u32 %v406, 7
        %v408 = vsub.s32 0, %v407
        %v409 = vrot.slane %v364, %v408
        %v410 = vlaneseq
        %v411 = vshrl.u32 %v410, 7
        %v412 = vsub.s32 4, %v411
        %v413 = vrot.slane %v364, %v412
        %v414 = vlaneseq
        %v415 = vshrl.u32 %v414, 7
        %v416 = vsub.s32 0, %v415
        %v417 = vrot.slane %v365, %v416
        %v425 = vlaneseq
        %v426 = vshrl.u32 %v425, 7
        %v427 = vsub.s32 0, %v426
        %v428 = vrot.slane %v393, %v427
        %v429 = vlaneseq
        %v430 = vshrl.u32 %v429, 7
        %v431 = vsub.s32 0, %v430
        %v432 = vrot.slane %v397, %v431
        %v433 = vlaneseq
        %v434 = vshrl.u32 %v433, 7
        %v435 = vsub.s32 0, %v434
        %v436 = vrot.slane %v401, %v435
        %v437 = vlaneseq
        %v438 = vshrl.u32 %v437, 7
        %v439 = vsub.s32 0, %v438
        %v440 = vrot.slane %v405, %v439
        %v441 = vlaneseq
        %v442 = vshrl.u32 %v441, 7
        %v443 = vsub.s32 0, %v442
        %v444 = vrot.slane %v409, %v443
        %v445 = vlaneseq
        %v446 = vshrl.u32 %v445, 7
        %v447 = vsub.s32 0, %v446
        %v448 = vrot.slane %v413, %v447
        %v449 = vlaneseq
        %v450 = vshrl.u32 %v449, 7
        %v451 = vsub.s32 0, %v450
        %v452 = vrot.slane %v417, %v451
        %v453 = vmul.f32 %v369, %v428
        %v454 = vmul.f32 %v369, %v432
        %v455 = vmul.f32 %v369, %v436
        %v456 = vmul.f32 %v369, %v440
        %v457 = vmul.f32 %v369, %v444
        %v458 = vmul.f32 %v369, %v448
        %v459 = vmul.f32 %v369, %v452
        %v460 = vmul.f32 %v374, %v428
        %v461 = vmul.f32 %v374, %v432
        %v462 = vmul.f32 %v374, %v436
        %v463 = vmul.f32 %v374, %v440
        %v464 = vmul.f32 %v374, %v444
        %v465 = vmul.f32 %v374, %v448
        %v466 = vmul.f32 %v374, %v452
        %v467 = vmul.f32 %v379, %v428
        %v468 = vmul.f32 %v379, %v432
        %v469 = vmul.f32 %v379, %v436
        %v470 = vmul.f32 %v379, %v440
        %v471 = vmul.f32 %v379, %v444
        %v472 = vmul.f32 %v379, %v448
        %v473 = vmul.f32 %v379, %v452
        %v474 = vmul.f32 %v384, %v428
        %v475 = vmul.f32 %v384, %v432
        %v476 = vmul.f32 %v384, %v436
        %v477 = vmul.f32 %v384, %v440
        %v478 = vmul.f32 %v384, %v444
        %v479 = vmul.f32 %v384, %v448
        %v480 = vmul.f32 %v384, %v452
        %481 = vset.pattern.permute.xlu0 1
        %482 = vperm.xlu0 %481, %v354
        %v483 = vpop.permute.xlu0 %482
        %485 = vset.pattern.permute.xlu0 1
        %486 = vperm.xlu0 %485, %v355
        %v487 = vpop.permute.xlu0 %486
        %489 = vset.pattern.permute.xlu0 1
        %490 = vperm.xlu0 %489, %v356
        %v491 = vpop.permute.xlu0 %490
        %493 = vset.pattern.permute.xlu0 1
        %494 = vperm.xlu0 %493, %v357
        %v495 = vpop.permute.xlu0 %494
        %v497 = vlaneseq
        %v498 = vshrl.u32 %v497, 7
        %v499 = vsub.s32 1, %v498
        %v500 = vrot.slane %v362, %v499
        %v501 = vlaneseq
        %v502 = vshrl.u32 %v501, 7
        %v503 = vsub.s32 5, %v502
        %v504 = vrot.slane %v362, %v503
        %v505 = vlaneseq
        %v506 = vshrl.u32 %v505, 7
        %v507 = vsub.s32 1, %v506
        %v508 = vrot.slane %v363, %v507
        %v509 = vlaneseq
        %v510 = vshrl.u32 %v509, 7
        %v511 = vsub.s32 5, %v510
        %v512 = vrot.slane %v363, %v511
        %v513 = vlaneseq
        %v514 = vshrl.u32 %v513, 7
        %v515 = vsub.s32 1, %v514
        %v516 = vrot.slane %v364, %v515
        %v517 = vlaneseq
        %v518 = vshrl.u32 %v517, 7
        %v519 = vsub.s32 5, %v518
        %v520 = vrot.slane %v364, %v519
        %v521 = vlaneseq
        %v522 = vshrl.u32 %v521, 7
        %v523 = vsub.s32 1, %v522
        %v524 = vrot.slane %v365, %v523
        %v532 = vlaneseq
        %v533 = vshrl.u32 %v532, 7
        %v534 = vsub.s32 1, %v533
        %v535 = vrot.slane %v500, %v534
        %v536 = vlaneseq
        %v537 = vshrl.u32 %v536, 7
        %v538 = vsub.s32 1, %v537
        %v539 = vrot.slane %v504, %v538
        %v540 = vlaneseq
        %v541 = vshrl.u32 %v540, 7
        %v542 = vsub.s32 1, %v541
        %v543 = vrot.slane %v508, %v542
        %v544 = vlaneseq
        %v545 = vshrl.u32 %v544, 7
        %v546 = vsub.s32 1, %v545
        %v547 = vrot.slane %v512, %v546
        %v548 = vlaneseq
        %v549 = vshrl.u32 %v548, 7
        %v550 = vsub.s32 1, %v549
        %v551 = vrot.slane %v516, %v550
        %v552 = vlaneseq
        %v553 = vshrl.u32 %v552, 7
        %v554 = vsub.s32 1, %v553
        %v555 = vrot.slane %v520, %v554
        %v556 = vlaneseq
        %v557 = vshrl.u32 %v556, 7
        %v558 = vsub.s32 1, %v557
        %v559 = vrot.slane %v524, %v558
        %v560 = vmul.f32 %v483, %v535
        %v561 = vmul.f32 %v483, %v539
        %v562 = vmul.f32 %v483, %v543
        %v563 = vmul.f32 %v483, %v547
        %v564 = vmul.f32 %v483, %v551
        %v565 = vmul.f32 %v483, %v555
        %v566 = vmul.f32 %v483, %v559
        %v567 = vmul.f32 %v487, %v535
        %v568 = vmul.f32 %v487, %v539
        %v569 = vmul.f32 %v487, %v543
        %v570 = vmul.f32 %v487, %v547
        %v571 = vmul.f32 %v487, %v551
        %v572 = vmul.f32 %v487, %v555
        %v573 = vmul.f32 %v487, %v559
        %v574 = vmul.f32 %v491, %v535
        %v575 = vmul.f32 %v491, %v539
        %v576 = vmul.f32 %v491, %v543
        %v577 = vmul.f32 %v491, %v547
        %v578 = vmul.f32 %v491, %v551
        %v579 = vmul.f32 %v491, %v555
        %v580 = vmul.f32 %v491, %v559
        %v581 = vmul.f32 %v495, %v535
        %v582 = vmul.f32 %v495, %v539
        %v583 = vmul.f32 %v495, %v543
        %v584 = vmul.f32 %v495, %v547
        %v585 = vmul.f32 %v495, %v551
        %v586 = vmul.f32 %v495, %v555
        %v587 = vmul.f32 %v495, %v559
        %v588 = vadd.f32 %v453, %v560
        %v589 = vadd.f32 %v454, %v561
        %v590 = vadd.f32 %v455, %v562
        %v591 = vadd.f32 %v456, %v563
        %v592 = vadd.f32 %v457, %v564
        %v593 = vadd.f32 %v458, %v565
        %v594 = vadd.f32 %v459, %v566
        %v595 = vadd.f32 %v460, %v567
        %v596 = vadd.f32 %v461, %v568
        %v597 = vadd.f32 %v462, %v569
        %v598 = vadd.f32 %v463, %v570
        %v599 = vadd.f32 %v464, %v571
        %v600 = vadd.f32 %v465, %v572
        %v601 = vadd.f32 %v466, %v573
        %v602 = vadd.f32 %v467, %v574
        %v603 = vadd.f32 %v468, %v575
        %v604 = vadd.f32 %v469, %v576
        %v605 = vadd.f32 %v470, %v577
        %v606 = vadd.f32 %v471, %v578
        %v607 = vadd.f32 %v472, %v579
        %v608 = vadd.f32 %v473, %v580
        %v609 = vadd.f32 %v474, %v581
        %v610 = vadd.f32 %v475, %v582
        %v611 = vadd.f32 %v476, %v583
        %v612 = vadd.f32 %v477, %v584
        %v613 = vadd.f32 %v478, %v585
        %v614 = vadd.f32 %v479, %v586
        %v615 = vadd.f32 %v480, %v587
        %616 = vset.pattern.permute.xlu0 2
        %617 = vperm.xlu0 %616, %v354
        %v618 = vpop.permute.xlu0 %617
        %620 = vset.pattern.permute.xlu0 2
        %621 = vperm.xlu0 %620, %v355
        %v622 = vpop.permute.xlu0 %621
        %624 = vset.pattern.permute.xlu0 2
        %625 = vperm.xlu0 %624, %v356
        %v626 = vpop.permute.xlu0 %625
        %628 = vset.pattern.permute.xlu0 2
        %629 = vperm.xlu0 %628, %v357
        %v630 = vpop.permute.xlu0 %629
        %v632 = vlaneseq
        %v633 = vshrl.u32 %v632, 7
        %v634 = vsub.s32 2, %v633
        %v635 = vrot.slane %v362, %v634
        %v636 = vlaneseq
        %v637 = vshrl.u32 %v636, 7
        %v638 = vsub.s32 6, %v637
        %v639 = vrot.slane %v362, %v638
        %v640 = vlaneseq
        %v641 = vshrl.u32 %v640, 7
        %v642 = vsub.s32 2, %v641
        %v643 = vrot.slane %v363, %v642
        %v644 = vlaneseq
        %v645 = vshrl.u32 %v644, 7
        %v646 = vsub.s32 6, %v645
        %v647 = vrot.slane %v363, %v646
        %v648 = vlaneseq
        %v649 = vshrl.u32 %v648, 7
        %v650 = vsub.s32 2, %v649
        %v651 = vrot.slane %v364, %v650
        %v652 = vlaneseq
        %v653 = vshrl.u32 %v652, 7
        %v654 = vsub.s32 6, %v653
        %v655 = vrot.slane %v364, %v654
        %v656 = vlaneseq
        %v657 = vshrl.u32 %v656, 7
        %v658 = vsub.s32 2, %v657
        %v659 = vrot.slane %v365, %v658
        %v667 = vlaneseq
        %v668 = vshrl.u32 %v667, 7
        %v669 = vsub.s32 2, %v668
        %v670 = vrot.slane %v635, %v669
        %v671 = vlaneseq
        %v672 = vshrl.u32 %v671, 7
        %v673 = vsub.s32 2, %v672
        %v674 = vrot.slane %v639, %v673
        %v675 = vlaneseq
        %v676 = vshrl.u32 %v675, 7
        %v677 = vsub.s32 2, %v676
        %v678 = vrot.slane %v643, %v677
        %v679 = vlaneseq
        %v680 = vshrl.u32 %v679, 7
        %v681 = vsub.s32 2, %v680
        %v682 = vrot.slane %v647, %v681
        %v683 = vlaneseq
        %v684 = vshrl.u32 %v683, 7
        %v685 = vsub.s32 2, %v684
        %v686 = vrot.slane %v651, %v685
        %v687 = vlaneseq
        %v688 = vshrl.u32 %v687, 7
        %v689 = vsub.s32 2, %v688
        %v690 = vrot.slane %v655, %v689
        %v691 = vlaneseq
        %v692 = vshrl.u32 %v691, 7
        %v693 = vsub.s32 2, %v692
        %v694 = vrot.slane %v659, %v693
        %v695 = vmul.f32 %v618, %v670
        %v696 = vmul.f32 %v618, %v674
        %v697 = vmul.f32 %v618, %v678
        %v698 = vmul.f32 %v618, %v682
        %v699 = vmul.f32 %v618, %v686
        %v700 = vmul.f32 %v618, %v690
        %v701 = vmul.f32 %v618, %v694
        %v702 = vmul.f32 %v622, %v670
        %v703 = vmul.f32 %v622, %v674
        %v704 = vmul.f32 %v622, %v678
        %v705 = vmul.f32 %v622, %v682
        %v706 = vmul.f32 %v622, %v686
        %v707 = vmul.f32 %v622, %v690
        %v708 = vmul.f32 %v622, %v694
        %v709 = vmul.f32 %v626, %v670
        %v710 = vmul.f32 %v626, %v674
        %v711 = vmul.f32 %v626, %v678
        %v712 = vmul.f32 %v626, %v682
        %v713 = vmul.f32 %v626, %v686
        %v714 = vmul.f32 %v626, %v690
        %v715 = vmul.f32 %v626, %v694
        %v716 = vmul.f32 %v630, %v670
        %v717 = vmul.f32 %v630, %v674
        %v718 = vmul.f32 %v630, %v678
        %v719 = vmul.f32 %v630, %v682
        %v720 = vmul.f32 %v630, %v686
        %v721 = vmul.f32 %v630, %v690
        %v722 = vmul.f32 %v630, %v694
        %v723 = vadd.f32 %v588, %v695
        %v724 = vadd.f32 %v589, %v696
        %v725 = vadd.f32 %v590, %v697
        %v726 = vadd.f32 %v591, %v698
        %v727 = vadd.f32 %v592, %v699
        %v728 = vadd.f32 %v593, %v700
        %v729 = vadd.f32 %v594, %v701
        %v730 = vadd.f32 %v595, %v702
        %v731 = vadd.f32 %v596, %v703
        %v732 = vadd.f32 %v597, %v704
        %v733 = vadd.f32 %v598, %v705
        %v734 = vadd.f32 %v599, %v706
        %v735 = vadd.f32 %v600, %v707
        %v736 = vadd.f32 %v601, %v708
        %v737 = vadd.f32 %v602, %v709
        %v738 = vadd.f32 %v603, %v710
        %v739 = vadd.f32 %v604, %v711
        %v740 = vadd.f32 %v605, %v712
        %v741 = vadd.f32 %v606, %v713
        %v742 = vadd.f32 %v607, %v714
        %v743 = vadd.f32 %v608, %v715
        %v744 = vadd.f32 %v609, %v716
        %v745 = vadd.f32 %v610, %v717
        %v746 = vadd.f32 %v611, %v718
        %v747 = vadd.f32 %v612, %v719
        %v748 = vadd.f32 %v613, %v720
        %v749 = vadd.f32 %v614, %v721
        %v750 = vadd.f32 %v615, %v722
        %752 = vset.pattern.permute.xlu0 0
        %753 = vperm.xlu0 %752, %v358
        %v754 = vpop.permute.xlu0 %753
        %757 = vset.pattern.permute.xlu0 0
        %758 = vperm.xlu0 %757, %v359
        %v759 = vpop.permute.xlu0 %758
        %762 = vset.pattern.permute.xlu0 0
        %763 = vperm.xlu0 %762, %v360
        %v764 = vpop.permute.xlu0 %763
        %767 = vset.pattern.permute.xlu0 0
        %768 = vperm.xlu0 %767, %v361
        %v769 = vpop.permute.xlu0 %768
        %v771 = vadd.f32 %v723, %v754
        %v772 = vadd.f32 %v724, %v754
        %v773 = vadd.f32 %v725, %v754
        %v774 = vadd.f32 %v726, %v754
        %v775 = vadd.f32 %v727, %v754
        %v776 = vadd.f32 %v728, %v754
        %v777 = vadd.f32 %v729, %v754
        %v778 = vadd.f32 %v730, %v759
        %v779 = vadd.f32 %v731, %v759
        %v780 = vadd.f32 %v732, %v759
        %v781 = vadd.f32 %v733, %v759
        %v782 = vadd.f32 %v734, %v759
        %v783 = vadd.f32 %v735, %v759
        %v784 = vadd.f32 %v736, %v759
        %v785 = vadd.f32 %v737, %v764
        %v786 = vadd.f32 %v738, %v764
        %v787 = vadd.f32 %v739, %v764
        %v788 = vadd.f32 %v740, %v764
        %v789 = vadd.f32 %v741, %v764
        %v790 = vadd.f32 %v742, %v764
        %v791 = vadd.f32 %v743, %v764
        %v792 = vadd.f32 %v744, %v769
        %v793 = vadd.f32 %v745, %v769
        %v794 = vadd.f32 %v746, %v769
        %v795 = vadd.f32 %v747, %v769
        %v796 = vadd.f32 %v748, %v769
        %v797 = vadd.f32 %v749, %v769
        %v798 = vadd.f32 %v750, %v769
        %v799 = vmax.f32 %v771, 0.0
        %v800 = vmax.f32 %v772, 0.0
        %v801 = vmax.f32 %v773, 0.0
        %v802 = vmax.f32 %v774, 0.0
        %v803 = vmax.f32 %v775, 0.0
        %v804 = vmax.f32 %v776, 0.0
        %v805 = vmax.f32 %v777, 0.0
        %v806 = vmax.f32 %v778, 0.0
        %v807 = vmax.f32 %v779, 0.0
        %v808 = vmax.f32 %v780, 0.0
        %v809 = vmax.f32 %v781, 0.0
        %v810 = vmax.f32 %v782, 0.0
        %v811 = vmax.f32 %v783, 0.0
        %v812 = vmax.f32 %v784, 0.0
        %v813 = vmax.f32 %v785, 0.0
        %v814 = vmax.f32 %v786, 0.0
        %v815 = vmax.f32 %v787, 0.0
        %v816 = vmax.f32 %v788, 0.0
        %v817 = vmax.f32 %v789, 0.0
        %v818 = vmax.f32 %v790, 0.0
        %v819 = vmax.f32 %v791, 0.0
        %v820 = vmax.f32 %v792, 0.0
        %v821 = vmax.f32 %v793, 0.0
        %v822 = vmax.f32 %v794, 0.0
        %v823 = vmax.f32 %v795, 0.0
        %v824 = vmax.f32 %v796, 0.0
        %v825 = vmax.f32 %v797, 0.0
        %v826 = vmax.f32 %v798, 0.0
        %v827 = vadd.f32 %v799, %v806
        %v828 = vadd.f32 %v827, %v813
        %v829 = vadd.f32 %v828, %v820
        %v830 = vrot.slane %v829, 4
        %v831 = vadd.f32 %v829, %v830
        %v832 = vrot.slane %v831, 2
        %v833 = vadd.f32 %v831, %v832
        %v834 = vrot.slane %v833, 1
        %v835 = vadd.f32 %v833, %v834
        %v836 = vadd.f32 %v800, %v807
        %v837 = vadd.f32 %v836, %v814
        %v838 = vadd.f32 %v837, %v821
        %v839 = vrot.slane %v838, 4
        %v840 = vadd.f32 %v838, %v839
        %v841 = vrot.slane %v840, 2
        %v842 = vadd.f32 %v840, %v841
        %v843 = vrot.slane %v842, 1
        %v844 = vadd.f32 %v842, %v843
        %v845 = vadd.f32 %v801, %v808
        %v846 = vadd.f32 %v845, %v815
        %v847 = vadd.f32 %v846, %v822
        %v848 = vrot.slane %v847, 4
        %v849 = vadd.f32 %v847, %v848
        %v850 = vrot.slane %v849, 2
        %v851 = vadd.f32 %v849, %v850
        %v852 = vrot.slane %v851, 1
        %v853 = vadd.f32 %v851, %v852
        %v854 = vadd.f32 %v802, %v809
        %v855 = vadd.f32 %v854, %v816
        %v856 = vadd.f32 %v855, %v823
        %v857 = vrot.slane %v856, 4
        %v858 = vadd.f32 %v856, %v857
        %v859 = vrot.slane %v858, 2
        %v860 = vadd.f32 %v858, %v859
        %v861 = vrot.slane %v860, 1
        %v862 = vadd.f32 %v860, %v861
        %v863 = vadd.f32 %v803, %v810
        %v864 = vadd.f32 %v863, %v817
        %v865 = vadd.f32 %v864, %v824
        %v866 = vrot.slane %v865, 4
        %v867 = vadd.f32 %v865, %v866
        %v868 = vrot.slane %v867, 2
        %v869 = vadd.f32 %v867, %v868
        %v870 = vrot.slane %v869, 1
        %v871 = vadd.f32 %v869, %v870
        %v872 = vadd.f32 %v804, %v811
        %v873 = vadd.f32 %v872, %v818
        %v874 = vadd.f32 %v873, %v825
        %v875 = vrot.slane %v874, 4
        %v876 = vadd.f32 %v874, %v875
        %v877 = vrot.slane %v876, 2
        %v878 = vadd.f32 %v876, %v877
        %v879 = vrot.slane %v878, 1
        %v880 = vadd.f32 %v878, %v879
        %vm881 = vcmask 261120
        %v882 = vsel %vm881, %v805, 0.0
        %v883 = vsel %vm881, %v812, 0.0
        %v884 = vadd.f32 %v882, %v883
        %v885 = vsel %vm881, %v819, 0.0
        %v886 = vadd.f32 %v884, %v885
        %v887 = vsel %vm881, %v826, 0.0
        %v888 = vadd.f32 %v886, %v887
        %v889 = vrot.slane %v888, 4
        %v890 = vadd.f32 %v888, %v889
        %v891 = vrot.slane %v890, 2
        %v892 = vadd.f32 %v890, %v891
        %v893 = vrot.slane %v892, 1
        %v894 = vadd.f32 %v892, %v893
        %v895 = vrcp.pop 32.0
        %v896 = vmul.f32 %v835, %v895
        %v897 = vmul.f32 %v844, %v895
        %v898 = vmul.f32 %v853, %v895
        %v899 = vmul.f32 %v862, %v895
        %v900 = vmul.f32 %v871, %v895
        %v901 = vmul.f32 %v880, %v895
        %v902 = vmul.f32 %v894, %v895
        %v903 = vsub.f32 0.0, %v896
        %v904 = vsub.f32 0.0, %v897
        %v905 = vsub.f32 0.0, %v898
        %v906 = vsub.f32 0.0, %v899
        %v907 = vsub.f32 0.0, %v900
        %v908 = vsub.f32 0.0, %v901
        %v909 = vsub.f32 0.0, %v902
        %v910 = vmul.f32 %v903, 1.442695
        %v911 = vpow.pop %v910
        %v912 = vmul.f32 %v904, 1.442695
        %v913 = vpow.pop %v912
        %v914 = vmul.f32 %v905, 1.442695
        %v915 = vpow.pop %v914
        %v916 = vmul.f32 %v906, 1.442695
        %v917 = vpow.pop %v916
        %v918 = vmul.f32 %v907, 1.442695
        %v919 = vpow.pop %v918
        %v920 = vmul.f32 %v908, 1.442695
        %v921 = vpow.pop %v920
        %v922 = vmul.f32 %v909, 1.442695
        %v923 = vpow.pop %v922
        %v924 = vadd.f32 %v911, 1.0
        %v925 = vadd.f32 %v913, 1.0
        %v926 = vadd.f32 %v915, 1.0
        %v927 = vadd.f32 %v917, 1.0
        %v928 = vadd.f32 %v919, 1.0
        %v929 = vadd.f32 %v921, 1.0
        %v930 = vadd.f32 %v923, 1.0
        %v931 = vrcp.pop %v924
        %v932 = vmul.f32 1.0, %v931
        %v933 = vrcp.pop %v925
        %v934 = vmul.f32 1.0, %v933
        %v935 = vrcp.pop %v926
        %v936 = vmul.f32 1.0, %v935
        %v937 = vrcp.pop %v927
        %v938 = vmul.f32 1.0, %v937
        %v939 = vrcp.pop %v928
        %v940 = vmul.f32 1.0, %v939
        %v941 = vrcp.pop %v929
        %v942 = vmul.f32 1.0, %v941
        %v943 = vrcp.pop %v930
        %v944 = vmul.f32 1.0, %v943
        %v952 = vcombine.low %v932, %v934
        %v953 = vcombine.low %v936, %v938
        %v954 = vcombine.low %v940, %v942
        %v956 = vunpack.c.l.s4 1966171168
        %v957 = vunpack.c.0.s8 %v956
        %v958 = vlaneseq
        %v959 = vshrl.u32 %v958, 7
        %v960 = vsub.s32 %v957, %v959
        %v961 = vrot.slane %v952, %v960
        %v963 = vunpack.c.l.s4 1966171168
        %v964 = vunpack.c.0.s8 %v963
        %v965 = vlaneseq
        %v966 = vshrl.u32 %v965, 7
        %v967 = vsub.s32 %v964, %v966
        %v968 = vrot.slane %v953, %v967
        %v970 = vunpack.c.l.s4 1966171168
        %v971 = vunpack.c.0.s8 %v970
        %v972 = vlaneseq
        %v973 = vshrl.u32 %v972, 7
        %v974 = vsub.s32 %v971, %v973
        %v975 = vrot.slane %v954, %v974
        %v977 = vunpack.c.l.s4 1966171168
        %v978 = vunpack.c.0.s8 %v977
        %v979 = vlaneseq
        %v980 = vshrl.u32 %v979, 7
        %v981 = vsub.s32 %v978, %v980
        %v982 = vrot.slane %v944, %v981
        %v983 = vcombine.low %v961, %v968
        %v984 = vcombine.low %v975, %v982
        %v986 = vunpack.c.l.s4 1966171168
        %v987 = vunpack.c.0.s8 %v986
        %v988 = vlaneseq
        %v989 = vshrl.u32 %v988, 7
        %v990 = vsub.s32 %v987, %v989
        %v991 = vrot.slane %v983, %v990
        %v993 = vunpack.c.l.s4 1966171168
        %v994 = vunpack.c.0.s8 %v993
        %v995 = vlaneseq
        %v996 = vshrl.u32 %v995, 7
        %v997 = vsub.s32 %v994, %v996
        %v998 = vrot.slane %v984, %v997
        %v999 = vcombine.low %v991, %v998
        %v1001 = vlaneseq
        %vm1002 = vcmp.ge.s32.totalorder %v1001, 0
        %vm1003 = vcmp.lt.s32.totalorder %v1001, 800
        %vm1004 = vmand %vm1002, %vm1003
        %1005 = vst.msk [vmem:[%s343] ss:$2 sm:$0x7f] %vm1004, %v999
        %v1006 = vadd.f32 %v799, %v800
        %v1007 = vadd.f32 %v1006, %v801
        %v1008 = vadd.f32 %v1007, %v802
        %v1009 = vadd.f32 %v1008, %v803
        %v1010 = vadd.f32 %v1009, %v804
        %v1011 = vadd.f32 %v1010, %v882
        %1012 = vadd.xlane.f32.xlu0 %v1011
        %v1013 = vpop.xlane.xlu0 %1012
        %v1014 = vadd.f32 %v806, %v807
        %v1015 = vadd.f32 %v1014, %v808
        %v1016 = vadd.f32 %v1015, %v809
        %v1017 = vadd.f32 %v1016, %v810
        %v1018 = vadd.f32 %v1017, %v811
        %v1019 = vadd.f32 %v1018, %v883
        %1020 = vadd.xlane.f32.xlu0 %v1019
        %v1021 = vpop.xlane.xlu0 %1020
        %v1022 = vadd.f32 %v813, %v814
        %v1023 = vadd.f32 %v1022, %v815
        %v1024 = vadd.f32 %v1023, %v816
        %v1025 = vadd.f32 %v1024, %v817
        %v1026 = vadd.f32 %v1025, %v818
        %v1027 = vadd.f32 %v1026, %v885
        %1028 = vadd.xlane.f32.xlu0 %v1027
        %v1029 = vpop.xlane.xlu0 %1028
        %v1030 = vadd.f32 %v820, %v821
        %v1031 = vadd.f32 %v1030, %v822
        %v1032 = vadd.f32 %v1031, %v823
        %v1033 = vadd.f32 %v1032, %v824
        %v1034 = vadd.f32 %v1033, %v825
        %v1035 = vadd.f32 %v1034, %v887
        %1036 = vadd.xlane.f32.xlu0 %v1035
        %v1037 = vpop.xlane.xlu0 %1036
        %v1038 = vmax.f32 %v799, %v800
        %v1039 = vmax.f32 %v1038, %v801
        %v1040 = vmax.f32 %v1039, %v802
        %v1041 = vmax.f32 %v1040, %v803
        %v1042 = vmax.f32 %v1041, %v804
        %v1043 = vsel %vm881, %v805, -inf
        %v1044 = vmax.f32 %v1042, %v1043
        %1045 = vmax.xlane.f32.xlu0 %v1044
        %v1046 = vpop.xlane.xlu0 %1045
        %v1047 = vmax.f32 %v806, %v807
        %v1048 = vmax.f32 %v1047, %v808
        %v1049 = vmax.f32 %v1048, %v809
        %v1050 = vmax.f32 %v1049, %v810
        %v1051 = vmax.f32 %v1050, %v811
        %v1052 = vsel %vm881, %v812, -inf
        %v1053 = vmax.f32 %v1051, %v1052
        %1054 = vmax.xlane.f32.xlu0 %v1053
        %v1055 = vpop.xlane.xlu0 %1054
        %v1056 = vmax.f32 %v813, %v814
        %v1057 = vmax.f32 %v1056, %v815
        %v1058 = vmax.f32 %v1057, %v816
        %v1059 = vmax.f32 %v1058, %v817
        %v1060 = vmax.f32 %v1059, %v818
        %v1061 = vsel %vm881, %v819, -inf
        %v1062 = vmax.f32 %v1060, %v1061
        %1063 = vmax.xlane.f32.xlu0 %v1062
        %v1064 = vpop.xlane.xlu0 %1063
        %v1065 = vmax.f32 %v820, %v821
        %v1066 = vmax.f32 %v1065, %v822
        %v1067 = vmax.f32 %v1066, %v823
        %v1068 = vmax.f32 %v1067, %v824
        %v1069 = vmax.f32 %v1068, %v825
        %v1070 = vsel %vm881, %v826, -inf
        %v1071 = vmax.f32 %v1069, %v1070
        %1072 = vmax.xlane.f32.xlu0 %v1071
        %v1073 = vpop.xlane.xlu0 %1072
        %s1074 = scalar_lea.vmem %s348, 28
        %v1075 = vld [vmem:[%s1074] sm:$0x77]
        %v1076 = vld [vmem:[%s1074 + $0x8] sm:$0x77]
        %v1077 = vld [vmem:[%s1074 + $0x10] sm:$0x77]
        %v1078 = vld [vmem:[%s1074 + $0x18] sm:$0x7]
        %v1083 = vlaneseq
        %v1084 = vshrl.u32 %v1083, 7
        %v1085 = vsub.s32 0, %v1084
        %v1086 = vrot.slane %v1075, %v1085
        %v1087 = vlaneseq
        %v1088 = vshrl.u32 %v1087, 7
        %v1089 = vsub.s32 4, %v1088
        %v1090 = vrot.slane %v1075, %v1089
        %v1091 = vlaneseq
        %v1092 = vshrl.u32 %v1091, 7
        %v1093 = vsub.s32 0, %v1092
        %v1094 = vrot.slane %v1076, %v1093
        %v1095 = vlaneseq
        %v1096 = vshrl.u32 %v1095, 7
        %v1097 = vsub.s32 4, %v1096
        %v1098 = vrot.slane %v1076, %v1097
        %v1099 = vlaneseq
        %v1100 = vshrl.u32 %v1099, 7
        %v1101 = vsub.s32 0, %v1100
        %v1102 = vrot.slane %v1077, %v1101
        %v1103 = vlaneseq
        %v1104 = vshrl.u32 %v1103, 7
        %v1105 = vsub.s32 4, %v1104
        %v1106 = vrot.slane %v1077, %v1105
        %v1107 = vlaneseq
        %v1108 = vshrl.u32 %v1107, 7
        %v1109 = vsub.s32 0, %v1108
        %v1110 = vrot.slane %v1078, %v1109
        %v1118 = vlaneseq
        %v1119 = vshrl.u32 %v1118, 7
        %v1120 = vsub.s32 0, %v1119
        %v1121 = vrot.slane %v1086, %v1120
        %v1122 = vlaneseq
        %v1123 = vshrl.u32 %v1122, 7
        %v1124 = vsub.s32 0, %v1123
        %v1125 = vrot.slane %v1090, %v1124
        %v1126 = vlaneseq
        %v1127 = vshrl.u32 %v1126, 7
        %v1128 = vsub.s32 0, %v1127
        %v1129 = vrot.slane %v1094, %v1128
        %v1130 = vlaneseq
        %v1131 = vshrl.u32 %v1130, 7
        %v1132 = vsub.s32 0, %v1131
        %v1133 = vrot.slane %v1098, %v1132
        %v1134 = vlaneseq
        %v1135 = vshrl.u32 %v1134, 7
        %v1136 = vsub.s32 0, %v1135
        %v1137 = vrot.slane %v1102, %v1136
        %v1138 = vlaneseq
        %v1139 = vshrl.u32 %v1138, 7
        %v1140 = vsub.s32 0, %v1139
        %v1141 = vrot.slane %v1106, %v1140
        %v1142 = vlaneseq
        %v1143 = vshrl.u32 %v1142, 7
        %v1144 = vsub.s32 0, %v1143
        %v1145 = vrot.slane %v1110, %v1144
        %v1146 = vmul.f32 %v369, %v1121
        %v1147 = vmul.f32 %v369, %v1125
        %v1148 = vmul.f32 %v369, %v1129
        %v1149 = vmul.f32 %v369, %v1133
        %v1150 = vmul.f32 %v369, %v1137
        %v1151 = vmul.f32 %v369, %v1141
        %v1152 = vmul.f32 %v369, %v1145
        %v1153 = vmul.f32 %v374, %v1121
        %v1154 = vmul.f32 %v374, %v1125
        %v1155 = vmul.f32 %v374, %v1129
        %v1156 = vmul.f32 %v374, %v1133
        %v1157 = vmul.f32 %v374, %v1137
        %v1158 = vmul.f32 %v374, %v1141
        %v1159 = vmul.f32 %v374, %v1145
        %v1160 = vmul.f32 %v379, %v1121
        %v1161 = vmul.f32 %v379, %v1125
        %v1162 = vmul.f32 %v379, %v1129
        %v1163 = vmul.f32 %v379, %v1133
        %v1164 = vmul.f32 %v379, %v1137
        %v1165 = vmul.f32 %v379, %v1141
        %v1166 = vmul.f32 %v379, %v1145
        %v1167 = vmul.f32 %v384, %v1121
        %v1168 = vmul.f32 %v384, %v1125
        %v1169 = vmul.f32 %v384, %v1129
        %v1170 = vmul.f32 %v384, %v1133
        %v1171 = vmul.f32 %v384, %v1137
        %v1172 = vmul.f32 %v384, %v1141
        %v1173 = vmul.f32 %v384, %v1145
        %v1174 = vlaneseq
        %v1175 = vshrl.u32 %v1174, 7
        %v1176 = vsub.s32 1, %v1175
        %v1177 = vrot.slane %v1075, %v1176
        %v1178 = vlaneseq
        %v1179 = vshrl.u32 %v1178, 7
        %v1180 = vsub.s32 5, %v1179
        %v1181 = vrot.slane %v1075, %v1180
        %v1182 = vlaneseq
        %v1183 = vshrl.u32 %v1182, 7
        %v1184 = vsub.s32 1, %v1183
        %v1185 = vrot.slane %v1076, %v1184
        %v1186 = vlaneseq
        %v1187 = vshrl.u32 %v1186, 7
        %v1188 = vsub.s32 5, %v1187
        %v1189 = vrot.slane %v1076, %v1188
        %v1190 = vlaneseq
        %v1191 = vshrl.u32 %v1190, 7
        %v1192 = vsub.s32 1, %v1191
        %v1193 = vrot.slane %v1077, %v1192
        %v1194 = vlaneseq
        %v1195 = vshrl.u32 %v1194, 7
        %v1196 = vsub.s32 5, %v1195
        %v1197 = vrot.slane %v1077, %v1196
        %v1198 = vlaneseq
        %v1199 = vshrl.u32 %v1198, 7
        %v1200 = vsub.s32 1, %v1199
        %v1201 = vrot.slane %v1078, %v1200
        %v1209 = vlaneseq
        %v1210 = vshrl.u32 %v1209, 7
        %v1211 = vsub.s32 1, %v1210
        %v1212 = vrot.slane %v1177, %v1211
        %v1213 = vlaneseq
        %v1214 = vshrl.u32 %v1213, 7
        %v1215 = vsub.s32 1, %v1214
        %v1216 = vrot.slane %v1181, %v1215
        %v1217 = vlaneseq
        %v1218 = vshrl.u32 %v1217, 7
        %v1219 = vsub.s32 1, %v1218
        %v1220 = vrot.slane %v1185, %v1219
        %v1221 = vlaneseq
        %v1222 = vshrl.u32 %v1221, 7
        %v1223 = vsub.s32 1, %v1222
        %v1224 = vrot.slane %v1189, %v1223
        %v1225 = vlaneseq
        %v1226 = vshrl.u32 %v1225, 7
        %v1227 = vsub.s32 1, %v1226
        %v1228 = vrot.slane %v1193, %v1227
        %v1229 = vlaneseq
        %v1230 = vshrl.u32 %v1229, 7
        %v1231 = vsub.s32 1, %v1230
        %v1232 = vrot.slane %v1197, %v1231
        %v1233 = vlaneseq
        %v1234 = vshrl.u32 %v1233, 7
        %v1235 = vsub.s32 1, %v1234
        %v1236 = vrot.slane %v1201, %v1235
        %v1237 = vmul.f32 %v483, %v1212
        %v1238 = vmul.f32 %v483, %v1216
        %v1239 = vmul.f32 %v483, %v1220
        %v1240 = vmul.f32 %v483, %v1224
        %v1241 = vmul.f32 %v483, %v1228
        %v1242 = vmul.f32 %v483, %v1232
        %v1243 = vmul.f32 %v483, %v1236
        %v1244 = vmul.f32 %v487, %v1212
        %v1245 = vmul.f32 %v487, %v1216
        %v1246 = vmul.f32 %v487, %v1220
        %v1247 = vmul.f32 %v487, %v1224
        %v1248 = vmul.f32 %v487, %v1228
        %v1249 = vmul.f32 %v487, %v1232
        %v1250 = vmul.f32 %v487, %v1236
        %v1251 = vmul.f32 %v491, %v1212
        %v1252 = vmul.f32 %v491, %v1216
        %v1253 = vmul.f32 %v491, %v1220
        %v1254 = vmul.f32 %v491, %v1224
        %v1255 = vmul.f32 %v491, %v1228
        %v1256 = vmul.f32 %v491, %v1232
        %v1257 = vmul.f32 %v491, %v1236
        %v1258 = vmul.f32 %v495, %v1212
        %v1259 = vmul.f32 %v495, %v1216
        %v1260 = vmul.f32 %v495, %v1220
        %v1261 = vmul.f32 %v495, %v1224
        %v1262 = vmul.f32 %v495, %v1228
        %v1263 = vmul.f32 %v495, %v1232
        %v1264 = vmul.f32 %v495, %v1236
        %v1265 = vadd.f32 %v1146, %v1237
        %v1266 = vadd.f32 %v1147, %v1238
        %v1267 = vadd.f32 %v1148, %v1239
        %v1268 = vadd.f32 %v1149, %v1240
        %v1269 = vadd.f32 %v1150, %v1241
        %v1270 = vadd.f32 %v1151, %v1242
        %v1271 = vadd.f32 %v1152, %v1243
        %v1272 = vadd.f32 %v1153, %v1244
        %v1273 = vadd.f32 %v1154, %v1245
        %v1274 = vadd.f32 %v1155, %v1246
        %v1275 = vadd.f32 %v1156, %v1247
        %v1276 = vadd.f32 %v1157, %v1248
        %v1277 = vadd.f32 %v1158, %v1249
        %v1278 = vadd.f32 %v1159, %v1250
        %v1279 = vadd.f32 %v1160, %v1251
        %v1280 = vadd.f32 %v1161, %v1252
        %v1281 = vadd.f32 %v1162, %v1253
        %v1282 = vadd.f32 %v1163, %v1254
        %v1283 = vadd.f32 %v1164, %v1255
        %v1284 = vadd.f32 %v1165, %v1256
        %v1285 = vadd.f32 %v1166, %v1257
        %v1286 = vadd.f32 %v1167, %v1258
        %v1287 = vadd.f32 %v1168, %v1259
        %v1288 = vadd.f32 %v1169, %v1260
        %v1289 = vadd.f32 %v1170, %v1261
        %v1290 = vadd.f32 %v1171, %v1262
        %v1291 = vadd.f32 %v1172, %v1263
        %v1292 = vadd.f32 %v1173, %v1264
        %v1293 = vlaneseq
        %v1294 = vshrl.u32 %v1293, 7
        %v1295 = vsub.s32 2, %v1294
        %v1296 = vrot.slane %v1075, %v1295
        %v1297 = vlaneseq
        %v1298 = vshrl.u32 %v1297, 7
        %v1299 = vsub.s32 6, %v1298
        %v1300 = vrot.slane %v1075, %v1299
        %v1301 = vlaneseq
        %v1302 = vshrl.u32 %v1301, 7
        %v1303 = vsub.s32 2, %v1302
        %v1304 = vrot.slane %v1076, %v1303
        %v1305 = vlaneseq
        %v1306 = vshrl.u32 %v1305, 7
        %v1307 = vsub.s32 6, %v1306
        %v1308 = vrot.slane %v1076, %v1307
        %v1309 = vlaneseq
        %v1310 = vshrl.u32 %v1309, 7
        %v1311 = vsub.s32 2, %v1310
        %v1312 = vrot.slane %v1077, %v1311
        %v1313 = vlaneseq
        %v1314 = vshrl.u32 %v1313, 7
        %v1315 = vsub.s32 6, %v1314
        %v1316 = vrot.slane %v1077, %v1315
        %v1317 = vlaneseq
        %v1318 = vshrl.u32 %v1317, 7
        %v1319 = vsub.s32 2, %v1318
        %v1320 = vrot.slane %v1078, %v1319
        %v1328 = vlaneseq
        %v1329 = vshrl.u32 %v1328, 7
        %v1330 = vsub.s32 2, %v1329
        %v1331 = vrot.slane %v1296, %v1330
        %v1332 = vlaneseq
        %v1333 = vshrl.u32 %v1332, 7
        %v1334 = vsub.s32 2, %v1333
        %v1335 = vrot.slane %v1300, %v1334
        %v1336 = vlaneseq
        %v1337 = vshrl.u32 %v1336, 7
        %v1338 = vsub.s32 2, %v1337
        %v1339 = vrot.slane %v1304, %v1338
        %v1340 = vlaneseq
        %v1341 = vshrl.u32 %v1340, 7
        %v1342 = vsub.s32 2, %v1341
        %v1343 = vrot.slane %v1308, %v1342
        %v1344 = vlaneseq
        %v1345 = vshrl.u32 %v1344, 7
        %v1346 = vsub.s32 2, %v1345
        %v1347 = vrot.slane %v1312, %v1346
        %v1348 = vlaneseq
        %v1349 = vshrl.u32 %v1348, 7
        %v1350 = vsub.s32 2, %v1349
        %v1351 = vrot.slane %v1316, %v1350
        %v1352 = vlaneseq
        %v1353 = vshrl.u32 %v1352, 7
        %v1354 = vsub.s32 2, %v1353
        %v1355 = vrot.slane %v1320, %v1354
        %v1356 = vmul.f32 %v618, %v1331
        %v1357 = vmul.f32 %v618, %v1335
        %v1358 = vmul.f32 %v618, %v1339
        %v1359 = vmul.f32 %v618, %v1343
        %v1360 = vmul.f32 %v618, %v1347
        %v1361 = vmul.f32 %v618, %v1351
        %v1362 = vmul.f32 %v618, %v1355
        %v1363 = vmul.f32 %v622, %v1331
        %v1364 = vmul.f32 %v622, %v1335
        %v1365 = vmul.f32 %v622, %v1339
        %v1366 = vmul.f32 %v622, %v1343
        %v1367 = vmul.f32 %v622, %v1347
        %v1368 = vmul.f32 %v622, %v1351
        %v1369 = vmul.f32 %v622, %v1355
        %v1370 = vmul.f32 %v626, %v1331
        %v1371 = vmul.f32 %v626, %v1335
        %v1372 = vmul.f32 %v626, %v1339
        %v1373 = vmul.f32 %v626, %v1343
        %v1374 = vmul.f32 %v626, %v1347
        %v1375 = vmul.f32 %v626, %v1351
        %v1376 = vmul.f32 %v626, %v1355
        %v1377 = vmul.f32 %v630, %v1331
        %v1378 = vmul.f32 %v630, %v1335
        %v1379 = vmul.f32 %v630, %v1339
        %v1380 = vmul.f32 %v630, %v1343
        %v1381 = vmul.f32 %v630, %v1347
        %v1382 = vmul.f32 %v630, %v1351
        %v1383 = vmul.f32 %v630, %v1355
        %v1384 = vadd.f32 %v1265, %v1356
        %v1385 = vadd.f32 %v1266, %v1357
        %v1386 = vadd.f32 %v1267, %v1358
        %v1387 = vadd.f32 %v1268, %v1359
        %v1388 = vadd.f32 %v1269, %v1360
        %v1389 = vadd.f32 %v1270, %v1361
        %v1390 = vadd.f32 %v1271, %v1362
        %v1391 = vadd.f32 %v1272, %v1363
        %v1392 = vadd.f32 %v1273, %v1364
        %v1393 = vadd.f32 %v1274, %v1365
        %v1394 = vadd.f32 %v1275, %v1366
        %v1395 = vadd.f32 %v1276, %v1367
        %v1396 = vadd.f32 %v1277, %v1368
        %v1397 = vadd.f32 %v1278, %v1369
        %v1398 = vadd.f32 %v1279, %v1370
        %v1399 = vadd.f32 %v1280, %v1371
        %v1400 = vadd.f32 %v1281, %v1372
        %v1401 = vadd.f32 %v1282, %v1373
        %v1402 = vadd.f32 %v1283, %v1374
        %v1403 = vadd.f32 %v1284, %v1375
        %v1404 = vadd.f32 %v1285, %v1376
        %v1405 = vadd.f32 %v1286, %v1377
        %v1406 = vadd.f32 %v1287, %v1378
        %v1407 = vadd.f32 %v1288, %v1379
        %v1408 = vadd.f32 %v1289, %v1380
        %v1409 = vadd.f32 %v1290, %v1381
        %v1410 = vadd.f32 %v1291, %v1382
        %v1411 = vadd.f32 %v1292, %v1383
        %v1412 = vadd.f32 %v1384, %v754
        %v1413 = vadd.f32 %v1385, %v754
        %v1414 = vadd.f32 %v1386, %v754
        %v1415 = vadd.f32 %v1387, %v754
        %v1416 = vadd.f32 %v1388, %v754
        %v1417 = vadd.f32 %v1389, %v754
        %v1418 = vadd.f32 %v1390, %v754
        %v1419 = vadd.f32 %v1391, %v759
        %v1420 = vadd.f32 %v1392, %v759
        %v1421 = vadd.f32 %v1393, %v759
        %v1422 = vadd.f32 %v1394, %v759
        %v1423 = vadd.f32 %v1395, %v759
        %v1424 = vadd.f32 %v1396, %v759
        %v1425 = vadd.f32 %v1397, %v759
        %v1426 = vadd.f32 %v1398, %v764
        %v1427 = vadd.f32 %v1399, %v764
        %v1428 = vadd.f32 %v1400, %v764
        %v1429 = vadd.f32 %v1401, %v764
        %v1430 = vadd.f32 %v1402, %v764
        %v1431 = vadd.f32 %v1403, %v764
        %v1432 = vadd.f32 %v1404, %v764
        %v1433 = vadd.f32 %v1405, %v769
        %v1434 = vadd.f32 %v1406, %v769
        %v1435 = vadd.f32 %v1407, %v769
        %v1436 = vadd.f32 %v1408, %v769
        %v1437 = vadd.f32 %v1409, %v769
        %v1438 = vadd.f32 %v1410, %v769
        %v1439 = vadd.f32 %v1411, %v769
        %v1440 = vmax.f32 %v1412, 0.0
        %v1441 = vmax.f32 %v1413, 0.0
        %v1442 = vmax.f32 %v1414, 0.0
        %v1443 = vmax.f32 %v1415, 0.0
        %v1444 = vmax.f32 %v1416, 0.0
        %v1445 = vmax.f32 %v1417, 0.0
        %v1446 = vmax.f32 %v1418, 0.0
        %v1447 = vmax.f32 %v1419, 0.0
        %v1448 = vmax.f32 %v1420, 0.0
        %v1449 = vmax.f32 %v1421, 0.0
        %v1450 = vmax.f32 %v1422, 0.0
        %v1451 = vmax.f32 %v1423, 0.0
        %v1452 = vmax.f32 %v1424, 0.0
        %v1453 = vmax.f32 %v1425, 0.0
        %v1454 = vmax.f32 %v1426, 0.0
        %v1455 = vmax.f32 %v1427, 0.0
        %v1456 = vmax.f32 %v1428, 0.0
        %v1457 = vmax.f32 %v1429, 0.0
        %v1458 = vmax.f32 %v1430, 0.0
        %v1459 = vmax.f32 %v1431, 0.0
        %v1460 = vmax.f32 %v1432, 0.0
        %v1461 = vmax.f32 %v1433, 0.0
        %v1462 = vmax.f32 %v1434, 0.0
        %v1463 = vmax.f32 %v1435, 0.0
        %v1464 = vmax.f32 %v1436, 0.0
        %v1465 = vmax.f32 %v1437, 0.0
        %v1466 = vmax.f32 %v1438, 0.0
        %v1467 = vmax.f32 %v1439, 0.0
        %v1468 = vadd.f32 %v1440, %v1447
        %v1469 = vadd.f32 %v1468, %v1454
        %v1470 = vadd.f32 %v1469, %v1461
        %v1471 = vrot.slane %v1470, 4
        %v1472 = vadd.f32 %v1470, %v1471
        %v1473 = vrot.slane %v1472, 2
        %v1474 = vadd.f32 %v1472, %v1473
        %v1475 = vrot.slane %v1474, 1
        %v1476 = vadd.f32 %v1474, %v1475
        %v1477 = vadd.f32 %v1441, %v1448
        %v1478 = vadd.f32 %v1477, %v1455
        %v1479 = vadd.f32 %v1478, %v1462
        %v1480 = vrot.slane %v1479, 4
        %v1481 = vadd.f32 %v1479, %v1480
        %v1482 = vrot.slane %v1481, 2
        %v1483 = vadd.f32 %v1481, %v1482
        %v1484 = vrot.slane %v1483, 1
        %v1485 = vadd.f32 %v1483, %v1484
        %v1486 = vadd.f32 %v1442, %v1449
        %v1487 = vadd.f32 %v1486, %v1456
        %v1488 = vadd.f32 %v1487, %v1463
        %v1489 = vrot.slane %v1488, 4
        %v1490 = vadd.f32 %v1488, %v1489
        %v1491 = vrot.slane %v1490, 2
        %v1492 = vadd.f32 %v1490, %v1491
        %v1493 = vrot.slane %v1492, 1
        %v1494 = vadd.f32 %v1492, %v1493
        %v1495 = vadd.f32 %v1443, %v1450
        %v1496 = vadd.f32 %v1495, %v1457
        %v1497 = vadd.f32 %v1496, %v1464
        %v1498 = vrot.slane %v1497, 4
        %v1499 = vadd.f32 %v1497, %v1498
        %v1500 = vrot.slane %v1499, 2
        %v1501 = vadd.f32 %v1499, %v1500
        %v1502 = vrot.slane %v1501, 1
        %v1503 = vadd.f32 %v1501, %v1502
        %v1504 = vadd.f32 %v1444, %v1451
        %v1505 = vadd.f32 %v1504, %v1458
        %v1506 = vadd.f32 %v1505, %v1465
        %v1507 = vrot.slane %v1506, 4
        %v1508 = vadd.f32 %v1506, %v1507
        %v1509 = vrot.slane %v1508, 2
        %v1510 = vadd.f32 %v1508, %v1509
        %v1511 = vrot.slane %v1510, 1
        %v1512 = vadd.f32 %v1510, %v1511
        %v1513 = vadd.f32 %v1445, %v1452
        %v1514 = vadd.f32 %v1513, %v1459
        %v1515 = vadd.f32 %v1514, %v1466
        %v1516 = vrot.slane %v1515, 4
        %v1517 = vadd.f32 %v1515, %v1516
        %v1518 = vrot.slane %v1517, 2
        %v1519 = vadd.f32 %v1517, %v1518
        %v1520 = vrot.slane %v1519, 1
        %v1521 = vadd.f32 %v1519, %v1520
        %v1522 = vsel %vm881, %v1446, 0.0
        %v1523 = vsel %vm881, %v1453, 0.0
        %v1524 = vadd.f32 %v1522, %v1523
        %v1525 = vsel %vm881, %v1460, 0.0
        %v1526 = vadd.f32 %v1524, %v1525
        %v1527 = vsel %vm881, %v1467, 0.0
        %v1528 = vadd.f32 %v1526, %v1527
        %v1529 = vrot.slane %v1528, 4
        %v1530 = vadd.f32 %v1528, %v1529
        %v1531 = vrot.slane %v1530, 2
        %v1532 = vadd.f32 %v1530, %v1531
        %v1533 = vrot.slane %v1532, 1
        %v1534 = vadd.f32 %v1532, %v1533
        %v1535 = vmul.f32 %v1476, %v895
        %v1536 = vmul.f32 %v1485, %v895
        %v1537 = vmul.f32 %v1494, %v895
        %v1538 = vmul.f32 %v1503, %v895
        %v1539 = vmul.f32 %v1512, %v895
        %v1540 = vmul.f32 %v1521, %v895
        %v1541 = vmul.f32 %v1534, %v895
        %v1542 = vsub.f32 0.0, %v1535
        %v1543 = vsub.f32 0.0, %v1536
        %v1544 = vsub.f32 0.0, %v1537
        %v1545 = vsub.f32 0.0, %v1538
        %v1546 = vsub.f32 0.0, %v1539
        %v1547 = vsub.f32 0.0, %v1540
        %v1548 = vsub.f32 0.0, %v1541
        %v1549 = vmul.f32 %v1542, 1.442695
        %v1550 = vpow.pop %v1549
        %v1551 = vmul.f32 %v1543, 1.442695
        %v1552 = vpow.pop %v1551
        %v1553 = vmul.f32 %v1544, 1.442695
        %v1554 = vpow.pop %v1553
        %v1555 = vmul.f32 %v1545, 1.442695
        %v1556 = vpow.pop %v1555
        %v1557 = vmul.f32 %v1546, 1.442695
        %v1558 = vpow.pop %v1557
        %v1559 = vmul.f32 %v1547, 1.442695
        %v1560 = vpow.pop %v1559
        %v1561 = vmul.f32 %v1548, 1.442695
        %v1562 = vpow.pop %v1561
        %v1563 = vadd.f32 %v1550, 1.0
        %v1564 = vadd.f32 %v1552, 1.0
        %v1565 = vadd.f32 %v1554, 1.0
        %v1566 = vadd.f32 %v1556, 1.0
        %v1567 = vadd.f32 %v1558, 1.0
        %v1568 = vadd.f32 %v1560, 1.0
        %v1569 = vadd.f32 %v1562, 1.0
        %v1570 = vrcp.pop %v1563
        %v1571 = vmul.f32 1.0, %v1570
        %v1572 = vrcp.pop %v1564
        %v1573 = vmul.f32 1.0, %v1572
        %v1574 = vrcp.pop %v1565
        %v1575 = vmul.f32 1.0, %v1574
        %v1576 = vrcp.pop %v1566
        %v1577 = vmul.f32 1.0, %v1576
        %v1578 = vrcp.pop %v1567
        %v1579 = vmul.f32 1.0, %v1578
        %v1580 = vrcp.pop %v1568
        %v1581 = vmul.f32 1.0, %v1580
        %v1582 = vrcp.pop %v1569
        %v1583 = vmul.f32 1.0, %v1582
        %v1591 = vcombine.low %v1571, %v1573
        %v1592 = vcombine.low %v1575, %v1577
        %v1593 = vcombine.low %v1579, %v1581
        %v1595 = vunpack.c.l.s4 1966171168
        %v1596 = vunpack.c.0.s8 %v1595
        %v1597 = vlaneseq
        %v1598 = vshrl.u32 %v1597, 7
        %v1599 = vsub.s32 %v1596, %v1598
        %v1600 = vrot.slane %v1591, %v1599
        %v1602 = vunpack.c.l.s4 1966171168
        %v1603 = vunpack.c.0.s8 %v1602
        %v1604 = vlaneseq
        %v1605 = vshrl.u32 %v1604, 7
        %v1606 = vsub.s32 %v1603, %v1605
        %v1607 = vrot.slane %v1592, %v1606
        %v1609 = vunpack.c.l.s4 1966171168
        %v1610 = vunpack.c.0.s8 %v1609
        %v1611 = vlaneseq
        %v1612 = vshrl.u32 %v1611, 7
        %v1613 = vsub.s32 %v1610, %v1612
        %v1614 = vrot.slane %v1593, %v1613
        %v1616 = vunpack.c.l.s4 1966171168
        %v1617 = vunpack.c.0.s8 %v1616
        %v1618 = vlaneseq
        %v1619 = vshrl.u32 %v1618, 7
        %v1620 = vsub.s32 %v1617, %v1619
        %v1621 = vrot.slane %v1583, %v1620
        %v1622 = vcombine.low %v1600, %v1607
        %v1623 = vcombine.low %v1614, %v1621
        %v1625 = vunpack.c.l.s4 1966171168
        %v1626 = vunpack.c.0.s8 %v1625
        %v1627 = vlaneseq
        %v1628 = vshrl.u32 %v1627, 7
        %v1629 = vsub.s32 %v1626, %v1628
        %v1630 = vrot.slane %v1622, %v1629
        %v1632 = vunpack.c.l.s4 1966171168
        %v1633 = vunpack.c.0.s8 %v1632
        %v1634 = vlaneseq
        %v1635 = vshrl.u32 %v1634, 7
        %v1636 = vsub.s32 %v1633, %v1635
        %v1637 = vrot.slane %v1623, %v1636
        %v1638 = vcombine.low %v1630, %v1637
        %s1640 = scalar_lea.vmem %s343, 1 [#allocation4]
        %1641 = vst.msk [vmem:[%s1640] ss:$2 sm:$0x7f] %vm1004, %v1638
        %v1642 = vadd.f32 %v1440, %v1441
        %v1643 = vadd.f32 %v1642, %v1442
        %v1644 = vadd.f32 %v1643, %v1443
        %v1645 = vadd.f32 %v1644, %v1444
        %v1646 = vadd.f32 %v1645, %v1445
        %v1647 = vadd.f32 %v1646, %v1522
        %1648 = vadd.xlane.f32.xlu0 %v1647
        %v1649 = vpop.xlane.xlu0 %1648
        %v1650 = vadd.f32 %v1447, %v1448
        %v1651 = vadd.f32 %v1650, %v1449
        %v1652 = vadd.f32 %v1651, %v1450
        %v1653 = vadd.f32 %v1652, %v1451
        %v1654 = vadd.f32 %v1653, %v1452
        %v1655 = vadd.f32 %v1654, %v1523
        %1656 = vadd.xlane.f32.xlu0 %v1655
        %v1657 = vpop.xlane.xlu0 %1656
        %v1658 = vadd.f32 %v1454, %v1455
        %v1659 = vadd.f32 %v1658, %v1456
        %v1660 = vadd.f32 %v1659, %v1457
        %v1661 = vadd.f32 %v1660, %v1458
        %v1662 = vadd.f32 %v1661, %v1459
        %v1663 = vadd.f32 %v1662, %v1525
        %1664 = vadd.xlane.f32.xlu0 %v1663
        %v1665 = vpop.xlane.xlu0 %1664
        %v1666 = vadd.f32 %v1461, %v1462
        %v1667 = vadd.f32 %v1666, %v1463
        %v1668 = vadd.f32 %v1667, %v1464
        %v1669 = vadd.f32 %v1668, %v1465
        %v1670 = vadd.f32 %v1669, %v1466
        %v1671 = vadd.f32 %v1670, %v1527
        %1672 = vadd.xlane.f32.xlu0 %v1671
        %v1673 = vpop.xlane.xlu0 %1672
        %v1674 = vmax.f32 %v1440, %v1441
        %v1675 = vmax.f32 %v1674, %v1442
        %v1676 = vmax.f32 %v1675, %v1443
        %v1677 = vmax.f32 %v1676, %v1444
        %v1678 = vmax.f32 %v1677, %v1445
        %v1679 = vsel %vm881, %v1446, -inf
        %v1680 = vmax.f32 %v1678, %v1679
        %1681 = vmax.xlane.f32.xlu0 %v1680
        %v1682 = vpop.xlane.xlu0 %1681
        %v1683 = vmax.f32 %v1447, %v1448
        %v1684 = vmax.f32 %v1683, %v1449
        %v1685 = vmax.f32 %v1684, %v1450
        %v1686 = vmax.f32 %v1685, %v1451
        %v1687 = vmax.f32 %v1686, %v1452
        %v1688 = vsel %vm881, %v1453, -inf
        %v1689 = vmax.f32 %v1687, %v1688
        %1690 = vmax.xlane.f32.xlu0 %v1689
        %v1691 = vpop.xlane.xlu0 %1690
        %v1692 = vmax.f32 %v1454, %v1455
        %v1693 = vmax.f32 %v1692, %v1456
        %v1694 = vmax.f32 %v1693, %v1457
        %v1695 = vmax.f32 %v1694, %v1458
        %v1696 = vmax.f32 %v1695, %v1459
        %v1697 = vsel %vm881, %v1460, -inf
        %v1698 = vmax.f32 %v1696, %v1697
        %1699 = vmax.xlane.f32.xlu0 %v1698
        %v1700 = vpop.xlane.xlu0 %1699
        %v1701 = vmax.f32 %v1461, %v1462
        %v1702 = vmax.f32 %v1701, %v1463
        %v1703 = vmax.f32 %v1702, %v1464
        %v1704 = vmax.f32 %v1703, %v1465
        %v1705 = vmax.f32 %v1704, %v1466
        %v1706 = vsel %vm881, %v1467, -inf
        %v1707 = vmax.f32 %v1705, %v1706
        %1708 = vmax.xlane.f32.xlu0 %v1707
        %v1709 = vpop.xlane.xlu0 %1708
        %v1710 = vadd.f32 %v1013, %v1649
        %v1711 = vadd.f32 %v1021, %v1657
        %v1712 = vadd.f32 %v1029, %v1665
        %v1713 = vadd.f32 %v1037, %v1673
        %v1714 = vadd.f32 %v1046, %v1682
        %v1715 = vadd.f32 %v1055, %v1691
        %v1716 = vadd.f32 %v1064, %v1700
        %v1717 = vadd.f32 %v1073, %v1709
        %v1718 = vmul.f32 %v1710, 0.000625
        %v1719 = vmul.f32 %v1711, 0.000625
        %v1720 = vmul.f32 %v1712, 0.000625
        %v1721 = vmul.f32 %v1713, 0.000625
        %v1722 = vmul.f32 %v1714, 0.5
        %v1723 = vmul.f32 %v1715, 0.5
        %v1724 = vmul.f32 %v1716, 0.5
        %v1725 = vmul.f32 %v1717, 0.5
        %v1726 = vld [vmem:[%s3] sm:$0xff]
        %v1727 = vld [vmem:[%s3 + $0x8] sm:$0xff]
        %v1728 = vld [vmem:[%s3 + $0x10] sm:$0xff]
        %v1729 = vld [vmem:[%s3 + $0x18] sm:$0xff]
        %v1730 = vmul.f32 %v1726, %v1718
        %v1731 = vmul.f32 %v1727, %v1719
        %v1732 = vmul.f32 %v1728, %v1720
        %v1733 = vmul.f32 %v1729, %v1721
        %v1734 = vsel %vm881, %v1730, 0.0
        %v1735 = vsel %vm881, %v1731, 0.0
        %v1736 = vadd.f32 %v1734, %v1735
        %v1737 = vsel %vm881, %v1732, 0.0
        %v1738 = vadd.f32 %v1736, %v1737
        %v1739 = vsel %vm881, %v1733, 0.0
        %v1740 = vadd.f32 %v1738, %v1739
        %v1741 = vrot.slane %v1740, 4
        %v1742 = vadd.f32 %v1740, %v1741
        %v1743 = vrot.slane %v1742, 2
        %v1744 = vadd.f32 %v1742, %v1743
        %v1745 = vrot.slane %v1744, 1
        %v1746 = vadd.f32 %v1744, %v1745
        %v1747 = vld [vmem:[%s4] sm:$0x1]
        %v1748 = vadd.f32 %v1746, %v1747
        %v1749 = vmax.f32 %v1748, 0.0
        %v1750 = vld [vmem:[%s5] sm:$0xff]
        %v1751 = vld [vmem:[%s5 + $0x8] sm:$0xff]
        %v1752 = vld [vmem:[%s5 + $0x10] sm:$0xff]
        %v1753 = vld [vmem:[%s5 + $0x18] sm:$0xff]
        %v1754 = vlaneseq
        %v1755 = vshrl.u32 %v1754, 7
        %v1756 = vsub.s32 0, %v1755
        %v1757 = vrot.slane %v1749, %v1756
        %v1758 = vmul.f32 %v1750, %v1757
        %v1759 = vmul.f32 %v1751, %v1757
        %v1760 = vmul.f32 %v1752, %v1757
        %v1761 = vmul.f32 %v1753, %v1757
        %v1762 = vsel %vm881, %v1758, 0.0
        %1763 = vadd.xlane.f32.xlu0 %v1762
        %v1764 = vpop.xlane.xlu0 %1763
        %v1765 = vsel %vm881, %v1759, 0.0
        %1766 = vadd.xlane.f32.xlu0 %v1765
        %v1767 = vpop.xlane.xlu0 %1766
        %v1768 = vsel %vm881, %v1760, 0.0
        %1769 = vadd.xlane.f32.xlu0 %v1768
        %v1770 = vpop.xlane.xlu0 %1769
        %v1771 = vsel %vm881, %v1761, 0.0
        %1772 = vadd.xlane.f32.xlu0 %v1771
        %v1773 = vpop.xlane.xlu0 %1772
        %v1774 = vld [vmem:[%s6] sm:$0xff]
        %v1775 = vld [vmem:[%s6 + $0x8] sm:$0xff]
        %v1776 = vld [vmem:[%s6 + $0x10] sm:$0xff]
        %v1777 = vld [vmem:[%s6 + $0x18] sm:$0xff]
        %v1778 = vadd.f32 %v1764, %v1774
        %v1779 = vadd.f32 %v1767, %v1775
        %v1780 = vadd.f32 %v1770, %v1776
        %v1781 = vadd.f32 %v1773, %v1777
        %vm1782 = vcmask 7168
        %1783 = vst.msk [vmem:[%s353] sm:$0xff] %vm1782, %v1778
        %1784 = vst.msk [vmem:[%s353 + $0x8] sm:$0xff] %vm1782, %v1779
        %1785 = vst.msk [vmem:[%s353 + $0x10] sm:$0xff] %vm1782, %v1780
        %1786 = vst.msk [vmem:[%s353 + $0x18] sm:$0xff] %vm1782, %v1781
        %v1787 = vld [vmem:[%s3] sm:$0xff]
        %v1788 = vld [vmem:[%s3 + $0x8] sm:$0xff]
        %v1789 = vld [vmem:[%s3 + $0x10] sm:$0xff]
        %v1790 = vld [vmem:[%s3 + $0x18] sm:$0xff]
        %v1791 = vmul.f32 %v1787, %v1722
        %v1792 = vmul.f32 %v1788, %v1723
        %v1793 = vmul.f32 %v1789, %v1724
        %v1794 = vmul.f32 %v1790, %v1725
        %v1795 = vsel %vm881, %v1791, 0.0
        %v1796 = vsel %vm881, %v1792, 0.0
        %v1797 = vadd.f32 %v1795, %v1796
        %v1798 = vsel %vm881, %v1793, 0.0
        %v1799 = vadd.f32 %v1797, %v1798
        %v1800 = vsel %vm881, %v1794, 0.0
        %v1801 = vadd.f32 %v1799, %v1800
        %v1802 = vrot.slane %v1801, 4
        %v1803 = vadd.f32 %v1801, %v1802
        %v1804 = vrot.slane %v1803, 2
        %v1805 = vadd.f32 %v1803, %v1804
        %v1806 = vrot.slane %v1805, 1
        %v1807 = vadd.f32 %v1805, %v1806
        %v1808 = vld [vmem:[%s4] sm:$0x1]
        %v1809 = vadd.f32 %v1807, %v1808
        %v1810 = vmax.f32 %v1809, 0.0
        %v1811 = vld [vmem:[%s5] sm:$0xff]
        %v1812 = vld [vmem:[%s5 + $0x8] sm:$0xff]
        %v1813 = vld [vmem:[%s5 + $0x10] sm:$0xff]
        %v1814 = vld [vmem:[%s5 + $0x18] sm:$0xff]
        %v1815 = vlaneseq
        %v1816 = vshrl.u32 %v1815, 7
        %v1817 = vsub.s32 0, %v1816
        %v1818 = vrot.slane %v1810, %v1817
        %v1819 = vmul.f32 %v1811, %v1818
        %v1820 = vmul.f32 %v1812, %v1818
        %v1821 = vmul.f32 %v1813, %v1818
        %v1822 = vmul.f32 %v1814, %v1818
        %v1823 = vsel %vm881, %v1819, 0.0
        %1824 = vadd.xlane.f32.xlu0 %v1823
        %v1825 = vpop.xlane.xlu0 %1824
        %v1826 = vsel %vm881, %v1820, 0.0
        %1827 = vadd.xlane.f32.xlu0 %v1826
        %v1828 = vpop.xlane.xlu0 %1827
        %v1829 = vsel %vm881, %v1821, 0.0
        %1830 = vadd.xlane.f32.xlu0 %v1829
        %v1831 = vpop.xlane.xlu0 %1830
        %v1832 = vsel %vm881, %v1822, 0.0
        %1833 = vadd.xlane.f32.xlu0 %v1832
        %v1834 = vpop.xlane.xlu0 %1833
        %v1835 = vld [vmem:[%s6] sm:$0xff]
        %v1836 = vld [vmem:[%s6 + $0x8] sm:$0xff]
        %v1837 = vld [vmem:[%s6 + $0x10] sm:$0xff]
        %v1838 = vld [vmem:[%s6 + $0x18] sm:$0xff]
        %v1839 = vadd.f32 %v1825, %v1835
        %v1840 = vadd.f32 %v1828, %v1836
        %v1841 = vadd.f32 %v1831, %v1837
        %v1842 = vadd.f32 %v1834, %v1838
        %1843 = vst.msk [vmem:[%s336] sm:$0xff] %vm1782, %v1839
        %1844 = vst.msk [vmem:[%s336 + $0x8] sm:$0xff] %vm1782, %v1840
        %1845 = vst.msk [vmem:[%s336 + $0x10] sm:$0xff] %vm1782, %v1841
        %1846 = vst.msk [vmem:[%s336 + $0x18] sm:$0xff] %vm1782, %v1842
        %p1847 = scmp.lt.s32.totalorder %s27, 11
        %s1848 = scalar_select %p1847, %s27, 11
        %s1849 = smul.addr %s1848, 4
        %s1850 = smul.addr %s1849, 8
        %s1851 = scalar_lea.vmem %s7, %s1850
        %s1852 = sand.u32 %s213, 1
        %s1853 = scalar_lea.sflag [#allocation3], %s1852
        %s1854 = sand.u32 %s213, 1
        %s1855 = smul.addr %s1854, 32
        %s1856 = scalar_lea.vmem [#allocation2], %s1855
        %s1857 = sand.u32 %s239, 1
        %s1858 = scalar_lea.sflag [#allocation5], %s1857
        %s1859 = sand.u32 %s239, 1
        %s1860 = smul.addr %s1859, 14
        %s1861 = scalar_lea.vmem [#allocation4], %s1860
        // Predicated region
        $region49: #{forward.6} parent=47 // pred_check
          %p1862 = pneg %p197
        $region50: #{forward.6} parent=47 // pred_check_branch
          %1864 = sbr.rel (%p1862) target = $region52
        $region51: #{forward.6} parent=47 // pred_region
          _
        $region52: #{forward.6} parent=47 // pred_fallthru
          _
        // Predicated region
        $region53: #{forward.6} parent=47 // pred_check
          %p1865 = pneg %p223
        $region54: #{forward.6} parent=47 // pred_check_branch
          %1867 = sbr.rel (%p1865) target = $region56
        $region55: #{forward.6} parent=47 // pred_region
          %s1869 = ssub.s32 512, 512
          %1870 = vsyncadd %s1853, %s1869
          %s1871 = smul.addr %s27, 4
          %s1872 = smul.addr %s1871, 128
          %s1873 = scalar_lea.hbm %s8, %s1872
          %s1874 = sshll.u32 %s1856, 4
          %s1875 = int_to_ptr.vmem [resolvable:$true] %s1874
          %1880 = dma.vmem_to_hbm [thread:$0]  %s1875, 512, %s1873, %s1853, 128, 128, 8
        $region56: #{forward.6} parent=47 // pred_fallthru
          _
        // Predicated region
        $region57: #{forward.6} parent=47 // pred_check
          %p1881 = pneg %p249
        $region58: #{forward.6} parent=47 // pred_check_branch
          %1883 = sbr.rel (%p1881) target = $region60
        $region59: #{forward.6} parent=47 // pred_region
          %s1885 = ssub.s32 224, 224
          %1886 = vsyncadd %s1858, %s1885
          %s1887 = smul.addr %s27, 7
          %s1888 = smul.addr %s1887, 32
          %s1889 = scalar_lea.hbm %s9, %s1888
          %s1891 = sshll.u32 %s1861, 4
          %s1892 = int_to_ptr.vmem [resolvable:$true] %s1891
          %1894 = dma.vmem_to_hbm [thread:$0]  %s1892, 224, %s1889, %s1858
        $region60: #{forward.6} parent=47 // pred_fallthru
          _
      $region48: #{forward.6} parent=5 // pred_fallthru
        _
      %p1895 = scmp.le.s32.totalorder 2, %s22
      // Predicated region
      $region61: #{forward.6} parent=5 // pred_check
        %p1896 = pneg %p1895
      $region62: #{forward.6} parent=5 // pred_check_branch
        %1898 = sbr.rel (%p1896) target = $region64
      $region63: #{forward.6} parent=5 // pred_region
        %s1899 = ssub.s32 %s22, 2
        // Predicated region
        $region65: #{forward.6} parent=63 // pred_check
          %p1900 = pneg %p203
        $region66: #{forward.6} parent=63 // pred_check_branch
          %1902 = sbr.rel (%p1900) target = $region68
        $region67: #{forward.6} parent=63 // pred_region
          %p1903 = scmp.lt.s32.totalorder %s28, 11
          %s1904 = scalar_select %p1903, %s28, 11
          %s1905 = smul.addr %s1904, 4
          %s1906 = smul.addr %s1905, 8
          %s1907 = scalar_lea.vmem %s7, %s1906
        $region68: #{forward.6} parent=63 // pred_fallthru
          _
        // Predicated region
        $region69: #{forward.6} parent=63 // pred_check
          %p1908 = pneg %p229
        $region70: #{forward.6} parent=63 // pred_check_branch
          %1910 = sbr.rel (%p1908) target = $region72
        $region71: #{forward.6} parent=63 // pred_region
          %s1911 = sand.u32 %s214, 1
          %s1912 = scalar_lea.sflag [#allocation3], %s1911
          %s1913 = sand.u32 %s214, 1
          %s1914 = smul.addr %s1913, 32
          %s1915 = scalar_lea.vmem [#allocation2], %s1914
          %1916 = dma.done %s1912, 512
        $region72: #{forward.6} parent=63 // pred_fallthru
          _
        // Predicated region
        $region73: #{forward.6} parent=63 // pred_check
          %p1917 = pneg %p255
        $region74: #{forward.6} parent=63 // pred_check_branch
          %1919 = sbr.rel (%p1917) target = $region76
        $region75: #{forward.6} parent=63 // pred_region
          %s1920 = sand.u32 %s240, 1
          %s1921 = scalar_lea.sflag [#allocation5], %s1920
          %s1922 = sand.u32 %s240, 1
          %s1923 = smul.addr %s1922, 14
          %s1924 = scalar_lea.vmem [#allocation4], %s1923
          %1925 = dma.done %s1921, 224
        $region76: #{forward.6} parent=63 // pred_fallthru
          _
      $region64: #{forward.6} parent=5 // pred_fallthru
        _
    $region6: #{forward.6} parent=1 // loop_footer
      %s26 = sadd.s32 1, %s22
    $region7: #{forward.6} parent=1 // loop_footer_branch
      %21 = sbr.rel target = $region3
    $region8: #{forward.6} parent=1 // loop_exit
      _
    %1926 = vsyncpa [#allocation3], 1
    %s1927 = scalar_lea.sflag [#allocation3], 1
    %1928 = vsyncpa %s1927, 1
    %1929 = vsyncpa [#allocation5], 1
    %s1930 = scalar_lea.sflag [#allocation5], 1
    %1931 = vsyncpa %s1930, 1

// kernel: forward.7
$region0: #{forward.7}
  #allocation0 [shape = 'u32[]', space=smem, size = 0x4, offset = 0x4, fixed_abs, tag = 'smem constant byte address 0x4 - core index']
  #allocation1 [shape = 'u32[144,128]{1,0:T(1,128)}', space=vmem, size = 0x12000, scoped, tag = 'internal scratch']
  %s0 = inlined_call_operand.vmem [shape: f32[5,2,3,800], index: 0, kind: input, shape index: {}]
  %s1 = inlined_call_operand.vmem [shape: f32[32,3], index: 1, kind: input, shape index: {}]
  %s2 = inlined_call_operand.vmem [shape: f32[32,1], index: 2, kind: input, shape index: {}]
  %s3 = inlined_call_operand.vmem [shape: f32[32,32], index: 3, kind: input, shape index: {}]
  %s4 = inlined_call_operand.vmem [shape: f32[1,32], index: 4, kind: input, shape index: {}]
  %s5 = inlined_call_operand.vmem [shape: f32[32,32], index: 5, kind: input, shape index: {}]
  %s6 = inlined_call_operand.vmem [shape: f32[32,1], index: 6, kind: input, shape index: {}]
  %s7 = inlined_call_operand.vmem [shape: f32[5,32,1], index: 7, kind: output, shape index: {0}]
  %s8 = inlined_call_operand.vmem [shape: f32[5,32,1], index: 8, kind: output, shape index: {1}]
  %s9 = inlined_call_operand.hbm [shape: f32[5,2,800], index: 9, kind: output, shape index: {2}]
  %10 = xla_tuple %s7, %s8, %s9
  %s11 = sld [smem:[#allocation0]]
  $region77: #{forward.7} parent=0
    _
  %s13 = ssub.s32 1, %s11
  %s14 = scalar_select 0, %s13, %s11
  $region1: #{forward.7} parent=0
    #allocation2 [shape = 'u8[14336]{0}', space=vmem, size = 0x3800, scoped, tag = 'output window, operand 2']
    #allocation3 [shape = 's32[2]{0}', space=sflag, size = 0x8, scoped, tag = 'scoped memory for forward.7']
    %15 = vsyncpa [#allocation3], 0
    %s16 = scalar_lea.sflag [#allocation3], 1
    %17 = vsyncpa %s16, 0
    loop: start=0, step=1, limit=7
    $region2: #{forward.7} parent=1 // loop_pre_header
      _
    $region3: #{forward.7} parent=1 // loop_header
      %s19 = sphi 0, %s23
      %p20 = scmp.ge.s32.totalorder %s19, 7
      %s29 = sphi 0, %s31
      %s32 = sphi 0, %s29
      %s33 = sphi 0, %s32
      %s49 = sphi 0, %s33
      %s53 = sphi 0, %s53
      %s55 = sphi 0, %s53
      %s56 = sphi 0, %s55
      %s70 = sphi 0, %s56
      %s74 = sphi 0, %s74
      %s76 = sphi 0, %s74
      %s77 = sphi 0, %s76
      %s91 = sphi 0, %s77
      %s95 = sphi 0, %s95
      %s97 = sphi 0, %s95
      %s98 = sphi 0, %s97
      %s112 = sphi 0, %s98
      %s116 = sphi 0, %s116
      %s118 = sphi 0, %s116
      %s119 = sphi 0, %s118
      %s133 = sphi 0, %s119
      %s137 = sphi 0, %s137
      %s139 = sphi 0, %s137
      %s140 = sphi 0, %s139
      %s154 = sphi 0, %s140
      %s158 = sphi 0, %s158
      %s160 = sphi 0, %s158
      %s161 = sphi 0, %s160
      %s175 = sphi 0, %s161
      %s181 = sphi 0, %s183
      %s184 = sphi 0, %s181
      %s185 = sphi 0, %s184
      %s201 = sphi 0, %s185
      %s207 = sphi 0, %s209
      %s210 = sphi 0, %s207
      %s211 = sphi 0, %s210
      %s227 = sphi 0, %s211
      %s233 = sphi 0, %s235
      %s236 = sphi 0, %s233
      %s237 = sphi 0, %s236
      %s253 = sphi 0, %s237
    $region4: #{forward.7} parent=1 // loop_header_branch
      %22 = sbr.rel (%p20) target = $region8
    $region5: #{forward.7} parent=1 // loop_body
      %s24 = ssub.s32 %s19, 1
      %s25 = ssub.s32 %s19, 2
      %s26 = sadd.s32 %s19, 1
      %s27 = ssub.s32 %s19, %s26
      %p28 = scmp.eq.s32.totalorder %s27, 0
      %s30 = sadd.s32 %s29, 1
      %s31 = scalar_select %p28, %s29, %s30
      %p34 = pneg %p28
      %p35 = scmp.eq.s32.totalorder %s19, 4
      %p36 = por %p34, %p35
      %p37 = scmp.ne.s32.totalorder %s29, %s32
      %p38 = scmp.eq.s32.totalorder %s19, 0
      %p39 = por %p37, %p38
      %p40 = scmp.ne.s32.totalorder %s29, %s32
      %p41 = scmp.eq.s32.totalorder %s24, 4
      %p42 = por %p40, %p41
      %p43 = scmp.ne.s32.totalorder %s32, %s33
      %p44 = scmp.eq.s32.totalorder %s24, 0
      %p45 = por %p43, %p44
      %p46 = scmp.ne.s32.totalorder %s32, %s33
      %p47 = scmp.eq.s32.totalorder %s25, 4
      %p48 = por %p46, %p47
      %p50 = scmp.ne.s32.totalorder %s33, %s49
      %p51 = scmp.eq.s32.totalorder %s25, 0
      %p52 = por %p50, %p51
      %s54 = sadd.s32 %s53, 1
      %p57 = scmp.eq.s32.totalorder %s19, 4
      %p58 = scmp.ne.s32.totalorder %s53, %s55
      %p59 = scmp.eq.s32.totalorder %s19, 0
      %p60 = por %p58, %p59
      %p61 = scmp.ne.s32.totalorder %s53, %s55
      %p62 = scmp.eq.s32.totalorder %s24, 4
      %p63 = por %p61, %p62
      %p64 = scmp.ne.s32.totalorder %s55, %s56
      %p65 = scmp.eq.s32.totalorder %s24, 0
      %p66 = por %p64, %p65
      %p67 = scmp.ne.s32.totalorder %s55, %s56
      %p68 = scmp.eq.s32.totalorder %s25, 4
      %p69 = por %p67, %p68
      %p71 = scmp.ne.s32.totalorder %s56, %s70
      %p72 = scmp.eq.s32.totalorder %s25, 0
      %p73 = por %p71, %p72
      %s75 = sadd.s32 %s74, 1
      %p78 = scmp.eq.s32.totalorder %s19, 4
      %p79 = scmp.ne.s32.totalorder %s74, %s76
      %p80 = scmp.eq.s32.totalorder %s19, 0
      %p81 = por %p79, %p80
      %p82 = scmp.ne.s32.totalorder %s74, %s76
      %p83 = scmp.eq.s32.totalorder %s24, 4
      %p84 = por %p82, %p83
      %p85 = scmp.ne.s32.totalorder %s76, %s77
      %p86 = scmp.eq.s32.totalorder %s24, 0
      %p87 = por %p85, %p86
      %p88 = scmp.ne.s32.totalorder %s76, %s77
      %p89 = scmp.eq.s32.totalorder %s25, 4
      %p90 = por %p88, %p89
      %p92 = scmp.ne.s32.totalorder %s77, %s91
      %p93 = scmp.eq.s32.totalorder %s25, 0
      %p94 = por %p92, %p93
      %s96 = sadd.s32 %s95, 1
      %p99 = scmp.eq.s32.totalorder %s19, 4
      %p100 = scmp.ne.s32.totalorder %s95, %s97
      %p101 = scmp.eq.s32.totalorder %s19, 0
      %p102 = por %p100, %p101
      %p103 = scmp.ne.s32.totalorder %s95, %s97
      %p104 = scmp.eq.s32.totalorder %s24, 4
      %p105 = por %p103, %p104
      %p106 = scmp.ne.s32.totalorder %s97, %s98
      %p107 = scmp.eq.s32.totalorder %s24, 0
      %p108 = por %p106, %p107
      %p109 = scmp.ne.s32.totalorder %s97, %s98
      %p110 = scmp.eq.s32.totalorder %s25, 4
      %p111 = por %p109, %p110
      %p113 = scmp.ne.s32.totalorder %s98, %s112
      %p114 = scmp.eq.s32.totalorder %s25, 0
      %p115 = por %p113, %p114
      %s117 = sadd.s32 %s116, 1
      %p120 = scmp.eq.s32.totalorder %s19, 4
      %p121 = scmp.ne.s32.totalorder %s116, %s118
      %p122 = scmp.eq.s32.totalorder %s19, 0
      %p123 = por %p121, %p122
      %p124 = scmp.ne.s32.totalorder %s116, %s118
      %p125 = scmp.eq.s32.totalorder %s24, 4
      %p126 = por %p124, %p125
      %p127 = scmp.ne.s32.totalorder %s118, %s119
      %p128 = scmp.eq.s32.totalorder %s24, 0
      %p129 = por %p127, %p128
      %p130 = scmp.ne.s32.totalorder %s118, %s119
      %p131 = scmp.eq.s32.totalorder %s25, 4
      %p132 = por %p130, %p131
      %p134 = scmp.ne.s32.totalorder %s119, %s133
      %p135 = scmp.eq.s32.totalorder %s25, 0
      %p136 = por %p134, %p135
      %s138 = sadd.s32 %s137, 1
      %p141 = scmp.eq.s32.totalorder %s19, 4
      %p142 = scmp.ne.s32.totalorder %s137, %s139
      %p143 = scmp.eq.s32.totalorder %s19, 0
      %p144 = por %p142, %p143
      %p145 = scmp.ne.s32.totalorder %s137, %s139
      %p146 = scmp.eq.s32.totalorder %s24, 4
      %p147 = por %p145, %p146
      %p148 = scmp.ne.s32.totalorder %s139, %s140
      %p149 = scmp.eq.s32.totalorder %s24, 0
      %p150 = por %p148, %p149
      %p151 = scmp.ne.s32.totalorder %s139, %s140
      %p152 = scmp.eq.s32.totalorder %s25, 4
      %p153 = por %p151, %p152
      %p155 = scmp.ne.s32.totalorder %s140, %s154
      %p156 = scmp.eq.s32.totalorder %s25, 0
      %p157 = por %p155, %p156
      %s159 = sadd.s32 %s158, 1
      %p162 = scmp.eq.s32.totalorder %s19, 4
      %p163 = scmp.ne.s32.totalorder %s158, %s160
      %p164 = scmp.eq.s32.totalorder %s19, 0
      %p165 = por %p163, %p164
      %p166 = scmp.ne.s32.totalorder %s158, %s160
      %p167 = scmp.eq.s32.totalorder %s24, 4
      %p168 = por %p166, %p167
      %p169 = scmp.ne.s32.totalorder %s160, %s161
      %p170 = scmp.eq.s32.totalorder %s24, 0
      %p171 = por %p169, %p170
      %p172 = scmp.ne.s32.totalorder %s160, %s161
      %p173 = scmp.eq.s32.totalorder %s25, 4
      %p174 = por %p172, %p173
      %p176 = scmp.ne.s32.totalorder %s161, %s175
      %p177 = scmp.eq.s32.totalorder %s25, 0
      %p178 = por %p176, %p177
      %s179 = ssub.s32 %s19, %s26
      %p180 = scmp.eq.s32.totalorder %s179, 0
      %s182 = sadd.s32 %s181, 1
      %s183 = scalar_select %p180, %s181, %s182
      %p186 = pneg %p180
      %p187 = scmp.eq.s32.totalorder %s19, 4
      %p188 = por %p186, %p187
      %p189 = scmp.ne.s32.totalorder %s181, %s184
      %p190 = scmp.eq.s32.totalorder %s19, 0
      %p191 = por %p189, %p190
      %p192 = scmp.ne.s32.totalorder %s181, %s184
      %p193 = scmp.eq.s32.totalorder %s24, 4
      %p194 = por %p192, %p193
      %p195 = scmp.ne.s32.totalorder %s184, %s185
      %p196 = scmp.eq.s32.totalorder %s24, 0
      %p197 = por %p195, %p196
      %p198 = scmp.ne.s32.totalorder %s184, %s185
      %p199 = scmp.eq.s32.totalorder %s25, 4
      %p200 = por %p198, %p199
      %p202 = scmp.ne.s32.totalorder %s185, %s201
      %p203 = scmp.eq.s32.totalorder %s25, 0
      %p204 = por %p202, %p203
      %s205 = ssub.s32 %s19, %s26
      %p206 = scmp.eq.s32.totalorder %s205, 0
      %s208 = sadd.s32 %s207, 1
      %s209 = scalar_select %p206, %s207, %s208
      %p212 = pneg %p206
      %p213 = scmp.eq.s32.totalorder %s19, 4
      %p214 = por %p212, %p213
      %p215 = scmp.ne.s32.totalorder %s207, %s210
      %p216 = scmp.eq.s32.totalorder %s19, 0
      %p217 = por %p215, %p216
      %p218 = scmp.ne.s32.totalorder %s207, %s210
      %p219 = scmp.eq.s32.totalorder %s24, 4
      %p220 = por %p218, %p219
      %p221 = scmp.ne.s32.totalorder %s210, %s211
      %p222 = scmp.eq.s32.totalorder %s24, 0
      %p223 = por %p221, %p222
      %p224 = scmp.ne.s32.totalorder %s210, %s211
      %p225 = scmp.eq.s32.totalorder %s25, 4
      %p226 = por %p224, %p225
      %p228 = scmp.ne.s32.totalorder %s211, %s227
      %p229 = scmp.eq.s32.totalorder %s25, 0
      %p230 = por %p228, %p229
      %s231 = ssub.s32 %s19, %s26
      %p232 = scmp.eq.s32.totalorder %s231, 0
      %s234 = sadd.s32 %s233, 1
      %s235 = scalar_select %p232, %s233, %s234
      %p238 = pneg %p232
      %p239 = scmp.eq.s32.totalorder %s19, 4
      %p240 = por %p238, %p239
      %p241 = scmp.ne.s32.totalorder %s233, %s236
      %p242 = scmp.eq.s32.totalorder %s19, 0
      %p243 = por %p241, %p242
      %p244 = scmp.ne.s32.totalorder %s233, %s236
      %p245 = scmp.eq.s32.totalorder %s24, 4
      %p246 = por %p244, %p245
      %p247 = scmp.ne.s32.totalorder %s236, %s237
      %p248 = scmp.eq.s32.totalorder %s24, 0
      %p249 = por %p247, %p248
      %p250 = scmp.ne.s32.totalorder %s236, %s237
      %p251 = scmp.eq.s32.totalorder %s25, 4
      %p252 = por %p250, %p251
      %p254 = scmp.ne.s32.totalorder %s237, %s253
      %p255 = scmp.eq.s32.totalorder %s25, 0
      %p256 = por %p254, %p255
      %p257 = scmp.le.s32.totalorder 1, %s19
      %p258 = scmp.lt.s32.totalorder %s19, 6
      %p259 = pnand %p257, %p258
      %p260 = pneg %p259
      // Predicated region
      $region9: #{forward.7} parent=5 // pred_check
        _
      $region10: #{forward.7} parent=5 // pred_check_branch
        %262 = sbr.rel (%p259) target = $region12
      $region11: #{forward.7} parent=5 // pred_region
        %s263 = ssub.s32 %s19, 1
        // Predicated region
        $region13: #{forward.7} parent=11 // pred_check
          %p264 = pneg %p66
        $region14: #{forward.7} parent=11 // pred_check_branch
          %266 = sbr.rel (%p264) target = $region16
        $region15: #{forward.7} parent=11 // pred_region
          _
        $region16: #{forward.7} parent=11 // pred_fallthru
          _
        // Predicated region
        $region17: #{forward.7} parent=11 // pred_check
          %p267 = pneg %p87
        $region18: #{forward.7} parent=11 // pred_check_branch
          %269 = sbr.rel (%p267) target = $region20
        $region19: #{forward.7} parent=11 // pred_region
          _
        $region20: #{forward.7} parent=11 // pred_fallthru
          _
        // Predicated region
        $region21: #{forward.7} parent=11 // pred_check
          %p270 = pneg %p108
        $region22: #{forward.7} parent=11 // pred_check_branch
          %272 = sbr.rel (%p270) target = $region24
        $region23: #{forward.7} parent=11 // pred_region
          _
        $region24: #{forward.7} parent=11 // pred_fallthru
          _
        // Predicated region
        $region25: #{forward.7} parent=11 // pred_check
          %p273 = pneg %p129
        $region26: #{forward.7} parent=11 // pred_check_branch
          %275 = sbr.rel (%p273) target = $region28
        $region27: #{forward.7} parent=11 // pred_region
          _
        $region28: #{forward.7} parent=11 // pred_fallthru
          _
        // Predicated region
        $region29: #{forward.7} parent=11 // pred_check
          %p276 = pneg %p150
        $region30: #{forward.7} parent=11 // pred_check_branch
          %278 = sbr.rel (%p276) target = $region32
        $region31: #{forward.7} parent=11 // pred_region
          _
        $region32: #{forward.7} parent=11 // pred_fallthru
          _
        // Predicated region
        $region33: #{forward.7} parent=11 // pred_check
          %p279 = pneg %p171
        $region34: #{forward.7} parent=11 // pred_check_branch
          %281 = sbr.rel (%p279) target = $region36
        $region35: #{forward.7} parent=11 // pred_region
          _
        $region36: #{forward.7} parent=11 // pred_fallthru
          _
      $region12: #{forward.7} parent=5 // pred_fallthru
        _
      %p282 = scmp.lt.s32.totalorder %s19, 5
      // Predicated region
      $region37: #{forward.7} parent=5 // pred_check
        %p283 = pneg %p282
      $region38: #{forward.7} parent=5 // pred_check_branch
        %285 = sbr.rel (%p283) target = $region40
      $region39: #{forward.7} parent=5 // pred_region
        // Predicated region
        $region41: #{forward.7} parent=39 // pred_check
          %p286 = pneg %p39
        $region42: #{forward.7} parent=39 // pred_check_branch
          %288 = sbr.rel (%p286) target = $region44
        $region43: #{forward.7} parent=39 // pred_region
          %p289 = scmp.lt.s32.totalorder %s19, 4
          %s290 = scalar_select %p289, %s19, 4
          %s291 = smul.addr %s290, 14
          %s292 = smul.addr %s291, 4
          %s293 = scalar_lea.vmem %s0, %s292
        $region44: #{forward.7} parent=39 // pred_fallthru
          _
      $region40: #{forward.7} parent=5 // pred_fallthru
        _
      %p294 = scmp.le.s32.totalorder 1, %s19
      %p295 = scmp.lt.s32.totalorder %s19, 6
      %p296 = pnand %p294, %p295
      %p297 = pneg %p296
      // Predicated region
      $region45: #{forward.7} parent=5 // pred_check
        _
      $region46: #{forward.7} parent=5 // pred_check_branch
        %299 = sbr.rel (%p296) target = $region48
      $region47: #{forward.7} parent=5 // pred_region
        %s300 = ssub.s32 %s19, 1
        %p301 = scmp.lt.s32.totalorder %s24, 4
        %s302 = scalar_select %p301, %s24, 4
        %s303 = smul.addr %s302, 14
        %s304 = smul.addr %s303, 4
        %s305 = scalar_lea.vmem %s0, %s304
        %p306 = pneg %p45
        %p307 = pneg %p42
        %p308 = pneg %p66
        %p309 = pneg %p63
        %p310 = pneg %p87
        %p311 = pneg %p84
        %p312 = pneg %p108
        %p313 = pneg %p105
        %p314 = pneg %p129
        %p315 = pneg %p126
        %p316 = pneg %p150
        %p317 = pneg %p147
        %p318 = pneg %p171
        %p319 = pneg %p168
        %p320 = pneg %p197
        %p321 = pneg %p194
        %p322 = scmp.lt.s32.totalorder %s24, 4
        %s323 = scalar_select %p322, %s24, 4
        %s324 = smul.addr %s323, 4
        %s325 = smul.addr %s324, 8
        %s326 = scalar_lea.vmem %s7, %s325
        %p327 = pneg %p223
        %p328 = pneg %p220
        %p329 = scmp.lt.s32.totalorder %s24, 4
        %s330 = scalar_select %p329, %s24, 4
        %s331 = smul.addr %s330, 4
        %s332 = smul.addr %s331, 8
        %s333 = scalar_lea.vmem %s8, %s332
        %p334 = pneg %p249
        %p335 = pneg %p246
        %s336 = sand.u32 %s236, 1
        %s337 = scalar_lea.sflag [#allocation3], %s336
        %s338 = sand.u32 %s236, 1
        %s339 = smul.addr %s338, 14
        %s340 = scalar_lea.vmem [#allocation2], %s339
        %p341 = scmp.lt.s32.totalorder %s24, 4
        %s342 = scalar_select %p341, %s24, 4
        %s343 = smul.addr %s342, 14
        %s344 = smul.addr %s343, 4
        %s345 = scalar_lea.vmem %s0, %s344
        %p346 = scmp.lt.s32.totalorder %s24, 4
        %s347 = scalar_select %p346, %s24, 4
        %s348 = smul.addr %s347, 4
        %s349 = smul.addr %s348, 8
        %s350 = scalar_lea.vmem %s7, %s349
        %p351 = scmp.lt.s32.totalorder %s24, 4
        %s352 = scalar_select %p351, %s24, 4
        %s353 = smul.addr %s352, 4
        %s354 = smul.addr %s353, 8
        %s355 = scalar_lea.vmem %s8, %s354
        %v356 = vld [vmem:[%s1] sm:$0xff]
        %v357 = vld [vmem:[%s1 + $0x8] sm:$0xff]
        %v358 = vld [vmem:[%s1 + $0x10] sm:$0xff]
        %v359 = vld [vmem:[%s1 + $0x18] sm:$0xff]
        %v360 = vld [vmem:[%s2] sm:$0xff]
        %v361 = vld [vmem:[%s2 + $0x8] sm:$0xff]
        %v362 = vld [vmem:[%s2 + $0x10] sm:$0xff]
        %v363 = vld [vmem:[%s2 + $0x18] sm:$0xff]
        %v364 = vld [vmem:[%s345] sm:$0x77]
        %v365 = vld [vmem:[%s345 + $0x8] sm:$0x77]
        %v366 = vld [vmem:[%s345 + $0x10] sm:$0x77]
        %v367 = vld [vmem:[%s345 + $0x18] sm:$0x7]
        %369 = vset.pattern.permute.xlu0 0
        %370 = vperm.xlu0 %369, %v356
        %v371 = vpop.permute.xlu0 %370
        %374 = vset.pattern.permute.xlu0 0
        %375 = vperm.xlu0 %374, %v357
        %v376 = vpop.permute.xlu0 %375
        %379 = vset.pattern.permute.xlu0 0
        %380 = vperm.xlu0 %379, %v358
        %v381 = vpop.permute.xlu0 %380
        %384 = vset.pattern.permute.xlu0 0
        %385 = vperm.xlu0 %384, %v359
        %v386 = vpop.permute.xlu0 %385
        %v392 = vlaneseq
        %v393 = vshrl.u32 %v392, 7
        %v394 = vsub.s32 0, %v393
        %v395 = vrot.slane %v364, %v394
        %v396 = vlaneseq
        %v397 = vshrl.u32 %v396, 7
        %v398 = vsub.s32 4, %v397
        %v399 = vrot.slane %v364, %v398
        %v400 = vlaneseq
        %v401 = vshrl.u32 %v400, 7
        %v402 = vsub.s32 0, %v401
        %v403 = vrot.slane %v365, %v402
        %v404 = vlaneseq
        %v405 = vshrl.u32 %v404, 7
        %v406 = vsub.s32 4, %v405
        %v407 = vrot.slane %v365, %v406
        %v408 = vlaneseq
        %v409 = vshrl.u32 %v408, 7
        %v410 = vsub.s32 0, %v409
        %v411 = vrot.slane %v366, %v410
        %v412 = vlaneseq
        %v413 = vshrl.u32 %v412, 7
        %v414 = vsub.s32 4, %v413
        %v415 = vrot.slane %v366, %v414
        %v416 = vlaneseq
        %v417 = vshrl.u32 %v416, 7
        %v418 = vsub.s32 0, %v417
        %v419 = vrot.slane %v367, %v418
        %v427 = vlaneseq
        %v428 = vshrl.u32 %v427, 7
        %v429 = vsub.s32 0, %v428
        %v430 = vrot.slane %v395, %v429
        %v431 = vlaneseq
        %v432 = vshrl.u32 %v431, 7
        %v433 = vsub.s32 0, %v432
        %v434 = vrot.slane %v399, %v433
        %v435 = vlaneseq
        %v436 = vshrl.u32 %v435, 7
        %v437 = vsub.s32 0, %v436
        %v438 = vrot.slane %v403, %v437
        %v439 = vlaneseq
        %v440 = vshrl.u32 %v439, 7
        %v441 = vsub.s32 0, %v440
        %v442 = vrot.slane %v407, %v441
        %v443 = vlaneseq
        %v444 = vshrl.u32 %v443, 7
        %v445 = vsub.s32 0, %v444
        %v446 = vrot.slane %v411, %v445
        %v447 = vlaneseq
        %v448 = vshrl.u32 %v447, 7
        %v449 = vsub.s32 0, %v448
        %v450 = vrot.slane %v415, %v449
        %v451 = vlaneseq
        %v452 = vshrl.u32 %v451, 7
        %v453 = vsub.s32 0, %v452
        %v454 = vrot.slane %v419, %v453
        %v455 = vmul.f32 %v371, %v430
        %v456 = vmul.f32 %v371, %v434
        %v457 = vmul.f32 %v371, %v438
        %v458 = vmul.f32 %v371, %v442
        %v459 = vmul.f32 %v371, %v446
        %v460 = vmul.f32 %v371, %v450
        %v461 = vmul.f32 %v371, %v454
        %v462 = vmul.f32 %v376, %v430
        %v463 = vmul.f32 %v376, %v434
        %v464 = vmul.f32 %v376, %v438
        %v465 = vmul.f32 %v376, %v442
        %v466 = vmul.f32 %v376, %v446
        %v467 = vmul.f32 %v376, %v450
        %v468 = vmul.f32 %v376, %v454
        %v469 = vmul.f32 %v381, %v430
        %v470 = vmul.f32 %v381, %v434
        %v471 = vmul.f32 %v381, %v438
        %v472 = vmul.f32 %v381, %v442
        %v473 = vmul.f32 %v381, %v446
        %v474 = vmul.f32 %v381, %v450
        %v475 = vmul.f32 %v381, %v454
        %v476 = vmul.f32 %v386, %v430
        %v477 = vmul.f32 %v386, %v434
        %v478 = vmul.f32 %v386, %v438
        %v479 = vmul.f32 %v386, %v442
        %v480 = vmul.f32 %v386, %v446
        %v481 = vmul.f32 %v386, %v450
        %v482 = vmul.f32 %v386, %v454
        %483 = vset.pattern.permute.xlu0 1
        %484 = vperm.xlu0 %483, %v356
        %v485 = vpop.permute.xlu0 %484
        %487 = vset.pattern.permute.xlu0 1
        %488 = vperm.xlu0 %487, %v357
        %v489 = vpop.permute.xlu0 %488
        %491 = vset.pattern.permute.xlu0 1
        %492 = vperm.xlu0 %491, %v358
        %v493 = vpop.permute.xlu0 %492
        %495 = vset.pattern.permute.xlu0 1
        %496 = vperm.xlu0 %495, %v359
        %v497 = vpop.permute.xlu0 %496
        %v499 = vlaneseq
        %v500 = vshrl.u32 %v499, 7
        %v501 = vsub.s32 1, %v500
        %v502 = vrot.slane %v364, %v501
        %v503 = vlaneseq
        %v504 = vshrl.u32 %v503, 7
        %v505 = vsub.s32 5, %v504
        %v506 = vrot.slane %v364, %v505
        %v507 = vlaneseq
        %v508 = vshrl.u32 %v507, 7
        %v509 = vsub.s32 1, %v508
        %v510 = vrot.slane %v365, %v509
        %v511 = vlaneseq
        %v512 = vshrl.u32 %v511, 7
        %v513 = vsub.s32 5, %v512
        %v514 = vrot.slane %v365, %v513
        %v515 = vlaneseq
        %v516 = vshrl.u32 %v515, 7
        %v517 = vsub.s32 1, %v516
        %v518 = vrot.slane %v366, %v517
        %v519 = vlaneseq
        %v520 = vshrl.u32 %v519, 7
        %v521 = vsub.s32 5, %v520
        %v522 = vrot.slane %v366, %v521
        %v523 = vlaneseq
        %v524 = vshrl.u32 %v523, 7
        %v525 = vsub.s32 1, %v524
        %v526 = vrot.slane %v367, %v525
        %v534 = vlaneseq
        %v535 = vshrl.u32 %v534, 7
        %v536 = vsub.s32 1, %v535
        %v537 = vrot.slane %v502, %v536
        %v538 = vlaneseq
        %v539 = vshrl.u32 %v538, 7
        %v540 = vsub.s32 1, %v539
        %v541 = vrot.slane %v506, %v540
        %v542 = vlaneseq
        %v543 = vshrl.u32 %v542, 7
        %v544 = vsub.s32 1, %v543
        %v545 = vrot.slane %v510, %v544
        %v546 = vlaneseq
        %v547 = vshrl.u32 %v546, 7
        %v548 = vsub.s32 1, %v547
        %v549 = vrot.slane %v514, %v548
        %v550 = vlaneseq
        %v551 = vshrl.u32 %v550, 7
        %v552 = vsub.s32 1, %v551
        %v553 = vrot.slane %v518, %v552
        %v554 = vlaneseq
        %v555 = vshrl.u32 %v554, 7
        %v556 = vsub.s32 1, %v555
        %v557 = vrot.slane %v522, %v556
        %v558 = vlaneseq
        %v559 = vshrl.u32 %v558, 7
        %v560 = vsub.s32 1, %v559
        %v561 = vrot.slane %v526, %v560
        %v562 = vmul.f32 %v485, %v537
        %v563 = vmul.f32 %v485, %v541
        %v564 = vmul.f32 %v485, %v545
        %v565 = vmul.f32 %v485, %v549
        %v566 = vmul.f32 %v485, %v553
        %v567 = vmul.f32 %v485, %v557
        %v568 = vmul.f32 %v485, %v561
        %v569 = vmul.f32 %v489, %v537
        %v570 = vmul.f32 %v489, %v541
        %v571 = vmul.f32 %v489, %v545
        %v572 = vmul.f32 %v489, %v549
        %v573 = vmul.f32 %v489, %v553
        %v574 = vmul.f32 %v489, %v557
        %v575 = vmul.f32 %v489, %v561
        %v576 = vmul.f32 %v493, %v537
        %v577 = vmul.f32 %v493, %v541
        %v578 = vmul.f32 %v493, %v545
        %v579 = vmul.f32 %v493, %v549
        %v580 = vmul.f32 %v493, %v553
        %v581 = vmul.f32 %v493, %v557
        %v582 = vmul.f32 %v493, %v561
        %v583 = vmul.f32 %v497, %v537
        %v584 = vmul.f32 %v497, %v541
        %v585 = vmul.f32 %v497, %v545
        %v586 = vmul.f32 %v497, %v549
        %v587 = vmul.f32 %v497, %v553
        %v588 = vmul.f32 %v497, %v557
        %v589 = vmul.f32 %v497, %v561
        %v590 = vadd.f32 %v455, %v562
        %v591 = vadd.f32 %v456, %v563
        %v592 = vadd.f32 %v457, %v564
        %v593 = vadd.f32 %v458, %v565
        %v594 = vadd.f32 %v459, %v566
        %v595 = vadd.f32 %v460, %v567
        %v596 = vadd.f32 %v461, %v568
        %v597 = vadd.f32 %v462, %v569
        %v598 = vadd.f32 %v463, %v570
        %v599 = vadd.f32 %v464, %v571
        %v600 = vadd.f32 %v465, %v572
        %v601 = vadd.f32 %v466, %v573
        %v602 = vadd.f32 %v467, %v574
        %v603 = vadd.f32 %v468, %v575
        %v604 = vadd.f32 %v469, %v576
        %v605 = vadd.f32 %v470, %v577
        %v606 = vadd.f32 %v471, %v578
        %v607 = vadd.f32 %v472, %v579
        %v608 = vadd.f32 %v473, %v580
        %v609 = vadd.f32 %v474, %v581
        %v610 = vadd.f32 %v475, %v582
        %v611 = vadd.f32 %v476, %v583
        %v612 = vadd.f32 %v477, %v584
        %v613 = vadd.f32 %v478, %v585
        %v614 = vadd.f32 %v479, %v586
        %v615 = vadd.f32 %v480, %v587
        %v616 = vadd.f32 %v481, %v588
        %v617 = vadd.f32 %v482, %v589
        %618 = vset.pattern.permute.xlu0 2
        %619 = vperm.xlu0 %618, %v356
        %v620 = vpop.permute.xlu0 %619
        %622 = vset.pattern.permute.xlu0 2
        %623 = vperm.xlu0 %622, %v357
        %v624 = vpop.permute.xlu0 %623
        %626 = vset.pattern.permute.xlu0 2
        %627 = vperm.xlu0 %626, %v358
        %v628 = vpop.permute.xlu0 %627
        %630 = vset.pattern.permute.xlu0 2
        %631 = vperm.xlu0 %630, %v359
        %v632 = vpop.permute.xlu0 %631
        %v634 = vlaneseq
        %v635 = vshrl.u32 %v634, 7
        %v636 = vsub.s32 2, %v635
        %v637 = vrot.slane %v364, %v636
        %v638 = vlaneseq
        %v639 = vshrl.u32 %v638, 7
        %v640 = vsub.s32 6, %v639
        %v641 = vrot.slane %v364, %v640
        %v642 = vlaneseq
        %v643 = vshrl.u32 %v642, 7
        %v644 = vsub.s32 2, %v643
        %v645 = vrot.slane %v365, %v644
        %v646 = vlaneseq
        %v647 = vshrl.u32 %v646, 7
        %v648 = vsub.s32 6, %v647
        %v649 = vrot.slane %v365, %v648
        %v650 = vlaneseq
        %v651 = vshrl.u32 %v650, 7
        %v652 = vsub.s32 2, %v651
        %v653 = vrot.slane %v366, %v652
        %v654 = vlaneseq
        %v655 = vshrl.u32 %v654, 7
        %v656 = vsub.s32 6, %v655
        %v657 = vrot.slane %v366, %v656
        %v658 = vlaneseq
        %v659 = vshrl.u32 %v658, 7
        %v660 = vsub.s32 2, %v659
        %v661 = vrot.slane %v367, %v660
        %v669 = vlaneseq
        %v670 = vshrl.u32 %v669, 7
        %v671 = vsub.s32 2, %v670
        %v672 = vrot.slane %v637, %v671
        %v673 = vlaneseq
        %v674 = vshrl.u32 %v673, 7
        %v675 = vsub.s32 2, %v674
        %v676 = vrot.slane %v641, %v675
        %v677 = vlaneseq
        %v678 = vshrl.u32 %v677, 7
        %v679 = vsub.s32 2, %v678
        %v680 = vrot.slane %v645, %v679
        %v681 = vlaneseq
        %v682 = vshrl.u32 %v681, 7
        %v683 = vsub.s32 2, %v682
        %v684 = vrot.slane %v649, %v683
        %v685 = vlaneseq
        %v686 = vshrl.u32 %v685, 7
        %v687 = vsub.s32 2, %v686
        %v688 = vrot.slane %v653, %v687
        %v689 = vlaneseq
        %v690 = vshrl.u32 %v689, 7
        %v691 = vsub.s32 2, %v690
        %v692 = vrot.slane %v657, %v691
        %v693 = vlaneseq
        %v694 = vshrl.u32 %v693, 7
        %v695 = vsub.s32 2, %v694
        %v696 = vrot.slane %v661, %v695
        %v697 = vmul.f32 %v620, %v672
        %v698 = vmul.f32 %v620, %v676
        %v699 = vmul.f32 %v620, %v680
        %v700 = vmul.f32 %v620, %v684
        %v701 = vmul.f32 %v620, %v688
        %v702 = vmul.f32 %v620, %v692
        %v703 = vmul.f32 %v620, %v696
        %v704 = vmul.f32 %v624, %v672
        %v705 = vmul.f32 %v624, %v676
        %v706 = vmul.f32 %v624, %v680
        %v707 = vmul.f32 %v624, %v684
        %v708 = vmul.f32 %v624, %v688
        %v709 = vmul.f32 %v624, %v692
        %v710 = vmul.f32 %v624, %v696
        %v711 = vmul.f32 %v628, %v672
        %v712 = vmul.f32 %v628, %v676
        %v713 = vmul.f32 %v628, %v680
        %v714 = vmul.f32 %v628, %v684
        %v715 = vmul.f32 %v628, %v688
        %v716 = vmul.f32 %v628, %v692
        %v717 = vmul.f32 %v628, %v696
        %v718 = vmul.f32 %v632, %v672
        %v719 = vmul.f32 %v632, %v676
        %v720 = vmul.f32 %v632, %v680
        %v721 = vmul.f32 %v632, %v684
        %v722 = vmul.f32 %v632, %v688
        %v723 = vmul.f32 %v632, %v692
        %v724 = vmul.f32 %v632, %v696
        %v725 = vadd.f32 %v590, %v697
        %v726 = vadd.f32 %v591, %v698
        %v727 = vadd.f32 %v592, %v699
        %v728 = vadd.f32 %v593, %v700
        %v729 = vadd.f32 %v594, %v701
        %v730 = vadd.f32 %v595, %v702
        %v731 = vadd.f32 %v596, %v703
        %v732 = vadd.f32 %v597, %v704
        %v733 = vadd.f32 %v598, %v705
        %v734 = vadd.f32 %v599, %v706
        %v735 = vadd.f32 %v600, %v707
        %v736 = vadd.f32 %v601, %v708
        %v737 = vadd.f32 %v602, %v709
        %v738 = vadd.f32 %v603, %v710
        %v739 = vadd.f32 %v604, %v711
        %v740 = vadd.f32 %v605, %v712
        %v741 = vadd.f32 %v606, %v713
        %v742 = vadd.f32 %v607, %v714
        %v743 = vadd.f32 %v608, %v715
        %v744 = vadd.f32 %v609, %v716
        %v745 = vadd.f32 %v610, %v717
        %v746 = vadd.f32 %v611, %v718
        %v747 = vadd.f32 %v612, %v719
        %v748 = vadd.f32 %v613, %v720
        %v749 = vadd.f32 %v614, %v721
        %v750 = vadd.f32 %v615, %v722
        %v751 = vadd.f32 %v616, %v723
        %v752 = vadd.f32 %v617, %v724
        %754 = vset.pattern.permute.xlu0 0
        %755 = vperm.xlu0 %754, %v360
        %v756 = vpop.permute.xlu0 %755
        %759 = vset.pattern.permute.xlu0 0
        %760 = vperm.xlu0 %759, %v361
        %v761 = vpop.permute.xlu0 %760
        %764 = vset.pattern.permute.xlu0 0
        %765 = vperm.xlu0 %764, %v362
        %v766 = vpop.permute.xlu0 %765
        %769 = vset.pattern.permute.xlu0 0
        %770 = vperm.xlu0 %769, %v363
        %v771 = vpop.permute.xlu0 %770
        %v773 = vadd.f32 %v725, %v756
        %v774 = vadd.f32 %v726, %v756
        %v775 = vadd.f32 %v727, %v756
        %v776 = vadd.f32 %v728, %v756
        %v777 = vadd.f32 %v729, %v756
        %v778 = vadd.f32 %v730, %v756
        %v779 = vadd.f32 %v731, %v756
        %v780 = vadd.f32 %v732, %v761
        %v781 = vadd.f32 %v733, %v761
        %v782 = vadd.f32 %v734, %v761
        %v783 = vadd.f32 %v735, %v761
        %v784 = vadd.f32 %v736, %v761
        %v785 = vadd.f32 %v737, %v761
        %v786 = vadd.f32 %v738, %v761
        %v787 = vadd.f32 %v739, %v766
        %v788 = vadd.f32 %v740, %v766
        %v789 = vadd.f32 %v741, %v766
        %v790 = vadd.f32 %v742, %v766
        %v791 = vadd.f32 %v743, %v766
        %v792 = vadd.f32 %v744, %v766
        %v793 = vadd.f32 %v745, %v766
        %v794 = vadd.f32 %v746, %v771
        %v795 = vadd.f32 %v747, %v771
        %v796 = vadd.f32 %v748, %v771
        %v797 = vadd.f32 %v749, %v771
        %v798 = vadd.f32 %v750, %v771
        %v799 = vadd.f32 %v751, %v771
        %v800 = vadd.f32 %v752, %v771
        %v801 = vmax.f32 %v773, 0.0
        %v802 = vmax.f32 %v774, 0.0
        %v803 = vmax.f32 %v775, 0.0
        %v804 = vmax.f32 %v776, 0.0
        %v805 = vmax.f32 %v777, 0.0
        %v806 = vmax.f32 %v778, 0.0
        %v807 = vmax.f32 %v779, 0.0
        %v808 = vmax.f32 %v780, 0.0
        %v809 = vmax.f32 %v781, 0.0
        %v810 = vmax.f32 %v782, 0.0
        %v811 = vmax.f32 %v783, 0.0
        %v812 = vmax.f32 %v784, 0.0
        %v813 = vmax.f32 %v785, 0.0
        %v814 = vmax.f32 %v786, 0.0
        %v815 = vmax.f32 %v787, 0.0
        %v816 = vmax.f32 %v788, 0.0
        %v817 = vmax.f32 %v789, 0.0
        %v818 = vmax.f32 %v790, 0.0
        %v819 = vmax.f32 %v791, 0.0
        %v820 = vmax.f32 %v792, 0.0
        %v821 = vmax.f32 %v793, 0.0
        %v822 = vmax.f32 %v794, 0.0
        %v823 = vmax.f32 %v795, 0.0
        %v824 = vmax.f32 %v796, 0.0
        %v825 = vmax.f32 %v797, 0.0
        %v826 = vmax.f32 %v798, 0.0
        %v827 = vmax.f32 %v799, 0.0
        %v828 = vmax.f32 %v800, 0.0
        %v829 = vadd.f32 %v801, %v808
        %v830 = vadd.f32 %v829, %v815
        %v831 = vadd.f32 %v830, %v822
        %v832 = vrot.slane %v831, 4
        %v833 = vadd.f32 %v831, %v832
        %v834 = vrot.slane %v833, 2
        %v835 = vadd.f32 %v833, %v834
        %v836 = vrot.slane %v835, 1
        %v837 = vadd.f32 %v835, %v836
        %v838 = vadd.f32 %v802, %v809
        %v839 = vadd.f32 %v838, %v816
        %v840 = vadd.f32 %v839, %v823
        %v841 = vrot.slane %v840, 4
        %v842 = vadd.f32 %v840, %v841
        %v843 = vrot.slane %v842, 2
        %v844 = vadd.f32 %v842, %v843
        %v845 = vrot.slane %v844, 1
        %v846 = vadd.f32 %v844, %v845
        %v847 = vadd.f32 %v803, %v810
        %v848 = vadd.f32 %v847, %v817
        %v849 = vadd.f32 %v848, %v824
        %v850 = vrot.slane %v849, 4
        %v851 = vadd.f32 %v849, %v850
        %v852 = vrot.slane %v851, 2
        %v853 = vadd.f32 %v851, %v852
        %v854 = vrot.slane %v853, 1
        %v855 = vadd.f32 %v853, %v854
        %v856 = vadd.f32 %v804, %v811
        %v857 = vadd.f32 %v856, %v818
        %v858 = vadd.f32 %v857, %v825
        %v859 = vrot.slane %v858, 4
        %v860 = vadd.f32 %v858, %v859
        %v861 = vrot.slane %v860, 2
        %v862 = vadd.f32 %v860, %v861
        %v863 = vrot.slane %v862, 1
        %v864 = vadd.f32 %v862, %v863
        %v865 = vadd.f32 %v805, %v812
        %v866 = vadd.f32 %v865, %v819
        %v867 = vadd.f32 %v866, %v826
        %v868 = vrot.slane %v867, 4
        %v869 = vadd.f32 %v867, %v868
        %v870 = vrot.slane %v869, 2
        %v871 = vadd.f32 %v869, %v870
        %v872 = vrot.slane %v871, 1
        %v873 = vadd.f32 %v871, %v872
        %v874 = vadd.f32 %v806, %v813
        %v875 = vadd.f32 %v874, %v820
        %v876 = vadd.f32 %v875, %v827
        %v877 = vrot.slane %v876, 4
        %v878 = vadd.f32 %v876, %v877
        %v879 = vrot.slane %v878, 2
        %v880 = vadd.f32 %v878, %v879
        %v881 = vrot.slane %v880, 1
        %v882 = vadd.f32 %v880, %v881
        %vm883 = vcmask 261120
        %v884 = vsel %vm883, %v807, 0.0
        %v885 = vsel %vm883, %v814, 0.0
        %v886 = vadd.f32 %v884, %v885
        %v887 = vsel %vm883, %v821, 0.0
        %v888 = vadd.f32 %v886, %v887
        %v889 = vsel %vm883, %v828, 0.0
        %v890 = vadd.f32 %v888, %v889
        %v891 = vrot.slane %v890, 4
        %v892 = vadd.f32 %v890, %v891
        %v893 = vrot.slane %v892, 2
        %v894 = vadd.f32 %v892, %v893
        %v895 = vrot.slane %v894, 1
        %v896 = vadd.f32 %v894, %v895
        %v897 = vrcp.pop 32.0
        %v898 = vmul.f32 %v837, %v897
        %v899 = vmul.f32 %v846, %v897
        %v900 = vmul.f32 %v855, %v897
        %v901 = vmul.f32 %v864, %v897
        %v902 = vmul.f32 %v873, %v897
        %v903 = vmul.f32 %v882, %v897
        %v904 = vmul.f32 %v896, %v897
        %v905 = vsub.f32 0.0, %v898
        %v906 = vsub.f32 0.0, %v899
        %v907 = vsub.f32 0.0, %v900
        %v908 = vsub.f32 0.0, %v901
        %v909 = vsub.f32 0.0, %v902
        %v910 = vsub.f32 0.0, %v903
        %v911 = vsub.f32 0.0, %v904
        %v912 = vmul.f32 %v905, 1.442695
        %v913 = vpow.pop %v912
        %v914 = vmul.f32 %v906, 1.442695
        %v915 = vpow.pop %v914
        %v916 = vmul.f32 %v907, 1.442695
        %v917 = vpow.pop %v916
        %v918 = vmul.f32 %v908, 1.442695
        %v919 = vpow.pop %v918
        %v920 = vmul.f32 %v909, 1.442695
        %v921 = vpow.pop %v920
        %v922 = vmul.f32 %v910, 1.442695
        %v923 = vpow.pop %v922
        %v924 = vmul.f32 %v911, 1.442695
        %v925 = vpow.pop %v924
        %v926 = vadd.f32 %v913, 1.0
        %v927 = vadd.f32 %v915, 1.0
        %v928 = vadd.f32 %v917, 1.0
        %v929 = vadd.f32 %v919, 1.0
        %v930 = vadd.f32 %v921, 1.0
        %v931 = vadd.f32 %v923, 1.0
        %v932 = vadd.f32 %v925, 1.0
        %v933 = vrcp.pop %v926
        %v934 = vmul.f32 1.0, %v933
        %v935 = vrcp.pop %v927
        %v936 = vmul.f32 1.0, %v935
        %v937 = vrcp.pop %v928
        %v938 = vmul.f32 1.0, %v937
        %v939 = vrcp.pop %v929
        %v940 = vmul.f32 1.0, %v939
        %v941 = vrcp.pop %v930
        %v942 = vmul.f32 1.0, %v941
        %v943 = vrcp.pop %v931
        %v944 = vmul.f32 1.0, %v943
        %v945 = vrcp.pop %v932
        %v946 = vmul.f32 1.0, %v945
        %v954 = vcombine.low %v934, %v936
        %v955 = vcombine.low %v938, %v940
        %v956 = vcombine.low %v942, %v944
        %v958 = vunpack.c.l.s4 1966171168
        %v959 = vunpack.c.0.s8 %v958
        %v960 = vlaneseq
        %v961 = vshrl.u32 %v960, 7
        %v962 = vsub.s32 %v959, %v961
        %v963 = vrot.slane %v954, %v962
        %v965 = vunpack.c.l.s4 1966171168
        %v966 = vunpack.c.0.s8 %v965
        %v967 = vlaneseq
        %v968 = vshrl.u32 %v967, 7
        %v969 = vsub.s32 %v966, %v968
        %v970 = vrot.slane %v955, %v969
        %v972 = vunpack.c.l.s4 1966171168
        %v973 = vunpack.c.0.s8 %v972
        %v974 = vlaneseq
        %v975 = vshrl.u32 %v974, 7
        %v976 = vsub.s32 %v973, %v975
        %v977 = vrot.slane %v956, %v976
        %v979 = vunpack.c.l.s4 1966171168
        %v980 = vunpack.c.0.s8 %v979
        %v981 = vlaneseq
        %v982 = vshrl.u32 %v981, 7
        %v983 = vsub.s32 %v980, %v982
        %v984 = vrot.slane %v946, %v983
        %v985 = vcombine.low %v963, %v970
        %v986 = vcombine.low %v977, %v984
        %v988 = vunpack.c.l.s4 1966171168
        %v989 = vunpack.c.0.s8 %v988
        %v990 = vlaneseq
        %v991 = vshrl.u32 %v990, 7
        %v992 = vsub.s32 %v989, %v991
        %v993 = vrot.slane %v985, %v992
        %v995 = vunpack.c.l.s4 1966171168
        %v996 = vunpack.c.0.s8 %v995
        %v997 = vlaneseq
        %v998 = vshrl.u32 %v997, 7
        %v999 = vsub.s32 %v996, %v998
        %v1000 = vrot.slane %v986, %v999
        %v1001 = vcombine.low %v993, %v1000
        %v1003 = vlaneseq
        %vm1004 = vcmp.ge.s32.totalorder %v1003, 0
        %vm1005 = vcmp.lt.s32.totalorder %v1003, 800
        %vm1006 = vmand %vm1004, %vm1005
        %1007 = vst.msk [vmem:[%s340] ss:$2 sm:$0x7f] %vm1006, %v1001
        %v1008 = vadd.f32 %v801, %v802
        %v1009 = vadd.f32 %v1008, %v803
        %v1010 = vadd.f32 %v1009, %v804
        %v1011 = vadd.f32 %v1010, %v805
        %v1012 = vadd.f32 %v1011, %v806
        %v1013 = vadd.f32 %v1012, %v884
        %1014 = vadd.xlane.f32.xlu0 %v1013
        %v1015 = vpop.xlane.xlu0 %1014
        %v1016 = vadd.f32 %v808, %v809
        %v1017 = vadd.f32 %v1016, %v810
        %v1018 = vadd.f32 %v1017, %v811
        %v1019 = vadd.f32 %v1018, %v812
        %v1020 = vadd.f32 %v1019, %v813
        %v1021 = vadd.f32 %v1020, %v885
        %1022 = vadd.xlane.f32.xlu0 %v1021
        %v1023 = vpop.xlane.xlu0 %1022
        %v1024 = vadd.f32 %v815, %v816
        %v1025 = vadd.f32 %v1024, %v817
        %v1026 = vadd.f32 %v1025, %v818
        %v1027 = vadd.f32 %v1026, %v819
        %v1028 = vadd.f32 %v1027, %v820
        %v1029 = vadd.f32 %v1028, %v887
        %1030 = vadd.xlane.f32.xlu0 %v1029
        %v1031 = vpop.xlane.xlu0 %1030
        %v1032 = vadd.f32 %v822, %v823
        %v1033 = vadd.f32 %v1032, %v824
        %v1034 = vadd.f32 %v1033, %v825
        %v1035 = vadd.f32 %v1034, %v826
        %v1036 = vadd.f32 %v1035, %v827
        %v1037 = vadd.f32 %v1036, %v889
        %1038 = vadd.xlane.f32.xlu0 %v1037
        %v1039 = vpop.xlane.xlu0 %1038
        %v1040 = vmax.f32 %v801, %v802
        %v1041 = vmax.f32 %v1040, %v803
        %v1042 = vmax.f32 %v1041, %v804
        %v1043 = vmax.f32 %v1042, %v805
        %v1044 = vmax.f32 %v1043, %v806
        %v1045 = vsel %vm883, %v807, -inf
        %v1046 = vmax.f32 %v1044, %v1045
        %1047 = vmax.xlane.f32.xlu0 %v1046
        %v1048 = vpop.xlane.xlu0 %1047
        %v1049 = vmax.f32 %v808, %v809
        %v1050 = vmax.f32 %v1049, %v810
        %v1051 = vmax.f32 %v1050, %v811
        %v1052 = vmax.f32 %v1051, %v812
        %v1053 = vmax.f32 %v1052, %v813
        %v1054 = vsel %vm883, %v814, -inf
        %v1055 = vmax.f32 %v1053, %v1054
        %1056 = vmax.xlane.f32.xlu0 %v1055
        %v1057 = vpop.xlane.xlu0 %1056
        %v1058 = vmax.f32 %v815, %v816
        %v1059 = vmax.f32 %v1058, %v817
        %v1060 = vmax.f32 %v1059, %v818
        %v1061 = vmax.f32 %v1060, %v819
        %v1062 = vmax.f32 %v1061, %v820
        %v1063 = vsel %vm883, %v821, -inf
        %v1064 = vmax.f32 %v1062, %v1063
        %1065 = vmax.xlane.f32.xlu0 %v1064
        %v1066 = vpop.xlane.xlu0 %1065
        %v1067 = vmax.f32 %v822, %v823
        %v1068 = vmax.f32 %v1067, %v824
        %v1069 = vmax.f32 %v1068, %v825
        %v1070 = vmax.f32 %v1069, %v826
        %v1071 = vmax.f32 %v1070, %v827
        %v1072 = vsel %vm883, %v828, -inf
        %v1073 = vmax.f32 %v1071, %v1072
        %1074 = vmax.xlane.f32.xlu0 %v1073
        %v1075 = vpop.xlane.xlu0 %1074
        %s1076 = scalar_lea.vmem %s345, 28
        %v1077 = vld [vmem:[%s1076] sm:$0x77]
        %v1078 = vld [vmem:[%s1076 + $0x8] sm:$0x77]
        %v1079 = vld [vmem:[%s1076 + $0x10] sm:$0x77]
        %v1080 = vld [vmem:[%s1076 + $0x18] sm:$0x7]
        %v1085 = vlaneseq
        %v1086 = vshrl.u32 %v1085, 7
        %v1087 = vsub.s32 0, %v1086
        %v1088 = vrot.slane %v1077, %v1087
        %v1089 = vlaneseq
        %v1090 = vshrl.u32 %v1089, 7
        %v1091 = vsub.s32 4, %v1090
        %v1092 = vrot.slane %v1077, %v1091
        %v1093 = vlaneseq
        %v1094 = vshrl.u32 %v1093, 7
        %v1095 = vsub.s32 0, %v1094
        %v1096 = vrot.slane %v1078, %v1095
        %v1097 = vlaneseq
        %v1098 = vshrl.u32 %v1097, 7
        %v1099 = vsub.s32 4, %v1098
        %v1100 = vrot.slane %v1078, %v1099
        %v1101 = vlaneseq
        %v1102 = vshrl.u32 %v1101, 7
        %v1103 = vsub.s32 0, %v1102
        %v1104 = vrot.slane %v1079, %v1103
        %v1105 = vlaneseq
        %v1106 = vshrl.u32 %v1105, 7
        %v1107 = vsub.s32 4, %v1106
        %v1108 = vrot.slane %v1079, %v1107
        %v1109 = vlaneseq
        %v1110 = vshrl.u32 %v1109, 7
        %v1111 = vsub.s32 0, %v1110
        %v1112 = vrot.slane %v1080, %v1111
        %v1120 = vlaneseq
        %v1121 = vshrl.u32 %v1120, 7
        %v1122 = vsub.s32 0, %v1121
        %v1123 = vrot.slane %v1088, %v1122
        %v1124 = vlaneseq
        %v1125 = vshrl.u32 %v1124, 7
        %v1126 = vsub.s32 0, %v1125
        %v1127 = vrot.slane %v1092, %v1126
        %v1128 = vlaneseq
        %v1129 = vshrl.u32 %v1128, 7
        %v1130 = vsub.s32 0, %v1129
        %v1131 = vrot.slane %v1096, %v1130
        %v1132 = vlaneseq
        %v1133 = vshrl.u32 %v1132, 7
        %v1134 = vsub.s32 0, %v1133
        %v1135 = vrot.slane %v1100, %v1134
        %v1136 = vlaneseq
        %v1137 = vshrl.u32 %v1136, 7
        %v1138 = vsub.s32 0, %v1137
        %v1139 = vrot.slane %v1104, %v1138
        %v1140 = vlaneseq
        %v1141 = vshrl.u32 %v1140, 7
        %v1142 = vsub.s32 0, %v1141
        %v1143 = vrot.slane %v1108, %v1142
        %v1144 = vlaneseq
        %v1145 = vshrl.u32 %v1144, 7
        %v1146 = vsub.s32 0, %v1145
        %v1147 = vrot.slane %v1112, %v1146
        %v1148 = vmul.f32 %v371, %v1123
        %v1149 = vmul.f32 %v371, %v1127
        %v1150 = vmul.f32 %v371, %v1131
        %v1151 = vmul.f32 %v371, %v1135
        %v1152 = vmul.f32 %v371, %v1139
        %v1153 = vmul.f32 %v371, %v1143
        %v1154 = vmul.f32 %v371, %v1147
        %v1155 = vmul.f32 %v376, %v1123
        %v1156 = vmul.f32 %v376, %v1127
        %v1157 = vmul.f32 %v376, %v1131
        %v1158 = vmul.f32 %v376, %v1135
        %v1159 = vmul.f32 %v376, %v1139
        %v1160 = vmul.f32 %v376, %v1143
        %v1161 = vmul.f32 %v376, %v1147
        %v1162 = vmul.f32 %v381, %v1123
        %v1163 = vmul.f32 %v381, %v1127
        %v1164 = vmul.f32 %v381, %v1131
        %v1165 = vmul.f32 %v381, %v1135
        %v1166 = vmul.f32 %v381, %v1139
        %v1167 = vmul.f32 %v381, %v1143
        %v1168 = vmul.f32 %v381, %v1147
        %v1169 = vmul.f32 %v386, %v1123
        %v1170 = vmul.f32 %v386, %v1127
        %v1171 = vmul.f32 %v386, %v1131
        %v1172 = vmul.f32 %v386, %v1135
        %v1173 = vmul.f32 %v386, %v1139
        %v1174 = vmul.f32 %v386, %v1143
        %v1175 = vmul.f32 %v386, %v1147
        %v1176 = vlaneseq
        %v1177 = vshrl.u32 %v1176, 7
        %v1178 = vsub.s32 1, %v1177
        %v1179 = vrot.slane %v1077, %v1178
        %v1180 = vlaneseq
        %v1181 = vshrl.u32 %v1180, 7
        %v1182 = vsub.s32 5, %v1181
        %v1183 = vrot.slane %v1077, %v1182
        %v1184 = vlaneseq
        %v1185 = vshrl.u32 %v1184, 7
        %v1186 = vsub.s32 1, %v1185
        %v1187 = vrot.slane %v1078, %v1186
        %v1188 = vlaneseq
        %v1189 = vshrl.u32 %v1188, 7
        %v1190 = vsub.s32 5, %v1189
        %v1191 = vrot.slane %v1078, %v1190
        %v1192 = vlaneseq
        %v1193 = vshrl.u32 %v1192, 7
        %v1194 = vsub.s32 1, %v1193
        %v1195 = vrot.slane %v1079, %v1194
        %v1196 = vlaneseq
        %v1197 = vshrl.u32 %v1196, 7
        %v1198 = vsub.s32 5, %v1197
        %v1199 = vrot.slane %v1079, %v1198
        %v1200 = vlaneseq
        %v1201 = vshrl.u32 %v1200, 7
        %v1202 = vsub.s32 1, %v1201
        %v1203 = vrot.slane %v1080, %v1202
        %v1211 = vlaneseq
        %v1212 = vshrl.u32 %v1211, 7
        %v1213 = vsub.s32 1, %v1212
        %v1214 = vrot.slane %v1179, %v1213
        %v1215 = vlaneseq
        %v1216 = vshrl.u32 %v1215, 7
        %v1217 = vsub.s32 1, %v1216
        %v1218 = vrot.slane %v1183, %v1217
        %v1219 = vlaneseq
        %v1220 = vshrl.u32 %v1219, 7
        %v1221 = vsub.s32 1, %v1220
        %v1222 = vrot.slane %v1187, %v1221
        %v1223 = vlaneseq
        %v1224 = vshrl.u32 %v1223, 7
        %v1225 = vsub.s32 1, %v1224
        %v1226 = vrot.slane %v1191, %v1225
        %v1227 = vlaneseq
        %v1228 = vshrl.u32 %v1227, 7
        %v1229 = vsub.s32 1, %v1228
        %v1230 = vrot.slane %v1195, %v1229
        %v1231 = vlaneseq
        %v1232 = vshrl.u32 %v1231, 7
        %v1233 = vsub.s32 1, %v1232
        %v1234 = vrot.slane %v1199, %v1233
        %v1235 = vlaneseq
        %v1236 = vshrl.u32 %v1235, 7
        %v1237 = vsub.s32 1, %v1236
        %v1238 = vrot.slane %v1203, %v1237
        %v1239 = vmul.f32 %v485, %v1214
        %v1240 = vmul.f32 %v485, %v1218
        %v1241 = vmul.f32 %v485, %v1222
        %v1242 = vmul.f32 %v485, %v1226
        %v1243 = vmul.f32 %v485, %v1230
        %v1244 = vmul.f32 %v485, %v1234
        %v1245 = vmul.f32 %v485, %v1238
        %v1246 = vmul.f32 %v489, %v1214
        %v1247 = vmul.f32 %v489, %v1218
        %v1248 = vmul.f32 %v489, %v1222
        %v1249 = vmul.f32 %v489, %v1226
        %v1250 = vmul.f32 %v489, %v1230
        %v1251 = vmul.f32 %v489, %v1234
        %v1252 = vmul.f32 %v489, %v1238
        %v1253 = vmul.f32 %v493, %v1214
        %v1254 = vmul.f32 %v493, %v1218
        %v1255 = vmul.f32 %v493, %v1222
        %v1256 = vmul.f32 %v493, %v1226
        %v1257 = vmul.f32 %v493, %v1230
        %v1258 = vmul.f32 %v493, %v1234
        %v1259 = vmul.f32 %v493, %v1238
        %v1260 = vmul.f32 %v497, %v1214
        %v1261 = vmul.f32 %v497, %v1218
        %v1262 = vmul.f32 %v497, %v1222
        %v1263 = vmul.f32 %v497, %v1226
        %v1264 = vmul.f32 %v497, %v1230
        %v1265 = vmul.f32 %v497, %v1234
        %v1266 = vmul.f32 %v497, %v1238
        %v1267 = vadd.f32 %v1148, %v1239
        %v1268 = vadd.f32 %v1149, %v1240
        %v1269 = vadd.f32 %v1150, %v1241
        %v1270 = vadd.f32 %v1151, %v1242
        %v1271 = vadd.f32 %v1152, %v1243
        %v1272 = vadd.f32 %v1153, %v1244
        %v1273 = vadd.f32 %v1154, %v1245
        %v1274 = vadd.f32 %v1155, %v1246
        %v1275 = vadd.f32 %v1156, %v1247
        %v1276 = vadd.f32 %v1157, %v1248
        %v1277 = vadd.f32 %v1158, %v1249
        %v1278 = vadd.f32 %v1159, %v1250
        %v1279 = vadd.f32 %v1160, %v1251
        %v1280 = vadd.f32 %v1161, %v1252
        %v1281 = vadd.f32 %v1162, %v1253
        %v1282 = vadd.f32 %v1163, %v1254
        %v1283 = vadd.f32 %v1164, %v1255
        %v1284 = vadd.f32 %v1165, %v1256
        %v1285 = vadd.f32 %v1166, %v1257
        %v1286 = vadd.f32 %v1167, %v1258
        %v1287 = vadd.f32 %v1168, %v1259
        %v1288 = vadd.f32 %v1169, %v1260
        %v1289 = vadd.f32 %v1170, %v1261
        %v1290 = vadd.f32 %v1171, %v1262
        %v1291 = vadd.f32 %v1172, %v1263
        %v1292 = vadd.f32 %v1173, %v1264
        %v1293 = vadd.f32 %v1174, %v1265
        %v1294 = vadd.f32 %v1175, %v1266
        %v1295 = vlaneseq
        %v1296 = vshrl.u32 %v1295, 7
        %v1297 = vsub.s32 2, %v1296
        %v1298 = vrot.slane %v1077, %v1297
        %v1299 = vlaneseq
        %v1300 = vshrl.u32 %v1299, 7
        %v1301 = vsub.s32 6, %v1300
        %v1302 = vrot.slane %v1077, %v1301
        %v1303 = vlaneseq
        %v1304 = vshrl.u32 %v1303, 7
        %v1305 = vsub.s32 2, %v1304
        %v1306 = vrot.slane %v1078, %v1305
        %v1307 = vlaneseq
        %v1308 = vshrl.u32 %v1307, 7
        %v1309 = vsub.s32 6, %v1308
        %v1310 = vrot.slane %v1078, %v1309
        %v1311 = vlaneseq
        %v1312 = vshrl.u32 %v1311, 7
        %v1313 = vsub.s32 2, %v1312
        %v1314 = vrot.slane %v1079, %v1313
        %v1315 = vlaneseq
        %v1316 = vshrl.u32 %v1315, 7
        %v1317 = vsub.s32 6, %v1316
        %v1318 = vrot.slane %v1079, %v1317
        %v1319 = vlaneseq
        %v1320 = vshrl.u32 %v1319, 7
        %v1321 = vsub.s32 2, %v1320
        %v1322 = vrot.slane %v1080, %v1321
        %v1330 = vlaneseq
        %v1331 = vshrl.u32 %v1330, 7
        %v1332 = vsub.s32 2, %v1331
        %v1333 = vrot.slane %v1298, %v1332
        %v1334 = vlaneseq
        %v1335 = vshrl.u32 %v1334, 7
        %v1336 = vsub.s32 2, %v1335
        %v1337 = vrot.slane %v1302, %v1336
        %v1338 = vlaneseq
        %v1339 = vshrl.u32 %v1338, 7
        %v1340 = vsub.s32 2, %v1339
        %v1341 = vrot.slane %v1306, %v1340
        %v1342 = vlaneseq
        %v1343 = vshrl.u32 %v1342, 7
        %v1344 = vsub.s32 2, %v1343
        %v1345 = vrot.slane %v1310, %v1344
        %v1346 = vlaneseq
        %v1347 = vshrl.u32 %v1346, 7
        %v1348 = vsub.s32 2, %v1347
        %v1349 = vrot.slane %v1314, %v1348
        %v1350 = vlaneseq
        %v1351 = vshrl.u32 %v1350, 7
        %v1352 = vsub.s32 2, %v1351
        %v1353 = vrot.slane %v1318, %v1352
        %v1354 = vlaneseq
        %v1355 = vshrl.u32 %v1354, 7
        %v1356 = vsub.s32 2, %v1355
        %v1357 = vrot.slane %v1322, %v1356
        %v1358 = vmul.f32 %v620, %v1333
        %v1359 = vmul.f32 %v620, %v1337
        %v1360 = vmul.f32 %v620, %v1341
        %v1361 = vmul.f32 %v620, %v1345
        %v1362 = vmul.f32 %v620, %v1349
        %v1363 = vmul.f32 %v620, %v1353
        %v1364 = vmul.f32 %v620, %v1357
        %v1365 = vmul.f32 %v624, %v1333
        %v1366 = vmul.f32 %v624, %v1337
        %v1367 = vmul.f32 %v624, %v1341
        %v1368 = vmul.f32 %v624, %v1345
        %v1369 = vmul.f32 %v624, %v1349
        %v1370 = vmul.f32 %v624, %v1353
        %v1371 = vmul.f32 %v624, %v1357
        %v1372 = vmul.f32 %v628, %v1333
        %v1373 = vmul.f32 %v628, %v1337
        %v1374 = vmul.f32 %v628, %v1341
        %v1375 = vmul.f32 %v628, %v1345
        %v1376 = vmul.f32 %v628, %v1349
        %v1377 = vmul.f32 %v628, %v1353
        %v1378 = vmul.f32 %v628, %v1357
        %v1379 = vmul.f32 %v632, %v1333
        %v1380 = vmul.f32 %v632, %v1337
        %v1381 = vmul.f32 %v632, %v1341
        %v1382 = vmul.f32 %v632, %v1345
        %v1383 = vmul.f32 %v632, %v1349
        %v1384 = vmul.f32 %v632, %v1353
        %v1385 = vmul.f32 %v632, %v1357
        %v1386 = vadd.f32 %v1267, %v1358
        %v1387 = vadd.f32 %v1268, %v1359
        %v1388 = vadd.f32 %v1269, %v1360
        %v1389 = vadd.f32 %v1270, %v1361
        %v1390 = vadd.f32 %v1271, %v1362
        %v1391 = vadd.f32 %v1272, %v1363
        %v1392 = vadd.f32 %v1273, %v1364
        %v1393 = vadd.f32 %v1274, %v1365
        %v1394 = vadd.f32 %v1275, %v1366
        %v1395 = vadd.f32 %v1276, %v1367
        %v1396 = vadd.f32 %v1277, %v1368
        %v1397 = vadd.f32 %v1278, %v1369
        %v1398 = vadd.f32 %v1279, %v1370
        %v1399 = vadd.f32 %v1280, %v1371
        %v1400 = vadd.f32 %v1281, %v1372
        %v1401 = vadd.f32 %v1282, %v1373
        %v1402 = vadd.f32 %v1283, %v1374
        %v1403 = vadd.f32 %v1284, %v1375
        %v1404 = vadd.f32 %v1285, %v1376
        %v1405 = vadd.f32 %v1286, %v1377
        %v1406 = vadd.f32 %v1287, %v1378
        %v1407 = vadd.f32 %v1288, %v1379
        %v1408 = vadd.f32 %v1289, %v1380
        %v1409 = vadd.f32 %v1290, %v1381
        %v1410 = vadd.f32 %v1291, %v1382
        %v1411 = vadd.f32 %v1292, %v1383
        %v1412 = vadd.f32 %v1293, %v1384
        %v1413 = vadd.f32 %v1294, %v1385
        %v1414 = vadd.f32 %v1386, %v756
        %v1415 = vadd.f32 %v1387, %v756
        %v1416 = vadd.f32 %v1388, %v756
        %v1417 = vadd.f32 %v1389, %v756
        %v1418 = vadd.f32 %v1390, %v756
        %v1419 = vadd.f32 %v1391, %v756
        %v1420 = vadd.f32 %v1392, %v756
        %v1421 = vadd.f32 %v1393, %v761
        %v1422 = vadd.f32 %v1394, %v761
        %v1423 = vadd.f32 %v1395, %v761
        %v1424 = vadd.f32 %v1396, %v761
        %v1425 = vadd.f32 %v1397, %v761
        %v1426 = vadd.f32 %v1398, %v761
        %v1427 = vadd.f32 %v1399, %v761
        %v1428 = vadd.f32 %v1400, %v766
        %v1429 = vadd.f32 %v1401, %v766
        %v1430 = vadd.f32 %v1402, %v766
        %v1431 = vadd.f32 %v1403, %v766
        %v1432 = vadd.f32 %v1404, %v766
        %v1433 = vadd.f32 %v1405, %v766
        %v1434 = vadd.f32 %v1406, %v766
        %v1435 = vadd.f32 %v1407, %v771
        %v1436 = vadd.f32 %v1408, %v771
        %v1437 = vadd.f32 %v1409, %v771
        %v1438 = vadd.f32 %v1410, %v771
        %v1439 = vadd.f32 %v1411, %v771
        %v1440 = vadd.f32 %v1412, %v771
        %v1441 = vadd.f32 %v1413, %v771
        %v1442 = vmax.f32 %v1414, 0.0
        %v1443 = vmax.f32 %v1415, 0.0
        %v1444 = vmax.f32 %v1416, 0.0
        %v1445 = vmax.f32 %v1417, 0.0
        %v1446 = vmax.f32 %v1418, 0.0
        %v1447 = vmax.f32 %v1419, 0.0
        %v1448 = vmax.f32 %v1420, 0.0
        %v1449 = vmax.f32 %v1421, 0.0
        %v1450 = vmax.f32 %v1422, 0.0
        %v1451 = vmax.f32 %v1423, 0.0
        %v1452 = vmax.f32 %v1424, 0.0
        %v1453 = vmax.f32 %v1425, 0.0
        %v1454 = vmax.f32 %v1426, 0.0
        %v1455 = vmax.f32 %v1427, 0.0
        %v1456 = vmax.f32 %v1428, 0.0
        %v1457 = vmax.f32 %v1429, 0.0
        %v1458 = vmax.f32 %v1430, 0.0
        %v1459 = vmax.f32 %v1431, 0.0
        %v1460 = vmax.f32 %v1432, 0.0
        %v1461 = vmax.f32 %v1433, 0.0
        %v1462 = vmax.f32 %v1434, 0.0
        %v1463 = vmax.f32 %v1435, 0.0
        %v1464 = vmax.f32 %v1436, 0.0
        %v1465 = vmax.f32 %v1437, 0.0
        %v1466 = vmax.f32 %v1438, 0.0
        %v1467 = vmax.f32 %v1439, 0.0
        %v1468 = vmax.f32 %v1440, 0.0
        %v1469 = vmax.f32 %v1441, 0.0
        %v1470 = vadd.f32 %v1442, %v1449
        %v1471 = vadd.f32 %v1470, %v1456
        %v1472 = vadd.f32 %v1471, %v1463
        %v1473 = vrot.slane %v1472, 4
        %v1474 = vadd.f32 %v1472, %v1473
        %v1475 = vrot.slane %v1474, 2
        %v1476 = vadd.f32 %v1474, %v1475
        %v1477 = vrot.slane %v1476, 1
        %v1478 = vadd.f32 %v1476, %v1477
        %v1479 = vadd.f32 %v1443, %v1450
        %v1480 = vadd.f32 %v1479, %v1457
        %v1481 = vadd.f32 %v1480, %v1464
        %v1482 = vrot.slane %v1481, 4
        %v1483 = vadd.f32 %v1481, %v1482
        %v1484 = vrot.slane %v1483, 2
        %v1485 = vadd.f32 %v1483, %v1484
        %v1486 = vrot.slane %v1485, 1
        %v1487 = vadd.f32 %v1485, %v1486
        %v1488 = vadd.f32 %v1444, %v1451
        %v1489 = vadd.f32 %v1488, %v1458
        %v1490 = vadd.f32 %v1489, %v1465
        %v1491 = vrot.slane %v1490, 4
        %v1492 = vadd.f32 %v1490, %v1491
        %v1493 = vrot.slane %v1492, 2
        %v1494 = vadd.f32 %v1492, %v1493
        %v1495 = vrot.slane %v1494, 1
        %v1496 = vadd.f32 %v1494, %v1495
        %v1497 = vadd.f32 %v1445, %v1452
        %v1498 = vadd.f32 %v1497, %v1459
        %v1499 = vadd.f32 %v1498, %v1466
        %v1500 = vrot.slane %v1499, 4
        %v1501 = vadd.f32 %v1499, %v1500
        %v1502 = vrot.slane %v1501, 2
        %v1503 = vadd.f32 %v1501, %v1502
        %v1504 = vrot.slane %v1503, 1
        %v1505 = vadd.f32 %v1503, %v1504
        %v1506 = vadd.f32 %v1446, %v1453
        %v1507 = vadd.f32 %v1506, %v1460
        %v1508 = vadd.f32 %v1507, %v1467
        %v1509 = vrot.slane %v1508, 4
        %v1510 = vadd.f32 %v1508, %v1509
        %v1511 = vrot.slane %v1510, 2
        %v1512 = vadd.f32 %v1510, %v1511
        %v1513 = vrot.slane %v1512, 1
        %v1514 = vadd.f32 %v1512, %v1513
        %v1515 = vadd.f32 %v1447, %v1454
        %v1516 = vadd.f32 %v1515, %v1461
        %v1517 = vadd.f32 %v1516, %v1468
        %v1518 = vrot.slane %v1517, 4
        %v1519 = vadd.f32 %v1517, %v1518
        %v1520 = vrot.slane %v1519, 2
        %v1521 = vadd.f32 %v1519, %v1520
        %v1522 = vrot.slane %v1521, 1
        %v1523 = vadd.f32 %v1521, %v1522
        %v1524 = vsel %vm883, %v1448, 0.0
        %v1525 = vsel %vm883, %v1455, 0.0
        %v1526 = vadd.f32 %v1524, %v1525
        %v1527 = vsel %vm883, %v1462, 0.0
        %v1528 = vadd.f32 %v1526, %v1527
        %v1529 = vsel %vm883, %v1469, 0.0
        %v1530 = vadd.f32 %v1528, %v1529
        %v1531 = vrot.slane %v1530, 4
        %v1532 = vadd.f32 %v1530, %v1531
        %v1533 = vrot.slane %v1532, 2
        %v1534 = vadd.f32 %v1532, %v1533
        %v1535 = vrot.slane %v1534, 1
        %v1536 = vadd.f32 %v1534, %v1535
        %v1537 = vmul.f32 %v1478, %v897
        %v1538 = vmul.f32 %v1487, %v897
        %v1539 = vmul.f32 %v1496, %v897
        %v1540 = vmul.f32 %v1505, %v897
        %v1541 = vmul.f32 %v1514, %v897
        %v1542 = vmul.f32 %v1523, %v897
        %v1543 = vmul.f32 %v1536, %v897
        %v1544 = vsub.f32 0.0, %v1537
        %v1545 = vsub.f32 0.0, %v1538
        %v1546 = vsub.f32 0.0, %v1539
        %v1547 = vsub.f32 0.0, %v1540
        %v1548 = vsub.f32 0.0, %v1541
        %v1549 = vsub.f32 0.0, %v1542
        %v1550 = vsub.f32 0.0, %v1543
        %v1551 = vmul.f32 %v1544, 1.442695
        %v1552 = vpow.pop %v1551
        %v1553 = vmul.f32 %v1545, 1.442695
        %v1554 = vpow.pop %v1553
        %v1555 = vmul.f32 %v1546, 1.442695
        %v1556 = vpow.pop %v1555
        %v1557 = vmul.f32 %v1547, 1.442695
        %v1558 = vpow.pop %v1557
        %v1559 = vmul.f32 %v1548, 1.442695
        %v1560 = vpow.pop %v1559
        %v1561 = vmul.f32 %v1549, 1.442695
        %v1562 = vpow.pop %v1561
        %v1563 = vmul.f32 %v1550, 1.442695
        %v1564 = vpow.pop %v1563
        %v1565 = vadd.f32 %v1552, 1.0
        %v1566 = vadd.f32 %v1554, 1.0
        %v1567 = vadd.f32 %v1556, 1.0
        %v1568 = vadd.f32 %v1558, 1.0
        %v1569 = vadd.f32 %v1560, 1.0
        %v1570 = vadd.f32 %v1562, 1.0
        %v1571 = vadd.f32 %v1564, 1.0
        %v1572 = vrcp.pop %v1565
        %v1573 = vmul.f32 1.0, %v1572
        %v1574 = vrcp.pop %v1566
        %v1575 = vmul.f32 1.0, %v1574
        %v1576 = vrcp.pop %v1567
        %v1577 = vmul.f32 1.0, %v1576
        %v1578 = vrcp.pop %v1568
        %v1579 = vmul.f32 1.0, %v1578
        %v1580 = vrcp.pop %v1569
        %v1581 = vmul.f32 1.0, %v1580
        %v1582 = vrcp.pop %v1570
        %v1583 = vmul.f32 1.0, %v1582
        %v1584 = vrcp.pop %v1571
        %v1585 = vmul.f32 1.0, %v1584
        %v1593 = vcombine.low %v1573, %v1575
        %v1594 = vcombine.low %v1577, %v1579
        %v1595 = vcombine.low %v1581, %v1583
        %v1597 = vunpack.c.l.s4 1966171168
        %v1598 = vunpack.c.0.s8 %v1597
        %v1599 = vlaneseq
        %v1600 = vshrl.u32 %v1599, 7
        %v1601 = vsub.s32 %v1598, %v1600
        %v1602 = vrot.slane %v1593, %v1601
        %v1604 = vunpack.c.l.s4 1966171168
        %v1605 = vunpack.c.0.s8 %v1604
        %v1606 = vlaneseq
        %v1607 = vshrl.u32 %v1606, 7
        %v1608 = vsub.s32 %v1605, %v1607
        %v1609 = vrot.slane %v1594, %v1608
        %v1611 = vunpack.c.l.s4 1966171168
        %v1612 = vunpack.c.0.s8 %v1611
        %v1613 = vlaneseq
        %v1614 = vshrl.u32 %v1613, 7
        %v1615 = vsub.s32 %v1612, %v1614
        %v1616 = vrot.slane %v1595, %v1615
        %v1618 = vunpack.c.l.s4 1966171168
        %v1619 = vunpack.c.0.s8 %v1618
        %v1620 = vlaneseq
        %v1621 = vshrl.u32 %v1620, 7
        %v1622 = vsub.s32 %v1619, %v1621
        %v1623 = vrot.slane %v1585, %v1622
        %v1624 = vcombine.low %v1602, %v1609
        %v1625 = vcombine.low %v1616, %v1623
        %v1627 = vunpack.c.l.s4 1966171168
        %v1628 = vunpack.c.0.s8 %v1627
        %v1629 = vlaneseq
        %v1630 = vshrl.u32 %v1629, 7
        %v1631 = vsub.s32 %v1628, %v1630
        %v1632 = vrot.slane %v1624, %v1631
        %v1634 = vunpack.c.l.s4 1966171168
        %v1635 = vunpack.c.0.s8 %v1634
        %v1636 = vlaneseq
        %v1637 = vshrl.u32 %v1636, 7
        %v1638 = vsub.s32 %v1635, %v1637
        %v1639 = vrot.slane %v1625, %v1638
        %v1640 = vcombine.low %v1632, %v1639
        %s1642 = scalar_lea.vmem %s340, 1 [#allocation2]
        %1643 = vst.msk [vmem:[%s1642] ss:$2 sm:$0x7f] %vm1006, %v1640
        %v1644 = vadd.f32 %v1442, %v1443
        %v1645 = vadd.f32 %v1644, %v1444
        %v1646 = vadd.f32 %v1645, %v1445
        %v1647 = vadd.f32 %v1646, %v1446
        %v1648 = vadd.f32 %v1647, %v1447
        %v1649 = vadd.f32 %v1648, %v1524
        %1650 = vadd.xlane.f32.xlu0 %v1649
        %v1651 = vpop.xlane.xlu0 %1650
        %v1652 = vadd.f32 %v1449, %v1450
        %v1653 = vadd.f32 %v1652, %v1451
        %v1654 = vadd.f32 %v1653, %v1452
        %v1655 = vadd.f32 %v1654, %v1453
        %v1656 = vadd.f32 %v1655, %v1454
        %v1657 = vadd.f32 %v1656, %v1525
        %1658 = vadd.xlane.f32.xlu0 %v1657
        %v1659 = vpop.xlane.xlu0 %1658
        %v1660 = vadd.f32 %v1456, %v1457
        %v1661 = vadd.f32 %v1660, %v1458
        %v1662 = vadd.f32 %v1661, %v1459
        %v1663 = vadd.f32 %v1662, %v1460
        %v1664 = vadd.f32 %v1663, %v1461
        %v1665 = vadd.f32 %v1664, %v1527
        %1666 = vadd.xlane.f32.xlu0 %v1665
        %v1667 = vpop.xlane.xlu0 %1666
        %v1668 = vadd.f32 %v1463, %v1464
        %v1669 = vadd.f32 %v1668, %v1465
        %v1670 = vadd.f32 %v1669, %v1466
        %v1671 = vadd.f32 %v1670, %v1467
        %v1672 = vadd.f32 %v1671, %v1468
        %v1673 = vadd.f32 %v1672, %v1529
        %1674 = vadd.xlane.f32.xlu0 %v1673
        %v1675 = vpop.xlane.xlu0 %1674
        %v1676 = vmax.f32 %v1442, %v1443
        %v1677 = vmax.f32 %v1676, %v1444
        %v1678 = vmax.f32 %v1677, %v1445
        %v1679 = vmax.f32 %v1678, %v1446
        %v1680 = vmax.f32 %v1679, %v1447
        %v1681 = vsel %vm883, %v1448, -inf
        %v1682 = vmax.f32 %v1680, %v1681
        %1683 = vmax.xlane.f32.xlu0 %v1682
        %v1684 = vpop.xlane.xlu0 %1683
        %v1685 = vmax.f32 %v1449, %v1450
        %v1686 = vmax.f32 %v1685, %v1451
        %v1687 = vmax.f32 %v1686, %v1452
        %v1688 = vmax.f32 %v1687, %v1453
        %v1689 = vmax.f32 %v1688, %v1454
        %v1690 = vsel %vm883, %v1455, -inf
        %v1691 = vmax.f32 %v1689, %v1690
        %1692 = vmax.xlane.f32.xlu0 %v1691
        %v1693 = vpop.xlane.xlu0 %1692
        %v1694 = vmax.f32 %v1456, %v1457
        %v1695 = vmax.f32 %v1694, %v1458
        %v1696 = vmax.f32 %v1695, %v1459
        %v1697 = vmax.f32 %v1696, %v1460
        %v1698 = vmax.f32 %v1697, %v1461
        %v1699 = vsel %vm883, %v1462, -inf
        %v1700 = vmax.f32 %v1698, %v1699
        %1701 = vmax.xlane.f32.xlu0 %v1700
        %v1702 = vpop.xlane.xlu0 %1701
        %v1703 = vmax.f32 %v1463, %v1464
        %v1704 = vmax.f32 %v1703, %v1465
        %v1705 = vmax.f32 %v1704, %v1466
        %v1706 = vmax.f32 %v1705, %v1467
        %v1707 = vmax.f32 %v1706, %v1468
        %v1708 = vsel %vm883, %v1469, -inf
        %v1709 = vmax.f32 %v1707, %v1708
        %1710 = vmax.xlane.f32.xlu0 %v1709
        %v1711 = vpop.xlane.xlu0 %1710
        %v1712 = vadd.f32 %v1015, %v1651
        %v1713 = vadd.f32 %v1023, %v1659
        %v1714 = vadd.f32 %v1031, %v1667
        %v1715 = vadd.f32 %v1039, %v1675
        %v1716 = vadd.f32 %v1048, %v1684
        %v1717 = vadd.f32 %v1057, %v1693
        %v1718 = vadd.f32 %v1066, %v1702
        %v1719 = vadd.f32 %v1075, %v1711
        %v1720 = vmul.f32 %v1712, 0.000625
        %v1721 = vmul.f32 %v1713, 0.000625
        %v1722 = vmul.f32 %v1714, 0.000625
        %v1723 = vmul.f32 %v1715, 0.000625
        %v1724 = vmul.f32 %v1716, 0.5
        %v1725 = vmul.f32 %v1717, 0.5
        %v1726 = vmul.f32 %v1718, 0.5
        %v1727 = vmul.f32 %v1719, 0.5
        %v1728 = vld [vmem:[%s3] sm:$0xff]
        %v1729 = vld [vmem:[%s3 + $0x8] sm:$0xff]
        %v1730 = vld [vmem:[%s3 + $0x10] sm:$0xff]
        %v1731 = vld [vmem:[%s3 + $0x18] sm:$0xff]
        %v1732 = vmul.f32 %v1728, %v1720
        %v1733 = vmul.f32 %v1729, %v1721
        %v1734 = vmul.f32 %v1730, %v1722
        %v1735 = vmul.f32 %v1731, %v1723
        %v1736 = vsel %vm883, %v1732, 0.0
        %v1737 = vsel %vm883, %v1733, 0.0
        %v1738 = vadd.f32 %v1736, %v1737
        %v1739 = vsel %vm883, %v1734, 0.0
        %v1740 = vadd.f32 %v1738, %v1739
        %v1741 = vsel %vm883, %v1735, 0.0
        %v1742 = vadd.f32 %v1740, %v1741
        %v1743 = vrot.slane %v1742, 4
        %v1744 = vadd.f32 %v1742, %v1743
        %v1745 = vrot.slane %v1744, 2
        %v1746 = vadd.f32 %v1744, %v1745
        %v1747 = vrot.slane %v1746, 1
        %v1748 = vadd.f32 %v1746, %v1747
        %v1749 = vld [vmem:[%s4] sm:$0x1]
        %v1750 = vadd.f32 %v1748, %v1749
        %v1751 = vmax.f32 %v1750, 0.0
        %v1752 = vld [vmem:[%s5] sm:$0xff]
        %v1753 = vld [vmem:[%s5 + $0x8] sm:$0xff]
        %v1754 = vld [vmem:[%s5 + $0x10] sm:$0xff]
        %v1755 = vld [vmem:[%s5 + $0x18] sm:$0xff]
        %v1756 = vlaneseq
        %v1757 = vshrl.u32 %v1756, 7
        %v1758 = vsub.s32 0, %v1757
        %v1759 = vrot.slane %v1751, %v1758
        %v1760 = vmul.f32 %v1752, %v1759
        %v1761 = vmul.f32 %v1753, %v1759
        %v1762 = vmul.f32 %v1754, %v1759
        %v1763 = vmul.f32 %v1755, %v1759
        %v1764 = vsel %vm883, %v1760, 0.0
        %1765 = vadd.xlane.f32.xlu0 %v1764
        %v1766 = vpop.xlane.xlu0 %1765
        %v1767 = vsel %vm883, %v1761, 0.0
        %1768 = vadd.xlane.f32.xlu0 %v1767
        %v1769 = vpop.xlane.xlu0 %1768
        %v1770 = vsel %vm883, %v1762, 0.0
        %1771 = vadd.xlane.f32.xlu0 %v1770
        %v1772 = vpop.xlane.xlu0 %1771
        %v1773 = vsel %vm883, %v1763, 0.0
        %1774 = vadd.xlane.f32.xlu0 %v1773
        %v1775 = vpop.xlane.xlu0 %1774
        %v1776 = vld [vmem:[%s6] sm:$0xff]
        %v1777 = vld [vmem:[%s6 + $0x8] sm:$0xff]
        %v1778 = vld [vmem:[%s6 + $0x10] sm:$0xff]
        %v1779 = vld [vmem:[%s6 + $0x18] sm:$0xff]
        %v1780 = vadd.f32 %v1766, %v1776
        %v1781 = vadd.f32 %v1769, %v1777
        %v1782 = vadd.f32 %v1772, %v1778
        %v1783 = vadd.f32 %v1775, %v1779
        %vm1784 = vcmask 7168
        %1785 = vst.msk [vmem:[%s350] sm:$0xff] %vm1784, %v1780
        %1786 = vst.msk [vmem:[%s350 + $0x8] sm:$0xff] %vm1784, %v1781
        %1787 = vst.msk [vmem:[%s350 + $0x10] sm:$0xff] %vm1784, %v1782
        %1788 = vst.msk [vmem:[%s350 + $0x18] sm:$0xff] %vm1784, %v1783
        %v1789 = vld [vmem:[%s3] sm:$0xff]
        %v1790 = vld [vmem:[%s3 + $0x8] sm:$0xff]
        %v1791 = vld [vmem:[%s3 + $0x10] sm:$0xff]
        %v1792 = vld [vmem:[%s3 + $0x18] sm:$0xff]
        %v1793 = vmul.f32 %v1789, %v1724
        %v1794 = vmul.f32 %v1790, %v1725
        %v1795 = vmul.f32 %v1791, %v1726
        %v1796 = vmul.f32 %v1792, %v1727
        %v1797 = vsel %vm883, %v1793, 0.0
        %v1798 = vsel %vm883, %v1794, 0.0
        %v1799 = vadd.f32 %v1797, %v1798
        %v1800 = vsel %vm883, %v1795, 0.0
        %v1801 = vadd.f32 %v1799, %v1800
        %v1802 = vsel %vm883, %v1796, 0.0
        %v1803 = vadd.f32 %v1801, %v1802
        %v1804 = vrot.slane %v1803, 4
        %v1805 = vadd.f32 %v1803, %v1804
        %v1806 = vrot.slane %v1805, 2
        %v1807 = vadd.f32 %v1805, %v1806
        %v1808 = vrot.slane %v1807, 1
        %v1809 = vadd.f32 %v1807, %v1808
        %v1810 = vld [vmem:[%s4] sm:$0x1]
        %v1811 = vadd.f32 %v1809, %v1810
        %v1812 = vmax.f32 %v1811, 0.0
        %v1813 = vld [vmem:[%s5] sm:$0xff]
        %v1814 = vld [vmem:[%s5 + $0x8] sm:$0xff]
        %v1815 = vld [vmem:[%s5 + $0x10] sm:$0xff]
        %v1816 = vld [vmem:[%s5 + $0x18] sm:$0xff]
        %v1817 = vlaneseq
        %v1818 = vshrl.u32 %v1817, 7
        %v1819 = vsub.s32 0, %v1818
        %v1820 = vrot.slane %v1812, %v1819
        %v1821 = vmul.f32 %v1813, %v1820
        %v1822 = vmul.f32 %v1814, %v1820
        %v1823 = vmul.f32 %v1815, %v1820
        %v1824 = vmul.f32 %v1816, %v1820
        %v1825 = vsel %vm883, %v1821, 0.0
        %1826 = vadd.xlane.f32.xlu0 %v1825
        %v1827 = vpop.xlane.xlu0 %1826
        %v1828 = vsel %vm883, %v1822, 0.0
        %1829 = vadd.xlane.f32.xlu0 %v1828
        %v1830 = vpop.xlane.xlu0 %1829
        %v1831 = vsel %vm883, %v1823, 0.0
        %1832 = vadd.xlane.f32.xlu0 %v1831
        %v1833 = vpop.xlane.xlu0 %1832
        %v1834 = vsel %vm883, %v1824, 0.0
        %1835 = vadd.xlane.f32.xlu0 %v1834
        %v1836 = vpop.xlane.xlu0 %1835
        %v1837 = vld [vmem:[%s6] sm:$0xff]
        %v1838 = vld [vmem:[%s6 + $0x8] sm:$0xff]
        %v1839 = vld [vmem:[%s6 + $0x10] sm:$0xff]
        %v1840 = vld [vmem:[%s6 + $0x18] sm:$0xff]
        %v1841 = vadd.f32 %v1827, %v1837
        %v1842 = vadd.f32 %v1830, %v1838
        %v1843 = vadd.f32 %v1833, %v1839
        %v1844 = vadd.f32 %v1836, %v1840
        %1845 = vst.msk [vmem:[%s355] sm:$0xff] %vm1784, %v1841
        %1846 = vst.msk [vmem:[%s355 + $0x8] sm:$0xff] %vm1784, %v1842
        %1847 = vst.msk [vmem:[%s355 + $0x10] sm:$0xff] %vm1784, %v1843
        %1848 = vst.msk [vmem:[%s355 + $0x18] sm:$0xff] %vm1784, %v1844
        %p1849 = scmp.lt.s32.totalorder %s24, 4
        %s1850 = scalar_select %p1849, %s24, 4
        %s1851 = smul.addr %s1850, 4
        %s1852 = smul.addr %s1851, 8
        %s1853 = scalar_lea.vmem %s7, %s1852
        %p1854 = scmp.lt.s32.totalorder %s24, 4
        %s1855 = scalar_select %p1854, %s24, 4
        %s1856 = smul.addr %s1855, 4
        %s1857 = smul.addr %s1856, 8
        %s1858 = scalar_lea.vmem %s8, %s1857
        %s1859 = sand.u32 %s236, 1
        %s1860 = scalar_lea.sflag [#allocation3], %s1859
        %s1861 = sand.u32 %s236, 1
        %s1862 = smul.addr %s1861, 14
        %s1863 = scalar_lea.vmem [#allocation2], %s1862
        // Predicated region
        $region49: #{forward.7} parent=47 // pred_check
          %p1864 = pneg %p194
        $region50: #{forward.7} parent=47 // pred_check_branch
          %1866 = sbr.rel (%p1864) target = $region52
        $region51: #{forward.7} parent=47 // pred_region
          _
        $region52: #{forward.7} parent=47 // pred_fallthru
          _
        // Predicated region
        $region53: #{forward.7} parent=47 // pred_check
          %p1867 = pneg %p220
        $region54: #{forward.7} parent=47 // pred_check_branch
          %1869 = sbr.rel (%p1867) target = $region56
        $region55: #{forward.7} parent=47 // pred_region
          _
        $region56: #{forward.7} parent=47 // pred_fallthru
          _
        // Predicated region
        $region57: #{forward.7} parent=47 // pred_check
          %p1870 = pneg %p246
        $region58: #{forward.7} parent=47 // pred_check_branch
          %1872 = sbr.rel (%p1870) target = $region60
        $region59: #{forward.7} parent=47 // pred_region
          %s1874 = ssub.s32 224, 224
          %1875 = vsyncadd %s1860, %s1874
          %s1876 = smul.addr %s24, 7
          %s1877 = smul.addr %s1876, 32
          %s1878 = scalar_lea.hbm %s9, %s1877
          %s1880 = sshll.u32 %s1863, 4
          %s1881 = int_to_ptr.vmem [resolvable:$true] %s1880
          %1883 = dma.vmem_to_hbm [thread:$0]  %s1881, 224, %s1878, %s1860
        $region60: #{forward.7} parent=47 // pred_fallthru
          _
      $region48: #{forward.7} parent=5 // pred_fallthru
        _
      %p1884 = scmp.le.s32.totalorder 2, %s19
      // Predicated region
      $region61: #{forward.7} parent=5 // pred_check
        %p1885 = pneg %p1884
      $region62: #{forward.7} parent=5 // pred_check_branch
        %1887 = sbr.rel (%p1885) target = $region64
      $region63: #{forward.7} parent=5 // pred_region
        %s1888 = ssub.s32 %s19, 2
        // Predicated region
        $region65: #{forward.7} parent=63 // pred_check
          %p1889 = pneg %p200
        $region66: #{forward.7} parent=63 // pred_check_branch
          %1891 = sbr.rel (%p1889) target = $region68
        $region67: #{forward.7} parent=63 // pred_region
          %p1892 = scmp.lt.s32.totalorder %s25, 4
          %s1893 = scalar_select %p1892, %s25, 4
          %s1894 = smul.addr %s1893, 4
          %s1895 = smul.addr %s1894, 8
          %s1896 = scalar_lea.vmem %s7, %s1895
        $region68: #{forward.7} parent=63 // pred_fallthru
          _
        // Predicated region
        $region69: #{forward.7} parent=63 // pred_check
          %p1897 = pneg %p226
        $region70: #{forward.7} parent=63 // pred_check_branch
          %1899 = sbr.rel (%p1897) target = $region72
        $region71: #{forward.7} parent=63 // pred_region
          %p1900 = scmp.lt.s32.totalorder %s25, 4
          %s1901 = scalar_select %p1900, %s25, 4
          %s1902 = smul.addr %s1901, 4
          %s1903 = smul.addr %s1902, 8
          %s1904 = scalar_lea.vmem %s8, %s1903
        $region72: #{forward.7} parent=63 // pred_fallthru
          _
        // Predicated region
        $region73: #{forward.7} parent=63 // pred_check
          %p1905 = pneg %p252
        $region74: #{forward.7} parent=63 // pred_check_branch
          %1907 = sbr.rel (%p1905) target = $region76
        $region75: #{forward.7} parent=63 // pred_region
          %s1908 = sand.u32 %s237, 1
          %s1909 = scalar_lea.sflag [#allocation3], %s1908
          %s1910 = sand.u32 %s237, 1
          %s1911 = smul.addr %s1910, 14
          %s1912 = scalar_lea.vmem [#allocation2], %s1911
          %1913 = dma.done %s1909, 224
        $region76: #{forward.7} parent=63 // pred_fallthru
          _
      $region64: #{forward.7} parent=5 // pred_fallthru
        _
    $region6: #{forward.7} parent=1 // loop_footer
      %s23 = sadd.s32 1, %s19
    $region7: #{forward.7} parent=1 // loop_footer_branch
      %18 = sbr.rel target = $region3
    $region8: #{forward.7} parent=1 // loop_exit
      _
    %1914 = vsyncpa [#allocation3], 1
    %s1915 = scalar_lea.sflag [#allocation3], 1
    %1916 = vsyncpa %s1915, 1

// kernel: forward.8
$region0: #{forward.8}
  #allocation0 [shape = 'u32[]', space=smem, size = 0x4, offset = 0x4, fixed_abs, tag = 'smem constant byte address 0x4 - core index']
  #allocation1 [shape = 'u32[144,128]{1,0:T(1,128)}', space=vmem, size = 0x12000, scoped, tag = 'internal scratch']
  %s0 = inlined_call_operand.vmem [shape: f32[20,32], index: 0, kind: input, shape index: {}]
  %s1 = inlined_call_operand.vmem [shape: bf16[32,1024], index: 1, kind: input, shape index: {}]
  %s2 = inlined_call_operand.vmem [shape: f32[20,1], index: 2, kind: input, shape index: {}]
  %s3 = inlined_call_operand.vmem [shape: f32[20,1024], index: 3, kind: output, shape index: {}]
  %s4 = sld [smem:[#allocation0]]
  $region22: #{forward.8} parent=0
    _
  %s6 = ssub.s32 1, %s4
  %s7 = scalar_select 0, %s6, %s4
  // Predicated region
  $region2: #{forward.8} parent=0 // pred_check
    _
  $region3: #{forward.8} parent=0 // pred_check_branch
    %9 = sbr.rel (0) target = $region5
  $region4: #{forward.8} parent=0 // pred_region
    _
  $region5: #{forward.8} parent=0 // pred_fallthru
    _
  // Predicated region
  $region6: #{forward.8} parent=0 // pred_check
    _
  $region7: #{forward.8} parent=0 // pred_check_branch
    %11 = sbr.rel (0) target = $region9
  $region8: #{forward.8} parent=0 // pred_region
    _
  $region9: #{forward.8} parent=0 // pred_fallthru
    _
  // Predicated region
  $region10: #{forward.8} parent=0 // pred_check
    _
  $region11: #{forward.8} parent=0 // pred_check_branch
    %13 = sbr.rel (0) target = $region13
  $region12: #{forward.8} parent=0 // pred_region
    _
  $region13: #{forward.8} parent=0 // pred_fallthru
    _
  %v15 = vld [vmem:[%s0] sm:$0xff]
  %v16 = vld [vmem:[%s0 + $0x8] sm:$0xff]
  %v17 = vld [vmem:[%s0 + $0x10] sm:$0xf]
  %v18 = vmul.f32 %v15, %v15
  %v19 = vmul.f32 %v16, %v16
  %v20 = vmul.f32 %v17, %v17
  %vm21 = vcmask 261120
  %v22 = vsel %vm21, %v18, 0.0
  %23 = vadd.xlane.f32.xlu0 %v22
  %v24 = vpop.xlane.xlu0 %23
  %v25 = vsel %vm21, %v19, 0.0
  %26 = vadd.xlane.f32.xlu0 %v25
  %v27 = vpop.xlane.xlu0 %26
  %vm28 = vcmask 257024
  %v29 = vsel %vm28, %v20, 0.0
  %30 = vadd.xlane.f32.xlu0 %v29
  %v31 = vpop.xlane.xlu0 %30
  %v32 = vmax.f32 %v24, 1e-24
  %v33 = vmax.f32 %v27, 1e-24
  %v34 = vmax.f32 %v31, 1e-24
  %v35 = vrsqrt.pop %v32
  %v36 = vrsqrt.pop %v33
  %v37 = vrsqrt.pop %v34
  %v38 = vmul.f32 %v15, %v35
  %v39 = vmul.f32 %v16, %v36
  %v40 = vmul.f32 %v17, %v37
  %v41 = vpack.c.bf16 %v39, %v38
  %v42 = vpack.c.bf16 %v40, %v40
  %v43 = vld [vmem:[%s1] sm:$0xff]
  %v44 = vld [vmem:[%s1 + $0x8] sm:$0xff]
  %v45 = vld [vmem:[%s1 + $0x10] sm:$0xff]
  %v46 = vld [vmem:[%s1 + $0x18] sm:$0xff]
  %v47 = vld [vmem:[%s1 + $0x20] sm:$0xff]
  %v48 = vld [vmem:[%s1 + $0x28] sm:$0xff]
  %v49 = vld [vmem:[%s1 + $0x30] sm:$0xff]
  %v50 = vld [vmem:[%s1 + $0x38] sm:$0xff]
  %v51 = vld [vmem:[%s1 + $0x40] sm:$0xff]
  %v52 = vld [vmem:[%s1 + $0x48] sm:$0xff]
  %v53 = vld [vmem:[%s1 + $0x50] sm:$0xff]
  %v54 = vld [vmem:[%s1 + $0x58] sm:$0xff]
  %v55 = vld [vmem:[%s1 + $0x60] sm:$0xff]
  %v56 = vld [vmem:[%s1 + $0x68] sm:$0xff]
  %v57 = vld [vmem:[%s1 + $0x70] sm:$0xff]
  %v58 = vld [vmem:[%s1 + $0x78] sm:$0xff]
  %v75 = vunpack.c.l.b16 %v43
  %v76 = vunpack.c.h.b16 %v43
  %v77 = vunpack.c.l.b16 %v44
  %v78 = vunpack.c.h.b16 %v44
  %v79 = vunpack.c.l.b16 %v45
  %v80 = vunpack.c.h.b16 %v45
  %v81 = vunpack.c.l.b16 %v46
  %v82 = vunpack.c.h.b16 %v46
  %v83 = vunpack.c.l.b16 %v47
  %v84 = vunpack.c.h.b16 %v47
  %v85 = vunpack.c.l.b16 %v48
  %v86 = vunpack.c.h.b16 %v48
  %v87 = vunpack.c.l.b16 %v49
  %v88 = vunpack.c.h.b16 %v49
  %v89 = vunpack.c.l.b16 %v50
  %v90 = vunpack.c.h.b16 %v50
  %v91 = vunpack.c.l.b16 %v51
  %v92 = vunpack.c.h.b16 %v51
  %v93 = vunpack.c.l.b16 %v52
  %v94 = vunpack.c.h.b16 %v52
  %v95 = vunpack.c.l.b16 %v53
  %v96 = vunpack.c.h.b16 %v53
  %v97 = vunpack.c.l.b16 %v54
  %v98 = vunpack.c.h.b16 %v54
  %v99 = vunpack.c.l.b16 %v55
  %v100 = vunpack.c.h.b16 %v55
  %v101 = vunpack.c.l.b16 %v56
  %v102 = vunpack.c.h.b16 %v56
  %v103 = vunpack.c.l.b16 %v57
  %v104 = vunpack.c.h.b16 %v57
  %v105 = vunpack.c.l.b16 %v58
  %v106 = vunpack.c.h.b16 %v58
  %v107 = vpack.c.b16 %v83, %v75
  %v108 = vpack.c.b16 %v84, %v76
  %v109 = vpack.c.b16 %v85, %v77
  %v110 = vpack.c.b16 %v86, %v78
  %v111 = vpack.c.b16 %v87, %v79
  %v112 = vpack.c.b16 %v88, %v80
  %v113 = vpack.c.b16 %v89, %v81
  %v114 = vpack.c.b16 %v90, %v82
  %v115 = vpack.c.b16 %v99, %v91
  %v116 = vpack.c.b16 %v100, %v92
  %v117 = vpack.c.b16 %v101, %v93
  %v118 = vpack.c.b16 %v102, %v94
  %v119 = vpack.c.b16 %v103, %v95
  %v120 = vpack.c.b16 %v104, %v96
  %v121 = vpack.c.b16 %v105, %v97
  %v122 = vpack.c.b16 %v106, %v98
  %v140 = vsel %vm21, %v41, 0
  %v143 = vsel %vm21, %v42, 0
  %145 = vmatprep.subr.bf16.mxu0 %v108
  %146 = vmatpush1.bf16.msra.mxu0 %v107
  %147 = vmatprep.subr.bf16.mxu0 %v116
  %148 = vmatpush1.bf16.msra.mxu0 %v115
  %149 = vmatprep.subr.bf16.mxu0 0
  %150 = vmatpush1.bf16.msra.mxu0 0
  %151 = vmatprep.subr.bf16.mxu0 0
  %152 = vmatpush1.bf16.msra.mxu0 0
  %153 = vmatprep.subr.bf16.mxu0 0
  %154 = vmatpush1.bf16.msra.mxu0 0
  %155 = vmatprep.subr.bf16.mxu0 0
  %156 = vmatpush1.bf16.msra.mxu0 0
  %157 = vmatprep.subr.bf16.mxu0 0
  %158 = vmatpush1.bf16.msra.mxu0 0
  %159 = vmatprep.subr.bf16.mxu0 0
  %160 = vmatpush1.bf16.msra.mxu0 0
  %161 = vmatprep.subr.bf16.mxu0 0
  %162 = vmatpush1.bf16.msra.mxu0 0
  %163 = vmatprep.subr.bf16.mxu0 0
  %164 = vmatpush1.bf16.msra.mxu0 0
  %165 = vmatprep.subr.bf16.mxu0 0
  %166 = vmatpush1.bf16.msra.mxu0 0
  %167 = vmatprep.subr.bf16.mxu0 0
  %168 = vmatpush1.bf16.msra.mxu0 0
  %169 = vmatprep.subr.bf16.mxu0 0
  %170 = vmatpush1.bf16.msra.mxu0 0
  %171 = vmatprep.subr.bf16.mxu0 0
  %172 = vmatpush1.bf16.msra.mxu0 0
  %173 = vmatprep.subr.bf16.mxu0 0
  %174 = vmatpush1.bf16.msra.mxu0 0
  %175 = vmatprep.subr.bf16.mxu0 0
  %176 = vmatpush1.bf16.msra.mxu0 0
  %177 = vmatprep.mubr.bf16.mxu0 0
  %178 = vmatmul.mubr.bf16.gmra.mrb[0].mxu0 %v140
  %v179 = vpop.f32.mrb[0].mxu0
  %v180 = vadd.f32 0.0, %v179
  %v181 = vpop.f32.mrb[0].mxu0
  %v182 = vadd.f32 0.0, %v181
  %v183 = vpop.f32.mrb[0].mxu0
  %v184 = vadd.f32 0.0, %v183
  %v185 = vpop.f32.mrb[0].mxu0
  %v186 = vadd.f32 0.0, %v185
  %187 = vmatprep.mubr.bf16.mxu0 0
  %188 = vmatmul.mubr.bf16.gmra.mrb[0].mxu0 %v143
  %v189 = vpop.f32.mrb[0].mxu0
  %v190 = vadd.f32 0.0, %v189
  %v191 = vpop.f32.mrb[0].mxu0
  %v192 = vadd.f32 0.0, %v191
  %v193 = vpop.f32.mrb[0].mxu0
  %v194 = vpop.f32.mrb[0].mxu0
  %195 = vdwg.mxu0
  %196 = vmatprep.subr.bf16.mxu0 %v110
  %197 = vmatpush1.bf16.msra.mxu0 %v109
  %198 = vmatprep.subr.bf16.mxu0 %v118
  %199 = vmatpush1.bf16.msra.mxu0 %v117
  %200 = vmatprep.subr.bf16.mxu0 0
  %201 = vmatpush1.bf16.msra.mxu0 0
  %202 = vmatprep.subr.bf16.mxu0 0
  %203 = vmatpush1.bf16.msra.mxu0 0
  %204 = vmatprep.subr.bf16.mxu0 0
  %205 = vmatpush1.bf16.msra.mxu0 0
  %206 = vmatprep.subr.bf16.mxu0 0
  %207 = vmatpush1.bf16.msra.mxu0 0
  %208 = vmatprep.subr.bf16.mxu0 0
  %209 = vmatpush1.bf16.msra.mxu0 0
  %210 = vmatprep.subr.bf16.mxu0 0
  %211 = vmatpush1.bf16.msra.mxu0 0
  %212 = vmatprep.subr.bf16.mxu0 0
  %213 = vmatpush1.bf16.msra.mxu0 0
  %214 = vmatprep.subr.bf16.mxu0 0
  %215 = vmatpush1.bf16.msra.mxu0 0
  %216 = vmatprep.subr.bf16.mxu0 0
  %217 = vmatpush1.bf16.msra.mxu0 0
  %218 = vmatprep.subr.bf16.mxu0 0
  %219 = vmatpush1.bf16.msra.mxu0 0
  %220 = vmatprep.subr.bf16.mxu0 0
  %221 = vmatpush1.bf16.msra.mxu0 0
  %222 = vmatprep.subr.bf16.mxu0 0
  %223 = vmatpush1.bf16.msra.mxu0 0
  %224 = vmatprep.subr.bf16.mxu0 0
  %225 = vmatpush1.bf16.msra.mxu0 0
  %226 = vmatprep.subr.bf16.mxu0 0
  %227 = vmatpush1.bf16.msra.mxu0 0
  %228 = vmatprep.mubr.bf16.mxu0 0
  %229 = vmatmul.mubr.bf16.gmra.mrb[0].mxu0 %v140
  %v230 = vpop.f32.mrb[0].mxu0
  %v231 = vadd.f32 0.0, %v230
  %v232 = vpop.f32.mrb[0].mxu0
  %v233 = vadd.f32 0.0, %v232
  %v234 = vpop.f32.mrb[0].mxu0
  %v235 = vadd.f32 0.0, %v234
  %v236 = vpop.f32.mrb[0].mxu0
  %v237 = vadd.f32 0.0, %v236
  %238 = vmatprep.mubr.bf16.mxu0 0
  %239 = vmatmul.mubr.bf16.gmra.mrb[0].mxu0 %v143
  %v240 = vpop.f32.mrb[0].mxu0
  %v241 = vadd.f32 0.0, %v240
  %v242 = vpop.f32.mrb[0].mxu0
  %v243 = vadd.f32 0.0, %v242
  %v244 = vpop.f32.mrb[0].mxu0
  %v245 = vpop.f32.mrb[0].mxu0
  %246 = vdwg.mxu0
  %247 = vmatprep.subr.bf16.mxu0 %v112
  %248 = vmatpush1.bf16.msra.mxu0 %v111
  %249 = vmatprep.subr.bf16.mxu0 %v120
  %250 = vmatpush1.bf16.msra.mxu0 %v119
  %251 = vmatprep.subr.bf16.mxu0 0
  %252 = vmatpush1.bf16.msra.mxu0 0
  %253 = vmatprep.subr.bf16.mxu0 0
  %254 = vmatpush1.bf16.msra.mxu0 0
  %255 = vmatprep.subr.bf16.mxu0 0
  %256 = vmatpush1.bf16.msra.mxu0 0
  %257 = vmatprep.subr.bf16.mxu0 0
  %258 = vmatpush1.bf16.msra.mxu0 0
  %259 = vmatprep.subr.bf16.mxu0 0
  %260 = vmatpush1.bf16.msra.mxu0 0
  %261 = vmatprep.subr.bf16.mxu0 0
  %262 = vmatpush1.bf16.msra.mxu0 0
  %263 = vmatprep.subr.bf16.mxu0 0
  %264 = vmatpush1.bf16.msra.mxu0 0
  %265 = vmatprep.subr.bf16.mxu0 0
  %266 = vmatpush1.bf16.msra.mxu0 0
  %267 = vmatprep.subr.bf16.mxu0 0
  %268 = vmatpush1.bf16.msra.mxu0 0
  %269 = vmatprep.subr.bf16.mxu0 0
  %270 = vmatpush1.bf16.msra.mxu0 0
  %271 = vmatprep.subr.bf16.mxu0 0
  %272 = vmatpush1.bf16.msra.mxu0 0
  %273 = vmatprep.subr.bf16.mxu0 0
  %274 = vmatpush1.bf16.msra.mxu0 0
  %275 = vmatprep.subr.bf16.mxu0 0
  %276 = vmatpush1.bf16.msra.mxu0 0
  %277 = vmatprep.subr.bf16.mxu0 0
  %278 = vmatpush1.bf16.msra.mxu0 0
  %279 = vmatprep.mubr.bf16.mxu0 0
  %280 = vmatmul.mubr.bf16.gmra.mrb[0].mxu0 %v140
  %v281 = vpop.f32.mrb[0].mxu0
  %v282 = vadd.f32 0.0, %v281
  %v283 = vpop.f32.mrb[0].mxu0
  %v284 = vadd.f32 0.0, %v283
  %v285 = vpop.f32.mrb[0].mxu0
  %v286 = vadd.f32 0.0, %v285
  %v287 = vpop.f32.mrb[0].mxu0
  %v288 = vadd.f32 0.0, %v287
  %289 = vmatprep.mubr.bf16.mxu0 0
  %290 = vmatmul.mubr.bf16.gmra.mrb[0].mxu0 %v143
  %v291 = vpop.f32.mrb[0].mxu0
  %v292 = vadd.f32 0.0, %v291
  %v293 = vpop.f32.mrb[0].mxu0
  %v294 = vadd.f32 0.0, %v293
  %v295 = vpop.f32.mrb[0].mxu0
  %v296 = vpop.f32.mrb[0].mxu0
  %297 = vdwg.mxu0
  %298 = vmatprep.subr.bf16.mxu0 %v114
  %299 = vmatpush1.bf16.msra.mxu0 %v113
  %300 = vmatprep.subr.bf16.mxu0 %v122
  %301 = vmatpush1.bf16.msra.mxu0 %v121
  %302 = vmatprep.subr.bf16.mxu0 0
  %303 = vmatpush1.bf16.msra.mxu0 0
  %304 = vmatprep.subr.bf16.mxu0 0
  %305 = vmatpush1.bf16.msra.mxu0 0
  %306 = vmatprep.subr.bf16.mxu0 0
  %307 = vmatpush1.bf16.msra.mxu0 0
  %308 = vmatprep.subr.bf16.mxu0 0
  %309 = vmatpush1.bf16.msra.mxu0 0
  %310 = vmatprep.subr.bf16.mxu0 0
  %311 = vmatpush1.bf16.msra.mxu0 0
  %312 = vmatprep.subr.bf16.mxu0 0
  %313 = vmatpush1.bf16.msra.mxu0 0
  %314 = vmatprep.subr.bf16.mxu0 0
  %315 = vmatpush1.bf16.msra.mxu0 0
  %316 = vmatprep.subr.bf16.mxu0 0
  %317 = vmatpush1.bf16.msra.mxu0 0
  %318 = vmatprep.subr.bf16.mxu0 0
  %319 = vmatpush1.bf16.msra.mxu0 0
  %320 = vmatprep.subr.bf16.mxu0 0
  %321 = vmatpush1.bf16.msra.mxu0 0
  %322 = vmatprep.subr.bf16.mxu0 0
  %323 = vmatpush1.bf16.msra.mxu0 0
  %324 = vmatprep.subr.bf16.mxu0 0
  %325 = vmatpush1.bf16.msra.mxu0 0
  %326 = vmatprep.subr.bf16.mxu0 0
  %327 = vmatpush1.bf16.msra.mxu0 0
  %328 = vmatprep.subr.bf16.mxu0 0
  %329 = vmatpush1.bf16.msra.mxu0 0
  %330 = vmatprep.mubr.bf16.mxu0 0
  %331 = vmatmul.mubr.bf16.gmra.mrb[0].mxu0 %v140
  %v332 = vpop.f32.mrb[0].mxu0
  %v333 = vadd.f32 0.0, %v332
  %v334 = vpop.f32.mrb[0].mxu0
  %v335 = vadd.f32 0.0, %v334
  %v336 = vpop.f32.mrb[0].mxu0
  %v337 = vadd.f32 0.0, %v336
  %v338 = vpop.f32.mrb[0].mxu0
  %v339 = vadd.f32 0.0, %v338
  %340 = vmatprep.mubr.bf16.mxu0 0
  %341 = vmatmul.mubr.bf16.gmra.mrb[0].mxu0 %v143
  %v342 = vpop.f32.mrb[0].mxu0
  %v343 = vadd.f32 0.0, %v342
  %v344 = vpop.f32.mrb[0].mxu0
  %v345 = vadd.f32 0.0, %v344
  %v346 = vpop.f32.mrb[0].mxu0
  %v347 = vpop.f32.mrb[0].mxu0
  %348 = vdwg.mxu0
  %v349 = vld [vmem:[%s2] sm:$0xff]
  %v350 = vld [vmem:[%s2 + $0x8] sm:$0xff]
  %v351 = vld [vmem:[%s2 + $0x10] sm:$0xf]
  %vm352 = vcmp.gt.f32.partialorder %v349, 0.5
  %vm353 = vcmp.gt.f32.partialorder %v350, 0.5
  %vm354 = vcmp.gt.f32.partialorder %v351, 0.5
  %v355 = vmul.f32 %v180, %v180
  %v356 = vmul.f32 %v182, %v182
  %v357 = vmul.f32 %v231, %v231
  %v358 = vmul.f32 %v233, %v233
  %v359 = vmul.f32 %v282, %v282
  %v360 = vmul.f32 %v284, %v284
  %v361 = vmul.f32 %v333, %v333
  %v362 = vmul.f32 %v335, %v335
  %v363 = vmul.f32 %v184, %v184
  %v364 = vmul.f32 %v186, %v186
  %v365 = vmul.f32 %v235, %v235
  %v366 = vmul.f32 %v237, %v237
  %v367 = vmul.f32 %v286, %v286
  %v368 = vmul.f32 %v288, %v288
  %v369 = vmul.f32 %v337, %v337
  %v370 = vmul.f32 %v339, %v339
  %v371 = vmul.f32 %v190, %v190
  %v372 = vmul.f32 %v192, %v192
  %v373 = vmul.f32 %v241, %v241
  %v374 = vmul.f32 %v243, %v243
  %v375 = vmul.f32 %v292, %v292
  %v376 = vmul.f32 %v294, %v294
  %v377 = vmul.f32 %v343, %v343
  %v378 = vmul.f32 %v345, %v345
  %v379 = vsel %vm352, 1, 0
  %v380 = vsel %vm353, 1, 0
  %v381 = vsel %vm354, 1, 0
  %382 = vset.pattern.permute.xlu0 0
  %383 = vperm.xlu0 %382, %v379
  %v384 = vpop.permute.xlu0 %383
  %385 = vset.pattern.permute.xlu0 0
  %386 = vperm.xlu0 %385, %v380
  %v387 = vpop.permute.xlu0 %386
  %388 = vset.pattern.permute.xlu0 0
  %389 = vperm.xlu0 %388, %v381
  %v390 = vpop.permute.xlu0 %389
  %vm391 = vcmp.eq.s32.totalorder %v384, 1
  %vm392 = vcmp.eq.s32.totalorder %v387, 1
  %vm393 = vcmp.eq.s32.totalorder %v390, 1
  %v394 = vsel %vm391, %v355, %v180
  %v395 = vsel %vm391, %v356, %v182
  %v396 = vsel %vm391, %v357, %v231
  %v397 = vsel %vm391, %v358, %v233
  %v398 = vsel %vm391, %v359, %v282
  %v399 = vsel %vm391, %v360, %v284
  %v400 = vsel %vm391, %v361, %v333
  %v401 = vsel %vm391, %v362, %v335
  %v402 = vsel %vm392, %v363, %v184
  %v403 = vsel %vm392, %v364, %v186
  %v404 = vsel %vm392, %v365, %v235
  %v405 = vsel %vm392, %v366, %v237
  %v406 = vsel %vm392, %v367, %v286
  %v407 = vsel %vm392, %v368, %v288
  %v408 = vsel %vm392, %v369, %v337
  %v409 = vsel %vm392, %v370, %v339
  %v410 = vsel %vm393, %v371, %v190
  %v411 = vsel %vm393, %v372, %v192
  %v412 = vsel %vm393, %v373, %v241
  %v413 = vsel %vm393, %v374, %v243
  %v414 = vsel %vm393, %v375, %v292
  %v415 = vsel %vm393, %v376, %v294
  %v416 = vsel %vm393, %v377, %v343
  %v417 = vsel %vm393, %v378, %v345
  %418 = vst [vmem:[%s3] sm:$0xff] %v394
  %419 = vst [vmem:[%s3 + $0x8] sm:$0xff] %v395
  %420 = vst [vmem:[%s3 + $0x10] sm:$0xff] %v396
  %421 = vst [vmem:[%s3 + $0x18] sm:$0xff] %v397
  %422 = vst [vmem:[%s3 + $0x20] sm:$0xff] %v398
  %423 = vst [vmem:[%s3 + $0x28] sm:$0xff] %v399
  %424 = vst [vmem:[%s3 + $0x30] sm:$0xff] %v400
  %425 = vst [vmem:[%s3 + $0x38] sm:$0xff] %v401
  %426 = vst [vmem:[%s3 + $0x40] sm:$0xff] %v402
  %427 = vst [vmem:[%s3 + $0x48] sm:$0xff] %v403
  %428 = vst [vmem:[%s3 + $0x50] sm:$0xff] %v404
  %429 = vst [vmem:[%s3 + $0x58] sm:$0xff] %v405
  %430 = vst [vmem:[%s3 + $0x60] sm:$0xff] %v406
  %431 = vst [vmem:[%s3 + $0x68] sm:$0xff] %v407
  %432 = vst [vmem:[%s3 + $0x70] sm:$0xff] %v408
  %433 = vst [vmem:[%s3 + $0x78] sm:$0xff] %v409
  %434 = vst [vmem:[%s3 + $0x80] sm:$0xf] %v410
  %435 = vst [vmem:[%s3 + $0x88] sm:$0xf] %v411
  %436 = vst [vmem:[%s3 + $0x90] sm:$0xf] %v412
  %437 = vst [vmem:[%s3 + $0x98] sm:$0xf] %v413
  %438 = vst [vmem:[%s3 + $0xa0] sm:$0xf] %v414
  %439 = vst [vmem:[%s3 + $0xa8] sm:$0xf] %v415
  %440 = vst [vmem:[%s3 + $0xb0] sm:$0xf] %v416
  %441 = vst [vmem:[%s3 + $0xb8] sm:$0xf] %v417
  // Predicated region
  $region14: #{forward.8} parent=0 // pred_check
    _
  $region15: #{forward.8} parent=0 // pred_check_branch
    %443 = sbr.rel (0) target = $region17
  $region16: #{forward.8} parent=0 // pred_region
    _
  $region17: #{forward.8} parent=0 // pred_fallthru
    _
  // Predicated region
  $region18: #{forward.8} parent=0 // pred_check
    _
  $region19: #{forward.8} parent=0 // pred_check_branch
    %445 = sbr.rel (0) target = $region21
  $region20: #{forward.8} parent=0 // pred_region
    _
  $region21: #{forward.8} parent=0 // pred_fallthru
    _

// kernel: forward.9
$region0: #{forward.9}
  #allocation0 [shape = 'u32[]', space=smem, size = 0x4, offset = 0x4, fixed_abs, tag = 'smem constant byte address 0x4 - core index']
  #allocation1 [shape = 'u32[144,128]{1,0:T(1,128)}', space=vmem, size = 0x12000, scoped, tag = 'internal scratch']
  %s0 = inlined_call_operand.vmem [shape: f32[12,256], index: 0, kind: input, shape index: {}]
  %s1 = inlined_call_operand.vmem [shape: f32[12,256], index: 1, kind: input, shape index: {}]
  %s2 = inlined_call_operand.hbm [shape: f32[1,1], index: 2, kind: output, shape index: {}]
  %s3 = sld [smem:[#allocation0]]
  $region18: #{forward.9} parent=0
    _
  %s5 = ssub.s32 1, %s3
  %s6 = scalar_select 0, %s5, %s3
  $region1: #{forward.9} parent=0
    #allocation2 [shape = 'u8[512]{0}', space=vmem, size = 0x400, scoped, tag = 'output window, operand 0, single buffered']
    #allocation3 [shape = 's32[1]{0}', space=sflag, size = 0x4, scoped, tag = 'scoped memory for forward.9']
    %7 = vsyncpa [#allocation3], 0
    // Predicated region
    $region2: #{forward.9} parent=1 // pred_check
      _
    $region3: #{forward.9} parent=1 // pred_check_branch
      %9 = sbr.rel (0) target = $region5
    $region4: #{forward.9} parent=1 // pred_region
      _
    $region5: #{forward.9} parent=1 // pred_fallthru
      _
    // Predicated region
    $region6: #{forward.9} parent=1 // pred_check
      _
    $region7: #{forward.9} parent=1 // pred_check_branch
      %11 = sbr.rel (0) target = $region9
    $region8: #{forward.9} parent=1 // pred_region
      _
    $region9: #{forward.9} parent=1 // pred_fallthru
      _
    %v12 = vld [vmem:[%s0] sm:$0xff]
    %v13 = vld [vmem:[%s0 + $0x8] sm:$0xff]
    %v14 = vld [vmem:[%s0 + $0x10] sm:$0xf]
    %v15 = vld [vmem:[%s0 + $0x18] sm:$0xf]
    %v16 = vmul.f32 %v12, 10.0
    %v17 = vmul.f32 %v13, 10.0
    %v18 = vmul.f32 %v14, 10.0
    %v19 = vmul.f32 %v15, 10.0
    %v20 = vld [vmem:[%s1] sm:$0xff]
    %v21 = vld [vmem:[%s1 + $0x8] sm:$0xff]
    %v22 = vld [vmem:[%s1 + $0x10] sm:$0xf]
    %v23 = vld [vmem:[%s1 + $0x18] sm:$0xf]
    %v24 = vmul.f32 %v20, 25.0
    %v25 = vmul.f32 %v21, 25.0
    %v26 = vmul.f32 %v22, 25.0
    %v27 = vmul.f32 %v23, 25.0
    %v28 = vmax.f32 %v16, %v17
    %29 = vmax.xlane.f32.xlu0 %v28
    %v30 = vpop.xlane.xlu0 %29
    %vm31 = vcmask 1043456
    %v32 = vsel %vm31, %v18, -inf
    %v33 = vsel %vm31, %v19, -inf
    %v34 = vmax.f32 %v32, %v33
    %35 = vmax.xlane.f32.xlu0 %v34
    %v36 = vpop.xlane.xlu0 %35
    %v37 = vsub.f32 %v16, %v30
    %v38 = vsub.f32 %v17, %v30
    %v39 = vsub.f32 %v18, %v36
    %v40 = vsub.f32 %v19, %v36
    %v41 = vmul.f32 %v37, 1.442695
    %v42 = vpow.pop %v41
    %v43 = vmul.f32 %v38, 1.442695
    %v44 = vpow.pop %v43
    %v45 = vmul.f32 %v39, 1.442695
    %v46 = vpow.pop %v45
    %v47 = vmul.f32 %v40, 1.442695
    %v48 = vpow.pop %v47
    %v49 = vadd.f32 %v42, %v44
    %50 = vadd.xlane.f32.xlu0 %v49
    %v51 = vpop.xlane.xlu0 %50
    %v52 = vsel %vm31, %v46, 0.0
    %v53 = vsel %vm31, %v48, 0.0
    %v54 = vadd.f32 %v52, %v53
    %55 = vadd.xlane.f32.xlu0 %v54
    %v56 = vpop.xlane.xlu0 %55
    %v57 = vlog2.pop %v51
    %v58 = vmul.f32 %v57, 0.6931472
    %v59 = vlog2.pop %v56
    %v60 = vmul.f32 %v59, 0.6931472
    %v61 = vsub.f32 %v37, %v58
    %v62 = vsub.f32 %v38, %v58
    %v63 = vsub.f32 %v39, %v60
    %v64 = vsub.f32 %v40, %v60
    %v65 = vmax.f32 %v24, %v25
    %66 = vmax.xlane.f32.xlu0 %v65
    %v67 = vpop.xlane.xlu0 %66
    %v68 = vsel %vm31, %v26, -inf
    %v69 = vsel %vm31, %v27, -inf
    %v70 = vmax.f32 %v68, %v69
    %71 = vmax.xlane.f32.xlu0 %v70
    %v72 = vpop.xlane.xlu0 %71
    %v73 = vsub.f32 %v24, %v67
    %v74 = vsub.f32 %v25, %v67
    %v75 = vsub.f32 %v26, %v72
    %v76 = vsub.f32 %v27, %v72
    %v77 = vmul.f32 %v73, 1.442695
    %v78 = vpow.pop %v77
    %v79 = vmul.f32 %v74, 1.442695
    %v80 = vpow.pop %v79
    %v81 = vmul.f32 %v75, 1.442695
    %v82 = vpow.pop %v81
    %v83 = vmul.f32 %v76, 1.442695
    %v84 = vpow.pop %v83
    %v85 = vadd.f32 %v78, %v80
    %86 = vadd.xlane.f32.xlu0 %v85
    %v87 = vpop.xlane.xlu0 %86
    %v88 = vsel %vm31, %v82, 0.0
    %v89 = vsel %vm31, %v84, 0.0
    %v90 = vadd.f32 %v88, %v89
    %91 = vadd.xlane.f32.xlu0 %v90
    %v92 = vpop.xlane.xlu0 %91
    %v93 = vlog2.pop %v87
    %v94 = vmul.f32 %v93, 0.6931472
    %v95 = vlog2.pop %v92
    %v96 = vmul.f32 %v95, 0.6931472
    %v97 = vsub.f32 %v73, %v94
    %v98 = vsub.f32 %v74, %v94
    %v99 = vsub.f32 %v75, %v96
    %v100 = vsub.f32 %v76, %v96
    %v101 = vmul.f32 %v97, 1.442695
    %v102 = vpow.pop %v101
    %v103 = vmul.f32 %v98, 1.442695
    %v104 = vpow.pop %v103
    %v105 = vmul.f32 %v99, 1.442695
    %v106 = vpow.pop %v105
    %v107 = vmul.f32 %v100, 1.442695
    %v108 = vpow.pop %v107
    %v109 = vsub.f32 %v97, %v61
    %v110 = vsub.f32 %v98, %v62
    %v111 = vsub.f32 %v99, %v63
    %v112 = vsub.f32 %v100, %v64
    %v113 = vmul.f32 %v102, %v109
    %v114 = vmul.f32 %v104, %v110
    %v115 = vmul.f32 %v106, %v111
    %v116 = vmul.f32 %v108, %v112
    %v117 = vadd.f32 %v113, %v114
    %118 = vadd.xlane.f32.xlu0 %v117
    %v119 = vpop.xlane.xlu0 %118
    %v120 = vsel %vm31, %v115, 0.0
    %v121 = vsel %vm31, %v116, 0.0
    %v122 = vadd.f32 %v120, %v121
    %123 = vadd.xlane.f32.xlu0 %v122
    %v124 = vpop.xlane.xlu0 %123
    %v125 = vsel %vm31, %v124, 0.0
    %v126 = vadd.f32 %v119, %v125
    %v127 = vrot.slane %v126, 4
    %v128 = vadd.f32 %v126, %v127
    %v129 = vrot.slane %v128, 2
    %v130 = vadd.f32 %v128, %v129
    %v131 = vrot.slane %v130, 1
    %v132 = vadd.f32 %v130, %v131
    %v133 = vmul.f32 %v132, 0.25
    %vm134 = vcmask 0
    %135 = vst.msk [vmem:[#allocation2] sm:$0x1] %vm134, %v133
    // Predicated region
    $region10: #{forward.9} parent=1 // pred_check
      _
    $region11: #{forward.9} parent=1 // pred_check_branch
      %137 = sbr.rel (0) target = $region13
    $region12: #{forward.9} parent=1 // pred_region
      %s139 = ssub.s32 16, 16
      %140 = vsyncadd [#allocation3], %s139
      %s142 = sshll.u32 [#allocation2], 4
      %s143 = int_to_ptr.vmem [resolvable:$true] %s142
      %145 = dma.vmem_to_hbm [thread:$0]  %s143, 16, %s2, [#allocation3]
    $region13: #{forward.9} parent=1 // pred_fallthru
      _
    // Predicated region
    $region14: #{forward.9} parent=1 // pred_check
      _
    $region15: #{forward.9} parent=1 // pred_check_branch
      %147 = sbr.rel (0) target = $region17
    $region16: #{forward.9} parent=1 // pred_region
      %148 = dma.done [#allocation3], 16
    $region17: #{forward.9} parent=1 // pred_fallthru
      _
    %149 = vsyncpa [#allocation3], 1

</llo_original>
